<compile_context>
chip_gen: v5e
topology: v5e:2x2
jax: 0.10.0
libtpu: 0.0.40
codegen_flags: <defaults>
</compile_context>

<pallas_src>
import math

import jax
import jax.numpy as jnp
from jax.experimental import pallas as pl
from jax.experimental.pallas import tpu as pltpu

N_CH = 128          # conv channels = transformer "batch" axis N
E = 128             # d_model
NHEAD = 8
DH = E // NHEAD     # head dim
FF_TILE = 256       # feed-forward hidden-dim chunk (bounds vreg pressure)
LN_EPS = 1e-5


def _fused_kernel(patches_ref, wc_ref, bc_ref, wp_ref, bp_ref, mask_ref,
                  wf_ref, bf_ref,
                  wqkv_ref, bqkv_ref, wo_ref, bo_ref,
                  w1_ref, b1_ref, w2_ref, b2_ref,
                  g1_ref, be1_ref, g2_ref, be2_ref,
                  out_ref, h_scr, qkv_scr):
    layer = pl.program_id(0)
    SN = h_scr.shape[0]
    S = SN // N_CH                       # image batch = transformer sequence length
    HW = patches_ref.shape[1] // S       # spatial positions per image (= 256)

    # ---------- layer-0 preamble: conv1 (im2col matmul) + projection Linear(256 -> 128) ----------
    @pl.when(layer == 0)
    def _():
        for b in range(S):
            # (128 out_ch, 32) @ (32, 256 spatial) -> (channels, spatial); pool(16,16) is identity.
            conv_b = (jnp.dot(wc_ref[...], patches_ref[:, b * HW:(b + 1) * HW],
                              preferred_element_type=jnp.float32)
                      + bc_ref[...])
            # projection contracts the spatial axis: (128 ch, 256) @ (256, 128 d_model)
            proj_b = (jnp.dot(conv_b.astype(jnp.bfloat16), wp_ref[...],
                              preferred_element_type=jnp.float32)
                      + bp_ref[...])
            h_scr[b * N_CH:(b + 1) * N_CH, :] = proj_b

    # ---------- fused QKV projection, batched over all S*N rows ----------
    qkv_scr[...] = (jnp.dot(h_scr[...].astype(jnp.bfloat16), wqkv_ref[0],
                            preferred_element_type=jnp.float32)
                    + bqkv_ref[0])

    # ---------- self-attention: per-head softmax over the S axis ----------
    attn_rows = []
    for i in range(S):
        q_i = qkv_scr[i * N_CH:(i + 1) * N_CH, 0:E]          # scale already folded into Wq/bq
        scores = [
            jnp.dot(q_i * qkv_scr[j * N_CH:(j + 1) * N_CH, E:2 * E], mask_ref[...],
                    preferred_element_type=jnp.float32)      # (N, E): head scores, lane-broadcast
            for j in range(S)
        ]
        m = scores[0]
        for s in scores[1:]:
            m = jnp.maximum(m, s)
        exps = [jnp.exp(s - m) for s in scores]
        denom = exps[0]
        for e_ in exps[1:]:
            denom = denom + e_
        inv = pl.reciprocal(denom, approx=True)
        attn = (exps[0] * inv) * qkv_scr[0:N_CH, 2 * E:3 * E]
        for j in range(1, S):
            attn = attn + (exps[j] * inv) * qkv_scr[j * N_CH:(j + 1) * N_CH, 2 * E:3 * E]
        attn_rows.append(attn.astype(jnp.bfloat16))
    attn_all = jnp.concatenate(attn_rows, axis=0)            # (S*N, E) bf16

    # out-proj (batched over S) + residual + LayerNorm1 (post-norm; dropout = identity)
    o_all = jnp.dot(attn_all, wo_ref[0], preferred_element_type=jnp.float32) + bo_ref[0]
    y = h_scr[...] + o_all
    mu = jnp.mean(y, axis=-1, keepdims=True)
    yc = y - mu
    var = jnp.mean(yc * yc, axis=-1, keepdims=True)
    h_scr[...] = yc * jax.lax.rsqrt(var + LN_EPS) * g1_ref[0] + be1_ref[0]

    # ---------- feed-forward (Linear -> ReLU -> Linear), batched over S*N, chunked over 2048 ----------
    yn_bf = h_scr[...].astype(jnp.bfloat16)
    ff_dim = w1_ref.shape[2]
    acc = jnp.zeros((SN, E), jnp.float32)
    for t in range(ff_dim // FF_TILE):
        lo = t * FF_TILE
        h1 = (jnp.dot(yn_bf, w1_ref[0, :, lo:lo + FF_TILE], preferred_element_type=jnp.float32)
              + b1_ref[0, :, lo:lo + FF_TILE])
        h1 = jnp.maximum(h1, 0.0).astype(jnp.bfloat16)
        acc = acc + jnp.dot(h1, w2_ref[0, lo:lo + FF_TILE, :], preferred_element_type=jnp.float32)

    # residual + LayerNorm2
    y2 = h_scr[...] + acc + b2_ref[0]
    mu2 = jnp.mean(y2, axis=-1, keepdims=True)
    yc2 = y2 - mu2
    var2 = jnp.mean(yc2 * yc2, axis=-1, keepdims=True)
    h_scr[...] = yc2 * jax.lax.rsqrt(var2 + LN_EPS) * g2_ref[0] + be2_ref[0]

    # ---------- last-layer epilogue: mean over dim=1 (channels) + fc (output padded to 128 lanes) ----------
    @pl.when(layer == pl.num_programs(0) - 1)
    def _():
        h_out = h_scr[...]
        means = [jnp.sum(h_out[b * N_CH:(b + 1) * N_CH, :], axis=0, keepdims=True) * (1.0 / N_CH)
                 for b in range(S)]
        fc_in = jnp.concatenate(means, axis=0)               # (B, E)
        out_ref[...] = (jnp.dot(fc_in, wf_ref[...], preferred_element_type=jnp.float32)
                        + bf_ref[...])


def _const_spec(arr):
    zeros = (0,) * arr.ndim
    return pl.BlockSpec(tuple(arr.shape), lambda l: zeros)


def _layer_spec(arr):
    trailing = (0,) * (arr.ndim - 1)
    return pl.BlockSpec((1,) + tuple(arr.shape[1:]), lambda l: (l,) + trailing)


def init_params(key):
    ks = jax.random.split(key, 32)

    def rnd(k, shape, scale=0.05):
        return jax.random.normal(k, shape, dtype=jnp.float32) * scale

    params = {
        "conv_w": rnd(ks[0], (128, 3, 3, 3)),
        "conv_b": rnd(ks[1], (128,)),
        "proj_w": rnd(ks[2], (128, 256)),
        "proj_b": rnd(ks[3], (128,)),
        "fc_w": rnd(ks[4], (2, 128)),
        "fc_b": rnd(ks[5], (2,)),
        "layers": [],
    }
    idx = 6
    for _ in range(2):
        params["layers"].append(dict(
            in_proj_w=rnd(ks[idx + 0], (384, 128)),
            in_proj_b=rnd(ks[idx + 1], (384,)),
            out_proj_w=rnd(ks[idx + 2], (128, 128)),
            out_proj_b=rnd(ks[idx + 3], (128,)),
            lin1_w=rnd(ks[idx + 4], (2048, 128)),
            lin1_b=rnd(ks[idx + 5], (2048,)),
            lin2_w=rnd(ks[idx + 6], (128, 2048)),
            lin2_b=rnd(ks[idx + 7], (128,)),
            ln1_g=jnp.ones((128,), jnp.float32),
            ln1_b=jnp.zeros((128,), jnp.float32),
            ln2_g=jnp.ones((128,), jnp.float32),
            ln2_b=jnp.zeros((128,), jnp.float32),
        ))
        idx += 8
    return params


def forward(params, x):
    B, C, Hin, Win = x.shape
    if (Hin, Win) != (16, 16):
        # TODO(synk): AdaptiveAvgPool2d for spatial sizes other than 16x16 not implemented.
        raise NotImplementedError("fused kernel assumes 16x16 feature maps (pool is identity)")

    n_layers = len(params["layers"])
    n_out = params["fc_b"].shape[0]
    scale = 1.0 / math.sqrt(DH)
    kdim = C * 9

    # im2col for conv1 (3x3, stride 1, pad 1), pre-transposed: rows (c_in, ky, kx) padded 27->32,
    # columns (b, y, x).  Keeps both the conv and the projection as plain NN matmuls in-kernel.
    xpad = jnp.pad(x, ((0, 0), (0, 0), (1, 1), (1, 1)))
    patches = jnp.stack(
        [xpad[:, :, dy:dy + Hin, dx:dx + Win] for dy in range(3) for dx in range(3)], axis=2
    )                                                        # (B, C, 9, H, W)
    patches = patches.transpose(1, 2, 0, 3, 4).reshape(kdim, B * Hin * Win)
    patches = jnp.pad(patches, ((0, 32 - kdim), (0, 0))).astype(jnp.bfloat16)

    wc = jnp.pad(params["conv_w"].reshape(N_CH, kdim), ((0, 0), (0, 32 - kdim))).astype(jnp.bfloat16)
    bc = params["conv_b"].reshape(N_CH, 1)
    wp = params["proj_w"].T.astype(jnp.bfloat16)             # (256, 128)
    bp = params["proj_b"].reshape(1, E)

    head = jnp.arange(E) // DH
    mask = (head[:, None] == head[None, :]).astype(jnp.float32)   # (E, E) block-diagonal head mask

    wf = jnp.pad(params["fc_w"].T, ((0, 0), (0, N_CH - n_out)))   # (128, 128): lane-dense fc output
    bf = jnp.pad(params["fc_b"], (0, N_CH - n_out)).reshape(1, N_CH)

    def prep(lyr):
        wq = lyr["in_proj_w"][:E].T * scale                  # fold 1/sqrt(head_dim) into Wq / bq
        wk = lyr["in_proj_w"][E:2 * E].T
        wv = lyr["in_proj_w"][2 * E:].T
        bq = lyr["in_proj_b"][:E] * scale
        return dict(
            wqkv=jnp.concatenate([wq, wk, wv], axis=1),      # (128, 384) fused QKV weight
            bqkv=jnp.concatenate(
                [bq, lyr["in_proj_b"][E:2 * E], lyr["in_proj_b"][2 * E:]]).reshape(1, 3 * E),
            wo=lyr["out_proj_w"].T, bo=lyr["out_proj_b"].reshape(1, E),
            w1=lyr["lin1_w"].T, b1=lyr["lin1_b"].reshape(1, -1),
            w2=lyr["lin2_w"].T, b2=lyr["lin2_b"].reshape(1, E),
            g1=lyr["ln1_g"].reshape(1, E), be1=lyr["ln1_b"].reshape(1, E),
            g2=lyr["ln2_g"].reshape(1, E), be2=lyr["ln2_b"].reshape(1, E),
        )

    preps = [prep(lyr) for lyr in params["layers"]]

    def stack(name, dtype=None):
        arr = jnp.stack([p[name] for p in preps])
        return arr.astype(dtype) if dtype is not None else arr

    wqkv, bqkv = stack("wqkv", jnp.bfloat16), stack("bqkv")
    wo, bo = stack("wo", jnp.bfloat16), stack("bo")
    w1, b1 = stack("w1", jnp.bfloat16), stack("b1")
    w2, b2 = stack("w2", jnp.bfloat16), stack("b2")
    g1, be1, g2, be2 = stack("g1"), stack("be1"), stack("g2"), stack("be2")

    const_args = (patches, wc, bc, wp, bp, mask, wf, bf)
    layer_args = (wqkv, bqkv, wo, bo, w1, b1, w2, b2, g1, be1, g2, be2)

    out = pl.pallas_call(
        _fused_kernel,
        out_shape=jax.ShapeDtypeStruct((B, N_CH), jnp.float32),
        grid=(n_layers,),
        in_specs=[_const_spec(a) for a in const_args] + [_layer_spec(a) for a in layer_args],
        out_specs=pl.BlockSpec((B, N_CH), lambda l: (0, 0)),
        scratch_shapes=[
            pltpu.VMEM((B * N_CH, E), jnp.float32),          # activations, resident across layers
            pltpu.VMEM((B * N_CH, 3 * E), jnp.float32),      # fused Q|K|V of the current layer
        ],
        compiler_params=pltpu.CompilerParams(
            dimension_semantics=("arbitrary",),
            vmem_limit_bytes=16 * 1024 * 1024,               # real footprint ~4 MiB; v5e/v6e/v7x-safe
        ),
    )(*const_args, *layer_args)

    return out[:, :n_out]


if __name__ == "__main__":
    key = jax.random.PRNGKey(0)
    k_param, k_x = jax.random.split(key)
    params = init_params(k_param)
    x = jax.random.normal(k_x, (2, 3, 16, 16), dtype=jnp.float32)

    out = jax.jit(forward)(params, x)
    out = jax.block_until_ready(out)
    assert out.shape == (2, 2) and out.dtype == jnp.float32
    print("KERNEL_OK")
</pallas_src>

<mosaic_0001>
module attributes {stable_mosaic.version = 11 : i64} {
  func.func @_fused_kernel(%arg0: i32, %arg1: memref<32x512xbf16, #tpu.memory_space<vmem>>, %arg2: memref<128x32xbf16, #tpu.memory_space<vmem>>, %arg3: memref<128x1xf32, #tpu.memory_space<vmem>>, %arg4: memref<256x128xbf16, #tpu.memory_space<vmem>>, %arg5: memref<1x128xf32, #tpu.memory_space<vmem>>, %arg6: memref<128x128xf32, #tpu.memory_space<vmem>>, %arg7: memref<128x128xf32, #tpu.memory_space<vmem>>, %arg8: memref<1x128xf32, #tpu.memory_space<vmem>>, %arg9: memref<1x128x384xbf16, #tpu.memory_space<vmem>>, %arg10: memref<1x1x384xf32, #tpu.memory_space<vmem>>, %arg11: memref<1x128x128xbf16, #tpu.memory_space<vmem>>, %arg12: memref<1x1x128xf32, #tpu.memory_space<vmem>>, %arg13: memref<1x128x2048xbf16, #tpu.memory_space<vmem>>, %arg14: memref<1x1x2048xf32, #tpu.memory_space<vmem>>, %arg15: memref<1x2048x128xbf16, #tpu.memory_space<vmem>>, %arg16: memref<1x1x128xf32, #tpu.memory_space<vmem>>, %arg17: memref<1x1x128xf32, #tpu.memory_space<vmem>>, %arg18: memref<1x1x128xf32, #tpu.memory_space<vmem>>, %arg19: memref<1x1x128xf32, #tpu.memory_space<vmem>>, %arg20: memref<1x1x128xf32, #tpu.memory_space<vmem>>, %arg21: memref<2x128xf32, #tpu.memory_space<vmem>>, %arg22: memref<256x128xf32, #tpu.memory_space<vmem>>, %arg23: memref<256x384xf32, #tpu.memory_space<vmem>>) attributes {dimension_semantics = [#tpu.dimension_semantics<arbitrary>], iteration_bounds = array<i64: 2>, scalar_prefetch = 0 : i64, scratch_operands = 2 : i64, tpu.core_type = #tpu.core_type<tc>, window_params = [{pipeline_mode = #tpu.pipeline_mode<synchronous>, transform_indices = @transform_0, window_bounds = array<i64: 32, 512>}, {pipeline_mode = #tpu.pipeline_mode<synchronous>, transform_indices = @transform_1, window_bounds = array<i64: 128, 32>}, {pipeline_mode = #tpu.pipeline_mode<synchronous>, transform_indices = @transform_2, window_bounds = array<i64: 128, 1>}, {pipeline_mode = #tpu.pipeline_mode<synchronous>, transform_indices = @transform_3, window_bounds = array<i64: 256, 128>}, {pipeline_mode = #tpu.pipeline_mode<synchronous>, transform_indices = @transform_4, window_bounds = array<i64: 1, 128>}, {pipeline_mode = #tpu.pipeline_mode<synchronous>, transform_indices = @transform_5, window_bounds = array<i64: 128, 128>}, {pipeline_mode = #tpu.pipeline_mode<synchronous>, transform_indices = @transform_6, window_bounds = array<i64: 128, 128>}, {pipeline_mode = #tpu.pipeline_mode<synchronous>, transform_indices = @transform_7, window_bounds = array<i64: 1, 128>}, {transform_indices = @transform_8, window_bounds = array<i64: 1, 128, 384>}, {transform_indices = @transform_9, window_bounds = array<i64: 1, 1, 384>}, {transform_indices = @transform_10, window_bounds = array<i64: 1, 128, 128>}, {transform_indices = @transform_11, window_bounds = array<i64: 1, 1, 128>}, {transform_indices = @transform_12, window_bounds = array<i64: 1, 128, 2048>}, {transform_indices = @transform_13, window_bounds = array<i64: 1, 1, 2048>}, {transform_indices = @transform_14, window_bounds = array<i64: 1, 2048, 128>}, {transform_indices = @transform_15, window_bounds = array<i64: 1, 1, 128>}, {transform_indices = @transform_16, window_bounds = array<i64: 1, 1, 128>}, {transform_indices = @transform_17, window_bounds = array<i64: 1, 1, 128>}, {transform_indices = @transform_18, window_bounds = array<i64: 1, 1, 128>}, {transform_indices = @transform_19, window_bounds = array<i64: 1, 1, 128>}, {pipeline_mode = #tpu.pipeline_mode<synchronous>, transform_indices = @transform_20, window_bounds = array<i64: 2, 128>}]} {
    %c0_i32 = arith.constant 0 : i32
    %0 = arith.cmpi eq, %arg0, %c0_i32 : i32
    %1 = arith.extui %0 : i1 to i32
    %c0_i32_0 = arith.constant 0 : i32
    %2 = arith.cmpi ne, %1, %c0_i32_0 : i32
    scf.if %2 {
      %c0_174 = arith.constant 0 : index
      %c0_175 = arith.constant 0 : index
      %245 = vector.load %arg2[%c0_174, %c0_175] : memref<128x32xbf16, #tpu.memory_space<vmem>>, vector<128x32xbf16>
      %c0_176 = arith.constant 0 : index
      %c0_177 = arith.constant 0 : index
      %246 = vector.load %arg1[%c0_176, %c0_177] : memref<32x512xbf16, #tpu.memory_space<vmem>>, vector<32x256xbf16>
      %cst_178 = arith.constant dense<0.000000e+00> : vector<128x256xf32>
      %247 = tpu.matmul %245, %246, %cst_178 {dimension_numbers = #tpu.dot_dimension_numbers<[1], [0], [0], [1], [0, 0, 1, 1], [], []>} : vector<128x32xbf16>, vector<32x256xbf16>, vector<128x256xf32> -> vector<128x256xf32>
      %c0_179 = arith.constant 0 : index
      %c0_180 = arith.constant 0 : index
      %248 = vector.load %arg3[%c0_179, %c0_180] : memref<128x1xf32, #tpu.memory_space<vmem>>, vector<128x1xf32>
      %249 = vector.broadcast %248 : vector<128x1xf32> to vector<128x256xf32>
      %250 = arith.addf %247, %249 : vector<128x256xf32>
      %251 = arith.truncf %250 : vector<128x256xf32> to vector<128x256xbf16>
      %c0_181 = arith.constant 0 : index
      %c0_182 = arith.constant 0 : index
      %252 = vector.load %arg4[%c0_181, %c0_182] : memref<256x128xbf16, #tpu.memory_space<vmem>>, vector<256x128xbf16>
      %cst_183 = arith.constant dense<0.000000e+00> : vector<128x128xf32>
      %253 = tpu.matmul %251, %252, %cst_183 {dimension_numbers = #tpu.dot_dimension_numbers<[1], [0], [0], [1], [0, 0, 1, 1], [], []>} : vector<128x256xbf16>, vector<256x128xbf16>, vector<128x128xf32> -> vector<128x128xf32>
      %c0_184 = arith.constant 0 : index
      %c0_185 = arith.constant 0 : index
      %254 = vector.load %arg5[%c0_184, %c0_185] : memref<1x128xf32, #tpu.memory_space<vmem>>, vector<1x128xf32>
      %255 = vector.broadcast %254 : vector<1x128xf32> to vector<128x128xf32>
      %256 = arith.addf %253, %255 : vector<128x128xf32>
      %c0_186 = arith.constant 0 : index
      %c0_187 = arith.constant 0 : index
      %257 = vector.load %arg22[%c0_186, %c0_187] : memref<256x128xf32, #tpu.memory_space<vmem>>, vector<128x128xf32>
      tpu.vector_store %arg22[%c0_186, %c0_187], %256 {strides = array<i32>} : memref<256x128xf32, #tpu.memory_space<vmem>>, vector<128x128xf32>,
      %c0_188 = arith.constant 0 : index
      %c0_189 = arith.constant 0 : index
      %258 = vector.load %arg2[%c0_188, %c0_189] : memref<128x32xbf16, #tpu.memory_space<vmem>>, vector<128x32xbf16>
      %c0_190 = arith.constant 0 : index
      %c256_191 = arith.constant 256 : index
      %259 = vector.load %arg1[%c0_190, %c256_191] : memref<32x512xbf16, #tpu.memory_space<vmem>>, vector<32x256xbf16>
      %cst_192 = arith.constant dense<0.000000e+00> : vector<128x256xf32>
      %260 = tpu.matmul %258, %259, %cst_192 {dimension_numbers = #tpu.dot_dimension_numbers<[1], [0], [0], [1], [0, 0, 1, 1], [], []>} : vector<128x32xbf16>, vector<32x256xbf16>, vector<128x256xf32> -> vector<128x256xf32>
      %c0_193 = arith.constant 0 : index
      %c0_194 = arith.constant 0 : index
      %261 = vector.load %arg3[%c0_193, %c0_194] : memref<128x1xf32, #tpu.memory_space<vmem>>, vector<128x1xf32>
      %262 = vector.broadcast %261 : vector<128x1xf32> to vector<128x256xf32>
      %263 = arith.addf %260, %262 : vector<128x256xf32>
      %264 = arith.truncf %263 : vector<128x256xf32> to vector<128x256xbf16>
      %c0_195 = arith.constant 0 : index
      %c0_196 = arith.constant 0 : index
      %265 = vector.load %arg4[%c0_195, %c0_196] : memref<256x128xbf16, #tpu.memory_space<vmem>>, vector<256x128xbf16>
      %cst_197 = arith.constant dense<0.000000e+00> : vector<128x128xf32>
      %266 = tpu.matmul %264, %265, %cst_197 {dimension_numbers = #tpu.dot_dimension_numbers<[1], [0], [0], [1], [0, 0, 1, 1], [], []>} : vector<128x256xbf16>, vector<256x128xbf16>, vector<128x128xf32> -> vector<128x128xf32>
      %c0_198 = arith.constant 0 : index
      %c0_199 = arith.constant 0 : index
      %267 = vector.load %arg5[%c0_198, %c0_199] : memref<1x128xf32, #tpu.memory_space<vmem>>, vector<1x128xf32>
      %268 = vector.broadcast %267 : vector<1x128xf32> to vector<128x128xf32>
      %269 = arith.addf %266, %268 : vector<128x128xf32>
      %c128_200 = arith.constant 128 : index
      %c0_201 = arith.constant 0 : index
      %270 = vector.load %arg22[%c128_200, %c0_201] : memref<256x128xf32, #tpu.memory_space<vmem>>, vector<128x128xf32>
      tpu.vector_store %arg22[%c128_200, %c0_201], %269 {strides = array<i32>} : memref<256x128xf32, #tpu.memory_space<vmem>>, vector<128x128xf32>,
    } else {
    }
    %c0 = arith.constant 0 : index
    %c0_1 = arith.constant 0 : index
    %3 = vector.load %arg22[%c0, %c0_1] : memref<256x128xf32, #tpu.memory_space<vmem>>, vector<256x128xf32>
    %4 = arith.truncf %3 : vector<256x128xf32> to vector<256x128xbf16>
    %c0_2 = arith.constant 0 : index
    %c0_3 = arith.constant 0 : index
    %c0_4 = arith.constant 0 : index
    %5 = vector.load %arg9[%c0_2, %c0_3, %c0_4] : memref<1x128x384xbf16, #tpu.memory_space<vmem>>, vector<1x128x384xbf16>
    %6 = vector.shape_cast %5 : vector<1x128x384xbf16> to vector<128x384xbf16>
    %cst = arith.constant dense<0.000000e+00> : vector<256x384xf32>
    %7 = tpu.matmul %4, %6, %cst {dimension_numbers = #tpu.dot_dimension_numbers<[1], [0], [0], [1], [0, 0, 1, 1], [], []>} : vector<256x128xbf16>, vector<128x384xbf16>, vector<256x384xf32> -> vector<256x384xf32>
    %c0_5 = arith.constant 0 : index
    %c0_6 = arith.constant 0 : index
    %c0_7 = arith.constant 0 : index
    %8 = vector.load %arg10[%c0_5, %c0_6, %c0_7] : memref<1x1x384xf32, #tpu.memory_space<vmem>>, vector<1x1x384xf32>
    %9 = vector.shape_cast %8 : vector<1x1x384xf32> to vector<1x384xf32>
    %10 = vector.broadcast %9 : vector<1x384xf32> to vector<256x384xf32>
    %11 = arith.addf %7, %10 : vector<256x384xf32>
    %c0_8 = arith.constant 0 : index
    %c0_9 = arith.constant 0 : index
    %12 = vector.load %arg23[%c0_8, %c0_9] : memref<256x384xf32, #tpu.memory_space<vmem>>, vector<256x384xf32>
    tpu.vector_store %arg23[%c0_8, %c0_9], %11 {strides = array<i32>} : memref<256x384xf32, #tpu.memory_space<vmem>>, vector<256x384xf32>,
    %c0_10 = arith.constant 0 : index
    %c0_11 = arith.constant 0 : index
    %13 = vector.load %arg23[%c0_10, %c0_11] : memref<256x384xf32, #tpu.memory_space<vmem>>, vector<128x128xf32>
    %c0_12 = arith.constant 0 : index
    %c128 = arith.constant 128 : index
    %14 = vector.load %arg23[%c0_12, %c128] : memref<256x384xf32, #tpu.memory_space<vmem>>, vector<128x128xf32>
    %15 = arith.mulf %13, %14 : vector<128x128xf32>
    %c0_13 = arith.constant 0 : index
    %c0_14 = arith.constant 0 : index
    %16 = vector.load %arg6[%c0_13, %c0_14] : memref<128x128xf32, #tpu.memory_space<vmem>>, vector<128x128xf32>
    %cst_15 = arith.constant dense<0.000000e+00> : vector<128x128xf32>
    %17 = tpu.matmul %15, %16, %cst_15 {dimension_numbers = #tpu.dot_dimension_numbers<[1], [0], [0], [1], [0, 0, 1, 1], [], []>} : vector<128x128xf32>, vector<128x128xf32>, vector<128x128xf32> -> vector<128x128xf32>
    %c128_16 = arith.constant 128 : index
    %c128_17 = arith.constant 128 : index
    %18 = vector.load %arg23[%c128_16, %c128_17] : memref<256x384xf32, #tpu.memory_space<vmem>>, vector<128x128xf32>
    %19 = arith.mulf %13, %18 : vector<128x128xf32>
    %c0_18 = arith.constant 0 : index
    %c0_19 = arith.constant 0 : index
    %20 = vector.load %arg6[%c0_18, %c0_19] : memref<128x128xf32, #tpu.memory_space<vmem>>, vector<128x128xf32>
    %cst_20 = arith.constant dense<0.000000e+00> : vector<128x128xf32>
    %21 = tpu.matmul %19, %20, %cst_20 {dimension_numbers = #tpu.dot_dimension_numbers<[1], [0], [0], [1], [0, 0, 1, 1], [], []>} : vector<128x128xf32>, vector<128x128xf32>, vector<128x128xf32> -> vector<128x128xf32>
    %22 = arith.maximumf %17, %21 : vector<128x128xf32>
    %23 = arith.subf %17, %22 : vector<128x128xf32>
    %24 = math.exp %23 : vector<128x128xf32>
    %25 = arith.subf %21, %22 : vector<128x128xf32>
    %26 = math.exp %25 : vector<128x128xf32>
    %27 = arith.addf %24, %26 : vector<128x128xf32>
    %28 = tpu.reciprocal %27 {approx = true} : vector<128x128xf32> -> vector<128x128xf32>
    %29 = arith.mulf %24, %28 : vector<128x128xf32>
    %c0_21 = arith.constant 0 : index
    %c256 = arith.constant 256 : index
    %30 = vector.load %arg23[%c0_21, %c256] : memref<256x384xf32, #tpu.memory_space<vmem>>, vector<128x128xf32>
    %31 = arith.mulf %29, %30 : vector<128x128xf32>
    %32 = arith.mulf %26, %28 : vector<128x128xf32>
    %c128_22 = arith.constant 128 : index
    %c256_23 = arith.constant 256 : index
    %33 = vector.load %arg23[%c128_22, %c256_23] : memref<256x384xf32, #tpu.memory_space<vmem>>, vector<128x128xf32>
    %34 = arith.mulf %32, %33 : vector<128x128xf32>
    %35 = arith.addf %31, %34 : vector<128x128xf32>
    %36 = arith.truncf %35 : vector<128x128xf32> to vector<128x128xbf16>
    %c128_24 = arith.constant 128 : index
    %c0_25 = arith.constant 0 : index
    %37 = vector.load %arg23[%c128_24, %c0_25] : memref<256x384xf32, #tpu.memory_space<vmem>>, vector<128x128xf32>
    %c0_26 = arith.constant 0 : index
    %c128_27 = arith.constant 128 : index
    %38 = vector.load %arg23[%c0_26, %c128_27] : memref<256x384xf32, #tpu.memory_space<vmem>>, vector<128x128xf32>
    %39 = arith.mulf %37, %38 : vector<128x128xf32>
    %c0_28 = arith.constant 0 : index
    %c0_29 = arith.constant 0 : index
    %40 = vector.load %arg6[%c0_28, %c0_29] : memref<128x128xf32, #tpu.memory_space<vmem>>, vector<128x128xf32>
    %cst_30 = arith.constant dense<0.000000e+00> : vector<128x128xf32>
    %41 = tpu.matmul %39, %40, %cst_30 {dimension_numbers = #tpu.dot_dimension_numbers<[1], [0], [0], [1], [0, 0, 1, 1], [], []>} : vector<128x128xf32>, vector<128x128xf32>, vector<128x128xf32> -> vector<128x128xf32>
    %c128_31 = arith.constant 128 : index
    %c128_32 = arith.constant 128 : index
    %42 = vector.load %arg23[%c128_31, %c128_32] : memref<256x384xf32, #tpu.memory_space<vmem>>, vector<128x128xf32>
    %43 = arith.mulf %37, %42 : vector<128x128xf32>
    %c0_33 = arith.constant 0 : index
    %c0_34 = arith.constant 0 : index
    %44 = vector.load %arg6[%c0_33, %c0_34] : memref<128x128xf32, #tpu.memory_space<vmem>>, vector<128x128xf32>
    %cst_35 = arith.constant dense<0.000000e+00> : vector<128x128xf32>
    %45 = tpu.matmul %43, %44, %cst_35 {dimension_numbers = #tpu.dot_dimension_numbers<[1], [0], [0], [1], [0, 0, 1, 1], [], []>} : vector<128x128xf32>, vector<128x128xf32>, vector<128x128xf32> -> vector<128x128xf32>
    %46 = arith.maximumf %41, %45 : vector<128x128xf32>
    %47 = arith.subf %41, %46 : vector<128x128xf32>
    %48 = math.exp %47 : vector<128x128xf32>
    %49 = arith.subf %45, %46 : vector<128x128xf32>
    %50 = math.exp %49 : vector<128x128xf32>
    %51 = arith.addf %48, %50 : vector<128x128xf32>
    %52 = tpu.reciprocal %51 {approx = true} : vector<128x128xf32> -> vector<128x128xf32>
    %53 = arith.mulf %48, %52 : vector<128x128xf32>
    %c0_36 = arith.constant 0 : index
    %c256_37 = arith.constant 256 : index
    %54 = vector.load %arg23[%c0_36, %c256_37] : memref<256x384xf32, #tpu.memory_space<vmem>>, vector<128x128xf32>
    %55 = arith.mulf %53, %54 : vector<128x128xf32>
    %56 = arith.mulf %50, %52 : vector<128x128xf32>
    %c128_38 = arith.constant 128 : index
    %c256_39 = arith.constant 256 : index
    %57 = vector.load %arg23[%c128_38, %c256_39] : memref<256x384xf32, #tpu.memory_space<vmem>>, vector<128x128xf32>
    %58 = arith.mulf %56, %57 : vector<128x128xf32>
    %59 = arith.addf %55, %58 : vector<128x128xf32>
    %60 = arith.truncf %59 : vector<128x128xf32> to vector<128x128xbf16>
    %61 = tpu.concatenate %36, %60 in 0 : vector<128x128xbf16>, vector<128x128xbf16> -> vector<256x128xbf16>
    %c0_40 = arith.constant 0 : index
    %c0_41 = arith.constant 0 : index
    %c0_42 = arith.constant 0 : index
    %62 = vector.load %arg11[%c0_40, %c0_41, %c0_42] : memref<1x128x128xbf16, #tpu.memory_space<vmem>>, vector<1x128x128xbf16>
    %63 = vector.shape_cast %62 : vector<1x128x128xbf16> to vector<128x128xbf16>
    %cst_43 = arith.constant dense<0.000000e+00> : vector<256x128xf32>
    %64 = tpu.matmul %61, %63, %cst_43 {dimension_numbers = #tpu.dot_dimension_numbers<[1], [0], [0], [1], [0, 0, 1, 1], [], []>} : vector<256x128xbf16>, vector<128x128xbf16>, vector<256x128xf32> -> vector<256x128xf32>
    %c0_44 = arith.constant 0 : index
    %c0_45 = arith.constant 0 : index
    %c0_46 = arith.constant 0 : index
    %65 = vector.load %arg12[%c0_44, %c0_45, %c0_46] : memref<1x1x128xf32, #tpu.memory_space<vmem>>, vector<1x1x128xf32>
    %66 = vector.shape_cast %65 : vector<1x1x128xf32> to vector<1x128xf32>
    %67 = vector.broadcast %66 : vector<1x128xf32> to vector<256x128xf32>
    %68 = arith.addf %64, %67 : vector<256x128xf32>
    %c0_47 = arith.constant 0 : index
    %c0_48 = arith.constant 0 : index
    %69 = vector.load %arg22[%c0_47, %c0_48] : memref<256x128xf32, #tpu.memory_space<vmem>>, vector<256x128xf32>
    %70 = arith.addf %69, %68 : vector<256x128xf32>
    %cst_49 = arith.constant dense<0.000000e+00> : vector<256xf32>
    %71 = vector.multi_reduction <add>, %70, %cst_49 [1] : vector<256x128xf32> to vector<256xf32>
    %72 = vector.shape_cast %71 : vector<256xf32> to vector<256x1xf32>
    %cst_50 = arith.constant 1.280000e+02 : f32
    %73 = vector.broadcast %cst_50 : f32 to vector<256x1xf32>
    %74 = arith.divf %72, %73 : vector<256x1xf32>
    %75 = vector.broadcast %74 : vector<256x1xf32> to vector<256x128xf32>
    %76 = arith.subf %70, %75 : vector<256x128xf32>
    %77 = arith.mulf %76, %76 : vector<256x128xf32>
    %cst_51 = arith.constant dense<0.000000e+00> : vector<256xf32>
    %78 = vector.multi_reduction <add>, %77, %cst_51 [1] : vector<256x128xf32> to vector<256xf32>
    %79 = vector.shape_cast %78 : vector<256xf32> to vector<256x1xf32>
    %cst_52 = arith.constant 1.280000e+02 : f32
    %80 = vector.broadcast %cst_52 : f32 to vector<256x1xf32>
    %81 = arith.divf %79, %80 : vector<256x1xf32>
    %cst_53 = arith.constant 9.99999974E-6 : f32
    %82 = vector.broadcast %cst_53 : f32 to vector<256x1xf32>
    %83 = arith.addf %81, %82 : vector<256x1xf32>
    %84 = math.rsqrt %83 : vector<256x1xf32>
    %85 = vector.broadcast %84 : vector<256x1xf32> to vector<256x128xf32>
    %86 = arith.mulf %76, %85 : vector<256x128xf32>
    %c0_54 = arith.constant 0 : index
    %c0_55 = arith.constant 0 : index
    %c0_56 = arith.constant 0 : index
    %87 = vector.load %arg17[%c0_54, %c0_55, %c0_56] : memref<1x1x128xf32, #tpu.memory_space<vmem>>, vector<1x1x128xf32>
    %88 = vector.shape_cast %87 : vector<1x1x128xf32> to vector<1x128xf32>
    %89 = vector.broadcast %88 : vector<1x128xf32> to vector<256x128xf32>
    %90 = arith.mulf %86, %89 : vector<256x128xf32>
    %c0_57 = arith.constant 0 : index
    %c0_58 = arith.constant 0 : index
    %c0_59 = arith.constant 0 : index
    %91 = vector.load %arg18[%c0_57, %c0_58, %c0_59] : memref<1x1x128xf32, #tpu.memory_space<vmem>>, vector<1x1x128xf32>
    %92 = vector.shape_cast %91 : vector<1x1x128xf32> to vector<1x128xf32>
    %93 = vector.broadcast %92 : vector<1x128xf32> to vector<256x128xf32>
    %94 = arith.addf %90, %93 : vector<256x128xf32>
    %c0_60 = arith.constant 0 : index
    %c0_61 = arith.constant 0 : index
    %95 = vector.load %arg22[%c0_60, %c0_61] : memref<256x128xf32, #tpu.memory_space<vmem>>, vector<256x128xf32>
    tpu.vector_store %arg22[%c0_60, %c0_61], %94 {strides = array<i32>} : memref<256x128xf32, #tpu.memory_space<vmem>>, vector<256x128xf32>,
    %c0_62 = arith.constant 0 : index
    %c0_63 = arith.constant 0 : index
    %96 = vector.load %arg22[%c0_62, %c0_63] : memref<256x128xf32, #tpu.memory_space<vmem>>, vector<256x128xf32>
    %97 = arith.truncf %96 : vector<256x128xf32> to vector<256x128xbf16>
    %cst_64 = arith.constant 0.000000e+00 : f32
    %98 = vector.broadcast %cst_64 : f32 to vector<256x128xf32>
    %c0_65 = arith.constant 0 : index
    %c0_66 = arith.constant 0 : index
    %c0_67 = arith.constant 0 : index
    %99 = vector.load %arg13[%c0_65, %c0_66, %c0_67] : memref<1x128x2048xbf16, #tpu.memory_space<vmem>>, vector<1x128x256xbf16>
    %100 = vector.shape_cast %99 : vector<1x128x256xbf16> to vector<128x256xbf16>
    %cst_68 = arith.constant dense<0.000000e+00> : vector<256x256xf32>
    %101 = tpu.matmul %97, %100, %cst_68 {dimension_numbers = #tpu.dot_dimension_numbers<[1], [0], [0], [1], [0, 0, 1, 1], [], []>} : vector<256x128xbf16>, vector<128x256xbf16>, vector<256x256xf32> -> vector<256x256xf32>
    %c0_69 = arith.constant 0 : index
    %c0_70 = arith.constant 0 : index
    %c0_71 = arith.constant 0 : index
    %102 = vector.load %arg14[%c0_69, %c0_70, %c0_71] : memref<1x1x2048xf32, #tpu.memory_space<vmem>>, vector<1x1x256xf32>
    %103 = vector.shape_cast %102 : vector<1x1x256xf32> to vector<1x256xf32>
    %104 = vector.broadcast %103 : vector<1x256xf32> to vector<256x256xf32>
    %105 = arith.addf %101, %104 : vector<256x256xf32>
    %cst_72 = arith.constant 0.000000e+00 : f32
    %106 = vector.broadcast %cst_72 : f32 to vector<256x256xf32>
    %107 = arith.maximumf %105, %106 : vector<256x256xf32>
    %108 = arith.truncf %107 : vector<256x256xf32> to vector<256x256xbf16>
    %c0_73 = arith.constant 0 : index
    %c0_74 = arith.constant 0 : index
    %c0_75 = arith.constant 0 : index
    %109 = vector.load %arg15[%c0_73, %c0_74, %c0_75] : memref<1x2048x128xbf16, #tpu.memory_space<vmem>>, vector<1x256x128xbf16>
    %110 = vector.shape_cast %109 : vector<1x256x128xbf16> to vector<256x128xbf16>
    %cst_76 = arith.constant dense<0.000000e+00> : vector<256x128xf32>
    %111 = tpu.matmul %108, %110, %cst_76 {dimension_numbers = #tpu.dot_dimension_numbers<[1], [0], [0], [1], [0, 0, 1, 1], [], []>} : vector<256x256xbf16>, vector<256x128xbf16>, vector<256x128xf32> -> vector<256x128xf32>
    %112 = arith.addf %98, %111 : vector<256x128xf32>
    %c0_77 = arith.constant 0 : index
    %c0_78 = arith.constant 0 : index
    %c256_79 = arith.constant 256 : index
    %113 = vector.load %arg13[%c0_77, %c0_78, %c256_79] : memref<1x128x2048xbf16, #tpu.memory_space<vmem>>, vector<1x128x256xbf16>
    %114 = vector.shape_cast %113 : vector<1x128x256xbf16> to vector<128x256xbf16>
    %cst_80 = arith.constant dense<0.000000e+00> : vector<256x256xf32>
    %115 = tpu.matmul %97, %114, %cst_80 {dimension_numbers = #tpu.dot_dimension_numbers<[1], [0], [0], [1], [0, 0, 1, 1], [], []>} : vector<256x128xbf16>, vector<128x256xbf16>, vector<256x256xf32> -> vector<256x256xf32>
    %c0_81 = arith.constant 0 : index
    %c0_82 = arith.constant 0 : index
    %c256_83 = arith.constant 256 : index
    %116 = vector.load %arg14[%c0_81, %c0_82, %c256_83] : memref<1x1x2048xf32, #tpu.memory_space<vmem>>, vector<1x1x256xf32>
    %117 = vector.shape_cast %116 : vector<1x1x256xf32> to vector<1x256xf32>
    %118 = vector.broadcast %117 : vector<1x256xf32> to vector<256x256xf32>
    %119 = arith.addf %115, %118 : vector<256x256xf32>
    %cst_84 = arith.constant 0.000000e+00 : f32
    %120 = vector.broadcast %cst_84 : f32 to vector<256x256xf32>
    %121 = arith.maximumf %119, %120 : vector<256x256xf32>
    %122 = arith.truncf %121 : vector<256x256xf32> to vector<256x256xbf16>
    %c0_85 = arith.constant 0 : index
    %c256_86 = arith.constant 256 : index
    %c0_87 = arith.constant 0 : index
    %123 = vector.load %arg15[%c0_85, %c256_86, %c0_87] : memref<1x2048x128xbf16, #tpu.memory_space<vmem>>, vector<1x256x128xbf16>
    %124 = vector.shape_cast %123 : vector<1x256x128xbf16> to vector<256x128xbf16>
    %cst_88 = arith.constant dense<0.000000e+00> : vector<256x128xf32>
    %125 = tpu.matmul %122, %124, %cst_88 {dimension_numbers = #tpu.dot_dimension_numbers<[1], [0], [0], [1], [0, 0, 1, 1], [], []>} : vector<256x256xbf16>, vector<256x128xbf16>, vector<256x128xf32> -> vector<256x128xf32>
    %126 = arith.addf %112, %125 : vector<256x128xf32>
    %c0_89 = arith.constant 0 : index
    %c0_90 = arith.constant 0 : index
    %c512 = arith.constant 512 : index
    %127 = vector.load %arg13[%c0_89, %c0_90, %c512] : memref<1x128x2048xbf16, #tpu.memory_space<vmem>>, vector<1x128x256xbf16>
    %128 = vector.shape_cast %127 : vector<1x128x256xbf16> to vector<128x256xbf16>
    %cst_91 = arith.constant dense<0.000000e+00> : vector<256x256xf32>
    %129 = tpu.matmul %97, %128, %cst_91 {dimension_numbers = #tpu.dot_dimension_numbers<[1], [0], [0], [1], [0, 0, 1, 1], [], []>} : vector<256x128xbf16>, vector<128x256xbf16>, vector<256x256xf32> -> vector<256x256xf32>
    %c0_92 = arith.constant 0 : index
    %c0_93 = arith.constant 0 : index
    %c512_94 = arith.constant 512 : index
    %130 = vector.load %arg14[%c0_92, %c0_93, %c512_94] : memref<1x1x2048xf32, #tpu.memory_space<vmem>>, vector<1x1x256xf32>
    %131 = vector.shape_cast %130 : vector<1x1x256xf32> to vector<1x256xf32>
    %132 = vector.broadcast %131 : vector<1x256xf32> to vector<256x256xf32>
    %133 = arith.addf %129, %132 : vector<256x256xf32>
    %cst_95 = arith.constant 0.000000e+00 : f32
    %134 = vector.broadcast %cst_95 : f32 to vector<256x256xf32>
    %135 = arith.maximumf %133, %134 : vector<256x256xf32>
    %136 = arith.truncf %135 : vector<256x256xf32> to vector<256x256xbf16>
    %c0_96 = arith.constant 0 : index
    %c512_97 = arith.constant 512 : index
    %c0_98 = arith.constant 0 : index
    %137 = vector.load %arg15[%c0_96, %c512_97, %c0_98] : memref<1x2048x128xbf16, #tpu.memory_space<vmem>>, vector<1x256x128xbf16>
    %138 = vector.shape_cast %137 : vector<1x256x128xbf16> to vector<256x128xbf16>
    %cst_99 = arith.constant dense<0.000000e+00> : vector<256x128xf32>
    %139 = tpu.matmul %136, %138, %cst_99 {dimension_numbers = #tpu.dot_dimension_numbers<[1], [0], [0], [1], [0, 0, 1, 1], [], []>} : vector<256x256xbf16>, vector<256x128xbf16>, vector<256x128xf32> -> vector<256x128xf32>
    %140 = arith.addf %126, %139 : vector<256x128xf32>
    %c0_100 = arith.constant 0 : index
    %c0_101 = arith.constant 0 : index
    %c768 = arith.constant 768 : index
    %141 = vector.load %arg13[%c0_100, %c0_101, %c768] : memref<1x128x2048xbf16, #tpu.memory_space<vmem>>, vector<1x128x256xbf16>
    %142 = vector.shape_cast %141 : vector<1x128x256xbf16> to vector<128x256xbf16>
    %cst_102 = arith.constant dense<0.000000e+00> : vector<256x256xf32>
    %143 = tpu.matmul %97, %142, %cst_102 {dimension_numbers = #tpu.dot_dimension_numbers<[1], [0], [0], [1], [0, 0, 1, 1], [], []>} : vector<256x128xbf16>, vector<128x256xbf16>, vector<256x256xf32> -> vector<256x256xf32>
    %c0_103 = arith.constant 0 : index
    %c0_104 = arith.constant 0 : index
    %c768_105 = arith.constant 768 : index
    %144 = vector.load %arg14[%c0_103, %c0_104, %c768_105] : memref<1x1x2048xf32, #tpu.memory_space<vmem>>, vector<1x1x256xf32>
    %145 = vector.shape_cast %144 : vector<1x1x256xf32> to vector<1x256xf32>
    %146 = vector.broadcast %145 : vector<1x256xf32> to vector<256x256xf32>
    %147 = arith.addf %143, %146 : vector<256x256xf32>
    %cst_106 = arith.constant 0.000000e+00 : f32
    %148 = vector.broadcast %cst_106 : f32 to vector<256x256xf32>
    %149 = arith.maximumf %147, %148 : vector<256x256xf32>
    %150 = arith.truncf %149 : vector<256x256xf32> to vector<256x256xbf16>
    %c0_107 = arith.constant 0 : index
    %c768_108 = arith.constant 768 : index
    %c0_109 = arith.constant 0 : index
    %151 = vector.load %arg15[%c0_107, %c768_108, %c0_109] : memref<1x2048x128xbf16, #tpu.memory_space<vmem>>, vector<1x256x128xbf16>
    %152 = vector.shape_cast %151 : vector<1x256x128xbf16> to vector<256x128xbf16>
    %cst_110 = arith.constant dense<0.000000e+00> : vector<256x128xf32>
    %153 = tpu.matmul %150, %152, %cst_110 {dimension_numbers = #tpu.dot_dimension_numbers<[1], [0], [0], [1], [0, 0, 1, 1], [], []>} : vector<256x256xbf16>, vector<256x128xbf16>, vector<256x128xf32> -> vector<256x128xf32>
    %154 = arith.addf %140, %153 : vector<256x128xf32>
    %c0_111 = arith.constant 0 : index
    %c0_112 = arith.constant 0 : index
    %c1024 = arith.constant 1024 : index
    %155 = vector.load %arg13[%c0_111, %c0_112, %c1024] : memref<1x128x2048xbf16, #tpu.memory_space<vmem>>, vector<1x128x256xbf16>
    %156 = vector.shape_cast %155 : vector<1x128x256xbf16> to vector<128x256xbf16>
    %cst_113 = arith.constant dense<0.000000e+00> : vector<256x256xf32>
    %157 = tpu.matmul %97, %156, %cst_113 {dimension_numbers = #tpu.dot_dimension_numbers<[1], [0], [0], [1], [0, 0, 1, 1], [], []>} : vector<256x128xbf16>, vector<128x256xbf16>, vector<256x256xf32> -> vector<256x256xf32>
    %c0_114 = arith.constant 0 : index
    %c0_115 = arith.constant 0 : index
    %c1024_116 = arith.constant 1024 : index
    %158 = vector.load %arg14[%c0_114, %c0_115, %c1024_116] : memref<1x1x2048xf32, #tpu.memory_space<vmem>>, vector<1x1x256xf32>
    %159 = vector.shape_cast %158 : vector<1x1x256xf32> to vector<1x256xf32>
    %160 = vector.broadcast %159 : vector<1x256xf32> to vector<256x256xf32>
    %161 = arith.addf %157, %160 : vector<256x256xf32>
    %cst_117 = arith.constant 0.000000e+00 : f32
    %162 = vector.broadcast %cst_117 : f32 to vector<256x256xf32>
    %163 = arith.maximumf %161, %162 : vector<256x256xf32>
    %164 = arith.truncf %163 : vector<256x256xf32> to vector<256x256xbf16>
    %c0_118 = arith.constant 0 : index
    %c1024_119 = arith.constant 1024 : index
    %c0_120 = arith.constant 0 : index
    %165 = vector.load %arg15[%c0_118, %c1024_119, %c0_120] : memref<1x2048x128xbf16, #tpu.memory_space<vmem>>, vector<1x256x128xbf16>
    %166 = vector.shape_cast %165 : vector<1x256x128xbf16> to vector<256x128xbf16>
    %cst_121 = arith.constant dense<0.000000e+00> : vector<256x128xf32>
    %167 = tpu.matmul %164, %166, %cst_121 {dimension_numbers = #tpu.dot_dimension_numbers<[1], [0], [0], [1], [0, 0, 1, 1], [], []>} : vector<256x256xbf16>, vector<256x128xbf16>, vector<256x128xf32> -> vector<256x128xf32>
    %168 = arith.addf %154, %167 : vector<256x128xf32>
    %c0_122 = arith.constant 0 : index
    %c0_123 = arith.constant 0 : index
    %c1280 = arith.constant 1280 : index
    %169 = vector.load %arg13[%c0_122, %c0_123, %c1280] : memref<1x128x2048xbf16, #tpu.memory_space<vmem>>, vector<1x128x256xbf16>
    %170 = vector.shape_cast %169 : vector<1x128x256xbf16> to vector<128x256xbf16>
    %cst_124 = arith.constant dense<0.000000e+00> : vector<256x256xf32>
    %171 = tpu.matmul %97, %170, %cst_124 {dimension_numbers = #tpu.dot_dimension_numbers<[1], [0], [0], [1], [0, 0, 1, 1], [], []>} : vector<256x128xbf16>, vector<128x256xbf16>, vector<256x256xf32> -> vector<256x256xf32>
    %c0_125 = arith.constant 0 : index
    %c0_126 = arith.constant 0 : index
    %c1280_127 = arith.constant 1280 : index
    %172 = vector.load %arg14[%c0_125, %c0_126, %c1280_127] : memref<1x1x2048xf32, #tpu.memory_space<vmem>>, vector<1x1x256xf32>
    %173 = vector.shape_cast %172 : vector<1x1x256xf32> to vector<1x256xf32>
    %174 = vector.broadcast %173 : vector<1x256xf32> to vector<256x256xf32>
    %175 = arith.addf %171, %174 : vector<256x256xf32>
    %cst_128 = arith.constant 0.000000e+00 : f32
    %176 = vector.broadcast %cst_128 : f32 to vector<256x256xf32>
    %177 = arith.maximumf %175, %176 : vector<256x256xf32>
    %178 = arith.truncf %177 : vector<256x256xf32> to vector<256x256xbf16>
    %c0_129 = arith.constant 0 : index
    %c1280_130 = arith.constant 1280 : index
    %c0_131 = arith.constant 0 : index
    %179 = vector.load %arg15[%c0_129, %c1280_130, %c0_131] : memref<1x2048x128xbf16, #tpu.memory_space<vmem>>, vector<1x256x128xbf16>
    %180 = vector.shape_cast %179 : vector<1x256x128xbf16> to vector<256x128xbf16>
    %cst_132 = arith.constant dense<0.000000e+00> : vector<256x128xf32>
    %181 = tpu.matmul %178, %180, %cst_132 {dimension_numbers = #tpu.dot_dimension_numbers<[1], [0], [0], [1], [0, 0, 1, 1], [], []>} : vector<256x256xbf16>, vector<256x128xbf16>, vector<256x128xf32> -> vector<256x128xf32>
    %182 = arith.addf %168, %181 : vector<256x128xf32>
    %c0_133 = arith.constant 0 : index
    %c0_134 = arith.constant 0 : index
    %c1536 = arith.constant 1536 : index
    %183 = vector.load %arg13[%c0_133, %c0_134, %c1536] : memref<1x128x2048xbf16, #tpu.memory_space<vmem>>, vector<1x128x256xbf16>
    %184 = vector.shape_cast %183 : vector<1x128x256xbf16> to vector<128x256xbf16>
    %cst_135 = arith.constant dense<0.000000e+00> : vector<256x256xf32>
    %185 = tpu.matmul %97, %184, %cst_135 {dimension_numbers = #tpu.dot_dimension_numbers<[1], [0], [0], [1], [0, 0, 1, 1], [], []>} : vector<256x128xbf16>, vector<128x256xbf16>, vector<256x256xf32> -> vector<256x256xf32>
    %c0_136 = arith.constant 0 : index
    %c0_137 = arith.constant 0 : index
    %c1536_138 = arith.constant 1536 : index
    %186 = vector.load %arg14[%c0_136, %c0_137, %c1536_138] : memref<1x1x2048xf32, #tpu.memory_space<vmem>>, vector<1x1x256xf32>
    %187 = vector.shape_cast %186 : vector<1x1x256xf32> to vector<1x256xf32>
    %188 = vector.broadcast %187 : vector<1x256xf32> to vector<256x256xf32>
    %189 = arith.addf %185, %188 : vector<256x256xf32>
    %cst_139 = arith.constant 0.000000e+00 : f32
    %190 = vector.broadcast %cst_139 : f32 to vector<256x256xf32>
    %191 = arith.maximumf %189, %190 : vector<256x256xf32>
    %192 = arith.truncf %191 : vector<256x256xf32> to vector<256x256xbf16>
    %c0_140 = arith.constant 0 : index
    %c1536_141 = arith.constant 1536 : index
    %c0_142 = arith.constant 0 : index
    %193 = vector.load %arg15[%c0_140, %c1536_141, %c0_142] : memref<1x2048x128xbf16, #tpu.memory_space<vmem>>, vector<1x256x128xbf16>
    %194 = vector.shape_cast %193 : vector<1x256x128xbf16> to vector<256x128xbf16>
    %cst_143 = arith.constant dense<0.000000e+00> : vector<256x128xf32>
    %195 = tpu.matmul %192, %194, %cst_143 {dimension_numbers = #tpu.dot_dimension_numbers<[1], [0], [0], [1], [0, 0, 1, 1], [], []>} : vector<256x256xbf16>, vector<256x128xbf16>, vector<256x128xf32> -> vector<256x128xf32>
    %196 = arith.addf %182, %195 : vector<256x128xf32>
    %c0_144 = arith.constant 0 : index
    %c0_145 = arith.constant 0 : index
    %c1792 = arith.constant 1792 : index
    %197 = vector.load %arg13[%c0_144, %c0_145, %c1792] : memref<1x128x2048xbf16, #tpu.memory_space<vmem>>, vector<1x128x256xbf16>
    %198 = vector.shape_cast %197 : vector<1x128x256xbf16> to vector<128x256xbf16>
    %cst_146 = arith.constant dense<0.000000e+00> : vector<256x256xf32>
    %199 = tpu.matmul %97, %198, %cst_146 {dimension_numbers = #tpu.dot_dimension_numbers<[1], [0], [0], [1], [0, 0, 1, 1], [], []>} : vector<256x128xbf16>, vector<128x256xbf16>, vector<256x256xf32> -> vector<256x256xf32>
    %c0_147 = arith.constant 0 : index
    %c0_148 = arith.constant 0 : index
    %c1792_149 = arith.constant 1792 : index
    %200 = vector.load %arg14[%c0_147, %c0_148, %c1792_149] : memref<1x1x2048xf32, #tpu.memory_space<vmem>>, vector<1x1x256xf32>
    %201 = vector.shape_cast %200 : vector<1x1x256xf32> to vector<1x256xf32>
    %202 = vector.broadcast %201 : vector<1x256xf32> to vector<256x256xf32>
    %203 = arith.addf %199, %202 : vector<256x256xf32>
    %cst_150 = arith.constant 0.000000e+00 : f32
    %204 = vector.broadcast %cst_150 : f32 to vector<256x256xf32>
    %205 = arith.maximumf %203, %204 : vector<256x256xf32>
    %206 = arith.truncf %205 : vector<256x256xf32> to vector<256x256xbf16>
    %c0_151 = arith.constant 0 : index
    %c1792_152 = arith.constant 1792 : index
    %c0_153 = arith.constant 0 : index
    %207 = vector.load %arg15[%c0_151, %c1792_152, %c0_153] : memref<1x2048x128xbf16, #tpu.memory_space<vmem>>, vector<1x256x128xbf16>
    %208 = vector.shape_cast %207 : vector<1x256x128xbf16> to vector<256x128xbf16>
    %cst_154 = arith.constant dense<0.000000e+00> : vector<256x128xf32>
    %209 = tpu.matmul %206, %208, %cst_154 {dimension_numbers = #tpu.dot_dimension_numbers<[1], [0], [0], [1], [0, 0, 1, 1], [], []>} : vector<256x256xbf16>, vector<256x128xbf16>, vector<256x128xf32> -> vector<256x128xf32>
    %210 = arith.addf %196, %209 : vector<256x128xf32>
    %c0_155 = arith.constant 0 : index
    %c0_156 = arith.constant 0 : index
    %211 = vector.load %arg22[%c0_155, %c0_156] : memref<256x128xf32, #tpu.memory_space<vmem>>, vector<256x128xf32>
    %212 = arith.addf %211, %210 : vector<256x128xf32>
    %c0_157 = arith.constant 0 : index
    %c0_158 = arith.constant 0 : index
    %c0_159 = arith.constant 0 : index
    %213 = vector.load %arg16[%c0_157, %c0_158, %c0_159] : memref<1x1x128xf32, #tpu.memory_space<vmem>>, vector<1x1x128xf32>
    %214 = vector.shape_cast %213 : vector<1x1x128xf32> to vector<1x128xf32>
    %215 = vector.broadcast %214 : vector<1x128xf32> to vector<256x128xf32>
    %216 = arith.addf %212, %215 : vector<256x128xf32>
    %cst_160 = arith.constant dense<0.000000e+00> : vector<256xf32>
    %217 = vector.multi_reduction <add>, %216, %cst_160 [1] : vector<256x128xf32> to vector<256xf32>
    %218 = vector.shape_cast %217 : vector<256xf32> to vector<256x1xf32>
    %cst_161 = arith.constant 1.280000e+02 : f32
    %219 = vector.broadcast %cst_161 : f32 to vector<256x1xf32>
    %220 = arith.divf %218, %219 : vector<256x1xf32>
    %221 = vector.broadcast %220 : vector<256x1xf32> to vector<256x128xf32>
    %222 = arith.subf %216, %221 : vector<256x128xf32>
    %223 = arith.mulf %222, %222 : vector<256x128xf32>
    %cst_162 = arith.constant dense<0.000000e+00> : vector<256xf32>
    %224 = vector.multi_reduction <add>, %223, %cst_162 [1] : vector<256x128xf32> to vector<256xf32>
    %225 = vector.shape_cast %224 : vector<256xf32> to vector<256x1xf32>
    %cst_163 = arith.constant 1.280000e+02 : f32
    %226 = vector.broadcast %cst_163 : f32 to vector<256x1xf32>
    %227 = arith.divf %225, %226 : vector<256x1xf32>
    %cst_164 = arith.constant 9.99999974E-6 : f32
    %228 = vector.broadcast %cst_164 : f32 to vector<256x1xf32>
    %229 = arith.addf %227, %228 : vector<256x1xf32>
    %230 = math.rsqrt %229 : vector<256x1xf32>
    %231 = vector.broadcast %230 : vector<256x1xf32> to vector<256x128xf32>
    %232 = arith.mulf %222, %231 : vector<256x128xf32>
    %c0_165 = arith.constant 0 : index
    %c0_166 = arith.constant 0 : index
    %c0_167 = arith.constant 0 : index
    %233 = vector.load %arg19[%c0_165, %c0_166, %c0_167] : memref<1x1x128xf32, #tpu.memory_space<vmem>>, vector<1x1x128xf32>
    %234 = vector.shape_cast %233 : vector<1x1x128xf32> to vector<1x128xf32>
    %235 = vector.broadcast %234 : vector<1x128xf32> to vector<256x128xf32>
    %236 = arith.mulf %232, %235 : vector<256x128xf32>
    %c0_168 = arith.constant 0 : index
    %c0_169 = arith.constant 0 : index
    %c0_170 = arith.constant 0 : index
    %237 = vector.load %arg20[%c0_168, %c0_169, %c0_170] : memref<1x1x128xf32, #tpu.memory_space<vmem>>, vector<1x1x128xf32>
    %238 = vector.shape_cast %237 : vector<1x1x128xf32> to vector<1x128xf32>
    %239 = vector.broadcast %238 : vector<1x128xf32> to vector<256x128xf32>
    %240 = arith.addf %236, %239 : vector<256x128xf32>
    %c0_171 = arith.constant 0 : index
    %c0_172 = arith.constant 0 : index
    %241 = vector.load %arg22[%c0_171, %c0_172] : memref<256x128xf32, #tpu.memory_space<vmem>>, vector<256x128xf32>
    tpu.vector_store %arg22[%c0_171, %c0_172], %240 {strides = array<i32>} : memref<256x128xf32, #tpu.memory_space<vmem>>, vector<256x128xf32>,
    %c1_i32 = arith.constant 1 : i32
    %242 = arith.cmpi eq, %arg0, %c1_i32 : i32
    %243 = arith.extui %242 : i1 to i32
    %c0_i32_173 = arith.constant 0 : i32
    %244 = arith.cmpi ne, %243, %c0_i32_173 : i32
    scf.if %244 {
      %c0_174 = arith.constant 0 : index
      %c0_175 = arith.constant 0 : index
      %245 = vector.load %arg22[%c0_174, %c0_175] : memref<256x128xf32, #tpu.memory_space<vmem>>, vector<256x128xf32>
      %246 = vector.extract_strided_slice %245 {offsets = [0, 0], sizes = [128, 128], strides = [1, 1]} : vector<256x128xf32> to vector<128x128xf32>
      %cst_176 = arith.constant dense<0.000000e+00> : vector<128xf32>
      %247 = vector.multi_reduction <add>, %246, %cst_176 [0] : vector<128x128xf32> to vector<128xf32>
      %248 = vector.shape_cast %247 : vector<128xf32> to vector<1x128xf32>
      %cst_177 = arith.constant 7.812500e-03 : f32
      %249 = vector.broadcast %cst_177 : f32 to vector<1x128xf32>
      %250 = arith.mulf %248, %249 : vector<1x128xf32>
      %251 = vector.extract_strided_slice %245 {offsets = [128, 0], sizes = [128, 128], strides = [1, 1]} : vector<256x128xf32> to vector<128x128xf32>
      %cst_178 = arith.constant dense<0.000000e+00> : vector<128xf32>
      %252 = vector.multi_reduction <add>, %251, %cst_178 [0] : vector<128x128xf32> to vector<128xf32>
      %253 = vector.shape_cast %252 : vector<128xf32> to vector<1x128xf32>
      %cst_179 = arith.constant 7.812500e-03 : f32
      %254 = vector.broadcast %cst_179 : f32 to vector<1x128xf32>
      %255 = arith.mulf %253, %254 : vector<1x128xf32>
      %256 = tpu.concatenate %250, %255 in 0 : vector<1x128xf32>, vector<1x128xf32> -> vector<2x128xf32>
      %c0_180 = arith.constant 0 : index
      %c0_181 = arith.constant 0 : index
      %257 = vector.load %arg7[%c0_180, %c0_181] : memref<128x128xf32, #tpu.memory_space<vmem>>, vector<128x128xf32>
      %cst_182 = arith.constant dense<0.000000e+00> : vector<2x128xf32>
      %258 = tpu.matmul %256, %257, %cst_182 {dimension_numbers = #tpu.dot_dimension_numbers<[1], [0], [0], [1], [0, 0, 1, 1], [], []>} : vector<2x128xf32>, vector<128x128xf32>, vector<2x128xf32> -> vector<2x128xf32>
      %c0_183 = arith.constant 0 : index
      %c0_184 = arith.constant 0 : index
      %259 = vector.load %arg8[%c0_183, %c0_184] : memref<1x128xf32, #tpu.memory_space<vmem>>, vector<1x128xf32>
      %260 = vector.broadcast %259 : vector<1x128xf32> to vector<2x128xf32>
      %261 = arith.addf %258, %260 : vector<2x128xf32>
      %c0_185 = arith.constant 0 : index
      %c0_186 = arith.constant 0 : index
      %262 = vector.load %arg21[%c0_185, %c0_186] : memref<2x128xf32, #tpu.memory_space<vmem>>, vector<2x128xf32>
      tpu.vector_store %arg21[%c0_185, %c0_186], %261 {strides = array<i32>} : memref<2x128xf32, #tpu.memory_space<vmem>>, vector<2x128xf32>,
    } else {
    }
    return
  }
  func.func @transform_0(%arg0: i32) -> (i32, i32) {
    %c0_i32 = arith.constant 0 : i32
    %c0_i32_0 = arith.constant 0 : i32
    %c0_i32_1 = arith.constant 0 : i32
    return %c0_i32, %c0_i32_0 : i32, i32
  }
  func.func @transform_1(%arg0: i32) -> (i32, i32) {
    %c0_i32 = arith.constant 0 : i32
    %c0_i32_0 = arith.constant 0 : i32
    %c0_i32_1 = arith.constant 0 : i32
    return %c0_i32, %c0_i32_0 : i32, i32
  }
  func.func @transform_2(%arg0: i32) -> (i32, i32) {
    %c0_i32 = arith.constant 0 : i32
    %c0_i32_0 = arith.constant 0 : i32
    %c0_i32_1 = arith.constant 0 : i32
    return %c0_i32, %c0_i32_0 : i32, i32
  }
  func.func @transform_3(%arg0: i32) -> (i32, i32) {
    %c0_i32 = arith.constant 0 : i32
    %c0_i32_0 = arith.constant 0 : i32
    %c0_i32_1 = arith.constant 0 : i32
    return %c0_i32, %c0_i32_0 : i32, i32
  }
  func.func @transform_4(%arg0: i32) -> (i32, i32) {
    %c0_i32 = arith.constant 0 : i32
    %c0_i32_0 = arith.constant 0 : i32
    %c0_i32_1 = arith.constant 0 : i32
    return %c0_i32, %c0_i32_0 : i32, i32
  }
  func.func @transform_5(%arg0: i32) -> (i32, i32) {
    %c0_i32 = arith.constant 0 : i32
    %c0_i32_0 = arith.constant 0 : i32
    %c0_i32_1 = arith.constant 0 : i32
    return %c0_i32, %c0_i32_0 : i32, i32
  }
  func.func @transform_6(%arg0: i32) -> (i32, i32) {
    %c0_i32 = arith.constant 0 : i32
    %c0_i32_0 = arith.constant 0 : i32
    %c0_i32_1 = arith.constant 0 : i32
    return %c0_i32, %c0_i32_0 : i32, i32
  }
  func.func @transform_7(%arg0: i32) -> (i32, i32) {
    %c0_i32 = arith.constant 0 : i32
    %c0_i32_0 = arith.constant 0 : i32
    %c0_i32_1 = arith.constant 0 : i32
    return %c0_i32, %c0_i32_0 : i32, i32
  }
  func.func @transform_8(%arg0: i32) -> (i32, i32, i32) {
    %c0_i32 = arith.constant 0 : i32
    %c0_i32_0 = arith.constant 0 : i32
    %c0_i32_1 = arith.constant 0 : i32
    return %arg0, %c0_i32, %c0_i32_0 : i32, i32, i32
  }
  func.func @transform_9(%arg0: i32) -> (i32, i32, i32) {
    %c0_i32 = arith.constant 0 : i32
    %c0_i32_0 = arith.constant 0 : i32
    %c0_i32_1 = arith.constant 0 : i32
    return %arg0, %c0_i32, %c0_i32_0 : i32, i32, i32
  }
  func.func @transform_10(%arg0: i32) -> (i32, i32, i32) {
    %c0_i32 = arith.constant 0 : i32
    %c0_i32_0 = arith.constant 0 : i32
    %c0_i32_1 = arith.constant 0 : i32
    return %arg0, %c0_i32, %c0_i32_0 : i32, i32, i32
  }
  func.func @transform_11(%arg0: i32) -> (i32, i32, i32) {
    %c0_i32 = arith.constant 0 : i32
    %c0_i32_0 = arith.constant 0 : i32
    %c0_i32_1 = arith.constant 0 : i32
    return %arg0, %c0_i32, %c0_i32_0 : i32, i32, i32
  }
  func.func @transform_12(%arg0: i32) -> (i32, i32, i32) {
    %c0_i32 = arith.constant 0 : i32
    %c0_i32_0 = arith.constant 0 : i32
    %c0_i32_1 = arith.constant 0 : i32
    return %arg0, %c0_i32, %c0_i32_0 : i32, i32, i32
  }
  func.func @transform_13(%arg0: i32) -> (i32, i32, i32) {
    %c0_i32 = arith.constant 0 : i32
    %c0_i32_0 = arith.constant 0 : i32
    %c0_i32_1 = arith.constant 0 : i32
    return %arg0, %c0_i32, %c0_i32_0 : i32, i32, i32
  }
  func.func @transform_14(%arg0: i32) -> (i32, i32, i32) {
    %c0_i32 = arith.constant 0 : i32
    %c0_i32_0 = arith.constant 0 : i32
    %c0_i32_1 = arith.constant 0 : i32
    return %arg0, %c0_i32, %c0_i32_0 : i32, i32, i32
  }
  func.func @transform_15(%arg0: i32) -> (i32, i32, i32) {
    %c0_i32 = arith.constant 0 : i32
    %c0_i32_0 = arith.constant 0 : i32
    %c0_i32_1 = arith.constant 0 : i32
    return %arg0, %c0_i32, %c0_i32_0 : i32, i32, i32
  }
  func.func @transform_16(%arg0: i32) -> (i32, i32, i32) {
    %c0_i32 = arith.constant 0 : i32
    %c0_i32_0 = arith.constant 0 : i32
    %c0_i32_1 = arith.constant 0 : i32
    return %arg0, %c0_i32, %c0_i32_0 : i32, i32, i32
  }
  func.func @transform_17(%arg0: i32) -> (i32, i32, i32) {
    %c0_i32 = arith.constant 0 : i32
    %c0_i32_0 = arith.constant 0 : i32
    %c0_i32_1 = arith.constant 0 : i32
    return %arg0, %c0_i32, %c0_i32_0 : i32, i32, i32
  }
  func.func @transform_18(%arg0: i32) -> (i32, i32, i32) {
    %c0_i32 = arith.constant 0 : i32
    %c0_i32_0 = arith.constant 0 : i32
    %c0_i32_1 = arith.constant 0 : i32
    return %arg0, %c0_i32, %c0_i32_0 : i32, i32, i32
  }
  func.func @transform_19(%arg0: i32) -> (i32, i32, i32) {
    %c0_i32 = arith.constant 0 : i32
    %c0_i32_0 = arith.constant 0 : i32
    %c0_i32_1 = arith.constant 0 : i32
    return %arg0, %c0_i32, %c0_i32_0 : i32, i32, i32
  }
  func.func @transform_20(%arg0: i32) -> (i32, i32) {
    %c0_i32 = arith.constant 0 : i32
    %c0_i32_0 = arith.constant 0 : i32
    %c0_i32_1 = arith.constant 0 : i32
    return %c0_i32, %c0_i32_0 : i32, i32
  }
}

</mosaic_0001>

<llo_original>
// kernel: forward.1
$region0: #{forward.1}
  #allocation0 [shape = 'u32[]', space=smem, size = 0x4, offset = 0x4, fixed_abs, tag = 'smem constant byte address 0x4 - core index']
  #allocation1 [shape = 'u32[72,128]{1,0:T(1,128)}', space=vmem, size = 0x9000, scoped, tag = 'internal scratch']
  #allocation2 [shape = 'f32[256,128]{1,0:T(8,128)}', space=vmem, size = 0x20000, scoped, tag = 'scratch operand']
  #allocation3 [shape = 'f32[256,384]{1,0:T(8,128)}', space=vmem, size = 0x60000, scoped, tag = 'scratch operand']
  %s0 = inlined_call_operand.vmem [shape: bf16[32,512], index: 0, kind: input, shape index: {}]
  %s1 = inlined_call_operand.vmem [shape: bf16[128,32], index: 1, kind: input, shape index: {}]
  %s2 = inlined_call_operand.vmem [shape: f32[128,1], index: 2, kind: input, shape index: {}]
  %s3 = inlined_call_operand.vmem [shape: bf16[256,128], index: 3, kind: input, shape index: {}]
  %s4 = inlined_call_operand.vmem [shape: f32[1,128], index: 4, kind: input, shape index: {}]
  %s5 = inlined_call_operand.vmem [shape: f32[128,128], index: 5, kind: input, shape index: {}]
  %s6 = inlined_call_operand.vmem [shape: f32[128,128], index: 6, kind: input, shape index: {}]
  %s7 = inlined_call_operand.vmem [shape: f32[1,128], index: 7, kind: input, shape index: {}]
  %s8 = inlined_call_operand.vmem [shape: bf16[2,128,384], index: 8, kind: input, shape index: {}]
  %s9 = inlined_call_operand.vmem [shape: f32[2,1,384], index: 9, kind: input, shape index: {}]
  %s10 = inlined_call_operand.vmem [shape: bf16[2,128,128], index: 10, kind: input, shape index: {}]
  %s11 = inlined_call_operand.vmem [shape: f32[2,1,128], index: 11, kind: input, shape index: {}]
  %s12 = inlined_call_operand.vmem [shape: bf16[2,128,2048], index: 12, kind: input, shape index: {}]
  %s13 = inlined_call_operand.vmem [shape: f32[2,1,2048], index: 13, kind: input, shape index: {}]
  %s14 = inlined_call_operand.vmem [shape: bf16[2,2048,128], index: 14, kind: input, shape index: {}]
  %s15 = inlined_call_operand.vmem [shape: f32[2,1,128], index: 15, kind: input, shape index: {}]
  %s16 = inlined_call_operand.vmem [shape: f32[2,1,128], index: 16, kind: input, shape index: {}]
  %s17 = inlined_call_operand.vmem [shape: f32[2,1,128], index: 17, kind: input, shape index: {}]
  %s18 = inlined_call_operand.vmem [shape: f32[2,1,128], index: 18, kind: input, shape index: {}]
  %s19 = inlined_call_operand.vmem [shape: f32[2,1,128], index: 19, kind: input, shape index: {}]
  %s20 = inlined_call_operand.hbm [shape: f32[2,128], index: 20, kind: output, shape index: {}]
  %s21 = sld [smem:[#allocation0]]
  $region121: #{forward.1} parent=0
    _
  %s23 = ssub.s32 1, %s21
  %s24 = scalar_select 0, %s23, %s21
  $region1: #{forward.1} parent=0
    #allocation4 [shape = 'u8[1024]{0}', space=vmem, size = 0x400, scoped, tag = 'output window, operand 0, single buffered']
    #allocation5 [shape = 's32[2]{0}', space=sflag, size = 0x8, scoped, tag = 'scoped memory for forward.1']
    %25 = vsyncpa [#allocation5], 0
    loop: start=0, step=1, limit=4
    $region2: #{forward.1} parent=1 // loop_pre_header
      _
    $region3: #{forward.1} parent=1 // loop_header
      %s27 = sphi 0, %s31
      %p28 = scmp.ge.s32.totalorder %s27, 4
      %s35 = sphi 0, %s35
      %s37 = sphi 0, %s35
      %s38 = sphi 0, %s37
      %s52 = sphi 0, %s38
      %s56 = sphi 0, %s56
      %s58 = sphi 0, %s56
      %s59 = sphi 0, %s58
      %s73 = sphi 0, %s59
      %s77 = sphi 0, %s77
      %s79 = sphi 0, %s77
      %s80 = sphi 0, %s79
      %s94 = sphi 0, %s80
      %s98 = sphi 0, %s98
      %s100 = sphi 0, %s98
      %s101 = sphi 0, %s100
      %s115 = sphi 0, %s101
      %s119 = sphi 0, %s119
      %s121 = sphi 0, %s119
      %s122 = sphi 0, %s121
      %s136 = sphi 0, %s122
      %s140 = sphi 0, %s140
      %s142 = sphi 0, %s140
      %s143 = sphi 0, %s142
      %s157 = sphi 0, %s143
      %s161 = sphi 0, %s161
      %s163 = sphi 0, %s161
      %s164 = sphi 0, %s163
      %s178 = sphi 0, %s164
      %s182 = sphi 0, %s182
      %s184 = sphi 0, %s182
      %s185 = sphi 0, %s184
      %s199 = sphi 0, %s185
      %s205 = sphi 0, %s207
      %s208 = sphi 0, %s205
      %s209 = sphi 0, %s208
      %s225 = sphi 0, %s209
      %s231 = sphi 0, %s233
      %s234 = sphi 0, %s231
      %s235 = sphi 0, %s234
      %s251 = sphi 0, %s235
      %s257 = sphi 0, %s259
      %s260 = sphi 0, %s257
      %s261 = sphi 0, %s260
      %s277 = sphi 0, %s261
      %s283 = sphi 0, %s285
      %s286 = sphi 0, %s283
      %s287 = sphi 0, %s286
      %s303 = sphi 0, %s287
      %s309 = sphi 0, %s311
      %s312 = sphi 0, %s309
      %s313 = sphi 0, %s312
      %s329 = sphi 0, %s313
      %s335 = sphi 0, %s337
      %s338 = sphi 0, %s335
      %s339 = sphi 0, %s338
      %s355 = sphi 0, %s339
      %s361 = sphi 0, %s363
      %s364 = sphi 0, %s361
      %s365 = sphi 0, %s364
      %s381 = sphi 0, %s365
      %s387 = sphi 0, %s389
      %s390 = sphi 0, %s387
      %s391 = sphi 0, %s390
      %s407 = sphi 0, %s391
      %s413 = sphi 0, %s415
      %s416 = sphi 0, %s413
      %s417 = sphi 0, %s416
      %s433 = sphi 0, %s417
      %s439 = sphi 0, %s441
      %s442 = sphi 0, %s439
      %s443 = sphi 0, %s442
      %s459 = sphi 0, %s443
      %s465 = sphi 0, %s467
      %s468 = sphi 0, %s465
      %s469 = sphi 0, %s468
      %s485 = sphi 0, %s469
      %s491 = sphi 0, %s493
      %s494 = sphi 0, %s491
      %s495 = sphi 0, %s494
      %s511 = sphi 0, %s495
      %s515 = sphi 0, %s515
      %s517 = sphi 0, %s515
      %s518 = sphi 0, %s517
      %s532 = sphi 0, %s518
    $region4: #{forward.1} parent=1 // loop_header_branch
      %30 = sbr.rel (%p28) target = $region8
    $region5: #{forward.1} parent=1 // loop_body
      %s32 = ssub.s32 %s27, 1
      %s33 = ssub.s32 %s27, 2
      %s34 = sadd.s32 %s27, 1
      %s36 = sadd.s32 %s35, 1
      %p39 = scmp.eq.s32.totalorder %s27, 1
      %p40 = scmp.ne.s32.totalorder %s35, %s37
      %p41 = scmp.eq.s32.totalorder %s27, 0
      %p42 = por %p40, %p41
      %p43 = scmp.ne.s32.totalorder %s35, %s37
      %p44 = scmp.eq.s32.totalorder %s32, 1
      %p45 = por %p43, %p44
      %p46 = scmp.ne.s32.totalorder %s37, %s38
      %p47 = scmp.eq.s32.totalorder %s32, 0
      %p48 = por %p46, %p47
      %p49 = scmp.ne.s32.totalorder %s37, %s38
      %p50 = scmp.eq.s32.totalorder %s33, 1
      %p51 = por %p49, %p50
      %p53 = scmp.ne.s32.totalorder %s38, %s52
      %p54 = scmp.eq.s32.totalorder %s33, 0
      %p55 = por %p53, %p54
      %s57 = sadd.s32 %s56, 1
      %p60 = scmp.eq.s32.totalorder %s27, 1
      %p61 = scmp.ne.s32.totalorder %s56, %s58
      %p62 = scmp.eq.s32.totalorder %s27, 0
      %p63 = por %p61, %p62
      %p64 = scmp.ne.s32.totalorder %s56, %s58
      %p65 = scmp.eq.s32.totalorder %s32, 1
      %p66 = por %p64, %p65
      %p67 = scmp.ne.s32.totalorder %s58, %s59
      %p68 = scmp.eq.s32.totalorder %s32, 0
      %p69 = por %p67, %p68
      %p70 = scmp.ne.s32.totalorder %s58, %s59
      %p71 = scmp.eq.s32.totalorder %s33, 1
      %p72 = por %p70, %p71
      %p74 = scmp.ne.s32.totalorder %s59, %s73
      %p75 = scmp.eq.s32.totalorder %s33, 0
      %p76 = por %p74, %p75
      %s78 = sadd.s32 %s77, 1
      %p81 = scmp.eq.s32.totalorder %s27, 1
      %p82 = scmp.ne.s32.totalorder %s77, %s79
      %p83 = scmp.eq.s32.totalorder %s27, 0
      %p84 = por %p82, %p83
      %p85 = scmp.ne.s32.totalorder %s77, %s79
      %p86 = scmp.eq.s32.totalorder %s32, 1
      %p87 = por %p85, %p86
      %p88 = scmp.ne.s32.totalorder %s79, %s80
      %p89 = scmp.eq.s32.totalorder %s32, 0
      %p90 = por %p88, %p89
      %p91 = scmp.ne.s32.totalorder %s79, %s80
      %p92 = scmp.eq.s32.totalorder %s33, 1
      %p93 = por %p91, %p92
      %p95 = scmp.ne.s32.totalorder %s80, %s94
      %p96 = scmp.eq.s32.totalorder %s33, 0
      %p97 = por %p95, %p96
      %s99 = sadd.s32 %s98, 1
      %p102 = scmp.eq.s32.totalorder %s27, 1
      %p103 = scmp.ne.s32.totalorder %s98, %s100
      %p104 = scmp.eq.s32.totalorder %s27, 0
      %p105 = por %p103, %p104
      %p106 = scmp.ne.s32.totalorder %s98, %s100
      %p107 = scmp.eq.s32.totalorder %s32, 1
      %p108 = por %p106, %p107
      %p109 = scmp.ne.s32.totalorder %s100, %s101
      %p110 = scmp.eq.s32.totalorder %s32, 0
      %p111 = por %p109, %p110
      %p112 = scmp.ne.s32.totalorder %s100, %s101
      %p113 = scmp.eq.s32.totalorder %s33, 1
      %p114 = por %p112, %p113
      %p116 = scmp.ne.s32.totalorder %s101, %s115
      %p117 = scmp.eq.s32.totalorder %s33, 0
      %p118 = por %p116, %p117
      %s120 = sadd.s32 %s119, 1
      %p123 = scmp.eq.s32.totalorder %s27, 1
      %p124 = scmp.ne.s32.totalorder %s119, %s121
      %p125 = scmp.eq.s32.totalorder %s27, 0
      %p126 = por %p124, %p125
      %p127 = scmp.ne.s32.totalorder %s119, %s121
      %p128 = scmp.eq.s32.totalorder %s32, 1
      %p129 = por %p127, %p128
      %p130 = scmp.ne.s32.totalorder %s121, %s122
      %p131 = scmp.eq.s32.totalorder %s32, 0
      %p132 = por %p130, %p131
      %p133 = scmp.ne.s32.totalorder %s121, %s122
      %p134 = scmp.eq.s32.totalorder %s33, 1
      %p135 = por %p133, %p134
      %p137 = scmp.ne.s32.totalorder %s122, %s136
      %p138 = scmp.eq.s32.totalorder %s33, 0
      %p139 = por %p137, %p138
      %s141 = sadd.s32 %s140, 1
      %p144 = scmp.eq.s32.totalorder %s27, 1
      %p145 = scmp.ne.s32.totalorder %s140, %s142
      %p146 = scmp.eq.s32.totalorder %s27, 0
      %p147 = por %p145, %p146
      %p148 = scmp.ne.s32.totalorder %s140, %s142
      %p149 = scmp.eq.s32.totalorder %s32, 1
      %p150 = por %p148, %p149
      %p151 = scmp.ne.s32.totalorder %s142, %s143
      %p152 = scmp.eq.s32.totalorder %s32, 0
      %p153 = por %p151, %p152
      %p154 = scmp.ne.s32.totalorder %s142, %s143
      %p155 = scmp.eq.s32.totalorder %s33, 1
      %p156 = por %p154, %p155
      %p158 = scmp.ne.s32.totalorder %s143, %s157
      %p159 = scmp.eq.s32.totalorder %s33, 0
      %p160 = por %p158, %p159
      %s162 = sadd.s32 %s161, 1
      %p165 = scmp.eq.s32.totalorder %s27, 1
      %p166 = scmp.ne.s32.totalorder %s161, %s163
      %p167 = scmp.eq.s32.totalorder %s27, 0
      %p168 = por %p166, %p167
      %p169 = scmp.ne.s32.totalorder %s161, %s163
      %p170 = scmp.eq.s32.totalorder %s32, 1
      %p171 = por %p169, %p170
      %p172 = scmp.ne.s32.totalorder %s163, %s164
      %p173 = scmp.eq.s32.totalorder %s32, 0
      %p174 = por %p172, %p173
      %p175 = scmp.ne.s32.totalorder %s163, %s164
      %p176 = scmp.eq.s32.totalorder %s33, 1
      %p177 = por %p175, %p176
      %p179 = scmp.ne.s32.totalorder %s164, %s178
      %p180 = scmp.eq.s32.totalorder %s33, 0
      %p181 = por %p179, %p180
      %s183 = sadd.s32 %s182, 1
      %p186 = scmp.eq.s32.totalorder %s27, 1
      %p187 = scmp.ne.s32.totalorder %s182, %s184
      %p188 = scmp.eq.s32.totalorder %s27, 0
      %p189 = por %p187, %p188
      %p190 = scmp.ne.s32.totalorder %s182, %s184
      %p191 = scmp.eq.s32.totalorder %s32, 1
      %p192 = por %p190, %p191
      %p193 = scmp.ne.s32.totalorder %s184, %s185
      %p194 = scmp.eq.s32.totalorder %s32, 0
      %p195 = por %p193, %p194
      %p196 = scmp.ne.s32.totalorder %s184, %s185
      %p197 = scmp.eq.s32.totalorder %s33, 1
      %p198 = por %p196, %p197
      %p200 = scmp.ne.s32.totalorder %s185, %s199
      %p201 = scmp.eq.s32.totalorder %s33, 0
      %p202 = por %p200, %p201
      %s203 = ssub.s32 %s27, %s34
      %p204 = scmp.eq.s32.totalorder %s203, 0
      %s206 = sadd.s32 %s205, 1
      %s207 = scalar_select %p204, %s205, %s206
      %p210 = pneg %p204
      %p211 = scmp.eq.s32.totalorder %s27, 1
      %p212 = por %p210, %p211
      %p213 = scmp.ne.s32.totalorder %s205, %s208
      %p214 = scmp.eq.s32.totalorder %s27, 0
      %p215 = por %p213, %p214
      %p216 = scmp.ne.s32.totalorder %s205, %s208
      %p217 = scmp.eq.s32.totalorder %s32, 1
      %p218 = por %p216, %p217
      %p219 = scmp.ne.s32.totalorder %s208, %s209
      %p220 = scmp.eq.s32.totalorder %s32, 0
      %p221 = por %p219, %p220
      %p222 = scmp.ne.s32.totalorder %s208, %s209
      %p223 = scmp.eq.s32.totalorder %s33, 1
      %p224 = por %p222, %p223
      %p226 = scmp.ne.s32.totalorder %s209, %s225
      %p227 = scmp.eq.s32.totalorder %s33, 0
      %p228 = por %p226, %p227
      %s229 = ssub.s32 %s27, %s34
      %p230 = scmp.eq.s32.totalorder %s229, 0
      %s232 = sadd.s32 %s231, 1
      %s233 = scalar_select %p230, %s231, %s232
      %p236 = pneg %p230
      %p237 = scmp.eq.s32.totalorder %s27, 1
      %p238 = por %p236, %p237
      %p239 = scmp.ne.s32.totalorder %s231, %s234
      %p240 = scmp.eq.s32.totalorder %s27, 0
      %p241 = por %p239, %p240
      %p242 = scmp.ne.s32.totalorder %s231, %s234
      %p243 = scmp.eq.s32.totalorder %s32, 1
      %p244 = por %p242, %p243
      %p245 = scmp.ne.s32.totalorder %s234, %s235
      %p246 = scmp.eq.s32.totalorder %s32, 0
      %p247 = por %p245, %p246
      %p248 = scmp.ne.s32.totalorder %s234, %s235
      %p249 = scmp.eq.s32.totalorder %s33, 1
      %p250 = por %p248, %p249
      %p252 = scmp.ne.s32.totalorder %s235, %s251
      %p253 = scmp.eq.s32.totalorder %s33, 0
      %p254 = por %p252, %p253
      %s255 = ssub.s32 %s27, %s34
      %p256 = scmp.eq.s32.totalorder %s255, 0
      %s258 = sadd.s32 %s257, 1
      %s259 = scalar_select %p256, %s257, %s258
      %p262 = pneg %p256
      %p263 = scmp.eq.s32.totalorder %s27, 1
      %p264 = por %p262, %p263
      %p265 = scmp.ne.s32.totalorder %s257, %s260
      %p266 = scmp.eq.s32.totalorder %s27, 0
      %p267 = por %p265, %p266
      %p268 = scmp.ne.s32.totalorder %s257, %s260
      %p269 = scmp.eq.s32.totalorder %s32, 1
      %p270 = por %p268, %p269
      %p271 = scmp.ne.s32.totalorder %s260, %s261
      %p272 = scmp.eq.s32.totalorder %s32, 0
      %p273 = por %p271, %p272
      %p274 = scmp.ne.s32.totalorder %s260, %s261
      %p275 = scmp.eq.s32.totalorder %s33, 1
      %p276 = por %p274, %p275
      %p278 = scmp.ne.s32.totalorder %s261, %s277
      %p279 = scmp.eq.s32.totalorder %s33, 0
      %p280 = por %p278, %p279
      %s281 = ssub.s32 %s27, %s34
      %p282 = scmp.eq.s32.totalorder %s281, 0
      %s284 = sadd.s32 %s283, 1
      %s285 = scalar_select %p282, %s283, %s284
      %p288 = pneg %p282
      %p289 = scmp.eq.s32.totalorder %s27, 1
      %p290 = por %p288, %p289
      %p291 = scmp.ne.s32.totalorder %s283, %s286
      %p292 = scmp.eq.s32.totalorder %s27, 0
      %p293 = por %p291, %p292
      %p294 = scmp.ne.s32.totalorder %s283, %s286
      %p295 = scmp.eq.s32.totalorder %s32, 1
      %p296 = por %p294, %p295
      %p297 = scmp.ne.s32.totalorder %s286, %s287
      %p298 = scmp.eq.s32.totalorder %s32, 0
      %p299 = por %p297, %p298
      %p300 = scmp.ne.s32.totalorder %s286, %s287
      %p301 = scmp.eq.s32.totalorder %s33, 1
      %p302 = por %p300, %p301
      %p304 = scmp.ne.s32.totalorder %s287, %s303
      %p305 = scmp.eq.s32.totalorder %s33, 0
      %p306 = por %p304, %p305
      %s307 = ssub.s32 %s27, %s34
      %p308 = scmp.eq.s32.totalorder %s307, 0
      %s310 = sadd.s32 %s309, 1
      %s311 = scalar_select %p308, %s309, %s310
      %p314 = pneg %p308
      %p315 = scmp.eq.s32.totalorder %s27, 1
      %p316 = por %p314, %p315
      %p317 = scmp.ne.s32.totalorder %s309, %s312
      %p318 = scmp.eq.s32.totalorder %s27, 0
      %p319 = por %p317, %p318
      %p320 = scmp.ne.s32.totalorder %s309, %s312
      %p321 = scmp.eq.s32.totalorder %s32, 1
      %p322 = por %p320, %p321
      %p323 = scmp.ne.s32.totalorder %s312, %s313
      %p324 = scmp.eq.s32.totalorder %s32, 0
      %p325 = por %p323, %p324
      %p326 = scmp.ne.s32.totalorder %s312, %s313
      %p327 = scmp.eq.s32.totalorder %s33, 1
      %p328 = por %p326, %p327
      %p330 = scmp.ne.s32.totalorder %s313, %s329
      %p331 = scmp.eq.s32.totalorder %s33, 0
      %p332 = por %p330, %p331
      %s333 = ssub.s32 %s27, %s34
      %p334 = scmp.eq.s32.totalorder %s333, 0
      %s336 = sadd.s32 %s335, 1
      %s337 = scalar_select %p334, %s335, %s336
      %p340 = pneg %p334
      %p341 = scmp.eq.s32.totalorder %s27, 1
      %p342 = por %p340, %p341
      %p343 = scmp.ne.s32.totalorder %s335, %s338
      %p344 = scmp.eq.s32.totalorder %s27, 0
      %p345 = por %p343, %p344
      %p346 = scmp.ne.s32.totalorder %s335, %s338
      %p347 = scmp.eq.s32.totalorder %s32, 1
      %p348 = por %p346, %p347
      %p349 = scmp.ne.s32.totalorder %s338, %s339
      %p350 = scmp.eq.s32.totalorder %s32, 0
      %p351 = por %p349, %p350
      %p352 = scmp.ne.s32.totalorder %s338, %s339
      %p353 = scmp.eq.s32.totalorder %s33, 1
      %p354 = por %p352, %p353
      %p356 = scmp.ne.s32.totalorder %s339, %s355
      %p357 = scmp.eq.s32.totalorder %s33, 0
      %p358 = por %p356, %p357
      %s359 = ssub.s32 %s27, %s34
      %p360 = scmp.eq.s32.totalorder %s359, 0
      %s362 = sadd.s32 %s361, 1
      %s363 = scalar_select %p360, %s361, %s362
      %p366 = pneg %p360
      %p367 = scmp.eq.s32.totalorder %s27, 1
      %p368 = por %p366, %p367
      %p369 = scmp.ne.s32.totalorder %s361, %s364
      %p370 = scmp.eq.s32.totalorder %s27, 0
      %p371 = por %p369, %p370
      %p372 = scmp.ne.s32.totalorder %s361, %s364
      %p373 = scmp.eq.s32.totalorder %s32, 1
      %p374 = por %p372, %p373
      %p375 = scmp.ne.s32.totalorder %s364, %s365
      %p376 = scmp.eq.s32.totalorder %s32, 0
      %p377 = por %p375, %p376
      %p378 = scmp.ne.s32.totalorder %s364, %s365
      %p379 = scmp.eq.s32.totalorder %s33, 1
      %p380 = por %p378, %p379
      %p382 = scmp.ne.s32.totalorder %s365, %s381
      %p383 = scmp.eq.s32.totalorder %s33, 0
      %p384 = por %p382, %p383
      %s385 = ssub.s32 %s27, %s34
      %p386 = scmp.eq.s32.totalorder %s385, 0
      %s388 = sadd.s32 %s387, 1
      %s389 = scalar_select %p386, %s387, %s388
      %p392 = pneg %p386
      %p393 = scmp.eq.s32.totalorder %s27, 1
      %p394 = por %p392, %p393
      %p395 = scmp.ne.s32.totalorder %s387, %s390
      %p396 = scmp.eq.s32.totalorder %s27, 0
      %p397 = por %p395, %p396
      %p398 = scmp.ne.s32.totalorder %s387, %s390
      %p399 = scmp.eq.s32.totalorder %s32, 1
      %p400 = por %p398, %p399
      %p401 = scmp.ne.s32.totalorder %s390, %s391
      %p402 = scmp.eq.s32.totalorder %s32, 0
      %p403 = por %p401, %p402
      %p404 = scmp.ne.s32.totalorder %s390, %s391
      %p405 = scmp.eq.s32.totalorder %s33, 1
      %p406 = por %p404, %p405
      %p408 = scmp.ne.s32.totalorder %s391, %s407
      %p409 = scmp.eq.s32.totalorder %s33, 0
      %p410 = por %p408, %p409
      %s411 = ssub.s32 %s27, %s34
      %p412 = scmp.eq.s32.totalorder %s411, 0
      %s414 = sadd.s32 %s413, 1
      %s415 = scalar_select %p412, %s413, %s414
      %p418 = pneg %p412
      %p419 = scmp.eq.s32.totalorder %s27, 1
      %p420 = por %p418, %p419
      %p421 = scmp.ne.s32.totalorder %s413, %s416
      %p422 = scmp.eq.s32.totalorder %s27, 0
      %p423 = por %p421, %p422
      %p424 = scmp.ne.s32.totalorder %s413, %s416
      %p425 = scmp.eq.s32.totalorder %s32, 1
      %p426 = por %p424, %p425
      %p427 = scmp.ne.s32.totalorder %s416, %s417
      %p428 = scmp.eq.s32.totalorder %s32, 0
      %p429 = por %p427, %p428
      %p430 = scmp.ne.s32.totalorder %s416, %s417
      %p431 = scmp.eq.s32.totalorder %s33, 1
      %p432 = por %p430, %p431
      %p434 = scmp.ne.s32.totalorder %s417, %s433
      %p435 = scmp.eq.s32.totalorder %s33, 0
      %p436 = por %p434, %p435
      %s437 = ssub.s32 %s27, %s34
      %p438 = scmp.eq.s32.totalorder %s437, 0
      %s440 = sadd.s32 %s439, 1
      %s441 = scalar_select %p438, %s439, %s440
      %p444 = pneg %p438
      %p445 = scmp.eq.s32.totalorder %s27, 1
      %p446 = por %p444, %p445
      %p447 = scmp.ne.s32.totalorder %s439, %s442
      %p448 = scmp.eq.s32.totalorder %s27, 0
      %p449 = por %p447, %p448
      %p450 = scmp.ne.s32.totalorder %s439, %s442
      %p451 = scmp.eq.s32.totalorder %s32, 1
      %p452 = por %p450, %p451
      %p453 = scmp.ne.s32.totalorder %s442, %s443
      %p454 = scmp.eq.s32.totalorder %s32, 0
      %p455 = por %p453, %p454
      %p456 = scmp.ne.s32.totalorder %s442, %s443
      %p457 = scmp.eq.s32.totalorder %s33, 1
      %p458 = por %p456, %p457
      %p460 = scmp.ne.s32.totalorder %s443, %s459
      %p461 = scmp.eq.s32.totalorder %s33, 0
      %p462 = por %p460, %p461
      %s463 = ssub.s32 %s27, %s34
      %p464 = scmp.eq.s32.totalorder %s463, 0
      %s466 = sadd.s32 %s465, 1
      %s467 = scalar_select %p464, %s465, %s466
      %p470 = pneg %p464
      %p471 = scmp.eq.s32.totalorder %s27, 1
      %p472 = por %p470, %p471
      %p473 = scmp.ne.s32.totalorder %s465, %s468
      %p474 = scmp.eq.s32.totalorder %s27, 0
      %p475 = por %p473, %p474
      %p476 = scmp.ne.s32.totalorder %s465, %s468
      %p477 = scmp.eq.s32.totalorder %s32, 1
      %p478 = por %p476, %p477
      %p479 = scmp.ne.s32.totalorder %s468, %s469
      %p480 = scmp.eq.s32.totalorder %s32, 0
      %p481 = por %p479, %p480
      %p482 = scmp.ne.s32.totalorder %s468, %s469
      %p483 = scmp.eq.s32.totalorder %s33, 1
      %p484 = por %p482, %p483
      %p486 = scmp.ne.s32.totalorder %s469, %s485
      %p487 = scmp.eq.s32.totalorder %s33, 0
      %p488 = por %p486, %p487
      %s489 = ssub.s32 %s27, %s34
      %p490 = scmp.eq.s32.totalorder %s489, 0
      %s492 = sadd.s32 %s491, 1
      %s493 = scalar_select %p490, %s491, %s492
      %p496 = pneg %p490
      %p497 = scmp.eq.s32.totalorder %s27, 1
      %p498 = por %p496, %p497
      %p499 = scmp.ne.s32.totalorder %s491, %s494
      %p500 = scmp.eq.s32.totalorder %s27, 0
      %p501 = por %p499, %p500
      %p502 = scmp.ne.s32.totalorder %s491, %s494
      %p503 = scmp.eq.s32.totalorder %s32, 1
      %p504 = por %p502, %p503
      %p505 = scmp.ne.s32.totalorder %s494, %s495
      %p506 = scmp.eq.s32.totalorder %s32, 0
      %p507 = por %p505, %p506
      %p508 = scmp.ne.s32.totalorder %s494, %s495
      %p509 = scmp.eq.s32.totalorder %s33, 1
      %p510 = por %p508, %p509
      %p512 = scmp.ne.s32.totalorder %s495, %s511
      %p513 = scmp.eq.s32.totalorder %s33, 0
      %p514 = por %p512, %p513
      %s516 = sadd.s32 %s515, 1
      %p519 = scmp.eq.s32.totalorder %s27, 1
      %p520 = scmp.ne.s32.totalorder %s515, %s517
      %p521 = scmp.eq.s32.totalorder %s27, 0
      %p522 = por %p520, %p521
      %p523 = scmp.ne.s32.totalorder %s515, %s517
      %p524 = scmp.eq.s32.totalorder %s32, 1
      %p525 = por %p523, %p524
      %p526 = scmp.ne.s32.totalorder %s517, %s518
      %p527 = scmp.eq.s32.totalorder %s32, 0
      %p528 = por %p526, %p527
      %p529 = scmp.ne.s32.totalorder %s517, %s518
      %p530 = scmp.eq.s32.totalorder %s33, 1
      %p531 = por %p529, %p530
      %p533 = scmp.ne.s32.totalorder %s518, %s532
      %p534 = scmp.eq.s32.totalorder %s33, 0
      %p535 = por %p533, %p534
      %p536 = scmp.le.s32.totalorder 1, %s27
      %p537 = scmp.lt.s32.totalorder %s27, 3
      %p538 = pnand %p536, %p537
      %p539 = pneg %p538
      // Predicated region
      $region9: #{forward.1} parent=5 // pred_check
        _
      $region10: #{forward.1} parent=5 // pred_check_branch
        %541 = sbr.rel (%p538) target = $region12
      $region11: #{forward.1} parent=5 // pred_region
        %s542 = ssub.s32 %s27, 1
        // Predicated region
        $region13: #{forward.1} parent=11 // pred_check
          %p543 = pneg %p48
        $region14: #{forward.1} parent=11 // pred_check_branch
          %545 = sbr.rel (%p543) target = $region16
        $region15: #{forward.1} parent=11 // pred_region
          _
        $region16: #{forward.1} parent=11 // pred_fallthru
          _
        // Predicated region
        $region17: #{forward.1} parent=11 // pred_check
          %p546 = pneg %p69
        $region18: #{forward.1} parent=11 // pred_check_branch
          %548 = sbr.rel (%p546) target = $region20
        $region19: #{forward.1} parent=11 // pred_region
          _
        $region20: #{forward.1} parent=11 // pred_fallthru
          _
        // Predicated region
        $region21: #{forward.1} parent=11 // pred_check
          %p549 = pneg %p90
        $region22: #{forward.1} parent=11 // pred_check_branch
          %551 = sbr.rel (%p549) target = $region24
        $region23: #{forward.1} parent=11 // pred_region
          _
        $region24: #{forward.1} parent=11 // pred_fallthru
          _
        // Predicated region
        $region25: #{forward.1} parent=11 // pred_check
          %p552 = pneg %p111
        $region26: #{forward.1} parent=11 // pred_check_branch
          %554 = sbr.rel (%p552) target = $region28
        $region27: #{forward.1} parent=11 // pred_region
          _
        $region28: #{forward.1} parent=11 // pred_fallthru
          _
        // Predicated region
        $region29: #{forward.1} parent=11 // pred_check
          %p555 = pneg %p132
        $region30: #{forward.1} parent=11 // pred_check_branch
          %557 = sbr.rel (%p555) target = $region32
        $region31: #{forward.1} parent=11 // pred_region
          _
        $region32: #{forward.1} parent=11 // pred_fallthru
          _
        // Predicated region
        $region33: #{forward.1} parent=11 // pred_check
          %p558 = pneg %p153
        $region34: #{forward.1} parent=11 // pred_check_branch
          %560 = sbr.rel (%p558) target = $region36
        $region35: #{forward.1} parent=11 // pred_region
          _
        $region36: #{forward.1} parent=11 // pred_fallthru
          _
        // Predicated region
        $region37: #{forward.1} parent=11 // pred_check
          %p561 = pneg %p174
        $region38: #{forward.1} parent=11 // pred_check_branch
          %563 = sbr.rel (%p561) target = $region40
        $region39: #{forward.1} parent=11 // pred_region
          _
        $region40: #{forward.1} parent=11 // pred_fallthru
          _
        // Predicated region
        $region41: #{forward.1} parent=11 // pred_check
          %p564 = pneg %p195
        $region42: #{forward.1} parent=11 // pred_check_branch
          %566 = sbr.rel (%p564) target = $region44
        $region43: #{forward.1} parent=11 // pred_region
          _
        $region44: #{forward.1} parent=11 // pred_fallthru
          _
      $region12: #{forward.1} parent=5 // pred_fallthru
        _
      %p567 = scmp.lt.s32.totalorder %s27, 2
      // Predicated region
      $region45: #{forward.1} parent=5 // pred_check
        %p568 = pneg %p567
      $region46: #{forward.1} parent=5 // pred_check_branch
        %570 = sbr.rel (%p568) target = $region48
      $region47: #{forward.1} parent=5 // pred_region
        // Predicated region
        $region49: #{forward.1} parent=47 // pred_check
          %p571 = pneg %p215
        $region50: #{forward.1} parent=47 // pred_check_branch
          %573 = sbr.rel (%p571) target = $region52
        $region51: #{forward.1} parent=47 // pred_region
          %p574 = scmp.lt.s32.totalorder %s27, 1
          %s575 = scalar_select %p574, %s27, 1
          %s576 = smul.addr %s575, 48
          %s577 = smul.addr %s576, 4
          %s578 = scalar_lea.vmem %s8, %s577
        $region52: #{forward.1} parent=47 // pred_fallthru
          _
        // Predicated region
        $region53: #{forward.1} parent=47 // pred_check
          %p579 = pneg %p241
        $region54: #{forward.1} parent=47 // pred_check_branch
          %581 = sbr.rel (%p579) target = $region56
        $region55: #{forward.1} parent=47 // pred_region
          %p582 = scmp.lt.s32.totalorder %s27, 1
          %s583 = scalar_select %p582, %s27, 1
          %s584 = smul.addr %s583, 3
          %s585 = scalar_lea.vmem %s9, %s584
        $region56: #{forward.1} parent=47 // pred_fallthru
          _
        // Predicated region
        $region57: #{forward.1} parent=47 // pred_check
          %p586 = pneg %p267
        $region58: #{forward.1} parent=47 // pred_check_branch
          %588 = sbr.rel (%p586) target = $region60
        $region59: #{forward.1} parent=47 // pred_region
          %p589 = scmp.lt.s32.totalorder %s27, 1
          %s590 = scalar_select %p589, %s27, 1
          %s591 = smul.addr %s590, 16
          %s592 = smul.addr %s591, 4
          %s593 = scalar_lea.vmem %s10, %s592
        $region60: #{forward.1} parent=47 // pred_fallthru
          _
        // Predicated region
        $region61: #{forward.1} parent=47 // pred_check
          %p594 = pneg %p293
        $region62: #{forward.1} parent=47 // pred_check_branch
          %596 = sbr.rel (%p594) target = $region64
        $region63: #{forward.1} parent=47 // pred_region
          %p597 = scmp.lt.s32.totalorder %s27, 1
          %s598 = scalar_select %p597, %s27, 1
          %s599 = scalar_lea.vmem %s11, %s598
        $region64: #{forward.1} parent=47 // pred_fallthru
          _
        // Predicated region
        $region65: #{forward.1} parent=47 // pred_check
          %p600 = pneg %p319
        $region66: #{forward.1} parent=47 // pred_check_branch
          %602 = sbr.rel (%p600) target = $region68
        $region67: #{forward.1} parent=47 // pred_region
          %p603 = scmp.lt.s32.totalorder %s27, 1
          %s604 = scalar_select %p603, %s27, 1
          %s605 = smul.addr %s604, 256
          %s606 = smul.addr %s605, 4
          %s607 = scalar_lea.vmem %s12, %s606
        $region68: #{forward.1} parent=47 // pred_fallthru
          _
        // Predicated region
        $region69: #{forward.1} parent=47 // pred_check
          %p608 = pneg %p345
        $region70: #{forward.1} parent=47 // pred_check_branch
          %610 = sbr.rel (%p608) target = $region72
        $region71: #{forward.1} parent=47 // pred_region
          %p611 = scmp.lt.s32.totalorder %s27, 1
          %s612 = scalar_select %p611, %s27, 1
          %s613 = smul.addr %s612, 16
          %s614 = scalar_lea.vmem %s13, %s613
        $region72: #{forward.1} parent=47 // pred_fallthru
          _
        // Predicated region
        $region73: #{forward.1} parent=47 // pred_check
          %p615 = pneg %p371
        $region74: #{forward.1} parent=47 // pred_check_branch
          %617 = sbr.rel (%p615) target = $region76
        $region75: #{forward.1} parent=47 // pred_region
          %p618 = scmp.lt.s32.totalorder %s27, 1
          %s619 = scalar_select %p618, %s27, 1
          %s620 = smul.addr %s619, 256
          %s621 = smul.addr %s620, 4
          %s622 = scalar_lea.vmem %s14, %s621
        $region76: #{forward.1} parent=47 // pred_fallthru
          _
        // Predicated region
        $region77: #{forward.1} parent=47 // pred_check
          %p623 = pneg %p397
        $region78: #{forward.1} parent=47 // pred_check_branch
          %625 = sbr.rel (%p623) target = $region80
        $region79: #{forward.1} parent=47 // pred_region
          %p626 = scmp.lt.s32.totalorder %s27, 1
          %s627 = scalar_select %p626, %s27, 1
          %s628 = scalar_lea.vmem %s15, %s627
        $region80: #{forward.1} parent=47 // pred_fallthru
          _
        // Predicated region
        $region81: #{forward.1} parent=47 // pred_check
          %p629 = pneg %p423
        $region82: #{forward.1} parent=47 // pred_check_branch
          %631 = sbr.rel (%p629) target = $region84
        $region83: #{forward.1} parent=47 // pred_region
          %p632 = scmp.lt.s32.totalorder %s27, 1
          %s633 = scalar_select %p632, %s27, 1
          %s634 = scalar_lea.vmem %s16, %s633
        $region84: #{forward.1} parent=47 // pred_fallthru
          _
        // Predicated region
        $region85: #{forward.1} parent=47 // pred_check
          %p635 = pneg %p449
        $region86: #{forward.1} parent=47 // pred_check_branch
          %637 = sbr.rel (%p635) target = $region88
        $region87: #{forward.1} parent=47 // pred_region
          %p638 = scmp.lt.s32.totalorder %s27, 1
          %s639 = scalar_select %p638, %s27, 1
          %s640 = scalar_lea.vmem %s17, %s639
        $region88: #{forward.1} parent=47 // pred_fallthru
          _
        // Predicated region
        $region89: #{forward.1} parent=47 // pred_check
          %p641 = pneg %p475
        $region90: #{forward.1} parent=47 // pred_check_branch
          %643 = sbr.rel (%p641) target = $region92
        $region91: #{forward.1} parent=47 // pred_region
          %p644 = scmp.lt.s32.totalorder %s27, 1
          %s645 = scalar_select %p644, %s27, 1
          %s646 = scalar_lea.vmem %s18, %s645
        $region92: #{forward.1} parent=47 // pred_fallthru
          _
        // Predicated region
        $region93: #{forward.1} parent=47 // pred_check
          %p647 = pneg %p501
        $region94: #{forward.1} parent=47 // pred_check_branch
          %649 = sbr.rel (%p647) target = $region96
        $region95: #{forward.1} parent=47 // pred_region
          %p650 = scmp.lt.s32.totalorder %s27, 1
          %s651 = scalar_select %p650, %s27, 1
          %s652 = scalar_lea.vmem %s19, %s651
        $region96: #{forward.1} parent=47 // pred_fallthru
          _
      $region48: #{forward.1} parent=5 // pred_fallthru
        _
      %p653 = scmp.le.s32.totalorder 1, %s27
      %p654 = scmp.lt.s32.totalorder %s27, 3
      %p655 = pnand %p653, %p654
      %p656 = pneg %p655
      // Predicated region
      $region97: #{forward.1} parent=5 // pred_check
        _
      $region98: #{forward.1} parent=5 // pred_check_branch
        %658 = sbr.rel (%p655) target = $region100
      $region99: #{forward.1} parent=5 // pred_region
        %s659 = ssub.s32 %s27, 1
        %p660 = pneg %p48
        %p661 = pneg %p45
        %p662 = pneg %p69
        %p663 = pneg %p66
        %p664 = pneg %p90
        %p665 = pneg %p87
        %p666 = pneg %p111
        %p667 = pneg %p108
        %p668 = pneg %p132
        %p669 = pneg %p129
        %p670 = pneg %p153
        %p671 = pneg %p150
        %p672 = pneg %p174
        %p673 = pneg %p171
        %p674 = pneg %p195
        %p675 = pneg %p192
        %p676 = scmp.lt.s32.totalorder %s32, 1
        %s677 = scalar_select %p676, %s32, 1
        %s678 = smul.addr %s677, 48
        %s679 = smul.addr %s678, 4
        %s680 = scalar_lea.vmem %s8, %s679
        %p681 = pneg %p221
        %p682 = pneg %p218
        %p683 = scmp.lt.s32.totalorder %s32, 1
        %s684 = scalar_select %p683, %s32, 1
        %s685 = smul.addr %s684, 3
        %s686 = scalar_lea.vmem %s9, %s685
        %p687 = pneg %p247
        %p688 = pneg %p244
        %p689 = scmp.lt.s32.totalorder %s32, 1
        %s690 = scalar_select %p689, %s32, 1
        %s691 = smul.addr %s690, 16
        %s692 = smul.addr %s691, 4
        %s693 = scalar_lea.vmem %s10, %s692
        %p694 = pneg %p273
        %p695 = pneg %p270
        %p696 = scmp.lt.s32.totalorder %s32, 1
        %s697 = scalar_select %p696, %s32, 1
        %s698 = scalar_lea.vmem %s11, %s697
        %p699 = pneg %p299
        %p700 = pneg %p296
        %p701 = scmp.lt.s32.totalorder %s32, 1
        %s702 = scalar_select %p701, %s32, 1
        %s703 = smul.addr %s702, 256
        %s704 = smul.addr %s703, 4
        %s705 = scalar_lea.vmem %s12, %s704
        %p706 = pneg %p325
        %p707 = pneg %p322
        %p708 = scmp.lt.s32.totalorder %s32, 1
        %s709 = scalar_select %p708, %s32, 1
        %s710 = smul.addr %s709, 16
        %s711 = scalar_lea.vmem %s13, %s710
        %p712 = pneg %p351
        %p713 = pneg %p348
        %p714 = scmp.lt.s32.totalorder %s32, 1
        %s715 = scalar_select %p714, %s32, 1
        %s716 = smul.addr %s715, 256
        %s717 = smul.addr %s716, 4
        %s718 = scalar_lea.vmem %s14, %s717
        %p719 = pneg %p377
        %p720 = pneg %p374
        %p721 = scmp.lt.s32.totalorder %s32, 1
        %s722 = scalar_select %p721, %s32, 1
        %s723 = scalar_lea.vmem %s15, %s722
        %p724 = pneg %p403
        %p725 = pneg %p400
        %p726 = scmp.lt.s32.totalorder %s32, 1
        %s727 = scalar_select %p726, %s32, 1
        %s728 = scalar_lea.vmem %s16, %s727
        %p729 = pneg %p429
        %p730 = pneg %p426
        %p731 = scmp.lt.s32.totalorder %s32, 1
        %s732 = scalar_select %p731, %s32, 1
        %s733 = scalar_lea.vmem %s17, %s732
        %p734 = pneg %p455
        %p735 = pneg %p452
        %p736 = scmp.lt.s32.totalorder %s32, 1
        %s737 = scalar_select %p736, %s32, 1
        %s738 = scalar_lea.vmem %s18, %s737
        %p739 = pneg %p481
        %p740 = pneg %p478
        %p741 = scmp.lt.s32.totalorder %s32, 1
        %s742 = scalar_select %p741, %s32, 1
        %s743 = scalar_lea.vmem %s19, %s742
        %p744 = pneg %p507
        %p745 = pneg %p504
        %p746 = pneg %p528
        %p747 = pneg %p525
        %p748 = scmp.lt.s32.totalorder %s32, 1
        %s749 = scalar_select %p748, %s32, 1
        %s750 = smul.addr %s749, 48
        %s751 = smul.addr %s750, 4
        %s752 = scalar_lea.vmem %s8, %s751
        %p753 = scmp.lt.s32.totalorder %s32, 1
        %s754 = scalar_select %p753, %s32, 1
        %s755 = smul.addr %s754, 3
        %s756 = scalar_lea.vmem %s9, %s755
        %p757 = scmp.lt.s32.totalorder %s32, 1
        %s758 = scalar_select %p757, %s32, 1
        %s759 = smul.addr %s758, 16
        %s760 = smul.addr %s759, 4
        %s761 = scalar_lea.vmem %s10, %s760
        %p762 = scmp.lt.s32.totalorder %s32, 1
        %s763 = scalar_select %p762, %s32, 1
        %s764 = scalar_lea.vmem %s11, %s763
        %p765 = scmp.lt.s32.totalorder %s32, 1
        %s766 = scalar_select %p765, %s32, 1
        %s767 = smul.addr %s766, 256
        %s768 = smul.addr %s767, 4
        %s769 = scalar_lea.vmem %s12, %s768
        %p770 = scmp.lt.s32.totalorder %s32, 1
        %s771 = scalar_select %p770, %s32, 1
        %s772 = smul.addr %s771, 16
        %s773 = scalar_lea.vmem %s13, %s772
        %p774 = scmp.lt.s32.totalorder %s32, 1
        %s775 = scalar_select %p774, %s32, 1
        %s776 = smul.addr %s775, 256
        %s777 = smul.addr %s776, 4
        %s778 = scalar_lea.vmem %s14, %s777
        %p779 = scmp.lt.s32.totalorder %s32, 1
        %s780 = scalar_select %p779, %s32, 1
        %s781 = scalar_lea.vmem %s15, %s780
        %p782 = scmp.lt.s32.totalorder %s32, 1
        %s783 = scalar_select %p782, %s32, 1
        %s784 = scalar_lea.vmem %s16, %s783
        %p785 = scmp.lt.s32.totalorder %s32, 1
        %s786 = scalar_select %p785, %s32, 1
        %s787 = scalar_lea.vmem %s17, %s786
        %p788 = scmp.lt.s32.totalorder %s32, 1
        %s789 = scalar_select %p788, %s32, 1
        %s790 = scalar_lea.vmem %s18, %s789
        %p791 = scmp.lt.s32.totalorder %s32, 1
        %s792 = scalar_select %p791, %s32, 1
        %s793 = scalar_lea.vmem %s19, %s792
        %p795 = scmp.eq.s32.totalorder %s32, 0
        // Predicated region
        $region101: #{forward.1} parent=99 // pred_check
          %p796 = pneg %p795
        $region102: #{forward.1} parent=99 // pred_check_branch
          %798 = sbr.rel (%p796) target = $region104
        $region103: #{forward.1} parent=99 // pred_region
          %v799 = vld [vmem:[%s1] sm:$0xf]
          %v800 = vld [vmem:[%s1 + $0x4] sm:$0xf]
          %v801 = vld [vmem:[%s1 + $0x8] sm:$0xf]
          %v802 = vld [vmem:[%s1 + $0xc] sm:$0xf]
          %v803 = vld [vmem:[%s1 + $0x10] sm:$0xf]
          %v804 = vld [vmem:[%s1 + $0x14] sm:$0xf]
          %v805 = vld [vmem:[%s1 + $0x18] sm:$0xf]
          %v806 = vld [vmem:[%s1 + $0x1c] sm:$0xf]
          %v807 = vld [vmem:[%s1 + $0x20] sm:$0xf]
          %v808 = vld [vmem:[%s1 + $0x24] sm:$0xf]
          %v809 = vld [vmem:[%s1 + $0x28] sm:$0xf]
          %v810 = vld [vmem:[%s1 + $0x2c] sm:$0xf]
          %v811 = vld [vmem:[%s1 + $0x30] sm:$0xf]
          %v812 = vld [vmem:[%s1 + $0x34] sm:$0xf]
          %v813 = vld [vmem:[%s1 + $0x38] sm:$0xf]
          %v814 = vld [vmem:[%s1 + $0x3c] sm:$0xf]
          %v815 = vld [vmem:[%s0] sm:$0xff]
          %v816 = vld [vmem:[%s0 + $0x10] sm:$0xff]
          %v817 = vld [vmem:[%s0 + $0x20] sm:$0xff]
          %v818 = vld [vmem:[%s0 + $0x30] sm:$0xff]
          %v819 = vld [vmem:[%s2] sm:$0xff]
          %v820 = vld [vmem:[%s2 + $0x8] sm:$0xff]
          %v821 = vld [vmem:[%s2 + $0x10] sm:$0xff]
          %v822 = vld [vmem:[%s2 + $0x18] sm:$0xff]
          %v823 = vld [vmem:[%s2 + $0x20] sm:$0xff]
          %v824 = vld [vmem:[%s2 + $0x28] sm:$0xff]
          %v825 = vld [vmem:[%s2 + $0x30] sm:$0xff]
          %v826 = vld [vmem:[%s2 + $0x38] sm:$0xff]
          %v827 = vld [vmem:[%s2 + $0x40] sm:$0xff]
          %v828 = vld [vmem:[%s2 + $0x48] sm:$0xff]
          %v829 = vld [vmem:[%s2 + $0x50] sm:$0xff]
          %v830 = vld [vmem:[%s2 + $0x58] sm:$0xff]
          %v831 = vld [vmem:[%s2 + $0x60] sm:$0xff]
          %v832 = vld [vmem:[%s2 + $0x68] sm:$0xff]
          %v833 = vld [vmem:[%s2 + $0x70] sm:$0xff]
          %v834 = vld [vmem:[%s2 + $0x78] sm:$0xff]
          %836 = vset.pattern.permute.xlu0 0
          %837 = vperm.xlu0 %836, %v819
          %v838 = vpop.permute.xlu0 %837
          %841 = vset.pattern.permute.xlu0 0
          %842 = vperm.xlu0 %841, %v820
          %v843 = vpop.permute.xlu0 %842
          %846 = vset.pattern.permute.xlu0 0
          %847 = vperm.xlu0 %846, %v821
          %v848 = vpop.permute.xlu0 %847
          %851 = vset.pattern.permute.xlu0 0
          %852 = vperm.xlu0 %851, %v822
          %v853 = vpop.permute.xlu0 %852
          %856 = vset.pattern.permute.xlu0 0
          %857 = vperm.xlu0 %856, %v823
          %v858 = vpop.permute.xlu0 %857
          %861 = vset.pattern.permute.xlu0 0
          %862 = vperm.xlu0 %861, %v824
          %v863 = vpop.permute.xlu0 %862
          %866 = vset.pattern.permute.xlu0 0
          %867 = vperm.xlu0 %866, %v825
          %v868 = vpop.permute.xlu0 %867
          %871 = vset.pattern.permute.xlu0 0
          %872 = vperm.xlu0 %871, %v826
          %v873 = vpop.permute.xlu0 %872
          %876 = vset.pattern.permute.xlu0 0
          %877 = vperm.xlu0 %876, %v827
          %v878 = vpop.permute.xlu0 %877
          %881 = vset.pattern.permute.xlu0 0
          %882 = vperm.xlu0 %881, %v828
          %v883 = vpop.permute.xlu0 %882
          %886 = vset.pattern.permute.xlu0 0
          %887 = vperm.xlu0 %886, %v829
          %v888 = vpop.permute.xlu0 %887
          %891 = vset.pattern.permute.xlu0 0
          %892 = vperm.xlu0 %891, %v830
          %v893 = vpop.permute.xlu0 %892
          %896 = vset.pattern.permute.xlu0 0
          %897 = vperm.xlu0 %896, %v831
          %v898 = vpop.permute.xlu0 %897
          %901 = vset.pattern.permute.xlu0 0
          %902 = vperm.xlu0 %901, %v832
          %v903 = vpop.permute.xlu0 %902
          %906 = vset.pattern.permute.xlu0 0
          %907 = vperm.xlu0 %906, %v833
          %v908 = vpop.permute.xlu0 %907
          %911 = vset.pattern.permute.xlu0 0
          %912 = vperm.xlu0 %911, %v834
          %v913 = vpop.permute.xlu0 %912
          %v931 = vunpack.c.l.b16 %v799
          %v932 = vunpack.c.l.b16 %v800
          %v933 = vunpack.c.l.b16 %v801
          %v934 = vunpack.c.l.b16 %v802
          %v935 = vunpack.c.l.b16 %v803
          %v936 = vunpack.c.l.b16 %v804
          %v937 = vunpack.c.l.b16 %v805
          %v938 = vunpack.c.l.b16 %v806
          %v939 = vunpack.c.l.b16 %v807
          %v940 = vunpack.c.l.b16 %v808
          %v941 = vunpack.c.l.b16 %v809
          %v942 = vunpack.c.l.b16 %v810
          %v943 = vunpack.c.l.b16 %v811
          %v944 = vunpack.c.l.b16 %v812
          %v945 = vunpack.c.l.b16 %v813
          %v946 = vunpack.c.l.b16 %v814
          %v947 = vpack.c.b16 %v932, %v931
          %v948 = vpack.c.b16 %v934, %v933
          %v949 = vpack.c.b16 %v936, %v935
          %v950 = vpack.c.b16 %v938, %v937
          %v951 = vpack.c.b16 %v940, %v939
          %v952 = vpack.c.b16 %v942, %v941
          %v953 = vpack.c.b16 %v944, %v943
          %v954 = vpack.c.b16 %v946, %v945
          %v959 = vunpack.c.l.b16 %v815
          %v960 = vunpack.c.h.b16 %v815
          %v961 = vunpack.c.l.b16 %v816
          %v962 = vunpack.c.h.b16 %v816
          %v963 = vunpack.c.l.b16 %v817
          %v964 = vunpack.c.h.b16 %v817
          %v965 = vunpack.c.l.b16 %v818
          %v966 = vunpack.c.h.b16 %v818
          %v967 = vpack.c.b16 %v961, %v959
          %v968 = vpack.c.b16 %v962, %v960
          %v969 = vpack.c.b16 %v965, %v963
          %v970 = vpack.c.b16 %v966, %v964
          %vm975 = vcmask 261120
          %v977 = vsel %vm975, %v947, 0
          %v980 = vsel %vm975, %v948, 0
          %v983 = vsel %vm975, %v949, 0
          %v986 = vsel %vm975, %v950, 0
          %v989 = vsel %vm975, %v951, 0
          %v992 = vsel %vm975, %v952, 0
          %v995 = vsel %vm975, %v953, 0
          %v998 = vsel %vm975, %v954, 0
          %1000 = vmatpush.bf16.msra.mxu0 0
          %1001 = vmatpush.bf16.msra.mxu0 0
          %1002 = vmatpush.bf16.msra.mxu0 0
          %1003 = vmatpush.bf16.msra.mxu0 0
          %1004 = vmatpush.bf16.msra.mxu0 0
          %1005 = vmatpush.bf16.msra.mxu0 0
          %1006 = vmatpush.bf16.msra.mxu0 %v969
          %1007 = vmatpush.bf16.msra.mxu0 %v967
          %1008 = vmatmul.bf16.gmra.mxu0 %v977
          %v1009 = vpop.f32.mrf.mxu0
          %v1010 = vadd.f32 %v838, %v1009
          %v1011 = vpop.f32.mrf.mxu0
          %v1012 = vadd.f32 %v843, %v1011
          %1013 = vmatmul.bf16.gmra.mxu0 %v980
          %v1014 = vpop.f32.mrf.mxu0
          %v1015 = vadd.f32 %v848, %v1014
          %v1016 = vpop.f32.mrf.mxu0
          %v1017 = vadd.f32 %v853, %v1016
          %1018 = vmatmul.bf16.gmra.mxu0 %v983
          %v1019 = vpop.f32.mrf.mxu0
          %v1020 = vadd.f32 %v858, %v1019
          %v1021 = vpop.f32.mrf.mxu0
          %v1022 = vadd.f32 %v863, %v1021
          %1023 = vmatmul.bf16.gmra.mxu0 %v986
          %v1024 = vpop.f32.mrf.mxu0
          %v1025 = vadd.f32 %v868, %v1024
          %v1026 = vpop.f32.mrf.mxu0
          %v1027 = vadd.f32 %v873, %v1026
          %1028 = vmatmul.bf16.gmra.mxu0 %v989
          %v1029 = vpop.f32.mrf.mxu0
          %v1030 = vadd.f32 %v878, %v1029
          %v1031 = vpop.f32.mrf.mxu0
          %v1032 = vadd.f32 %v883, %v1031
          %1033 = vmatmul.bf16.gmra.mxu0 %v992
          %v1034 = vpop.f32.mrf.mxu0
          %v1035 = vadd.f32 %v888, %v1034
          %v1036 = vpop.f32.mrf.mxu0
          %v1037 = vadd.f32 %v893, %v1036
          %1038 = vmatmul.bf16.gmra.mxu0 %v995
          %v1039 = vpop.f32.mrf.mxu0
          %v1040 = vadd.f32 %v898, %v1039
          %v1041 = vpop.f32.mrf.mxu0
          %v1042 = vadd.f32 %v903, %v1041
          %1043 = vmatmul.bf16.gmra.mxu0 %v998
          %v1044 = vpop.f32.mrf.mxu0
          %v1045 = vadd.f32 %v908, %v1044
          %v1046 = vpop.f32.mrf.mxu0
          %v1047 = vadd.f32 %v913, %v1046
          %1048 = vdwg.mxu0
          %1049 = vmatpush.bf16.msra.mxu0 0
          %1050 = vmatpush.bf16.msra.mxu0 0
          %1051 = vmatpush.bf16.msra.mxu0 0
          %1052 = vmatpush.bf16.msra.mxu0 0
          %1053 = vmatpush.bf16.msra.mxu0 0
          %1054 = vmatpush.bf16.msra.mxu0 0
          %1055 = vmatpush.bf16.msra.mxu0 %v970
          %1056 = vmatpush.bf16.msra.mxu0 %v968
          %1057 = vmatmul.bf16.gmra.mxu0 %v977
          %v1058 = vpop.f32.mrf.mxu0
          %v1059 = vadd.f32 %v838, %v1058
          %v1060 = vpop.f32.mrf.mxu0
          %v1061 = vadd.f32 %v843, %v1060
          %1062 = vmatmul.bf16.gmra.mxu0 %v980
          %v1063 = vpop.f32.mrf.mxu0
          %v1064 = vadd.f32 %v848, %v1063
          %v1065 = vpop.f32.mrf.mxu0
          %v1066 = vadd.f32 %v853, %v1065
          %1067 = vmatmul.bf16.gmra.mxu0 %v983
          %v1068 = vpop.f32.mrf.mxu0
          %v1069 = vadd.f32 %v858, %v1068
          %v1070 = vpop.f32.mrf.mxu0
          %v1071 = vadd.f32 %v863, %v1070
          %1072 = vmatmul.bf16.gmra.mxu0 %v986
          %v1073 = vpop.f32.mrf.mxu0
          %v1074 = vadd.f32 %v868, %v1073
          %v1075 = vpop.f32.mrf.mxu0
          %v1076 = vadd.f32 %v873, %v1075
          %1077 = vmatmul.bf16.gmra.mxu0 %v989
          %v1078 = vpop.f32.mrf.mxu0
          %v1079 = vadd.f32 %v878, %v1078
          %v1080 = vpop.f32.mrf.mxu0
          %v1081 = vadd.f32 %v883, %v1080
          %1082 = vmatmul.bf16.gmra.mxu0 %v992
          %v1083 = vpop.f32.mrf.mxu0
          %v1084 = vadd.f32 %v888, %v1083
          %v1085 = vpop.f32.mrf.mxu0
          %v1086 = vadd.f32 %v893, %v1085
          %1087 = vmatmul.bf16.gmra.mxu0 %v995
          %v1088 = vpop.f32.mrf.mxu0
          %v1089 = vadd.f32 %v898, %v1088
          %v1090 = vpop.f32.mrf.mxu0
          %v1091 = vadd.f32 %v903, %v1090
          %1092 = vmatmul.bf16.gmra.mxu0 %v998
          %v1093 = vpop.f32.mrf.mxu0
          %v1094 = vadd.f32 %v908, %v1093
          %v1095 = vpop.f32.mrf.mxu0
          %v1096 = vadd.f32 %v913, %v1095
          %1097 = vdwg.mxu0
          %v1098 = vpack.c.bf16 %v1012, %v1010
          %v1099 = vpack.c.bf16 %v1061, %v1059
          %v1100 = vpack.c.bf16 %v1017, %v1015
          %v1101 = vpack.c.bf16 %v1066, %v1064
          %v1102 = vpack.c.bf16 %v1022, %v1020
          %v1103 = vpack.c.bf16 %v1071, %v1069
          %v1104 = vpack.c.bf16 %v1027, %v1025
          %v1105 = vpack.c.bf16 %v1076, %v1074
          %v1106 = vpack.c.bf16 %v1032, %v1030
          %v1107 = vpack.c.bf16 %v1081, %v1079
          %v1108 = vpack.c.bf16 %v1037, %v1035
          %v1109 = vpack.c.bf16 %v1086, %v1084
          %v1110 = vpack.c.bf16 %v1042, %v1040
          %v1111 = vpack.c.bf16 %v1091, %v1089
          %v1112 = vpack.c.bf16 %v1047, %v1045
          %v1113 = vpack.c.bf16 %v1096, %v1094
          %v1114 = vld [vmem:[%s3] sm:$0xf]
          %v1115 = vld [vmem:[%s3 + $0x4] sm:$0xf]
          %v1116 = vld [vmem:[%s3 + $0x8] sm:$0xf]
          %v1117 = vld [vmem:[%s3 + $0xc] sm:$0xf]
          %v1118 = vld [vmem:[%s3 + $0x10] sm:$0xf]
          %v1119 = vld [vmem:[%s3 + $0x14] sm:$0xf]
          %v1120 = vld [vmem:[%s3 + $0x18] sm:$0xf]
          %v1121 = vld [vmem:[%s3 + $0x1c] sm:$0xf]
          %v1122 = vld [vmem:[%s3 + $0x20] sm:$0xf]
          %v1123 = vld [vmem:[%s3 + $0x24] sm:$0xf]
          %v1124 = vld [vmem:[%s3 + $0x28] sm:$0xf]
          %v1125 = vld [vmem:[%s3 + $0x2c] sm:$0xf]
          %v1126 = vld [vmem:[%s3 + $0x30] sm:$0xf]
          %v1127 = vld [vmem:[%s3 + $0x34] sm:$0xf]
          %v1128 = vld [vmem:[%s3 + $0x38] sm:$0xf]
          %v1129 = vld [vmem:[%s3 + $0x3c] sm:$0xf]
          %v1130 = vld [vmem:[%s3 + $0x40] sm:$0xf]
          %v1131 = vld [vmem:[%s3 + $0x44] sm:$0xf]
          %v1132 = vld [vmem:[%s3 + $0x48] sm:$0xf]
          %v1133 = vld [vmem:[%s3 + $0x4c] sm:$0xf]
          %v1134 = vld [vmem:[%s3 + $0x50] sm:$0xf]
          %v1135 = vld [vmem:[%s3 + $0x54] sm:$0xf]
          %v1136 = vld [vmem:[%s3 + $0x58] sm:$0xf]
          %v1137 = vld [vmem:[%s3 + $0x5c] sm:$0xf]
          %v1138 = vld [vmem:[%s3 + $0x60] sm:$0xf]
          %v1139 = vld [vmem:[%s3 + $0x64] sm:$0xf]
          %v1140 = vld [vmem:[%s3 + $0x68] sm:$0xf]
          %v1141 = vld [vmem:[%s3 + $0x6c] sm:$0xf]
          %v1142 = vld [vmem:[%s3 + $0x70] sm:$0xf]
          %v1143 = vld [vmem:[%s3 + $0x74] sm:$0xf]
          %v1144 = vld [vmem:[%s3 + $0x78] sm:$0xf]
          %v1145 = vld [vmem:[%s3 + $0x7c] sm:$0xf]
          %v1146 = vld [vmem:[%s4] sm:$0x1]
          %v1148 = vperm.slane %v1146, 0
          %v1182 = vunpack.c.l.b16 %v1114
          %v1183 = vunpack.c.l.b16 %v1115
          %v1184 = vunpack.c.l.b16 %v1116
          %v1185 = vunpack.c.l.b16 %v1117
          %v1186 = vunpack.c.l.b16 %v1118
          %v1187 = vunpack.c.l.b16 %v1119
          %v1188 = vunpack.c.l.b16 %v1120
          %v1189 = vunpack.c.l.b16 %v1121
          %v1190 = vunpack.c.l.b16 %v1122
          %v1191 = vunpack.c.l.b16 %v1123
          %v1192 = vunpack.c.l.b16 %v1124
          %v1193 = vunpack.c.l.b16 %v1125
          %v1194 = vunpack.c.l.b16 %v1126
          %v1195 = vunpack.c.l.b16 %v1127
          %v1196 = vunpack.c.l.b16 %v1128
          %v1197 = vunpack.c.l.b16 %v1129
          %v1198 = vunpack.c.l.b16 %v1130
          %v1199 = vunpack.c.l.b16 %v1131
          %v1200 = vunpack.c.l.b16 %v1132
          %v1201 = vunpack.c.l.b16 %v1133
          %v1202 = vunpack.c.l.b16 %v1134
          %v1203 = vunpack.c.l.b16 %v1135
          %v1204 = vunpack.c.l.b16 %v1136
          %v1205 = vunpack.c.l.b16 %v1137
          %v1206 = vunpack.c.l.b16 %v1138
          %v1207 = vunpack.c.l.b16 %v1139
          %v1208 = vunpack.c.l.b16 %v1140
          %v1209 = vunpack.c.l.b16 %v1141
          %v1210 = vunpack.c.l.b16 %v1142
          %v1211 = vunpack.c.l.b16 %v1143
          %v1212 = vunpack.c.l.b16 %v1144
          %v1213 = vunpack.c.l.b16 %v1145
          %v1214 = vpack.c.b16 %v1183, %v1182
          %v1215 = vpack.c.b16 %v1185, %v1184
          %v1216 = vpack.c.b16 %v1187, %v1186
          %v1217 = vpack.c.b16 %v1189, %v1188
          %v1218 = vpack.c.b16 %v1191, %v1190
          %v1219 = vpack.c.b16 %v1193, %v1192
          %v1220 = vpack.c.b16 %v1195, %v1194
          %v1221 = vpack.c.b16 %v1197, %v1196
          %v1222 = vpack.c.b16 %v1199, %v1198
          %v1223 = vpack.c.b16 %v1201, %v1200
          %v1224 = vpack.c.b16 %v1203, %v1202
          %v1225 = vpack.c.b16 %v1205, %v1204
          %v1226 = vpack.c.b16 %v1207, %v1206
          %v1227 = vpack.c.b16 %v1209, %v1208
          %v1228 = vpack.c.b16 %v1211, %v1210
          %v1229 = vpack.c.b16 %v1213, %v1212
          %1246 = vmatpush.bf16.msra.mxu0 %v1221
          %1247 = vmatpush.bf16.msra.mxu0 %v1220
          %1248 = vmatpush.bf16.msra.mxu0 %v1219
          %1249 = vmatpush.bf16.msra.mxu0 %v1218
          %1250 = vmatpush.bf16.msra.mxu0 %v1217
          %1251 = vmatpush.bf16.msra.mxu0 %v1216
          %1252 = vmatpush.bf16.msra.mxu0 %v1215
          %1253 = vmatpush.bf16.msra.mxu0 %v1214
          %1254 = vmatmul.bf16.gmra.mxu0 %v1098
          %v1255 = vpop.f32.mrf.mxu0
          %v1256 = vadd.f32 %v1148, %v1255
          %v1257 = vpop.f32.mrf.mxu0
          %v1258 = vadd.f32 %v1148, %v1257
          %1259 = vmatmul.bf16.gmra.mxu0 %v1100
          %v1260 = vpop.f32.mrf.mxu0
          %v1261 = vadd.f32 %v1148, %v1260
          %v1262 = vpop.f32.mrf.mxu0
          %v1263 = vadd.f32 %v1148, %v1262
          %1264 = vmatmul.bf16.gmra.mxu0 %v1102
          %v1265 = vpop.f32.mrf.mxu0
          %v1266 = vadd.f32 %v1148, %v1265
          %v1267 = vpop.f32.mrf.mxu0
          %v1268 = vadd.f32 %v1148, %v1267
          %1269 = vmatmul.bf16.gmra.mxu0 %v1104
          %v1270 = vpop.f32.mrf.mxu0
          %v1271 = vadd.f32 %v1148, %v1270
          %v1272 = vpop.f32.mrf.mxu0
          %v1273 = vadd.f32 %v1148, %v1272
          %1274 = vmatmul.bf16.gmra.mxu0 %v1106
          %v1275 = vpop.f32.mrf.mxu0
          %v1276 = vadd.f32 %v1148, %v1275
          %v1277 = vpop.f32.mrf.mxu0
          %v1278 = vadd.f32 %v1148, %v1277
          %1279 = vmatmul.bf16.gmra.mxu0 %v1108
          %v1280 = vpop.f32.mrf.mxu0
          %v1281 = vadd.f32 %v1148, %v1280
          %v1282 = vpop.f32.mrf.mxu0
          %v1283 = vadd.f32 %v1148, %v1282
          %1284 = vmatmul.bf16.gmra.mxu0 %v1110
          %v1285 = vpop.f32.mrf.mxu0
          %v1286 = vadd.f32 %v1148, %v1285
          %v1287 = vpop.f32.mrf.mxu0
          %v1288 = vadd.f32 %v1148, %v1287
          %1289 = vmatmul.bf16.gmra.mxu0 %v1112
          %v1290 = vpop.f32.mrf.mxu0
          %v1291 = vadd.f32 %v1148, %v1290
          %v1292 = vpop.f32.mrf.mxu0
          %v1293 = vadd.f32 %v1148, %v1292
          %1294 = vdwg.mxu0
          %1295 = vmatpush.bf16.msra.mxu0 %v1229
          %1296 = vmatpush.bf16.msra.mxu0 %v1228
          %1297 = vmatpush.bf16.msra.mxu0 %v1227
          %1298 = vmatpush.bf16.msra.mxu0 %v1226
          %1299 = vmatpush.bf16.msra.mxu0 %v1225
          %1300 = vmatpush.bf16.msra.mxu0 %v1224
          %1301 = vmatpush.bf16.msra.mxu0 %v1223
          %1302 = vmatpush.bf16.msra.mxu0 %v1222
          %1303 = vmatmul.bf16.gmra.mxu0 %v1099
          %v1304 = vpop.f32.mrf.mxu0
          %v1305 = vadd.f32 %v1256, %v1304
          %v1306 = vpop.f32.mrf.mxu0
          %v1307 = vadd.f32 %v1258, %v1306
          %1308 = vmatmul.bf16.gmra.mxu0 %v1101
          %v1309 = vpop.f32.mrf.mxu0
          %v1310 = vadd.f32 %v1261, %v1309
          %v1311 = vpop.f32.mrf.mxu0
          %v1312 = vadd.f32 %v1263, %v1311
          %1313 = vmatmul.bf16.gmra.mxu0 %v1103
          %v1314 = vpop.f32.mrf.mxu0
          %v1315 = vadd.f32 %v1266, %v1314
          %v1316 = vpop.f32.mrf.mxu0
          %v1317 = vadd.f32 %v1268, %v1316
          %1318 = vmatmul.bf16.gmra.mxu0 %v1105
          %v1319 = vpop.f32.mrf.mxu0
          %v1320 = vadd.f32 %v1271, %v1319
          %v1321 = vpop.f32.mrf.mxu0
          %v1322 = vadd.f32 %v1273, %v1321
          %1323 = vmatmul.bf16.gmra.mxu0 %v1107
          %v1324 = vpop.f32.mrf.mxu0
          %v1325 = vadd.f32 %v1276, %v1324
          %v1326 = vpop.f32.mrf.mxu0
          %v1327 = vadd.f32 %v1278, %v1326
          %1328 = vmatmul.bf16.gmra.mxu0 %v1109
          %v1329 = vpop.f32.mrf.mxu0
          %v1330 = vadd.f32 %v1281, %v1329
          %v1331 = vpop.f32.mrf.mxu0
          %v1332 = vadd.f32 %v1283, %v1331
          %1333 = vmatmul.bf16.gmra.mxu0 %v1111
          %v1334 = vpop.f32.mrf.mxu0
          %v1335 = vadd.f32 %v1286, %v1334
          %v1336 = vpop.f32.mrf.mxu0
          %v1337 = vadd.f32 %v1288, %v1336
          %1338 = vmatmul.bf16.gmra.mxu0 %v1113
          %v1339 = vpop.f32.mrf.mxu0
          %v1340 = vadd.f32 %v1291, %v1339
          %v1341 = vpop.f32.mrf.mxu0
          %v1342 = vadd.f32 %v1293, %v1341
          %1343 = vdwg.mxu0
          %1344 = vst [vmem:[#allocation2] sm:$0xff] %v1305
          %1345 = vst [vmem:[#allocation2 + $0x8] sm:$0xff] %v1307
          %1346 = vst [vmem:[#allocation2 + $0x10] sm:$0xff] %v1310
          %1347 = vst [vmem:[#allocation2 + $0x18] sm:$0xff] %v1312
          %1348 = vst [vmem:[#allocation2 + $0x20] sm:$0xff] %v1315
          %1349 = vst [vmem:[#allocation2 + $0x28] sm:$0xff] %v1317
          %1350 = vst [vmem:[#allocation2 + $0x30] sm:$0xff] %v1320
          %1351 = vst [vmem:[#allocation2 + $0x38] sm:$0xff] %v1322
          %1352 = vst [vmem:[#allocation2 + $0x40] sm:$0xff] %v1325
          %1353 = vst [vmem:[#allocation2 + $0x48] sm:$0xff] %v1327
          %1354 = vst [vmem:[#allocation2 + $0x50] sm:$0xff] %v1330
          %1355 = vst [vmem:[#allocation2 + $0x58] sm:$0xff] %v1332
          %1356 = vst [vmem:[#allocation2 + $0x60] sm:$0xff] %v1335
          %1357 = vst [vmem:[#allocation2 + $0x68] sm:$0xff] %v1337
          %1358 = vst [vmem:[#allocation2 + $0x70] sm:$0xff] %v1340
          %1359 = vst [vmem:[#allocation2 + $0x78] sm:$0xff] %v1342
          %v1360 = vld [vmem:[%s1] sm:$0xf]
          %v1361 = vld [vmem:[%s1 + $0x4] sm:$0xf]
          %v1362 = vld [vmem:[%s1 + $0x8] sm:$0xf]
          %v1363 = vld [vmem:[%s1 + $0xc] sm:$0xf]
          %v1364 = vld [vmem:[%s1 + $0x10] sm:$0xf]
          %v1365 = vld [vmem:[%s1 + $0x14] sm:$0xf]
          %v1366 = vld [vmem:[%s1 + $0x18] sm:$0xf]
          %v1367 = vld [vmem:[%s1 + $0x1c] sm:$0xf]
          %v1368 = vld [vmem:[%s1 + $0x20] sm:$0xf]
          %v1369 = vld [vmem:[%s1 + $0x24] sm:$0xf]
          %v1370 = vld [vmem:[%s1 + $0x28] sm:$0xf]
          %v1371 = vld [vmem:[%s1 + $0x2c] sm:$0xf]
          %v1372 = vld [vmem:[%s1 + $0x30] sm:$0xf]
          %v1373 = vld [vmem:[%s1 + $0x34] sm:$0xf]
          %v1374 = vld [vmem:[%s1 + $0x38] sm:$0xf]
          %v1375 = vld [vmem:[%s1 + $0x3c] sm:$0xf]
          %v1376 = vld [vmem:[%s0 + $0x8] sm:$0xff]
          %v1377 = vld [vmem:[%s0 + $0x18] sm:$0xff]
          %v1378 = vld [vmem:[%s0 + $0x28] sm:$0xff]
          %v1379 = vld [vmem:[%s0 + $0x38] sm:$0xff]
          %v1380 = vld [vmem:[%s2] sm:$0xff]
          %v1381 = vld [vmem:[%s2 + $0x8] sm:$0xff]
          %v1382 = vld [vmem:[%s2 + $0x10] sm:$0xff]
          %v1383 = vld [vmem:[%s2 + $0x18] sm:$0xff]
          %v1384 = vld [vmem:[%s2 + $0x20] sm:$0xff]
          %v1385 = vld [vmem:[%s2 + $0x28] sm:$0xff]
          %v1386 = vld [vmem:[%s2 + $0x30] sm:$0xff]
          %v1387 = vld [vmem:[%s2 + $0x38] sm:$0xff]
          %v1388 = vld [vmem:[%s2 + $0x40] sm:$0xff]
          %v1389 = vld [vmem:[%s2 + $0x48] sm:$0xff]
          %v1390 = vld [vmem:[%s2 + $0x50] sm:$0xff]
          %v1391 = vld [vmem:[%s2 + $0x58] sm:$0xff]
          %v1392 = vld [vmem:[%s2 + $0x60] sm:$0xff]
          %v1393 = vld [vmem:[%s2 + $0x68] sm:$0xff]
          %v1394 = vld [vmem:[%s2 + $0x70] sm:$0xff]
          %v1395 = vld [vmem:[%s2 + $0x78] sm:$0xff]
          %1397 = vset.pattern.permute.xlu0 0
          %1398 = vperm.xlu0 %1397, %v1380
          %v1399 = vpop.permute.xlu0 %1398
          %1402 = vset.pattern.permute.xlu0 0
          %1403 = vperm.xlu0 %1402, %v1381
          %v1404 = vpop.permute.xlu0 %1403
          %1407 = vset.pattern.permute.xlu0 0
          %1408 = vperm.xlu0 %1407, %v1382
          %v1409 = vpop.permute.xlu0 %1408
          %1412 = vset.pattern.permute.xlu0 0
          %1413 = vperm.xlu0 %1412, %v1383
          %v1414 = vpop.permute.xlu0 %1413
          %1417 = vset.pattern.permute.xlu0 0
          %1418 = vperm.xlu0 %1417, %v1384
          %v1419 = vpop.permute.xlu0 %1418
          %1422 = vset.pattern.permute.xlu0 0
          %1423 = vperm.xlu0 %1422, %v1385
          %v1424 = vpop.permute.xlu0 %1423
          %1427 = vset.pattern.permute.xlu0 0
          %1428 = vperm.xlu0 %1427, %v1386
          %v1429 = vpop.permute.xlu0 %1428
          %1432 = vset.pattern.permute.xlu0 0
          %1433 = vperm.xlu0 %1432, %v1387
          %v1434 = vpop.permute.xlu0 %1433
          %1437 = vset.pattern.permute.xlu0 0
          %1438 = vperm.xlu0 %1437, %v1388
          %v1439 = vpop.permute.xlu0 %1438
          %1442 = vset.pattern.permute.xlu0 0
          %1443 = vperm.xlu0 %1442, %v1389
          %v1444 = vpop.permute.xlu0 %1443
          %1447 = vset.pattern.permute.xlu0 0
          %1448 = vperm.xlu0 %1447, %v1390
          %v1449 = vpop.permute.xlu0 %1448
          %1452 = vset.pattern.permute.xlu0 0
          %1453 = vperm.xlu0 %1452, %v1391
          %v1454 = vpop.permute.xlu0 %1453
          %1457 = vset.pattern.permute.xlu0 0
          %1458 = vperm.xlu0 %1457, %v1392
          %v1459 = vpop.permute.xlu0 %1458
          %1462 = vset.pattern.permute.xlu0 0
          %1463 = vperm.xlu0 %1462, %v1393
          %v1464 = vpop.permute.xlu0 %1463
          %1467 = vset.pattern.permute.xlu0 0
          %1468 = vperm.xlu0 %1467, %v1394
          %v1469 = vpop.permute.xlu0 %1468
          %1472 = vset.pattern.permute.xlu0 0
          %1473 = vperm.xlu0 %1472, %v1395
          %v1474 = vpop.permute.xlu0 %1473
          %v1492 = vunpack.c.l.b16 %v1360
          %v1493 = vunpack.c.l.b16 %v1361
          %v1494 = vunpack.c.l.b16 %v1362
          %v1495 = vunpack.c.l.b16 %v1363
          %v1496 = vunpack.c.l.b16 %v1364
          %v1497 = vunpack.c.l.b16 %v1365
          %v1498 = vunpack.c.l.b16 %v1366
          %v1499 = vunpack.c.l.b16 %v1367
          %v1500 = vunpack.c.l.b16 %v1368
          %v1501 = vunpack.c.l.b16 %v1369
          %v1502 = vunpack.c.l.b16 %v1370
          %v1503 = vunpack.c.l.b16 %v1371
          %v1504 = vunpack.c.l.b16 %v1372
          %v1505 = vunpack.c.l.b16 %v1373
          %v1506 = vunpack.c.l.b16 %v1374
          %v1507 = vunpack.c.l.b16 %v1375
          %v1508 = vpack.c.b16 %v1493, %v1492
          %v1509 = vpack.c.b16 %v1495, %v1494
          %v1510 = vpack.c.b16 %v1497, %v1496
          %v1511 = vpack.c.b16 %v1499, %v1498
          %v1512 = vpack.c.b16 %v1501, %v1500
          %v1513 = vpack.c.b16 %v1503, %v1502
          %v1514 = vpack.c.b16 %v1505, %v1504
          %v1515 = vpack.c.b16 %v1507, %v1506
          %v1520 = vunpack.c.l.b16 %v1376
          %v1521 = vunpack.c.h.b16 %v1376
          %v1522 = vunpack.c.l.b16 %v1377
          %v1523 = vunpack.c.h.b16 %v1377
          %v1524 = vunpack.c.l.b16 %v1378
          %v1525 = vunpack.c.h.b16 %v1378
          %v1526 = vunpack.c.l.b16 %v1379
          %v1527 = vunpack.c.h.b16 %v1379
          %v1528 = vpack.c.b16 %v1522, %v1520
          %v1529 = vpack.c.b16 %v1523, %v1521
          %v1530 = vpack.c.b16 %v1526, %v1524
          %v1531 = vpack.c.b16 %v1527, %v1525
          %v1537 = vsel %vm975, %v1508, 0
          %v1540 = vsel %vm975, %v1509, 0
          %v1543 = vsel %vm975, %v1510, 0
          %v1546 = vsel %vm975, %v1511, 0
          %v1549 = vsel %vm975, %v1512, 0
          %v1552 = vsel %vm975, %v1513, 0
          %v1555 = vsel %vm975, %v1514, 0
          %v1558 = vsel %vm975, %v1515, 0
          %1560 = vmatpush.bf16.msra.mxu0 0
          %1561 = vmatpush.bf16.msra.mxu0 0
          %1562 = vmatpush.bf16.msra.mxu0 0
          %1563 = vmatpush.bf16.msra.mxu0 0
          %1564 = vmatpush.bf16.msra.mxu0 0
          %1565 = vmatpush.bf16.msra.mxu0 0
          %1566 = vmatpush.bf16.msra.mxu0 %v1530
          %1567 = vmatpush.bf16.msra.mxu0 %v1528
          %1568 = vmatmul.bf16.gmra.mxu0 %v1537
          %v1569 = vpop.f32.mrf.mxu0
          %v1570 = vadd.f32 %v1399, %v1569
          %v1571 = vpop.f32.mrf.mxu0
          %v1572 = vadd.f32 %v1404, %v1571
          %1573 = vmatmul.bf16.gmra.mxu0 %v1540
          %v1574 = vpop.f32.mrf.mxu0
          %v1575 = vadd.f32 %v1409, %v1574
          %v1576 = vpop.f32.mrf.mxu0
          %v1577 = vadd.f32 %v1414, %v1576
          %1578 = vmatmul.bf16.gmra.mxu0 %v1543
          %v1579 = vpop.f32.mrf.mxu0
          %v1580 = vadd.f32 %v1419, %v1579
          %v1581 = vpop.f32.mrf.mxu0
          %v1582 = vadd.f32 %v1424, %v1581
          %1583 = vmatmul.bf16.gmra.mxu0 %v1546
          %v1584 = vpop.f32.mrf.mxu0
          %v1585 = vadd.f32 %v1429, %v1584
          %v1586 = vpop.f32.mrf.mxu0
          %v1587 = vadd.f32 %v1434, %v1586
          %1588 = vmatmul.bf16.gmra.mxu0 %v1549
          %v1589 = vpop.f32.mrf.mxu0
          %v1590 = vadd.f32 %v1439, %v1589
          %v1591 = vpop.f32.mrf.mxu0
          %v1592 = vadd.f32 %v1444, %v1591
          %1593 = vmatmul.bf16.gmra.mxu0 %v1552
          %v1594 = vpop.f32.mrf.mxu0
          %v1595 = vadd.f32 %v1449, %v1594
          %v1596 = vpop.f32.mrf.mxu0
          %v1597 = vadd.f32 %v1454, %v1596
          %1598 = vmatmul.bf16.gmra.mxu0 %v1555
          %v1599 = vpop.f32.mrf.mxu0
          %v1600 = vadd.f32 %v1459, %v1599
          %v1601 = vpop.f32.mrf.mxu0
          %v1602 = vadd.f32 %v1464, %v1601
          %1603 = vmatmul.bf16.gmra.mxu0 %v1558
          %v1604 = vpop.f32.mrf.mxu0
          %v1605 = vadd.f32 %v1469, %v1604
          %v1606 = vpop.f32.mrf.mxu0
          %v1607 = vadd.f32 %v1474, %v1606
          %1608 = vdwg.mxu0
          %1609 = vmatpush.bf16.msra.mxu0 0
          %1610 = vmatpush.bf16.msra.mxu0 0
          %1611 = vmatpush.bf16.msra.mxu0 0
          %1612 = vmatpush.bf16.msra.mxu0 0
          %1613 = vmatpush.bf16.msra.mxu0 0
          %1614 = vmatpush.bf16.msra.mxu0 0
          %1615 = vmatpush.bf16.msra.mxu0 %v1531
          %1616 = vmatpush.bf16.msra.mxu0 %v1529
          %1617 = vmatmul.bf16.gmra.mxu0 %v1537
          %v1618 = vpop.f32.mrf.mxu0
          %v1619 = vadd.f32 %v1399, %v1618
          %v1620 = vpop.f32.mrf.mxu0
          %v1621 = vadd.f32 %v1404, %v1620
          %1622 = vmatmul.bf16.gmra.mxu0 %v1540
          %v1623 = vpop.f32.mrf.mxu0
          %v1624 = vadd.f32 %v1409, %v1623
          %v1625 = vpop.f32.mrf.mxu0
          %v1626 = vadd.f32 %v1414, %v1625
          %1627 = vmatmul.bf16.gmra.mxu0 %v1543
          %v1628 = vpop.f32.mrf.mxu0
          %v1629 = vadd.f32 %v1419, %v1628
          %v1630 = vpop.f32.mrf.mxu0
          %v1631 = vadd.f32 %v1424, %v1630
          %1632 = vmatmul.bf16.gmra.mxu0 %v1546
          %v1633 = vpop.f32.mrf.mxu0
          %v1634 = vadd.f32 %v1429, %v1633
          %v1635 = vpop.f32.mrf.mxu0
          %v1636 = vadd.f32 %v1434, %v1635
          %1637 = vmatmul.bf16.gmra.mxu0 %v1549
          %v1638 = vpop.f32.mrf.mxu0
          %v1639 = vadd.f32 %v1439, %v1638
          %v1640 = vpop.f32.mrf.mxu0
          %v1641 = vadd.f32 %v1444, %v1640
          %1642 = vmatmul.bf16.gmra.mxu0 %v1552
          %v1643 = vpop.f32.mrf.mxu0
          %v1644 = vadd.f32 %v1449, %v1643
          %v1645 = vpop.f32.mrf.mxu0
          %v1646 = vadd.f32 %v1454, %v1645
          %1647 = vmatmul.bf16.gmra.mxu0 %v1555
          %v1648 = vpop.f32.mrf.mxu0
          %v1649 = vadd.f32 %v1459, %v1648
          %v1650 = vpop.f32.mrf.mxu0
          %v1651 = vadd.f32 %v1464, %v1650
          %1652 = vmatmul.bf16.gmra.mxu0 %v1558
          %v1653 = vpop.f32.mrf.mxu0
          %v1654 = vadd.f32 %v1469, %v1653
          %v1655 = vpop.f32.mrf.mxu0
          %v1656 = vadd.f32 %v1474, %v1655
          %1657 = vdwg.mxu0
          %v1658 = vpack.c.bf16 %v1572, %v1570
          %v1659 = vpack.c.bf16 %v1621, %v1619
          %v1660 = vpack.c.bf16 %v1577, %v1575
          %v1661 = vpack.c.bf16 %v1626, %v1624
          %v1662 = vpack.c.bf16 %v1582, %v1580
          %v1663 = vpack.c.bf16 %v1631, %v1629
          %v1664 = vpack.c.bf16 %v1587, %v1585
          %v1665 = vpack.c.bf16 %v1636, %v1634
          %v1666 = vpack.c.bf16 %v1592, %v1590
          %v1667 = vpack.c.bf16 %v1641, %v1639
          %v1668 = vpack.c.bf16 %v1597, %v1595
          %v1669 = vpack.c.bf16 %v1646, %v1644
          %v1670 = vpack.c.bf16 %v1602, %v1600
          %v1671 = vpack.c.bf16 %v1651, %v1649
          %v1672 = vpack.c.bf16 %v1607, %v1605
          %v1673 = vpack.c.bf16 %v1656, %v1654
          %v1674 = vld [vmem:[%s3] sm:$0xf]
          %v1675 = vld [vmem:[%s3 + $0x4] sm:$0xf]
          %v1676 = vld [vmem:[%s3 + $0x8] sm:$0xf]
          %v1677 = vld [vmem:[%s3 + $0xc] sm:$0xf]
          %v1678 = vld [vmem:[%s3 + $0x10] sm:$0xf]
          %v1679 = vld [vmem:[%s3 + $0x14] sm:$0xf]
          %v1680 = vld [vmem:[%s3 + $0x18] sm:$0xf]
          %v1681 = vld [vmem:[%s3 + $0x1c] sm:$0xf]
          %v1682 = vld [vmem:[%s3 + $0x20] sm:$0xf]
          %v1683 = vld [vmem:[%s3 + $0x24] sm:$0xf]
          %v1684 = vld [vmem:[%s3 + $0x28] sm:$0xf]
          %v1685 = vld [vmem:[%s3 + $0x2c] sm:$0xf]
          %v1686 = vld [vmem:[%s3 + $0x30] sm:$0xf]
          %v1687 = vld [vmem:[%s3 + $0x34] sm:$0xf]
          %v1688 = vld [vmem:[%s3 + $0x38] sm:$0xf]
          %v1689 = vld [vmem:[%s3 + $0x3c] sm:$0xf]
          %v1690 = vld [vmem:[%s3 + $0x40] sm:$0xf]
          %v1691 = vld [vmem:[%s3 + $0x44] sm:$0xf]
          %v1692 = vld [vmem:[%s3 + $0x48] sm:$0xf]
          %v1693 = vld [vmem:[%s3 + $0x4c] sm:$0xf]
          %v1694 = vld [vmem:[%s3 + $0x50] sm:$0xf]
          %v1695 = vld [vmem:[%s3 + $0x54] sm:$0xf]
          %v1696 = vld [vmem:[%s3 + $0x58] sm:$0xf]
          %v1697 = vld [vmem:[%s3 + $0x5c] sm:$0xf]
          %v1698 = vld [vmem:[%s3 + $0x60] sm:$0xf]
          %v1699 = vld [vmem:[%s3 + $0x64] sm:$0xf]
          %v1700 = vld [vmem:[%s3 + $0x68] sm:$0xf]
          %v1701 = vld [vmem:[%s3 + $0x6c] sm:$0xf]
          %v1702 = vld [vmem:[%s3 + $0x70] sm:$0xf]
          %v1703 = vld [vmem:[%s3 + $0x74] sm:$0xf]
          %v1704 = vld [vmem:[%s3 + $0x78] sm:$0xf]
          %v1705 = vld [vmem:[%s3 + $0x7c] sm:$0xf]
          %v1706 = vld [vmem:[%s4] sm:$0x1]
          %v1708 = vperm.slane %v1706, 0
          %v1742 = vunpack.c.l.b16 %v1674
          %v1743 = vunpack.c.l.b16 %v1675
          %v1744 = vunpack.c.l.b16 %v1676
          %v1745 = vunpack.c.l.b16 %v1677
          %v1746 = vunpack.c.l.b16 %v1678
          %v1747 = vunpack.c.l.b16 %v1679
          %v1748 = vunpack.c.l.b16 %v1680
          %v1749 = vunpack.c.l.b16 %v1681
          %v1750 = vunpack.c.l.b16 %v1682
          %v1751 = vunpack.c.l.b16 %v1683
          %v1752 = vunpack.c.l.b16 %v1684
          %v1753 = vunpack.c.l.b16 %v1685
          %v1754 = vunpack.c.l.b16 %v1686
          %v1755 = vunpack.c.l.b16 %v1687
          %v1756 = vunpack.c.l.b16 %v1688
          %v1757 = vunpack.c.l.b16 %v1689
          %v1758 = vunpack.c.l.b16 %v1690
          %v1759 = vunpack.c.l.b16 %v1691
          %v1760 = vunpack.c.l.b16 %v1692
          %v1761 = vunpack.c.l.b16 %v1693
          %v1762 = vunpack.c.l.b16 %v1694
          %v1763 = vunpack.c.l.b16 %v1695
          %v1764 = vunpack.c.l.b16 %v1696
          %v1765 = vunpack.c.l.b16 %v1697
          %v1766 = vunpack.c.l.b16 %v1698
          %v1767 = vunpack.c.l.b16 %v1699
          %v1768 = vunpack.c.l.b16 %v1700
          %v1769 = vunpack.c.l.b16 %v1701
          %v1770 = vunpack.c.l.b16 %v1702
          %v1771 = vunpack.c.l.b16 %v1703
          %v1772 = vunpack.c.l.b16 %v1704
          %v1773 = vunpack.c.l.b16 %v1705
          %v1774 = vpack.c.b16 %v1743, %v1742
          %v1775 = vpack.c.b16 %v1745, %v1744
          %v1776 = vpack.c.b16 %v1747, %v1746
          %v1777 = vpack.c.b16 %v1749, %v1748
          %v1778 = vpack.c.b16 %v1751, %v1750
          %v1779 = vpack.c.b16 %v1753, %v1752
          %v1780 = vpack.c.b16 %v1755, %v1754
          %v1781 = vpack.c.b16 %v1757, %v1756
          %v1782 = vpack.c.b16 %v1759, %v1758
          %v1783 = vpack.c.b16 %v1761, %v1760
          %v1784 = vpack.c.b16 %v1763, %v1762
          %v1785 = vpack.c.b16 %v1765, %v1764
          %v1786 = vpack.c.b16 %v1767, %v1766
          %v1787 = vpack.c.b16 %v1769, %v1768
          %v1788 = vpack.c.b16 %v1771, %v1770
          %v1789 = vpack.c.b16 %v1773, %v1772
          %1806 = vmatpush.bf16.msra.mxu0 %v1781
          %1807 = vmatpush.bf16.msra.mxu0 %v1780
          %1808 = vmatpush.bf16.msra.mxu0 %v1779
          %1809 = vmatpush.bf16.msra.mxu0 %v1778
          %1810 = vmatpush.bf16.msra.mxu0 %v1777
          %1811 = vmatpush.bf16.msra.mxu0 %v1776
          %1812 = vmatpush.bf16.msra.mxu0 %v1775
          %1813 = vmatpush.bf16.msra.mxu0 %v1774
          %1814 = vmatmul.bf16.gmra.mxu0 %v1658
          %v1815 = vpop.f32.mrf.mxu0
          %v1816 = vadd.f32 %v1708, %v1815
          %v1817 = vpop.f32.mrf.mxu0
          %v1818 = vadd.f32 %v1708, %v1817
          %1819 = vmatmul.bf16.gmra.mxu0 %v1660
          %v1820 = vpop.f32.mrf.mxu0
          %v1821 = vadd.f32 %v1708, %v1820
          %v1822 = vpop.f32.mrf.mxu0
          %v1823 = vadd.f32 %v1708, %v1822
          %1824 = vmatmul.bf16.gmra.mxu0 %v1662
          %v1825 = vpop.f32.mrf.mxu0
          %v1826 = vadd.f32 %v1708, %v1825
          %v1827 = vpop.f32.mrf.mxu0
          %v1828 = vadd.f32 %v1708, %v1827
          %1829 = vmatmul.bf16.gmra.mxu0 %v1664
          %v1830 = vpop.f32.mrf.mxu0
          %v1831 = vadd.f32 %v1708, %v1830
          %v1832 = vpop.f32.mrf.mxu0
          %v1833 = vadd.f32 %v1708, %v1832
          %1834 = vmatmul.bf16.gmra.mxu0 %v1666
          %v1835 = vpop.f32.mrf.mxu0
          %v1836 = vadd.f32 %v1708, %v1835
          %v1837 = vpop.f32.mrf.mxu0
          %v1838 = vadd.f32 %v1708, %v1837
          %1839 = vmatmul.bf16.gmra.mxu0 %v1668
          %v1840 = vpop.f32.mrf.mxu0
          %v1841 = vadd.f32 %v1708, %v1840
          %v1842 = vpop.f32.mrf.mxu0
          %v1843 = vadd.f32 %v1708, %v1842
          %1844 = vmatmul.bf16.gmra.mxu0 %v1670
          %v1845 = vpop.f32.mrf.mxu0
          %v1846 = vadd.f32 %v1708, %v1845
          %v1847 = vpop.f32.mrf.mxu0
          %v1848 = vadd.f32 %v1708, %v1847
          %1849 = vmatmul.bf16.gmra.mxu0 %v1672
          %v1850 = vpop.f32.mrf.mxu0
          %v1851 = vadd.f32 %v1708, %v1850
          %v1852 = vpop.f32.mrf.mxu0
          %v1853 = vadd.f32 %v1708, %v1852
          %1854 = vdwg.mxu0
          %1855 = vmatpush.bf16.msra.mxu0 %v1789
          %1856 = vmatpush.bf16.msra.mxu0 %v1788
          %1857 = vmatpush.bf16.msra.mxu0 %v1787
          %1858 = vmatpush.bf16.msra.mxu0 %v1786
          %1859 = vmatpush.bf16.msra.mxu0 %v1785
          %1860 = vmatpush.bf16.msra.mxu0 %v1784
          %1861 = vmatpush.bf16.msra.mxu0 %v1783
          %1862 = vmatpush.bf16.msra.mxu0 %v1782
          %1863 = vmatmul.bf16.gmra.mxu0 %v1659
          %v1864 = vpop.f32.mrf.mxu0
          %v1865 = vadd.f32 %v1816, %v1864
          %v1866 = vpop.f32.mrf.mxu0
          %v1867 = vadd.f32 %v1818, %v1866
          %1868 = vmatmul.bf16.gmra.mxu0 %v1661
          %v1869 = vpop.f32.mrf.mxu0
          %v1870 = vadd.f32 %v1821, %v1869
          %v1871 = vpop.f32.mrf.mxu0
          %v1872 = vadd.f32 %v1823, %v1871
          %1873 = vmatmul.bf16.gmra.mxu0 %v1663
          %v1874 = vpop.f32.mrf.mxu0
          %v1875 = vadd.f32 %v1826, %v1874
          %v1876 = vpop.f32.mrf.mxu0
          %v1877 = vadd.f32 %v1828, %v1876
          %1878 = vmatmul.bf16.gmra.mxu0 %v1665
          %v1879 = vpop.f32.mrf.mxu0
          %v1880 = vadd.f32 %v1831, %v1879
          %v1881 = vpop.f32.mrf.mxu0
          %v1882 = vadd.f32 %v1833, %v1881
          %1883 = vmatmul.bf16.gmra.mxu0 %v1667
          %v1884 = vpop.f32.mrf.mxu0
          %v1885 = vadd.f32 %v1836, %v1884
          %v1886 = vpop.f32.mrf.mxu0
          %v1887 = vadd.f32 %v1838, %v1886
          %1888 = vmatmul.bf16.gmra.mxu0 %v1669
          %v1889 = vpop.f32.mrf.mxu0
          %v1890 = vadd.f32 %v1841, %v1889
          %v1891 = vpop.f32.mrf.mxu0
          %v1892 = vadd.f32 %v1843, %v1891
          %1893 = vmatmul.bf16.gmra.mxu0 %v1671
          %v1894 = vpop.f32.mrf.mxu0
          %v1895 = vadd.f32 %v1846, %v1894
          %v1896 = vpop.f32.mrf.mxu0
          %v1897 = vadd.f32 %v1848, %v1896
          %1898 = vmatmul.bf16.gmra.mxu0 %v1673
          %v1899 = vpop.f32.mrf.mxu0
          %v1900 = vadd.f32 %v1851, %v1899
          %v1901 = vpop.f32.mrf.mxu0
          %v1902 = vadd.f32 %v1853, %v1901
          %1903 = vdwg.mxu0
          %1904 = vst [vmem:[#allocation2 + $0x80] sm:$0xff] %v1865
          %1905 = vst [vmem:[#allocation2 + $0x88] sm:$0xff] %v1867
          %1906 = vst [vmem:[#allocation2 + $0x90] sm:$0xff] %v1870
          %1907 = vst [vmem:[#allocation2 + $0x98] sm:$0xff] %v1872
          %1908 = vst [vmem:[#allocation2 + $0xa0] sm:$0xff] %v1875
          %1909 = vst [vmem:[#allocation2 + $0xa8] sm:$0xff] %v1877
          %1910 = vst [vmem:[#allocation2 + $0xb0] sm:$0xff] %v1880
          %1911 = vst [vmem:[#allocation2 + $0xb8] sm:$0xff] %v1882
          %1912 = vst [vmem:[#allocation2 + $0xc0] sm:$0xff] %v1885
          %1913 = vst [vmem:[#allocation2 + $0xc8] sm:$0xff] %v1887
          %1914 = vst [vmem:[#allocation2 + $0xd0] sm:$0xff] %v1890
          %1915 = vst [vmem:[#allocation2 + $0xd8] sm:$0xff] %v1892
          %1916 = vst [vmem:[#allocation2 + $0xe0] sm:$0xff] %v1895
          %1917 = vst [vmem:[#allocation2 + $0xe8] sm:$0xff] %v1897
          %1918 = vst [vmem:[#allocation2 + $0xf0] sm:$0xff] %v1900
          %1919 = vst [vmem:[#allocation2 + $0xf8] sm:$0xff] %v1902
        $region104: #{forward.1} parent=99 // pred_fallthru
          _
        %v1920 = vld [vmem:[#allocation2] sm:$0xff]
        %v1921 = vld [vmem:[#allocation2 + $0x8] sm:$0xff]
        %v1922 = vld [vmem:[#allocation2 + $0x10] sm:$0xff]
        %v1923 = vld [vmem:[#allocation2 + $0x18] sm:$0xff]
        %v1924 = vld [vmem:[#allocation2 + $0x20] sm:$0xff]
        %v1925 = vld [vmem:[#allocation2 + $0x28] sm:$0xff]
        %v1926 = vld [vmem:[#allocation2 + $0x30] sm:$0xff]
        %v1927 = vld [vmem:[#allocation2 + $0x38] sm:$0xff]
        %v1928 = vld [vmem:[#allocation2 + $0x40] sm:$0xff]
        %v1929 = vld [vmem:[#allocation2 + $0x48] sm:$0xff]
        %v1930 = vld [vmem:[#allocation2 + $0x50] sm:$0xff]
        %v1931 = vld [vmem:[#allocation2 + $0x58] sm:$0xff]
        %v1932 = vld [vmem:[#allocation2 + $0x60] sm:$0xff]
        %v1933 = vld [vmem:[#allocation2 + $0x68] sm:$0xff]
        %v1934 = vld [vmem:[#allocation2 + $0x70] sm:$0xff]
        %v1935 = vld [vmem:[#allocation2 + $0x78] sm:$0xff]
        %v1936 = vld [vmem:[#allocation2 + $0x80] sm:$0xff]
        %v1937 = vld [vmem:[#allocation2 + $0x88] sm:$0xff]
        %v1938 = vld [vmem:[#allocation2 + $0x90] sm:$0xff]
        %v1939 = vld [vmem:[#allocation2 + $0x98] sm:$0xff]
        %v1940 = vld [vmem:[#allocation2 + $0xa0] sm:$0xff]
        %v1941 = vld [vmem:[#allocation2 + $0xa8] sm:$0xff]
        %v1942 = vld [vmem:[#allocation2 + $0xb0] sm:$0xff]
        %v1943 = vld [vmem:[#allocation2 + $0xb8] sm:$0xff]
        %v1944 = vld [vmem:[#allocation2 + $0xc0] sm:$0xff]
        %v1945 = vld [vmem:[#allocation2 + $0xc8] sm:$0xff]
        %v1946 = vld [vmem:[#allocation2 + $0xd0] sm:$0xff]
        %v1947 = vld [vmem:[#allocation2 + $0xd8] sm:$0xff]
        %v1948 = vld [vmem:[#allocation2 + $0xe0] sm:$0xff]
        %v1949 = vld [vmem:[#allocation2 + $0xe8] sm:$0xff]
        %v1950 = vld [vmem:[#allocation2 + $0xf0] sm:$0xff]
        %v1951 = vld [vmem:[#allocation2 + $0xf8] sm:$0xff]
        %v1952 = vpack.c.bf16 %v1921, %v1920
        %v1953 = vpack.c.bf16 %v1923, %v1922
        %v1954 = vpack.c.bf16 %v1925, %v1924
        %v1955 = vpack.c.bf16 %v1927, %v1926
        %v1956 = vpack.c.bf16 %v1929, %v1928
        %v1957 = vpack.c.bf16 %v1931, %v1930
        %v1958 = vpack.c.bf16 %v1933, %v1932
        %v1959 = vpack.c.bf16 %v1935, %v1934
        %v1960 = vpack.c.bf16 %v1937, %v1936
        %v1961 = vpack.c.bf16 %v1939, %v1938
        %v1962 = vpack.c.bf16 %v1941, %v1940
        %v1963 = vpack.c.bf16 %v1943, %v1942
        %v1964 = vpack.c.bf16 %v1945, %v1944
        %v1965 = vpack.c.bf16 %v1947, %v1946
        %v1966 = vpack.c.bf16 %v1949, %v1948
        %v1967 = vpack.c.bf16 %v1951, %v1950
        %v1968 = vld [vmem:[%s752] sm:$0xff]
        %v1969 = vld [vmem:[%s752 + $0x8] sm:$0xf]
        %v1970 = vld [vmem:[%s752 + $0xc] sm:$0xff]
        %v1971 = vld [vmem:[%s752 + $0x14] sm:$0xf]
        %v1972 = vld [vmem:[%s752 + $0x18] sm:$0xff]
        %v1973 = vld [vmem:[%s752 + $0x20] sm:$0xf]
        %v1974 = vld [vmem:[%s752 + $0x24] sm:$0xff]
        %v1975 = vld [vmem:[%s752 + $0x2c] sm:$0xf]
        %v1976 = vld [vmem:[%s752 + $0x30] sm:$0xff]
        %v1977 = vld [vmem:[%s752 + $0x38] sm:$0xf]
        %v1978 = vld [vmem:[%s752 + $0x3c] sm:$0xff]
        %v1979 = vld [vmem:[%s752 + $0x44] sm:$0xf]
        %v1980 = vld [vmem:[%s752 + $0x48] sm:$0xff]
        %v1981 = vld [vmem:[%s752 + $0x50] sm:$0xf]
        %v1982 = vld [vmem:[%s752 + $0x54] sm:$0xff]
        %v1983 = vld [vmem:[%s752 + $0x5c] sm:$0xf]
        %v1984 = vld [vmem:[%s752 + $0x60] sm:$0xff]
        %v1985 = vld [vmem:[%s752 + $0x68] sm:$0xf]
        %v1986 = vld [vmem:[%s752 + $0x6c] sm:$0xff]
        %v1987 = vld [vmem:[%s752 + $0x74] sm:$0xf]
        %v1988 = vld [vmem:[%s752 + $0x78] sm:$0xff]
        %v1989 = vld [vmem:[%s752 + $0x80] sm:$0xf]
        %v1990 = vld [vmem:[%s752 + $0x84] sm:$0xff]
        %v1991 = vld [vmem:[%s752 + $0x8c] sm:$0xf]
        %v1992 = vld [vmem:[%s752 + $0x90] sm:$0xff]
        %v1993 = vld [vmem:[%s752 + $0x98] sm:$0xf]
        %v1994 = vld [vmem:[%s752 + $0x9c] sm:$0xff]
        %v1995 = vld [vmem:[%s752 + $0xa4] sm:$0xf]
        %v1996 = vld [vmem:[%s752 + $0xa8] sm:$0xff]
        %v1997 = vld [vmem:[%s752 + $0xb0] sm:$0xf]
        %v1998 = vld [vmem:[%s752 + $0xb4] sm:$0xff]
        %v1999 = vld [vmem:[%s752 + $0xbc] sm:$0xf]
        %v2000 = vld [vmem:[%s756] sm:$0x7]
        %v2002 = vperm.slane %v2000, 0
        %v2003 = vperm.slane %v2000, 1
        %v2004 = vperm.slane %v2000, 2
        %v2040 = vunpack.c.l.b16 %v1968
        %v2041 = vunpack.c.h.b16 %v1968
        %v2042 = vunpack.c.l.b16 %v1969
        %v2043 = vunpack.c.l.b16 %v1970
        %v2044 = vunpack.c.h.b16 %v1970
        %v2045 = vunpack.c.l.b16 %v1971
        %v2046 = vunpack.c.l.b16 %v1972
        %v2047 = vunpack.c.h.b16 %v1972
        %v2048 = vunpack.c.l.b16 %v1973
        %v2049 = vunpack.c.l.b16 %v1974
        %v2050 = vunpack.c.h.b16 %v1974
        %v2051 = vunpack.c.l.b16 %v1975
        %v2052 = vunpack.c.l.b16 %v1976
        %v2053 = vunpack.c.h.b16 %v1976
        %v2054 = vunpack.c.l.b16 %v1977
        %v2055 = vunpack.c.l.b16 %v1978
        %v2056 = vunpack.c.h.b16 %v1978
        %v2057 = vunpack.c.l.b16 %v1979
        %v2058 = vunpack.c.l.b16 %v1980
        %v2059 = vunpack.c.h.b16 %v1980
        %v2060 = vunpack.c.l.b16 %v1981
        %v2061 = vunpack.c.l.b16 %v1982
        %v2062 = vunpack.c.h.b16 %v1982
        %v2063 = vunpack.c.l.b16 %v1983
        %v2064 = vunpack.c.l.b16 %v1984
        %v2065 = vunpack.c.h.b16 %v1984
        %v2066 = vunpack.c.l.b16 %v1985
        %v2067 = vunpack.c.l.b16 %v1986
        %v2068 = vunpack.c.h.b16 %v1986
        %v2069 = vunpack.c.l.b16 %v1987
        %v2070 = vunpack.c.l.b16 %v1988
        %v2071 = vunpack.c.h.b16 %v1988
        %v2072 = vunpack.c.l.b16 %v1989
        %v2073 = vunpack.c.l.b16 %v1990
        %v2074 = vunpack.c.h.b16 %v1990
        %v2075 = vunpack.c.l.b16 %v1991
        %v2076 = vunpack.c.l.b16 %v1992
        %v2077 = vunpack.c.h.b16 %v1992
        %v2078 = vunpack.c.l.b16 %v1993
        %v2079 = vunpack.c.l.b16 %v1994
        %v2080 = vunpack.c.h.b16 %v1994
        %v2081 = vunpack.c.l.b16 %v1995
        %v2082 = vunpack.c.l.b16 %v1996
        %v2083 = vunpack.c.h.b16 %v1996
        %v2084 = vunpack.c.l.b16 %v1997
        %v2085 = vunpack.c.l.b16 %v1998
        %v2086 = vunpack.c.h.b16 %v1998
        %v2087 = vunpack.c.l.b16 %v1999
        %v2088 = vpack.c.b16 %v2043, %v2040
        %v2089 = vpack.c.b16 %v2044, %v2041
        %v2090 = vpack.c.b16 %v2045, %v2042
        %v2091 = vpack.c.b16 %v2049, %v2046
        %v2092 = vpack.c.b16 %v2050, %v2047
        %v2093 = vpack.c.b16 %v2051, %v2048
        %v2094 = vpack.c.b16 %v2055, %v2052
        %v2095 = vpack.c.b16 %v2056, %v2053
        %v2096 = vpack.c.b16 %v2057, %v2054
        %v2097 = vpack.c.b16 %v2061, %v2058
        %v2098 = vpack.c.b16 %v2062, %v2059
        %v2099 = vpack.c.b16 %v2063, %v2060
        %v2100 = vpack.c.b16 %v2067, %v2064
        %v2101 = vpack.c.b16 %v2068, %v2065
        %v2102 = vpack.c.b16 %v2069, %v2066
        %v2103 = vpack.c.b16 %v2073, %v2070
        %v2104 = vpack.c.b16 %v2074, %v2071
        %v2105 = vpack.c.b16 %v2075, %v2072
        %v2106 = vpack.c.b16 %v2079, %v2076
        %v2107 = vpack.c.b16 %v2080, %v2077
        %v2108 = vpack.c.b16 %v2081, %v2078
        %v2109 = vpack.c.b16 %v2085, %v2082
        %v2110 = vpack.c.b16 %v2086, %v2083
        %v2111 = vpack.c.b16 %v2087, %v2084
        %2136 = vmatpush.bf16.msra.mxu0 %v2109
        %2137 = vmatpush.bf16.msra.mxu0 %v2106
        %2138 = vmatpush.bf16.msra.mxu0 %v2103
        %2139 = vmatpush.bf16.msra.mxu0 %v2100
        %2140 = vmatpush.bf16.msra.mxu0 %v2097
        %2141 = vmatpush.bf16.msra.mxu0 %v2094
        %2142 = vmatpush.bf16.msra.mxu0 %v2091
        %2143 = vmatpush.bf16.msra.mxu0 %v2088
        %2144 = vmatmul.bf16.gmra.mxu0 %v1952
        %v2145 = vpop.f32.mrf.mxu0
        %v2146 = vadd.f32 %v2002, %v2145
        %v2147 = vpop.f32.mrf.mxu0
        %v2148 = vadd.f32 %v2002, %v2147
        %2149 = vmatmul.bf16.gmra.mxu0 %v1953
        %v2150 = vpop.f32.mrf.mxu0
        %v2151 = vadd.f32 %v2002, %v2150
        %v2152 = vpop.f32.mrf.mxu0
        %v2153 = vadd.f32 %v2002, %v2152
        %2154 = vmatmul.bf16.gmra.mxu0 %v1954
        %v2155 = vpop.f32.mrf.mxu0
        %v2156 = vadd.f32 %v2002, %v2155
        %v2157 = vpop.f32.mrf.mxu0
        %v2158 = vadd.f32 %v2002, %v2157
        %2159 = vmatmul.bf16.gmra.mxu0 %v1955
        %v2160 = vpop.f32.mrf.mxu0
        %v2161 = vadd.f32 %v2002, %v2160
        %v2162 = vpop.f32.mrf.mxu0
        %v2163 = vadd.f32 %v2002, %v2162
        %2164 = vmatmul.bf16.gmra.mxu0 %v1956
        %v2165 = vpop.f32.mrf.mxu0
        %v2166 = vadd.f32 %v2002, %v2165
        %v2167 = vpop.f32.mrf.mxu0
        %v2168 = vadd.f32 %v2002, %v2167
        %2169 = vmatmul.bf16.gmra.mxu0 %v1957
        %v2170 = vpop.f32.mrf.mxu0
        %v2171 = vadd.f32 %v2002, %v2170
        %v2172 = vpop.f32.mrf.mxu0
        %v2173 = vadd.f32 %v2002, %v2172
        %2174 = vmatmul.bf16.gmra.mxu0 %v1958
        %v2175 = vpop.f32.mrf.mxu0
        %v2176 = vadd.f32 %v2002, %v2175
        %v2177 = vpop.f32.mrf.mxu0
        %v2178 = vadd.f32 %v2002, %v2177
        %2179 = vmatmul.bf16.gmra.mxu0 %v1959
        %v2180 = vpop.f32.mrf.mxu0
        %v2181 = vadd.f32 %v2002, %v2180
        %v2182 = vpop.f32.mrf.mxu0
        %v2183 = vadd.f32 %v2002, %v2182
        %2184 = vmatmul.bf16.gmra.mxu0 %v1960
        %v2185 = vpop.f32.mrf.mxu0
        %v2186 = vadd.f32 %v2002, %v2185
        %v2187 = vpop.f32.mrf.mxu0
        %v2188 = vadd.f32 %v2002, %v2187
        %2189 = vmatmul.bf16.gmra.mxu0 %v1961
        %v2190 = vpop.f32.mrf.mxu0
        %v2191 = vadd.f32 %v2002, %v2190
        %v2192 = vpop.f32.mrf.mxu0
        %v2193 = vadd.f32 %v2002, %v2192
        %2194 = vmatmul.bf16.gmra.mxu0 %v1962
        %v2195 = vpop.f32.mrf.mxu0
        %v2196 = vadd.f32 %v2002, %v2195
        %v2197 = vpop.f32.mrf.mxu0
        %v2198 = vadd.f32 %v2002, %v2197
        %2199 = vmatmul.bf16.gmra.mxu0 %v1963
        %v2200 = vpop.f32.mrf.mxu0
        %v2201 = vadd.f32 %v2002, %v2200
        %v2202 = vpop.f32.mrf.mxu0
        %v2203 = vadd.f32 %v2002, %v2202
        %2204 = vmatmul.bf16.gmra.mxu0 %v1964
        %v2205 = vpop.f32.mrf.mxu0
        %v2206 = vadd.f32 %v2002, %v2205
        %v2207 = vpop.f32.mrf.mxu0
        %v2208 = vadd.f32 %v2002, %v2207
        %2209 = vmatmul.bf16.gmra.mxu0 %v1965
        %v2210 = vpop.f32.mrf.mxu0
        %v2211 = vadd.f32 %v2002, %v2210
        %v2212 = vpop.f32.mrf.mxu0
        %v2213 = vadd.f32 %v2002, %v2212
        %2214 = vmatmul.bf16.gmra.mxu0 %v1966
        %v2215 = vpop.f32.mrf.mxu0
        %v2216 = vadd.f32 %v2002, %v2215
        %v2217 = vpop.f32.mrf.mxu0
        %v2218 = vadd.f32 %v2002, %v2217
        %2219 = vmatmul.bf16.gmra.mxu0 %v1967
        %v2220 = vpop.f32.mrf.mxu0
        %v2221 = vadd.f32 %v2002, %v2220
        %v2222 = vpop.f32.mrf.mxu0
        %v2223 = vadd.f32 %v2002, %v2222
        %2224 = vdwg.mxu0
        %2225 = vmatpush.bf16.msra.mxu0 %v2110
        %2226 = vmatpush.bf16.msra.mxu0 %v2107
        %2227 = vmatpush.bf16.msra.mxu0 %v2104
        %2228 = vmatpush.bf16.msra.mxu0 %v2101
        %2229 = vmatpush.bf16.msra.mxu0 %v2098
        %2230 = vmatpush.bf16.msra.mxu0 %v2095
        %2231 = vmatpush.bf16.msra.mxu0 %v2092
        %2232 = vmatpush.bf16.msra.mxu0 %v2089
        %2233 = vmatmul.bf16.gmra.mxu0 %v1952
        %v2234 = vpop.f32.mrf.mxu0
        %v2235 = vadd.f32 %v2003, %v2234
        %v2236 = vpop.f32.mrf.mxu0
        %v2237 = vadd.f32 %v2003, %v2236
        %2238 = vmatmul.bf16.gmra.mxu0 %v1953
        %v2239 = vpop.f32.mrf.mxu0
        %v2240 = vadd.f32 %v2003, %v2239
        %v2241 = vpop.f32.mrf.mxu0
        %v2242 = vadd.f32 %v2003, %v2241
        %2243 = vmatmul.bf16.gmra.mxu0 %v1954
        %v2244 = vpop.f32.mrf.mxu0
        %v2245 = vadd.f32 %v2003, %v2244
        %v2246 = vpop.f32.mrf.mxu0
        %v2247 = vadd.f32 %v2003, %v2246
        %2248 = vmatmul.bf16.gmra.mxu0 %v1955
        %v2249 = vpop.f32.mrf.mxu0
        %v2250 = vadd.f32 %v2003, %v2249
        %v2251 = vpop.f32.mrf.mxu0
        %v2252 = vadd.f32 %v2003, %v2251
        %2253 = vmatmul.bf16.gmra.mxu0 %v1956
        %v2254 = vpop.f32.mrf.mxu0
        %v2255 = vadd.f32 %v2003, %v2254
        %v2256 = vpop.f32.mrf.mxu0
        %v2257 = vadd.f32 %v2003, %v2256
        %2258 = vmatmul.bf16.gmra.mxu0 %v1957
        %v2259 = vpop.f32.mrf.mxu0
        %v2260 = vadd.f32 %v2003, %v2259
        %v2261 = vpop.f32.mrf.mxu0
        %v2262 = vadd.f32 %v2003, %v2261
        %2263 = vmatmul.bf16.gmra.mxu0 %v1958
        %v2264 = vpop.f32.mrf.mxu0
        %v2265 = vadd.f32 %v2003, %v2264
        %v2266 = vpop.f32.mrf.mxu0
        %v2267 = vadd.f32 %v2003, %v2266
        %2268 = vmatmul.bf16.gmra.mxu0 %v1959
        %v2269 = vpop.f32.mrf.mxu0
        %v2270 = vadd.f32 %v2003, %v2269
        %v2271 = vpop.f32.mrf.mxu0
        %v2272 = vadd.f32 %v2003, %v2271
        %2273 = vmatmul.bf16.gmra.mxu0 %v1960
        %v2274 = vpop.f32.mrf.mxu0
        %v2275 = vadd.f32 %v2003, %v2274
        %v2276 = vpop.f32.mrf.mxu0
        %v2277 = vadd.f32 %v2003, %v2276
        %2278 = vmatmul.bf16.gmra.mxu0 %v1961
        %v2279 = vpop.f32.mrf.mxu0
        %v2280 = vadd.f32 %v2003, %v2279
        %v2281 = vpop.f32.mrf.mxu0
        %v2282 = vadd.f32 %v2003, %v2281
        %2283 = vmatmul.bf16.gmra.mxu0 %v1962
        %v2284 = vpop.f32.mrf.mxu0
        %v2285 = vadd.f32 %v2003, %v2284
        %v2286 = vpop.f32.mrf.mxu0
        %v2287 = vadd.f32 %v2003, %v2286
        %2288 = vmatmul.bf16.gmra.mxu0 %v1963
        %v2289 = vpop.f32.mrf.mxu0
        %v2290 = vadd.f32 %v2003, %v2289
        %v2291 = vpop.f32.mrf.mxu0
        %v2292 = vadd.f32 %v2003, %v2291
        %2293 = vmatmul.bf16.gmra.mxu0 %v1964
        %v2294 = vpop.f32.mrf.mxu0
        %v2295 = vadd.f32 %v2003, %v2294
        %v2296 = vpop.f32.mrf.mxu0
        %v2297 = vadd.f32 %v2003, %v2296
        %2298 = vmatmul.bf16.gmra.mxu0 %v1965
        %v2299 = vpop.f32.mrf.mxu0
        %v2300 = vadd.f32 %v2003, %v2299
        %v2301 = vpop.f32.mrf.mxu0
        %v2302 = vadd.f32 %v2003, %v2301
        %2303 = vmatmul.bf16.gmra.mxu0 %v1966
        %v2304 = vpop.f32.mrf.mxu0
        %v2305 = vadd.f32 %v2003, %v2304
        %v2306 = vpop.f32.mrf.mxu0
        %v2307 = vadd.f32 %v2003, %v2306
        %2308 = vmatmul.bf16.gmra.mxu0 %v1967
        %v2309 = vpop.f32.mrf.mxu0
        %v2310 = vadd.f32 %v2003, %v2309
        %v2311 = vpop.f32.mrf.mxu0
        %v2312 = vadd.f32 %v2003, %v2311
        %2313 = vdwg.mxu0
        %2314 = vmatpush.bf16.msra.mxu0 %v2111
        %2315 = vmatpush.bf16.msra.mxu0 %v2108
        %2316 = vmatpush.bf16.msra.mxu0 %v2105
        %2317 = vmatpush.bf16.msra.mxu0 %v2102
        %2318 = vmatpush.bf16.msra.mxu0 %v2099
        %2319 = vmatpush.bf16.msra.mxu0 %v2096
        %2320 = vmatpush.bf16.msra.mxu0 %v2093
        %2321 = vmatpush.bf16.msra.mxu0 %v2090
        %2322 = vmatmul.bf16.gmra.mxu0 %v1952
        %v2323 = vpop.f32.mrf.mxu0
        %v2324 = vadd.f32 %v2004, %v2323
        %v2325 = vpop.f32.mrf.mxu0
        %v2326 = vadd.f32 %v2004, %v2325
        %2327 = vmatmul.bf16.gmra.mxu0 %v1953
        %v2328 = vpop.f32.mrf.mxu0
        %v2329 = vadd.f32 %v2004, %v2328
        %v2330 = vpop.f32.mrf.mxu0
        %v2331 = vadd.f32 %v2004, %v2330
        %2332 = vmatmul.bf16.gmra.mxu0 %v1954
        %v2333 = vpop.f32.mrf.mxu0
        %v2334 = vadd.f32 %v2004, %v2333
        %v2335 = vpop.f32.mrf.mxu0
        %v2336 = vadd.f32 %v2004, %v2335
        %2337 = vmatmul.bf16.gmra.mxu0 %v1955
        %v2338 = vpop.f32.mrf.mxu0
        %v2339 = vadd.f32 %v2004, %v2338
        %v2340 = vpop.f32.mrf.mxu0
        %v2341 = vadd.f32 %v2004, %v2340
        %2342 = vmatmul.bf16.gmra.mxu0 %v1956
        %v2343 = vpop.f32.mrf.mxu0
        %v2344 = vadd.f32 %v2004, %v2343
        %v2345 = vpop.f32.mrf.mxu0
        %v2346 = vadd.f32 %v2004, %v2345
        %2347 = vmatmul.bf16.gmra.mxu0 %v1957
        %v2348 = vpop.f32.mrf.mxu0
        %v2349 = vadd.f32 %v2004, %v2348
        %v2350 = vpop.f32.mrf.mxu0
        %v2351 = vadd.f32 %v2004, %v2350
        %2352 = vmatmul.bf16.gmra.mxu0 %v1958
        %v2353 = vpop.f32.mrf.mxu0
        %v2354 = vadd.f32 %v2004, %v2353
        %v2355 = vpop.f32.mrf.mxu0
        %v2356 = vadd.f32 %v2004, %v2355
        %2357 = vmatmul.bf16.gmra.mxu0 %v1959
        %v2358 = vpop.f32.mrf.mxu0
        %v2359 = vadd.f32 %v2004, %v2358
        %v2360 = vpop.f32.mrf.mxu0
        %v2361 = vadd.f32 %v2004, %v2360
        %2362 = vmatmul.bf16.gmra.mxu0 %v1960
        %v2363 = vpop.f32.mrf.mxu0
        %v2364 = vadd.f32 %v2004, %v2363
        %v2365 = vpop.f32.mrf.mxu0
        %v2366 = vadd.f32 %v2004, %v2365
        %2367 = vmatmul.bf16.gmra.mxu0 %v1961
        %v2368 = vpop.f32.mrf.mxu0
        %v2369 = vadd.f32 %v2004, %v2368
        %v2370 = vpop.f32.mrf.mxu0
        %v2371 = vadd.f32 %v2004, %v2370
        %2372 = vmatmul.bf16.gmra.mxu0 %v1962
        %v2373 = vpop.f32.mrf.mxu0
        %v2374 = vadd.f32 %v2004, %v2373
        %v2375 = vpop.f32.mrf.mxu0
        %v2376 = vadd.f32 %v2004, %v2375
        %2377 = vmatmul.bf16.gmra.mxu0 %v1963
        %v2378 = vpop.f32.mrf.mxu0
        %v2379 = vadd.f32 %v2004, %v2378
        %v2380 = vpop.f32.mrf.mxu0
        %v2381 = vadd.f32 %v2004, %v2380
        %2382 = vmatmul.bf16.gmra.mxu0 %v1964
        %v2383 = vpop.f32.mrf.mxu0
        %v2384 = vadd.f32 %v2004, %v2383
        %v2385 = vpop.f32.mrf.mxu0
        %v2386 = vadd.f32 %v2004, %v2385
        %2387 = vmatmul.bf16.gmra.mxu0 %v1965
        %v2388 = vpop.f32.mrf.mxu0
        %v2389 = vadd.f32 %v2004, %v2388
        %v2390 = vpop.f32.mrf.mxu0
        %v2391 = vadd.f32 %v2004, %v2390
        %2392 = vmatmul.bf16.gmra.mxu0 %v1966
        %v2393 = vpop.f32.mrf.mxu0
        %v2394 = vadd.f32 %v2004, %v2393
        %v2395 = vpop.f32.mrf.mxu0
        %v2396 = vadd.f32 %v2004, %v2395
        %2397 = vmatmul.bf16.gmra.mxu0 %v1967
        %v2398 = vpop.f32.mrf.mxu0
        %v2399 = vadd.f32 %v2004, %v2398
        %v2400 = vpop.f32.mrf.mxu0
        %v2401 = vadd.f32 %v2004, %v2400
        %2402 = vdwg.mxu0
        %2403 = vst [vmem:[#allocation3] sm:$0xff] %v2146
        %2404 = vst [vmem:[#allocation3 + $0x8] sm:$0xff] %v2235
        %2405 = vst [vmem:[#allocation3 + $0x10] sm:$0xff] %v2324
        %2406 = vst [vmem:[#allocation3 + $0x18] sm:$0xff] %v2148
        %2407 = vst [vmem:[#allocation3 + $0x20] sm:$0xff] %v2237
        %2408 = vst [vmem:[#allocation3 + $0x28] sm:$0xff] %v2326
        %2409 = vst [vmem:[#allocation3 + $0x30] sm:$0xff] %v2151
        %2410 = vst [vmem:[#allocation3 + $0x38] sm:$0xff] %v2240
        %2411 = vst [vmem:[#allocation3 + $0x40] sm:$0xff] %v2329
        %2412 = vst [vmem:[#allocation3 + $0x48] sm:$0xff] %v2153
        %2413 = vst [vmem:[#allocation3 + $0x50] sm:$0xff] %v2242
        %2414 = vst [vmem:[#allocation3 + $0x58] sm:$0xff] %v2331
        %2415 = vst [vmem:[#allocation3 + $0x60] sm:$0xff] %v2156
        %2416 = vst [vmem:[#allocation3 + $0x68] sm:$0xff] %v2245
        %2417 = vst [vmem:[#allocation3 + $0x70] sm:$0xff] %v2334
        %2418 = vst [vmem:[#allocation3 + $0x78] sm:$0xff] %v2158
        %2419 = vst [vmem:[#allocation3 + $0x80] sm:$0xff] %v2247
        %2420 = vst [vmem:[#allocation3 + $0x88] sm:$0xff] %v2336
        %2421 = vst [vmem:[#allocation3 + $0x90] sm:$0xff] %v2161
        %2422 = vst [vmem:[#allocation3 + $0x98] sm:$0xff] %v2250
        %2423 = vst [vmem:[#allocation3 + $0xa0] sm:$0xff] %v2339
        %2424 = vst [vmem:[#allocation3 + $0xa8] sm:$0xff] %v2163
        %2425 = vst [vmem:[#allocation3 + $0xb0] sm:$0xff] %v2252
        %2426 = vst [vmem:[#allocation3 + $0xb8] sm:$0xff] %v2341
        %2427 = vst [vmem:[#allocation3 + $0xc0] sm:$0xff] %v2166
        %2428 = vst [vmem:[#allocation3 + $0xc8] sm:$0xff] %v2255
        %2429 = vst [vmem:[#allocation3 + $0xd0] sm:$0xff] %v2344
        %2430 = vst [vmem:[#allocation3 + $0xd8] sm:$0xff] %v2168
        %2431 = vst [vmem:[#allocation3 + $0xe0] sm:$0xff] %v2257
        %2432 = vst [vmem:[#allocation3 + $0xe8] sm:$0xff] %v2346
        %2433 = vst [vmem:[#allocation3 + $0xf0] sm:$0xff] %v2171
        %2434 = vst [vmem:[#allocation3 + $0xf8] sm:$0xff] %v2260
        %2435 = vst [vmem:[#allocation3 + $0x100] sm:$0xff] %v2349
        %2436 = vst [vmem:[#allocation3 + $0x108] sm:$0xff] %v2173
        %2437 = vst [vmem:[#allocation3 + $0x110] sm:$0xff] %v2262
        %2438 = vst [vmem:[#allocation3 + $0x118] sm:$0xff] %v2351
        %2439 = vst [vmem:[#allocation3 + $0x120] sm:$0xff] %v2176
        %2440 = vst [vmem:[#allocation3 + $0x128] sm:$0xff] %v2265
        %2441 = vst [vmem:[#allocation3 + $0x130] sm:$0xff] %v2354
        %2442 = vst [vmem:[#allocation3 + $0x138] sm:$0xff] %v2178
        %2443 = vst [vmem:[#allocation3 + $0x140] sm:$0xff] %v2267
        %2444 = vst [vmem:[#allocation3 + $0x148] sm:$0xff] %v2356
        %2445 = vst [vmem:[#allocation3 + $0x150] sm:$0xff] %v2181
        %2446 = vst [vmem:[#allocation3 + $0x158] sm:$0xff] %v2270
        %2447 = vst [vmem:[#allocation3 + $0x160] sm:$0xff] %v2359
        %2448 = vst [vmem:[#allocation3 + $0x168] sm:$0xff] %v2183
        %2449 = vst [vmem:[#allocation3 + $0x170] sm:$0xff] %v2272
        %2450 = vst [vmem:[#allocation3 + $0x178] sm:$0xff] %v2361
        %2451 = vst [vmem:[#allocation3 + $0x180] sm:$0xff] %v2186
        %2452 = vst [vmem:[#allocation3 + $0x188] sm:$0xff] %v2275
        %2453 = vst [vmem:[#allocation3 + $0x190] sm:$0xff] %v2364
        %2454 = vst [vmem:[#allocation3 + $0x198] sm:$0xff] %v2188
        %2455 = vst [vmem:[#allocation3 + $0x1a0] sm:$0xff] %v2277
        %2456 = vst [vmem:[#allocation3 + $0x1a8] sm:$0xff] %v2366
        %2457 = vst [vmem:[#allocation3 + $0x1b0] sm:$0xff] %v2191
        %2458 = vst [vmem:[#allocation3 + $0x1b8] sm:$0xff] %v2280
        %2459 = vst [vmem:[#allocation3 + $0x1c0] sm:$0xff] %v2369
        %2460 = vst [vmem:[#allocation3 + $0x1c8] sm:$0xff] %v2193
        %2461 = vst [vmem:[#allocation3 + $0x1d0] sm:$0xff] %v2282
        %2462 = vst [vmem:[#allocation3 + $0x1d8] sm:$0xff] %v2371
        %2463 = vst [vmem:[#allocation3 + $0x1e0] sm:$0xff] %v2196
        %2464 = vst [vmem:[#allocation3 + $0x1e8] sm:$0xff] %v2285
        %2465 = vst [vmem:[#allocation3 + $0x1f0] sm:$0xff] %v2374
        %2466 = vst [vmem:[#allocation3 + $0x1f8] sm:$0xff] %v2198
        %2467 = vst [vmem:[#allocation3 + $0x200] sm:$0xff] %v2287
        %2468 = vst [vmem:[#allocation3 + $0x208] sm:$0xff] %v2376
        %2469 = vst [vmem:[#allocation3 + $0x210] sm:$0xff] %v2201
        %2470 = vst [vmem:[#allocation3 + $0x218] sm:$0xff] %v2290
        %2471 = vst [vmem:[#allocation3 + $0x220] sm:$0xff] %v2379
        %2472 = vst [vmem:[#allocation3 + $0x228] sm:$0xff] %v2203
        %2473 = vst [vmem:[#allocation3 + $0x230] sm:$0xff] %v2292
        %2474 = vst [vmem:[#allocation3 + $0x238] sm:$0xff] %v2381
        %2475 = vst [vmem:[#allocation3 + $0x240] sm:$0xff] %v2206
        %2476 = vst [vmem:[#allocation3 + $0x248] sm:$0xff] %v2295
        %2477 = vst [vmem:[#allocation3 + $0x250] sm:$0xff] %v2384
        %2478 = vst [vmem:[#allocation3 + $0x258] sm:$0xff] %v2208
        %2479 = vst [vmem:[#allocation3 + $0x260] sm:$0xff] %v2297
        %2480 = vst [vmem:[#allocation3 + $0x268] sm:$0xff] %v2386
        %2481 = vst [vmem:[#allocation3 + $0x270] sm:$0xff] %v2211
        %2482 = vst [vmem:[#allocation3 + $0x278] sm:$0xff] %v2300
        %2483 = vst [vmem:[#allocation3 + $0x280] sm:$0xff] %v2389
        %2484 = vst [vmem:[#allocation3 + $0x288] sm:$0xff] %v2213
        %2485 = vst [vmem:[#allocation3 + $0x290] sm:$0xff] %v2302
        %2486 = vst [vmem:[#allocation3 + $0x298] sm:$0xff] %v2391
        %2487 = vst [vmem:[#allocation3 + $0x2a0] sm:$0xff] %v2216
        %2488 = vst [vmem:[#allocation3 + $0x2a8] sm:$0xff] %v2305
        %2489 = vst [vmem:[#allocation3 + $0x2b0] sm:$0xff] %v2394
        %2490 = vst [vmem:[#allocation3 + $0x2b8] sm:$0xff] %v2218
        %2491 = vst [vmem:[#allocation3 + $0x2c0] sm:$0xff] %v2307
        %2492 = vst [vmem:[#allocation3 + $0x2c8] sm:$0xff] %v2396
        %2493 = vst [vmem:[#allocation3 + $0x2d0] sm:$0xff] %v2221
        %2494 = vst [vmem:[#allocation3 + $0x2d8] sm:$0xff] %v2310
        %2495 = vst [vmem:[#allocation3 + $0x2e0] sm:$0xff] %v2399
        %2496 = vst [vmem:[#allocation3 + $0x2e8] sm:$0xff] %v2223
        %2497 = vst [vmem:[#allocation3 + $0x2f0] sm:$0xff] %v2312
        %2498 = vst [vmem:[#allocation3 + $0x2f8] sm:$0xff] %v2401
        %v2499 = vld [vmem:[#allocation3] sm:$0xff]
        %v2500 = vld [vmem:[#allocation3 + $0x18] sm:$0xff]
        %v2501 = vld [vmem:[#allocation3 + $0x30] sm:$0xff]
        %v2502 = vld [vmem:[#allocation3 + $0x48] sm:$0xff]
        %v2503 = vld [vmem:[#allocation3 + $0x60] sm:$0xff]
        %v2504 = vld [vmem:[#allocation3 + $0x78] sm:$0xff]
        %v2505 = vld [vmem:[#allocation3 + $0x90] sm:$0xff]
        %v2506 = vld [vmem:[#allocation3 + $0xa8] sm:$0xff]
        %v2507 = vld [vmem:[#allocation3 + $0xc0] sm:$0xff]
        %v2508 = vld [vmem:[#allocation3 + $0xd8] sm:$0xff]
        %v2509 = vld [vmem:[#allocation3 + $0xf0] sm:$0xff]
        %v2510 = vld [vmem:[#allocation3 + $0x108] sm:$0xff]
        %v2511 = vld [vmem:[#allocation3 + $0x120] sm:$0xff]
        %v2512 = vld [vmem:[#allocation3 + $0x138] sm:$0xff]
        %v2513 = vld [vmem:[#allocation3 + $0x150] sm:$0xff]
        %v2514 = vld [vmem:[#allocation3 + $0x168] sm:$0xff]
        %v2515 = vld [vmem:[#allocation3 + $0x8] sm:$0xff]
        %v2516 = vld [vmem:[#allocation3 + $0x20] sm:$0xff]
        %v2517 = vld [vmem:[#allocation3 + $0x38] sm:$0xff]
        %v2518 = vld [vmem:[#allocation3 + $0x50] sm:$0xff]
        %v2519 = vld [vmem:[#allocation3 + $0x68] sm:$0xff]
        %v2520 = vld [vmem:[#allocation3 + $0x80] sm:$0xff]
        %v2521 = vld [vmem:[#allocation3 + $0x98] sm:$0xff]
        %v2522 = vld [vmem:[#allocation3 + $0xb0] sm:$0xff]
        %v2523 = vld [vmem:[#allocation3 + $0xc8] sm:$0xff]
        %v2524 = vld [vmem:[#allocation3 + $0xe0] sm:$0xff]
        %v2525 = vld [vmem:[#allocation3 + $0xf8] sm:$0xff]
        %v2526 = vld [vmem:[#allocation3 + $0x110] sm:$0xff]
        %v2527 = vld [vmem:[#allocation3 + $0x128] sm:$0xff]
        %v2528 = vld [vmem:[#allocation3 + $0x140] sm:$0xff]
        %v2529 = vld [vmem:[#allocation3 + $0x158] sm:$0xff]
        %v2530 = vld [vmem:[#allocation3 + $0x170] sm:$0xff]
        %v2531 = vmul.f32 %v2499, %v2515
        %v2532 = vmul.f32 %v2500, %v2516
        %v2533 = vmul.f32 %v2501, %v2517
        %v2534 = vmul.f32 %v2502, %v2518
        %v2535 = vmul.f32 %v2503, %v2519
        %v2536 = vmul.f32 %v2504, %v2520
        %v2537 = vmul.f32 %v2505, %v2521
        %v2538 = vmul.f32 %v2506, %v2522
        %v2539 = vmul.f32 %v2507, %v2523
        %v2540 = vmul.f32 %v2508, %v2524
        %v2541 = vmul.f32 %v2509, %v2525
        %v2542 = vmul.f32 %v2510, %v2526
        %v2543 = vmul.f32 %v2511, %v2527
        %v2544 = vmul.f32 %v2512, %v2528
        %v2545 = vmul.f32 %v2513, %v2529
        %v2546 = vmul.f32 %v2514, %v2530
        %v2547 = vld [vmem:[%s5] sm:$0xff]
        %v2548 = vld [vmem:[%s5 + $0x8] sm:$0xff]
        %v2549 = vld [vmem:[%s5 + $0x10] sm:$0xff]
        %v2550 = vld [vmem:[%s5 + $0x18] sm:$0xff]
        %v2551 = vld [vmem:[%s5 + $0x20] sm:$0xff]
        %v2552 = vld [vmem:[%s5 + $0x28] sm:$0xff]
        %v2553 = vld [vmem:[%s5 + $0x30] sm:$0xff]
        %v2554 = vld [vmem:[%s5 + $0x38] sm:$0xff]
        %v2555 = vld [vmem:[%s5 + $0x40] sm:$0xff]
        %v2556 = vld [vmem:[%s5 + $0x48] sm:$0xff]
        %v2557 = vld [vmem:[%s5 + $0x50] sm:$0xff]
        %v2558 = vld [vmem:[%s5 + $0x58] sm:$0xff]
        %v2559 = vld [vmem:[%s5 + $0x60] sm:$0xff]
        %v2560 = vld [vmem:[%s5 + $0x68] sm:$0xff]
        %v2561 = vld [vmem:[%s5 + $0x70] sm:$0xff]
        %v2562 = vld [vmem:[%s5 + $0x78] sm:$0xff]
        %2563 = vmatpush.msra.mxu0 %v2562
        %2564 = vmatpush.msra.mxu0 %v2561
        %2565 = vmatpush.msra.mxu0 %v2560
        %2566 = vmatpush.msra.mxu0 %v2559
        %2567 = vmatpush.msra.mxu0 %v2558
        %2568 = vmatpush.msra.mxu0 %v2557
        %2569 = vmatpush.msra.mxu0 %v2556
        %2570 = vmatpush.msra.mxu0 %v2555
        %2571 = vmatpush.msra.mxu0 %v2554
        %2572 = vmatpush.msra.mxu0 %v2553
        %2573 = vmatpush.msra.mxu0 %v2552
        %2574 = vmatpush.msra.mxu0 %v2551
        %2575 = vmatpush.msra.mxu0 %v2550
        %2576 = vmatpush.msra.mxu0 %v2549
        %2577 = vmatpush.msra.mxu0 %v2548
        %2578 = vmatpush.msra.mxu0 %v2547
        %2579 = vmatmul.f32.gmra.mxu0 %v2531
        %v2580 = vpop.f32.mrf.mxu0
        %v2581 = vadd.f32 0.0, %v2580
        %2582 = vmatmul.f32.gmra.mxu0 %v2532
        %v2583 = vpop.f32.mrf.mxu0
        %v2584 = vadd.f32 0.0, %v2583
        %2585 = vmatmul.f32.gmra.mxu0 %v2533
        %v2586 = vpop.f32.mrf.mxu0
        %v2587 = vadd.f32 0.0, %v2586
        %2588 = vmatmul.f32.gmra.mxu0 %v2534
        %v2589 = vpop.f32.mrf.mxu0
        %v2590 = vadd.f32 0.0, %v2589
        %2591 = vmatmul.f32.gmra.mxu0 %v2535
        %v2592 = vpop.f32.mrf.mxu0
        %v2593 = vadd.f32 0.0, %v2592
        %2594 = vmatmul.f32.gmra.mxu0 %v2536
        %v2595 = vpop.f32.mrf.mxu0
        %v2596 = vadd.f32 0.0, %v2595
        %2597 = vmatmul.f32.gmra.mxu0 %v2537
        %v2598 = vpop.f32.mrf.mxu0
        %v2599 = vadd.f32 0.0, %v2598
        %2600 = vmatmul.f32.gmra.mxu0 %v2538
        %v2601 = vpop.f32.mrf.mxu0
        %v2602 = vadd.f32 0.0, %v2601
        %2603 = vmatmul.f32.gmra.mxu0 %v2539
        %v2604 = vpop.f32.mrf.mxu0
        %v2605 = vadd.f32 0.0, %v2604
        %2606 = vmatmul.f32.gmra.mxu0 %v2540
        %v2607 = vpop.f32.mrf.mxu0
        %v2608 = vadd.f32 0.0, %v2607
        %2609 = vmatmul.f32.gmra.mxu0 %v2541
        %v2610 = vpop.f32.mrf.mxu0
        %v2611 = vadd.f32 0.0, %v2610
        %2612 = vmatmul.f32.gmra.mxu0 %v2542
        %v2613 = vpop.f32.mrf.mxu0
        %v2614 = vadd.f32 0.0, %v2613
        %2615 = vmatmul.f32.gmra.mxu0 %v2543
        %v2616 = vpop.f32.mrf.mxu0
        %v2617 = vadd.f32 0.0, %v2616
        %2618 = vmatmul.f32.gmra.mxu0 %v2544
        %v2619 = vpop.f32.mrf.mxu0
        %v2620 = vadd.f32 0.0, %v2619
        %2621 = vmatmul.f32.gmra.mxu0 %v2545
        %v2622 = vpop.f32.mrf.mxu0
        %v2623 = vadd.f32 0.0, %v2622
        %2624 = vmatmul.f32.gmra.mxu0 %v2546
        %v2625 = vpop.f32.mrf.mxu0
        %v2626 = vadd.f32 0.0, %v2625
        %2627 = vdwg.mxu0
        %v2628 = vld [vmem:[#allocation3 + $0x188] sm:$0xff]
        %v2629 = vld [vmem:[#allocation3 + $0x1a0] sm:$0xff]
        %v2630 = vld [vmem:[#allocation3 + $0x1b8] sm:$0xff]
        %v2631 = vld [vmem:[#allocation3 + $0x1d0] sm:$0xff]
        %v2632 = vld [vmem:[#allocation3 + $0x1e8] sm:$0xff]
        %v2633 = vld [vmem:[#allocation3 + $0x200] sm:$0xff]
        %v2634 = vld [vmem:[#allocation3 + $0x218] sm:$0xff]
        %v2635 = vld [vmem:[#allocation3 + $0x230] sm:$0xff]
        %v2636 = vld [vmem:[#allocation3 + $0x248] sm:$0xff]
        %v2637 = vld [vmem:[#allocation3 + $0x260] sm:$0xff]
        %v2638 = vld [vmem:[#allocation3 + $0x278] sm:$0xff]
        %v2639 = vld [vmem:[#allocation3 + $0x290] sm:$0xff]
        %v2640 = vld [vmem:[#allocation3 + $0x2a8] sm:$0xff]
        %v2641 = vld [vmem:[#allocation3 + $0x2c0] sm:$0xff]
        %v2642 = vld [vmem:[#allocation3 + $0x2d8] sm:$0xff]
        %v2643 = vld [vmem:[#allocation3 + $0x2f0] sm:$0xff]
        %v2644 = vmul.f32 %v2499, %v2628
        %v2645 = vmul.f32 %v2500, %v2629
        %v2646 = vmul.f32 %v2501, %v2630
        %v2647 = vmul.f32 %v2502, %v2631
        %v2648 = vmul.f32 %v2503, %v2632
        %v2649 = vmul.f32 %v2504, %v2633
        %v2650 = vmul.f32 %v2505, %v2634
        %v2651 = vmul.f32 %v2506, %v2635
        %v2652 = vmul.f32 %v2507, %v2636
        %v2653 = vmul.f32 %v2508, %v2637
        %v2654 = vmul.f32 %v2509, %v2638
        %v2655 = vmul.f32 %v2510, %v2639
        %v2656 = vmul.f32 %v2511, %v2640
        %v2657 = vmul.f32 %v2512, %v2641
        %v2658 = vmul.f32 %v2513, %v2642
        %v2659 = vmul.f32 %v2514, %v2643
        %2660 = vmatpush.msra.mxu0 %v2562
        %2661 = vmatpush.msra.mxu0 %v2561
        %2662 = vmatpush.msra.mxu0 %v2560
        %2663 = vmatpush.msra.mxu0 %v2559
        %2664 = vmatpush.msra.mxu0 %v2558
        %2665 = vmatpush.msra.mxu0 %v2557
        %2666 = vmatpush.msra.mxu0 %v2556
        %2667 = vmatpush.msra.mxu0 %v2555
        %2668 = vmatpush.msra.mxu0 %v2554
        %2669 = vmatpush.msra.mxu0 %v2553
        %2670 = vmatpush.msra.mxu0 %v2552
        %2671 = vmatpush.msra.mxu0 %v2551
        %2672 = vmatpush.msra.mxu0 %v2550
        %2673 = vmatpush.msra.mxu0 %v2549
        %2674 = vmatpush.msra.mxu0 %v2548
        %2675 = vmatpush.msra.mxu0 %v2547
        %2676 = vmatmul.f32.gmra.mxu0 %v2644
        %v2677 = vpop.f32.mrf.mxu0
        %v2678 = vadd.f32 0.0, %v2677
        %2679 = vmatmul.f32.gmra.mxu0 %v2645
        %v2680 = vpop.f32.mrf.mxu0
        %v2681 = vadd.f32 0.0, %v2680
        %2682 = vmatmul.f32.gmra.mxu0 %v2646
        %v2683 = vpop.f32.mrf.mxu0
        %v2684 = vadd.f32 0.0, %v2683
        %2685 = vmatmul.f32.gmra.mxu0 %v2647
        %v2686 = vpop.f32.mrf.mxu0
        %v2687 = vadd.f32 0.0, %v2686
        %2688 = vmatmul.f32.gmra.mxu0 %v2648
        %v2689 = vpop.f32.mrf.mxu0
        %v2690 = vadd.f32 0.0, %v2689
        %2691 = vmatmul.f32.gmra.mxu0 %v2649
        %v2692 = vpop.f32.mrf.mxu0
        %v2693 = vadd.f32 0.0, %v2692
        %2694 = vmatmul.f32.gmra.mxu0 %v2650
        %v2695 = vpop.f32.mrf.mxu0
        %v2696 = vadd.f32 0.0, %v2695
        %2697 = vmatmul.f32.gmra.mxu0 %v2651
        %v2698 = vpop.f32.mrf.mxu0
        %v2699 = vadd.f32 0.0, %v2698
        %2700 = vmatmul.f32.gmra.mxu0 %v2652
        %v2701 = vpop.f32.mrf.mxu0
        %v2702 = vadd.f32 0.0, %v2701
        %2703 = vmatmul.f32.gmra.mxu0 %v2653
        %v2704 = vpop.f32.mrf.mxu0
        %v2705 = vadd.f32 0.0, %v2704
        %2706 = vmatmul.f32.gmra.mxu0 %v2654
        %v2707 = vpop.f32.mrf.mxu0
        %v2708 = vadd.f32 0.0, %v2707
        %2709 = vmatmul.f32.gmra.mxu0 %v2655
        %v2710 = vpop.f32.mrf.mxu0
        %v2711 = vadd.f32 0.0, %v2710
        %2712 = vmatmul.f32.gmra.mxu0 %v2656
        %v2713 = vpop.f32.mrf.mxu0
        %v2714 = vadd.f32 0.0, %v2713
        %2715 = vmatmul.f32.gmra.mxu0 %v2657
        %v2716 = vpop.f32.mrf.mxu0
        %v2717 = vadd.f32 0.0, %v2716
        %2718 = vmatmul.f32.gmra.mxu0 %v2658
        %v2719 = vpop.f32.mrf.mxu0
        %v2720 = vadd.f32 0.0, %v2719
        %2721 = vmatmul.f32.gmra.mxu0 %v2659
        %v2722 = vpop.f32.mrf.mxu0
        %v2723 = vadd.f32 0.0, %v2722
        %2724 = vdwg.mxu0
        %v2725 = vmax.f32 %v2581, %v2678
        %v2726 = vmax.f32 %v2584, %v2681
        %v2727 = vmax.f32 %v2587, %v2684
        %v2728 = vmax.f32 %v2590, %v2687
        %v2729 = vmax.f32 %v2593, %v2690
        %v2730 = vmax.f32 %v2596, %v2693
        %v2731 = vmax.f32 %v2599, %v2696
        %v2732 = vmax.f32 %v2602, %v2699
        %v2733 = vmax.f32 %v2605, %v2702
        %v2734 = vmax.f32 %v2608, %v2705
        %v2735 = vmax.f32 %v2611, %v2708
        %v2736 = vmax.f32 %v2614, %v2711
        %v2737 = vmax.f32 %v2617, %v2714
        %v2738 = vmax.f32 %v2620, %v2717
        %v2739 = vmax.f32 %v2623, %v2720
        %v2740 = vmax.f32 %v2626, %v2723
        %v2741 = vsub.f32 %v2581, %v2725
        %v2742 = vsub.f32 %v2584, %v2726
        %v2743 = vsub.f32 %v2587, %v2727
        %v2744 = vsub.f32 %v2590, %v2728
        %v2745 = vsub.f32 %v2593, %v2729
        %v2746 = vsub.f32 %v2596, %v2730
        %v2747 = vsub.f32 %v2599, %v2731
        %v2748 = vsub.f32 %v2602, %v2732
        %v2749 = vsub.f32 %v2605, %v2733
        %v2750 = vsub.f32 %v2608, %v2734
        %v2751 = vsub.f32 %v2611, %v2735
        %v2752 = vsub.f32 %v2614, %v2736
        %v2753 = vsub.f32 %v2617, %v2737
        %v2754 = vsub.f32 %v2620, %v2738
        %v2755 = vsub.f32 %v2623, %v2739
        %v2756 = vsub.f32 %v2626, %v2740
        %v2757 = vmul.f32 %v2741, 1.442695
        %v2758 = vpow.pop %v2757
        %v2759 = vmul.f32 %v2742, 1.442695
        %v2760 = vpow.pop %v2759
        %v2761 = vmul.f32 %v2743, 1.442695
        %v2762 = vpow.pop %v2761
        %v2763 = vmul.f32 %v2744, 1.442695
        %v2764 = vpow.pop %v2763
        %v2765 = vmul.f32 %v2745, 1.442695
        %v2766 = vpow.pop %v2765
        %v2767 = vmul.f32 %v2746, 1.442695
        %v2768 = vpow.pop %v2767
        %v2769 = vmul.f32 %v2747, 1.442695
        %v2770 = vpow.pop %v2769
        %v2771 = vmul.f32 %v2748, 1.442695
        %v2772 = vpow.pop %v2771
        %v2773 = vmul.f32 %v2749, 1.442695
        %v2774 = vpow.pop %v2773
        %v2775 = vmul.f32 %v2750, 1.442695
        %v2776 = vpow.pop %v2775
        %v2777 = vmul.f32 %v2751, 1.442695
        %v2778 = vpow.pop %v2777
        %v2779 = vmul.f32 %v2752, 1.442695
        %v2780 = vpow.pop %v2779
        %v2781 = vmul.f32 %v2753, 1.442695
        %v2782 = vpow.pop %v2781
        %v2783 = vmul.f32 %v2754, 1.442695
        %v2784 = vpow.pop %v2783
        %v2785 = vmul.f32 %v2755, 1.442695
        %v2786 = vpow.pop %v2785
        %v2787 = vmul.f32 %v2756, 1.442695
        %v2788 = vpow.pop %v2787
        %v2789 = vsub.f32 %v2678, %v2725
        %v2790 = vsub.f32 %v2681, %v2726
        %v2791 = vsub.f32 %v2684, %v2727
        %v2792 = vsub.f32 %v2687, %v2728
        %v2793 = vsub.f32 %v2690, %v2729
        %v2794 = vsub.f32 %v2693, %v2730
        %v2795 = vsub.f32 %v2696, %v2731
        %v2796 = vsub.f32 %v2699, %v2732
        %v2797 = vsub.f32 %v2702, %v2733
        %v2798 = vsub.f32 %v2705, %v2734
        %v2799 = vsub.f32 %v2708, %v2735
        %v2800 = vsub.f32 %v2711, %v2736
        %v2801 = vsub.f32 %v2714, %v2737
        %v2802 = vsub.f32 %v2717, %v2738
        %v2803 = vsub.f32 %v2720, %v2739
        %v2804 = vsub.f32 %v2723, %v2740
        %v2805 = vmul.f32 %v2789, 1.442695
        %v2806 = vpow.pop %v2805
        %v2807 = vmul.f32 %v2790, 1.442695
        %v2808 = vpow.pop %v2807
        %v2809 = vmul.f32 %v2791, 1.442695
        %v2810 = vpow.pop %v2809
        %v2811 = vmul.f32 %v2792, 1.442695
        %v2812 = vpow.pop %v2811
        %v2813 = vmul.f32 %v2793, 1.442695
        %v2814 = vpow.pop %v2813
        %v2815 = vmul.f32 %v2794, 1.442695
        %v2816 = vpow.pop %v2815
        %v2817 = vmul.f32 %v2795, 1.442695
        %v2818 = vpow.pop %v2817
        %v2819 = vmul.f32 %v2796, 1.442695
        %v2820 = vpow.pop %v2819
        %v2821 = vmul.f32 %v2797, 1.442695
        %v2822 = vpow.pop %v2821
        %v2823 = vmul.f32 %v2798, 1.442695
        %v2824 = vpow.pop %v2823
        %v2825 = vmul.f32 %v2799, 1.442695
        %v2826 = vpow.pop %v2825
        %v2827 = vmul.f32 %v2800, 1.442695
        %v2828 = vpow.pop %v2827
        %v2829 = vmul.f32 %v2801, 1.442695
        %v2830 = vpow.pop %v2829
        %v2831 = vmul.f32 %v2802, 1.442695
        %v2832 = vpow.pop %v2831
        %v2833 = vmul.f32 %v2803, 1.442695
        %v2834 = vpow.pop %v2833
        %v2835 = vmul.f32 %v2804, 1.442695
        %v2836 = vpow.pop %v2835
        %v2837 = vadd.f32 %v2758, %v2806
        %v2838 = vadd.f32 %v2760, %v2808
        %v2839 = vadd.f32 %v2762, %v2810
        %v2840 = vadd.f32 %v2764, %v2812
        %v2841 = vadd.f32 %v2766, %v2814
        %v2842 = vadd.f32 %v2768, %v2816
        %v2843 = vadd.f32 %v2770, %v2818
        %v2844 = vadd.f32 %v2772, %v2820
        %v2845 = vadd.f32 %v2774, %v2822
        %v2846 = vadd.f32 %v2776, %v2824
        %v2847 = vadd.f32 %v2778, %v2826
        %v2848 = vadd.f32 %v2780, %v2828
        %v2849 = vadd.f32 %v2782, %v2830
        %v2850 = vadd.f32 %v2784, %v2832
        %v2851 = vadd.f32 %v2786, %v2834
        %v2852 = vadd.f32 %v2788, %v2836
        %v2853 = vrcp.pop %v2837
        %v2854 = vrcp.pop %v2838
        %v2855 = vrcp.pop %v2839
        %v2856 = vrcp.pop %v2840
        %v2857 = vrcp.pop %v2841
        %v2858 = vrcp.pop %v2842
        %v2859 = vrcp.pop %v2843
        %v2860 = vrcp.pop %v2844
        %v2861 = vrcp.pop %v2845
        %v2862 = vrcp.pop %v2846
        %v2863 = vrcp.pop %v2847
        %v2864 = vrcp.pop %v2848
        %v2865 = vrcp.pop %v2849
        %v2866 = vrcp.pop %v2850
        %v2867 = vrcp.pop %v2851
        %v2868 = vrcp.pop %v2852
        %v2869 = vmul.f32 %v2758, %v2853
        %v2870 = vmul.f32 %v2760, %v2854
        %v2871 = vmul.f32 %v2762, %v2855
        %v2872 = vmul.f32 %v2764, %v2856
        %v2873 = vmul.f32 %v2766, %v2857
        %v2874 = vmul.f32 %v2768, %v2858
        %v2875 = vmul.f32 %v2770, %v2859
        %v2876 = vmul.f32 %v2772, %v2860
        %v2877 = vmul.f32 %v2774, %v2861
        %v2878 = vmul.f32 %v2776, %v2862
        %v2879 = vmul.f32 %v2778, %v2863
        %v2880 = vmul.f32 %v2780, %v2864
        %v2881 = vmul.f32 %v2782, %v2865
        %v2882 = vmul.f32 %v2784, %v2866
        %v2883 = vmul.f32 %v2786, %v2867
        %v2884 = vmul.f32 %v2788, %v2868
        %v2885 = vld [vmem:[#allocation3 + $0x10] sm:$0xff]
        %v2886 = vld [vmem:[#allocation3 + $0x28] sm:$0xff]
        %v2887 = vld [vmem:[#allocation3 + $0x40] sm:$0xff]
        %v2888 = vld [vmem:[#allocation3 + $0x58] sm:$0xff]
        %v2889 = vld [vmem:[#allocation3 + $0x70] sm:$0xff]
        %v2890 = vld [vmem:[#allocation3 + $0x88] sm:$0xff]
        %v2891 = vld [vmem:[#allocation3 + $0xa0] sm:$0xff]
        %v2892 = vld [vmem:[#allocation3 + $0xb8] sm:$0xff]
        %v2893 = vld [vmem:[#allocation3 + $0xd0] sm:$0xff]
        %v2894 = vld [vmem:[#allocation3 + $0xe8] sm:$0xff]
        %v2895 = vld [vmem:[#allocation3 + $0x100] sm:$0xff]
        %v2896 = vld [vmem:[#allocation3 + $0x118] sm:$0xff]
        %v2897 = vld [vmem:[#allocation3 + $0x130] sm:$0xff]
        %v2898 = vld [vmem:[#allocation3 + $0x148] sm:$0xff]
        %v2899 = vld [vmem:[#allocation3 + $0x160] sm:$0xff]
        %v2900 = vld [vmem:[#allocation3 + $0x178] sm:$0xff]
        %v2901 = vmul.f32 %v2869, %v2885
        %v2902 = vmul.f32 %v2870, %v2886
        %v2903 = vmul.f32 %v2871, %v2887
        %v2904 = vmul.f32 %v2872, %v2888
        %v2905 = vmul.f32 %v2873, %v2889
        %v2906 = vmul.f32 %v2874, %v2890
        %v2907 = vmul.f32 %v2875, %v2891
        %v2908 = vmul.f32 %v2876, %v2892
        %v2909 = vmul.f32 %v2877, %v2893
        %v2910 = vmul.f32 %v2878, %v2894
        %v2911 = vmul.f32 %v2879, %v2895
        %v2912 = vmul.f32 %v2880, %v2896
        %v2913 = vmul.f32 %v2881, %v2897
        %v2914 = vmul.f32 %v2882, %v2898
        %v2915 = vmul.f32 %v2883, %v2899
        %v2916 = vmul.f32 %v2884, %v2900
        %v2917 = vmul.f32 %v2806, %v2853
        %v2918 = vmul.f32 %v2808, %v2854
        %v2919 = vmul.f32 %v2810, %v2855
        %v2920 = vmul.f32 %v2812, %v2856
        %v2921 = vmul.f32 %v2814, %v2857
        %v2922 = vmul.f32 %v2816, %v2858
        %v2923 = vmul.f32 %v2818, %v2859
        %v2924 = vmul.f32 %v2820, %v2860
        %v2925 = vmul.f32 %v2822, %v2861
        %v2926 = vmul.f32 %v2824, %v2862
        %v2927 = vmul.f32 %v2826, %v2863
        %v2928 = vmul.f32 %v2828, %v2864
        %v2929 = vmul.f32 %v2830, %v2865
        %v2930 = vmul.f32 %v2832, %v2866
        %v2931 = vmul.f32 %v2834, %v2867
        %v2932 = vmul.f32 %v2836, %v2868
        %v2933 = vld [vmem:[#allocation3 + $0x190] sm:$0xff]
        %v2934 = vld [vmem:[#allocation3 + $0x1a8] sm:$0xff]
        %v2935 = vld [vmem:[#allocation3 + $0x1c0] sm:$0xff]
        %v2936 = vld [vmem:[#allocation3 + $0x1d8] sm:$0xff]
        %v2937 = vld [vmem:[#allocation3 + $0x1f0] sm:$0xff]
        %v2938 = vld [vmem:[#allocation3 + $0x208] sm:$0xff]
        %v2939 = vld [vmem:[#allocation3 + $0x220] sm:$0xff]
        %v2940 = vld [vmem:[#allocation3 + $0x238] sm:$0xff]
        %v2941 = vld [vmem:[#allocation3 + $0x250] sm:$0xff]
        %v2942 = vld [vmem:[#allocation3 + $0x268] sm:$0xff]
        %v2943 = vld [vmem:[#allocation3 + $0x280] sm:$0xff]
        %v2944 = vld [vmem:[#allocation3 + $0x298] sm:$0xff]
        %v2945 = vld [vmem:[#allocation3 + $0x2b0] sm:$0xff]
        %v2946 = vld [vmem:[#allocation3 + $0x2c8] sm:$0xff]
        %v2947 = vld [vmem:[#allocation3 + $0x2e0] sm:$0xff]
        %v2948 = vld [vmem:[#allocation3 + $0x2f8] sm:$0xff]
        %v2949 = vmul.f32 %v2917, %v2933
        %v2950 = vmul.f32 %v2918, %v2934
        %v2951 = vmul.f32 %v2919, %v2935
        %v2952 = vmul.f32 %v2920, %v2936
        %v2953 = vmul.f32 %v2921, %v2937
        %v2954 = vmul.f32 %v2922, %v2938
        %v2955 = vmul.f32 %v2923, %v2939
        %v2956 = vmul.f32 %v2924, %v2940
        %v2957 = vmul.f32 %v2925, %v2941
        %v2958 = vmul.f32 %v2926, %v2942
        %v2959 = vmul.f32 %v2927, %v2943
        %v2960 = vmul.f32 %v2928, %v2944
        %v2961 = vmul.f32 %v2929, %v2945
        %v2962 = vmul.f32 %v2930, %v2946
        %v2963 = vmul.f32 %v2931, %v2947
        %v2964 = vmul.f32 %v2932, %v2948
        %v2965 = vadd.f32 %v2901, %v2949
        %v2966 = vadd.f32 %v2902, %v2950
        %v2967 = vadd.f32 %v2903, %v2951
        %v2968 = vadd.f32 %v2904, %v2952
        %v2969 = vadd.f32 %v2905, %v2953
        %v2970 = vadd.f32 %v2906, %v2954
        %v2971 = vadd.f32 %v2907, %v2955
        %v2972 = vadd.f32 %v2908, %v2956
        %v2973 = vadd.f32 %v2909, %v2957
        %v2974 = vadd.f32 %v2910, %v2958
        %v2975 = vadd.f32 %v2911, %v2959
        %v2976 = vadd.f32 %v2912, %v2960
        %v2977 = vadd.f32 %v2913, %v2961
        %v2978 = vadd.f32 %v2914, %v2962
        %v2979 = vadd.f32 %v2915, %v2963
        %v2980 = vadd.f32 %v2916, %v2964
        %v2981 = vpack.c.bf16 %v2965, %v2965
        %v2982 = vpack.c.bf16 %v2966, %v2966
        %v2983 = vpack.c.bf16 %v2967, %v2967
        %v2984 = vpack.c.bf16 %v2968, %v2968
        %v2985 = vpack.c.bf16 %v2969, %v2969
        %v2986 = vpack.c.bf16 %v2970, %v2970
        %v2987 = vpack.c.bf16 %v2971, %v2971
        %v2988 = vpack.c.bf16 %v2972, %v2972
        %v2989 = vpack.c.bf16 %v2973, %v2973
        %v2990 = vpack.c.bf16 %v2974, %v2974
        %v2991 = vpack.c.bf16 %v2975, %v2975
        %v2992 = vpack.c.bf16 %v2976, %v2976
        %v2993 = vpack.c.bf16 %v2977, %v2977
        %v2994 = vpack.c.bf16 %v2978, %v2978
        %v2995 = vpack.c.bf16 %v2979, %v2979
        %v2996 = vpack.c.bf16 %v2980, %v2980
        %v2997 = vld [vmem:[#allocation3 + $0x180] sm:$0xff]
        %v2998 = vld [vmem:[#allocation3 + $0x198] sm:$0xff]
        %v2999 = vld [vmem:[#allocation3 + $0x1b0] sm:$0xff]
        %v3000 = vld [vmem:[#allocation3 + $0x1c8] sm:$0xff]
        %v3001 = vld [vmem:[#allocation3 + $0x1e0] sm:$0xff]
        %v3002 = vld [vmem:[#allocation3 + $0x1f8] sm:$0xff]
        %v3003 = vld [vmem:[#allocation3 + $0x210] sm:$0xff]
        %v3004 = vld [vmem:[#allocation3 + $0x228] sm:$0xff]
        %v3005 = vld [vmem:[#allocation3 + $0x240] sm:$0xff]
        %v3006 = vld [vmem:[#allocation3 + $0x258] sm:$0xff]
        %v3007 = vld [vmem:[#allocation3 + $0x270] sm:$0xff]
        %v3008 = vld [vmem:[#allocation3 + $0x288] sm:$0xff]
        %v3009 = vld [vmem:[#allocation3 + $0x2a0] sm:$0xff]
        %v3010 = vld [vmem:[#allocation3 + $0x2b8] sm:$0xff]
        %v3011 = vld [vmem:[#allocation3 + $0x2d0] sm:$0xff]
        %v3012 = vld [vmem:[#allocation3 + $0x2e8] sm:$0xff]
        %v3013 = vmul.f32 %v2997, %v2515
        %v3014 = vmul.f32 %v2998, %v2516
        %v3015 = vmul.f32 %v2999, %v2517
        %v3016 = vmul.f32 %v3000, %v2518
        %v3017 = vmul.f32 %v3001, %v2519
        %v3018 = vmul.f32 %v3002, %v2520
        %v3019 = vmul.f32 %v3003, %v2521
        %v3020 = vmul.f32 %v3004, %v2522
        %v3021 = vmul.f32 %v3005, %v2523
        %v3022 = vmul.f32 %v3006, %v2524
        %v3023 = vmul.f32 %v3007, %v2525
        %v3024 = vmul.f32 %v3008, %v2526
        %v3025 = vmul.f32 %v3009, %v2527
        %v3026 = vmul.f32 %v3010, %v2528
        %v3027 = vmul.f32 %v3011, %v2529
        %v3028 = vmul.f32 %v3012, %v2530
        %3029 = vmatpush.msra.mxu0 %v2562
        %3030 = vmatpush.msra.mxu0 %v2561
        %3031 = vmatpush.msra.mxu0 %v2560
        %3032 = vmatpush.msra.mxu0 %v2559
        %3033 = vmatpush.msra.mxu0 %v2558
        %3034 = vmatpush.msra.mxu0 %v2557
        %3035 = vmatpush.msra.mxu0 %v2556
        %3036 = vmatpush.msra.mxu0 %v2555
        %3037 = vmatpush.msra.mxu0 %v2554
        %3038 = vmatpush.msra.mxu0 %v2553
        %3039 = vmatpush.msra.mxu0 %v2552
        %3040 = vmatpush.msra.mxu0 %v2551
        %3041 = vmatpush.msra.mxu0 %v2550
        %3042 = vmatpush.msra.mxu0 %v2549
        %3043 = vmatpush.msra.mxu0 %v2548
        %3044 = vmatpush.msra.mxu0 %v2547
        %3045 = vmatmul.f32.gmra.mxu0 %v3013
        %v3046 = vpop.f32.mrf.mxu0
        %v3047 = vadd.f32 0.0, %v3046
        %3048 = vmatmul.f32.gmra.mxu0 %v3014
        %v3049 = vpop.f32.mrf.mxu0
        %v3050 = vadd.f32 0.0, %v3049
        %3051 = vmatmul.f32.gmra.mxu0 %v3015
        %v3052 = vpop.f32.mrf.mxu0
        %v3053 = vadd.f32 0.0, %v3052
        %3054 = vmatmul.f32.gmra.mxu0 %v3016
        %v3055 = vpop.f32.mrf.mxu0
        %v3056 = vadd.f32 0.0, %v3055
        %3057 = vmatmul.f32.gmra.mxu0 %v3017
        %v3058 = vpop.f32.mrf.mxu0
        %v3059 = vadd.f32 0.0, %v3058
        %3060 = vmatmul.f32.gmra.mxu0 %v3018
        %v3061 = vpop.f32.mrf.mxu0
        %v3062 = vadd.f32 0.0, %v3061
        %3063 = vmatmul.f32.gmra.mxu0 %v3019
        %v3064 = vpop.f32.mrf.mxu0
        %v3065 = vadd.f32 0.0, %v3064
        %3066 = vmatmul.f32.gmra.mxu0 %v3020
        %v3067 = vpop.f32.mrf.mxu0
        %v3068 = vadd.f32 0.0, %v3067
        %3069 = vmatmul.f32.gmra.mxu0 %v3021
        %v3070 = vpop.f32.mrf.mxu0
        %v3071 = vadd.f32 0.0, %v3070
        %3072 = vmatmul.f32.gmra.mxu0 %v3022
        %v3073 = vpop.f32.mrf.mxu0
        %v3074 = vadd.f32 0.0, %v3073
        %3075 = vmatmul.f32.gmra.mxu0 %v3023
        %v3076 = vpop.f32.mrf.mxu0
        %v3077 = vadd.f32 0.0, %v3076
        %3078 = vmatmul.f32.gmra.mxu0 %v3024
        %v3079 = vpop.f32.mrf.mxu0
        %v3080 = vadd.f32 0.0, %v3079
        %3081 = vmatmul.f32.gmra.mxu0 %v3025
        %v3082 = vpop.f32.mrf.mxu0
        %v3083 = vadd.f32 0.0, %v3082
        %3084 = vmatmul.f32.gmra.mxu0 %v3026
        %v3085 = vpop.f32.mrf.mxu0
        %v3086 = vadd.f32 0.0, %v3085
        %3087 = vmatmul.f32.gmra.mxu0 %v3027
        %v3088 = vpop.f32.mrf.mxu0
        %v3089 = vadd.f32 0.0, %v3088
        %3090 = vmatmul.f32.gmra.mxu0 %v3028
        %v3091 = vpop.f32.mrf.mxu0
        %v3092 = vadd.f32 0.0, %v3091
        %3093 = vdwg.mxu0
        %v3094 = vmul.f32 %v2997, %v2628
        %v3095 = vmul.f32 %v2998, %v2629
        %v3096 = vmul.f32 %v2999, %v2630
        %v3097 = vmul.f32 %v3000, %v2631
        %v3098 = vmul.f32 %v3001, %v2632
        %v3099 = vmul.f32 %v3002, %v2633
        %v3100 = vmul.f32 %v3003, %v2634
        %v3101 = vmul.f32 %v3004, %v2635
        %v3102 = vmul.f32 %v3005, %v2636
        %v3103 = vmul.f32 %v3006, %v2637
        %v3104 = vmul.f32 %v3007, %v2638
        %v3105 = vmul.f32 %v3008, %v2639
        %v3106 = vmul.f32 %v3009, %v2640
        %v3107 = vmul.f32 %v3010, %v2641
        %v3108 = vmul.f32 %v3011, %v2642
        %v3109 = vmul.f32 %v3012, %v2643
        %3110 = vmatpush.msra.mxu0 %v2562
        %3111 = vmatpush.msra.mxu0 %v2561
        %3112 = vmatpush.msra.mxu0 %v2560
        %3113 = vmatpush.msra.mxu0 %v2559
        %3114 = vmatpush.msra.mxu0 %v2558
        %3115 = vmatpush.msra.mxu0 %v2557
        %3116 = vmatpush.msra.mxu0 %v2556
        %3117 = vmatpush.msra.mxu0 %v2555
        %3118 = vmatpush.msra.mxu0 %v2554
        %3119 = vmatpush.msra.mxu0 %v2553
        %3120 = vmatpush.msra.mxu0 %v2552
        %3121 = vmatpush.msra.mxu0 %v2551
        %3122 = vmatpush.msra.mxu0 %v2550
        %3123 = vmatpush.msra.mxu0 %v2549
        %3124 = vmatpush.msra.mxu0 %v2548
        %3125 = vmatpush.msra.mxu0 %v2547
        %3126 = vmatmul.f32.gmra.mxu0 %v3094
        %v3127 = vpop.f32.mrf.mxu0
        %v3128 = vadd.f32 0.0, %v3127
        %3129 = vmatmul.f32.gmra.mxu0 %v3095
        %v3130 = vpop.f32.mrf.mxu0
        %v3131 = vadd.f32 0.0, %v3130
        %3132 = vmatmul.f32.gmra.mxu0 %v3096
        %v3133 = vpop.f32.mrf.mxu0
        %v3134 = vadd.f32 0.0, %v3133
        %3135 = vmatmul.f32.gmra.mxu0 %v3097
        %v3136 = vpop.f32.mrf.mxu0
        %v3137 = vadd.f32 0.0, %v3136
        %3138 = vmatmul.f32.gmra.mxu0 %v3098
        %v3139 = vpop.f32.mrf.mxu0
        %v3140 = vadd.f32 0.0, %v3139
        %3141 = vmatmul.f32.gmra.mxu0 %v3099
        %v3142 = vpop.f32.mrf.mxu0
        %v3143 = vadd.f32 0.0, %v3142
        %3144 = vmatmul.f32.gmra.mxu0 %v3100
        %v3145 = vpop.f32.mrf.mxu0
        %v3146 = vadd.f32 0.0, %v3145
        %3147 = vmatmul.f32.gmra.mxu0 %v3101
        %v3148 = vpop.f32.mrf.mxu0
        %v3149 = vadd.f32 0.0, %v3148
        %3150 = vmatmul.f32.gmra.mxu0 %v3102
        %v3151 = vpop.f32.mrf.mxu0
        %v3152 = vadd.f32 0.0, %v3151
        %3153 = vmatmul.f32.gmra.mxu0 %v3103
        %v3154 = vpop.f32.mrf.mxu0
        %v3155 = vadd.f32 0.0, %v3154
        %3156 = vmatmul.f32.gmra.mxu0 %v3104
        %v3157 = vpop.f32.mrf.mxu0
        %v3158 = vadd.f32 0.0, %v3157
        %3159 = vmatmul.f32.gmra.mxu0 %v3105
        %v3160 = vpop.f32.mrf.mxu0
        %v3161 = vadd.f32 0.0, %v3160
        %3162 = vmatmul.f32.gmra.mxu0 %v3106
        %v3163 = vpop.f32.mrf.mxu0
        %v3164 = vadd.f32 0.0, %v3163
        %3165 = vmatmul.f32.gmra.mxu0 %v3107
        %v3166 = vpop.f32.mrf.mxu0
        %v3167 = vadd.f32 0.0, %v3166
        %3168 = vmatmul.f32.gmra.mxu0 %v3108
        %v3169 = vpop.f32.mrf.mxu0
        %v3170 = vadd.f32 0.0, %v3169
        %3171 = vmatmul.f32.gmra.mxu0 %v3109
        %v3172 = vpop.f32.mrf.mxu0
        %v3173 = vadd.f32 0.0, %v3172
        %3174 = vdwg.mxu0
        %v3175 = vmax.f32 %v3047, %v3128
        %v3176 = vmax.f32 %v3050, %v3131
        %v3177 = vmax.f32 %v3053, %v3134
        %v3178 = vmax.f32 %v3056, %v3137
        %v3179 = vmax.f32 %v3059, %v3140
        %v3180 = vmax.f32 %v3062, %v3143
        %v3181 = vmax.f32 %v3065, %v3146
        %v3182 = vmax.f32 %v3068, %v3149
        %v3183 = vmax.f32 %v3071, %v3152
        %v3184 = vmax.f32 %v3074, %v3155
        %v3185 = vmax.f32 %v3077, %v3158
        %v3186 = vmax.f32 %v3080, %v3161
        %v3187 = vmax.f32 %v3083, %v3164
        %v3188 = vmax.f32 %v3086, %v3167
        %v3189 = vmax.f32 %v3089, %v3170
        %v3190 = vmax.f32 %v3092, %v3173
        %v3191 = vsub.f32 %v3047, %v3175
        %v3192 = vsub.f32 %v3050, %v3176
        %v3193 = vsub.f32 %v3053, %v3177
        %v3194 = vsub.f32 %v3056, %v3178
        %v3195 = vsub.f32 %v3059, %v3179
        %v3196 = vsub.f32 %v3062, %v3180
        %v3197 = vsub.f32 %v3065, %v3181
        %v3198 = vsub.f32 %v3068, %v3182
        %v3199 = vsub.f32 %v3071, %v3183
        %v3200 = vsub.f32 %v3074, %v3184
        %v3201 = vsub.f32 %v3077, %v3185
        %v3202 = vsub.f32 %v3080, %v3186
        %v3203 = vsub.f32 %v3083, %v3187
        %v3204 = vsub.f32 %v3086, %v3188
        %v3205 = vsub.f32 %v3089, %v3189
        %v3206 = vsub.f32 %v3092, %v3190
        %v3207 = vmul.f32 %v3191, 1.442695
        %v3208 = vpow.pop %v3207
        %v3209 = vmul.f32 %v3192, 1.442695
        %v3210 = vpow.pop %v3209
        %v3211 = vmul.f32 %v3193, 1.442695
        %v3212 = vpow.pop %v3211
        %v3213 = vmul.f32 %v3194, 1.442695
        %v3214 = vpow.pop %v3213
        %v3215 = vmul.f32 %v3195, 1.442695
        %v3216 = vpow.pop %v3215
        %v3217 = vmul.f32 %v3196, 1.442695
        %v3218 = vpow.pop %v3217
        %v3219 = vmul.f32 %v3197, 1.442695
        %v3220 = vpow.pop %v3219
        %v3221 = vmul.f32 %v3198, 1.442695
        %v3222 = vpow.pop %v3221
        %v3223 = vmul.f32 %v3199, 1.442695
        %v3224 = vpow.pop %v3223
        %v3225 = vmul.f32 %v3200, 1.442695
        %v3226 = vpow.pop %v3225
        %v3227 = vmul.f32 %v3201, 1.442695
        %v3228 = vpow.pop %v3227
        %v3229 = vmul.f32 %v3202, 1.442695
        %v3230 = vpow.pop %v3229
        %v3231 = vmul.f32 %v3203, 1.442695
        %v3232 = vpow.pop %v3231
        %v3233 = vmul.f32 %v3204, 1.442695
        %v3234 = vpow.pop %v3233
        %v3235 = vmul.f32 %v3205, 1.442695
        %v3236 = vpow.pop %v3235
        %v3237 = vmul.f32 %v3206, 1.442695
        %v3238 = vpow.pop %v3237
        %v3239 = vsub.f32 %v3128, %v3175
        %v3240 = vsub.f32 %v3131, %v3176
        %v3241 = vsub.f32 %v3134, %v3177
        %v3242 = vsub.f32 %v3137, %v3178
        %v3243 = vsub.f32 %v3140, %v3179
        %v3244 = vsub.f32 %v3143, %v3180
        %v3245 = vsub.f32 %v3146, %v3181
        %v3246 = vsub.f32 %v3149, %v3182
        %v3247 = vsub.f32 %v3152, %v3183
        %v3248 = vsub.f32 %v3155, %v3184
        %v3249 = vsub.f32 %v3158, %v3185
        %v3250 = vsub.f32 %v3161, %v3186
        %v3251 = vsub.f32 %v3164, %v3187
        %v3252 = vsub.f32 %v3167, %v3188
        %v3253 = vsub.f32 %v3170, %v3189
        %v3254 = vsub.f32 %v3173, %v3190
        %v3255 = vmul.f32 %v3239, 1.442695
        %v3256 = vpow.pop %v3255
        %v3257 = vmul.f32 %v3240, 1.442695
        %v3258 = vpow.pop %v3257
        %v3259 = vmul.f32 %v3241, 1.442695
        %v3260 = vpow.pop %v3259
        %v3261 = vmul.f32 %v3242, 1.442695
        %v3262 = vpow.pop %v3261
        %v3263 = vmul.f32 %v3243, 1.442695
        %v3264 = vpow.pop %v3263
        %v3265 = vmul.f32 %v3244, 1.442695
        %v3266 = vpow.pop %v3265
        %v3267 = vmul.f32 %v3245, 1.442695
        %v3268 = vpow.pop %v3267
        %v3269 = vmul.f32 %v3246, 1.442695
        %v3270 = vpow.pop %v3269
        %v3271 = vmul.f32 %v3247, 1.442695
        %v3272 = vpow.pop %v3271
        %v3273 = vmul.f32 %v3248, 1.442695
        %v3274 = vpow.pop %v3273
        %v3275 = vmul.f32 %v3249, 1.442695
        %v3276 = vpow.pop %v3275
        %v3277 = vmul.f32 %v3250, 1.442695
        %v3278 = vpow.pop %v3277
        %v3279 = vmul.f32 %v3251, 1.442695
        %v3280 = vpow.pop %v3279
        %v3281 = vmul.f32 %v3252, 1.442695
        %v3282 = vpow.pop %v3281
        %v3283 = vmul.f32 %v3253, 1.442695
        %v3284 = vpow.pop %v3283
        %v3285 = vmul.f32 %v3254, 1.442695
        %v3286 = vpow.pop %v3285
        %v3287 = vadd.f32 %v3208, %v3256
        %v3288 = vadd.f32 %v3210, %v3258
        %v3289 = vadd.f32 %v3212, %v3260
        %v3290 = vadd.f32 %v3214, %v3262
        %v3291 = vadd.f32 %v3216, %v3264
        %v3292 = vadd.f32 %v3218, %v3266
        %v3293 = vadd.f32 %v3220, %v3268
        %v3294 = vadd.f32 %v3222, %v3270
        %v3295 = vadd.f32 %v3224, %v3272
        %v3296 = vadd.f32 %v3226, %v3274
        %v3297 = vadd.f32 %v3228, %v3276
        %v3298 = vadd.f32 %v3230, %v3278
        %v3299 = vadd.f32 %v3232, %v3280
        %v3300 = vadd.f32 %v3234, %v3282
        %v3301 = vadd.f32 %v3236, %v3284
        %v3302 = vadd.f32 %v3238, %v3286
        %v3303 = vrcp.pop %v3287
        %v3304 = vrcp.pop %v3288
        %v3305 = vrcp.pop %v3289
        %v3306 = vrcp.pop %v3290
        %v3307 = vrcp.pop %v3291
        %v3308 = vrcp.pop %v3292
        %v3309 = vrcp.pop %v3293
        %v3310 = vrcp.pop %v3294
        %v3311 = vrcp.pop %v3295
        %v3312 = vrcp.pop %v3296
        %v3313 = vrcp.pop %v3297
        %v3314 = vrcp.pop %v3298
        %v3315 = vrcp.pop %v3299
        %v3316 = vrcp.pop %v3300
        %v3317 = vrcp.pop %v3301
        %v3318 = vrcp.pop %v3302
        %v3319 = vmul.f32 %v3208, %v3303
        %v3320 = vmul.f32 %v3210, %v3304
        %v3321 = vmul.f32 %v3212, %v3305
        %v3322 = vmul.f32 %v3214, %v3306
        %v3323 = vmul.f32 %v3216, %v3307
        %v3324 = vmul.f32 %v3218, %v3308
        %v3325 = vmul.f32 %v3220, %v3309
        %v3326 = vmul.f32 %v3222, %v3310
        %v3327 = vmul.f32 %v3224, %v3311
        %v3328 = vmul.f32 %v3226, %v3312
        %v3329 = vmul.f32 %v3228, %v3313
        %v3330 = vmul.f32 %v3230, %v3314
        %v3331 = vmul.f32 %v3232, %v3315
        %v3332 = vmul.f32 %v3234, %v3316
        %v3333 = vmul.f32 %v3236, %v3317
        %v3334 = vmul.f32 %v3238, %v3318
        %v3335 = vmul.f32 %v3319, %v2885
        %v3336 = vmul.f32 %v3320, %v2886
        %v3337 = vmul.f32 %v3321, %v2887
        %v3338 = vmul.f32 %v3322, %v2888
        %v3339 = vmul.f32 %v3323, %v2889
        %v3340 = vmul.f32 %v3324, %v2890
        %v3341 = vmul.f32 %v3325, %v2891
        %v3342 = vmul.f32 %v3326, %v2892
        %v3343 = vmul.f32 %v3327, %v2893
        %v3344 = vmul.f32 %v3328, %v2894
        %v3345 = vmul.f32 %v3329, %v2895
        %v3346 = vmul.f32 %v3330, %v2896
        %v3347 = vmul.f32 %v3331, %v2897
        %v3348 = vmul.f32 %v3332, %v2898
        %v3349 = vmul.f32 %v3333, %v2899
        %v3350 = vmul.f32 %v3334, %v2900
        %v3351 = vmul.f32 %v3256, %v3303
        %v3352 = vmul.f32 %v3258, %v3304
        %v3353 = vmul.f32 %v3260, %v3305
        %v3354 = vmul.f32 %v3262, %v3306
        %v3355 = vmul.f32 %v3264, %v3307
        %v3356 = vmul.f32 %v3266, %v3308
        %v3357 = vmul.f32 %v3268, %v3309
        %v3358 = vmul.f32 %v3270, %v3310
        %v3359 = vmul.f32 %v3272, %v3311
        %v3360 = vmul.f32 %v3274, %v3312
        %v3361 = vmul.f32 %v3276, %v3313
        %v3362 = vmul.f32 %v3278, %v3314
        %v3363 = vmul.f32 %v3280, %v3315
        %v3364 = vmul.f32 %v3282, %v3316
        %v3365 = vmul.f32 %v3284, %v3317
        %v3366 = vmul.f32 %v3286, %v3318
        %v3367 = vmul.f32 %v3351, %v2933
        %v3368 = vmul.f32 %v3352, %v2934
        %v3369 = vmul.f32 %v3353, %v2935
        %v3370 = vmul.f32 %v3354, %v2936
        %v3371 = vmul.f32 %v3355, %v2937
        %v3372 = vmul.f32 %v3356, %v2938
        %v3373 = vmul.f32 %v3357, %v2939
        %v3374 = vmul.f32 %v3358, %v2940
        %v3375 = vmul.f32 %v3359, %v2941
        %v3376 = vmul.f32 %v3360, %v2942
        %v3377 = vmul.f32 %v3361, %v2943
        %v3378 = vmul.f32 %v3362, %v2944
        %v3379 = vmul.f32 %v3363, %v2945
        %v3380 = vmul.f32 %v3364, %v2946
        %v3381 = vmul.f32 %v3365, %v2947
        %v3382 = vmul.f32 %v3366, %v2948
        %v3383 = vadd.f32 %v3335, %v3367
        %v3384 = vadd.f32 %v3336, %v3368
        %v3385 = vadd.f32 %v3337, %v3369
        %v3386 = vadd.f32 %v3338, %v3370
        %v3387 = vadd.f32 %v3339, %v3371
        %v3388 = vadd.f32 %v3340, %v3372
        %v3389 = vadd.f32 %v3341, %v3373
        %v3390 = vadd.f32 %v3342, %v3374
        %v3391 = vadd.f32 %v3343, %v3375
        %v3392 = vadd.f32 %v3344, %v3376
        %v3393 = vadd.f32 %v3345, %v3377
        %v3394 = vadd.f32 %v3346, %v3378
        %v3395 = vadd.f32 %v3347, %v3379
        %v3396 = vadd.f32 %v3348, %v3380
        %v3397 = vadd.f32 %v3349, %v3381
        %v3398 = vadd.f32 %v3350, %v3382
        %v3399 = vpack.c.bf16 %v3383, %v3383
        %v3400 = vpack.c.bf16 %v3384, %v3384
        %v3401 = vpack.c.bf16 %v3385, %v3385
        %v3402 = vpack.c.bf16 %v3386, %v3386
        %v3403 = vpack.c.bf16 %v3387, %v3387
        %v3404 = vpack.c.bf16 %v3388, %v3388
        %v3405 = vpack.c.bf16 %v3389, %v3389
        %v3406 = vpack.c.bf16 %v3390, %v3390
        %v3407 = vpack.c.bf16 %v3391, %v3391
        %v3408 = vpack.c.bf16 %v3392, %v3392
        %v3409 = vpack.c.bf16 %v3393, %v3393
        %v3410 = vpack.c.bf16 %v3394, %v3394
        %v3411 = vpack.c.bf16 %v3395, %v3395
        %v3412 = vpack.c.bf16 %v3396, %v3396
        %v3413 = vpack.c.bf16 %v3397, %v3397
        %v3414 = vpack.c.bf16 %v3398, %v3398
        %v3431 = vunpack.c.l.b16 %v2981
        %v3432 = vunpack.c.l.b16 %v2982
        %v3433 = vunpack.c.l.b16 %v2983
        %v3434 = vunpack.c.l.b16 %v2984
        %v3435 = vunpack.c.l.b16 %v2985
        %v3436 = vunpack.c.l.b16 %v2986
        %v3437 = vunpack.c.l.b16 %v2987
        %v3438 = vunpack.c.l.b16 %v2988
        %v3439 = vunpack.c.l.b16 %v2989
        %v3440 = vunpack.c.l.b16 %v2990
        %v3441 = vunpack.c.l.b16 %v2991
        %v3442 = vunpack.c.l.b16 %v2992
        %v3443 = vunpack.c.l.b16 %v2993
        %v3444 = vunpack.c.l.b16 %v2994
        %v3445 = vunpack.c.l.b16 %v2995
        %v3446 = vunpack.c.l.b16 %v2996
        %v3447 = vpack.c.b16 %v3432, %v3431
        %v3448 = vpack.c.b16 %v3434, %v3433
        %v3449 = vpack.c.b16 %v3436, %v3435
        %v3450 = vpack.c.b16 %v3438, %v3437
        %v3451 = vpack.c.b16 %v3440, %v3439
        %v3452 = vpack.c.b16 %v3442, %v3441
        %v3453 = vpack.c.b16 %v3444, %v3443
        %v3454 = vpack.c.b16 %v3446, %v3445
        %v3479 = vunpack.c.l.b16 %v3399
        %v3480 = vunpack.c.l.b16 %v3400
        %v3481 = vunpack.c.l.b16 %v3401
        %v3482 = vunpack.c.l.b16 %v3402
        %v3483 = vunpack.c.l.b16 %v3403
        %v3484 = vunpack.c.l.b16 %v3404
        %v3485 = vunpack.c.l.b16 %v3405
        %v3486 = vunpack.c.l.b16 %v3406
        %v3487 = vunpack.c.l.b16 %v3407
        %v3488 = vunpack.c.l.b16 %v3408
        %v3489 = vunpack.c.l.b16 %v3409
        %v3490 = vunpack.c.l.b16 %v3410
        %v3491 = vunpack.c.l.b16 %v3411
        %v3492 = vunpack.c.l.b16 %v3412
        %v3493 = vunpack.c.l.b16 %v3413
        %v3494 = vunpack.c.l.b16 %v3414
        %v3495 = vpack.c.b16 %v3480, %v3479
        %v3496 = vpack.c.b16 %v3482, %v3481
        %v3497 = vpack.c.b16 %v3484, %v3483
        %v3498 = vpack.c.b16 %v3486, %v3485
        %v3499 = vpack.c.b16 %v3488, %v3487
        %v3500 = vpack.c.b16 %v3490, %v3489
        %v3501 = vpack.c.b16 %v3492, %v3491
        %v3502 = vpack.c.b16 %v3494, %v3493
        %v3511 = vld [vmem:[%s761] sm:$0xf]
        %v3512 = vld [vmem:[%s761 + $0x4] sm:$0xf]
        %v3513 = vld [vmem:[%s761 + $0x8] sm:$0xf]
        %v3514 = vld [vmem:[%s761 + $0xc] sm:$0xf]
        %v3515 = vld [vmem:[%s761 + $0x10] sm:$0xf]
        %v3516 = vld [vmem:[%s761 + $0x14] sm:$0xf]
        %v3517 = vld [vmem:[%s761 + $0x18] sm:$0xf]
        %v3518 = vld [vmem:[%s761 + $0x1c] sm:$0xf]
        %v3519 = vld [vmem:[%s761 + $0x20] sm:$0xf]
        %v3520 = vld [vmem:[%s761 + $0x24] sm:$0xf]
        %v3521 = vld [vmem:[%s761 + $0x28] sm:$0xf]
        %v3522 = vld [vmem:[%s761 + $0x2c] sm:$0xf]
        %v3523 = vld [vmem:[%s761 + $0x30] sm:$0xf]
        %v3524 = vld [vmem:[%s761 + $0x34] sm:$0xf]
        %v3525 = vld [vmem:[%s761 + $0x38] sm:$0xf]
        %v3526 = vld [vmem:[%s761 + $0x3c] sm:$0xf]
        %v3527 = vld [vmem:[%s764] sm:$0x1]
        %v3529 = vperm.slane %v3527, 0
        %v3547 = vunpack.c.l.b16 %v3511
        %v3548 = vunpack.c.l.b16 %v3512
        %v3549 = vunpack.c.l.b16 %v3513
        %v3550 = vunpack.c.l.b16 %v3514
        %v3551 = vunpack.c.l.b16 %v3515
        %v3552 = vunpack.c.l.b16 %v3516
        %v3553 = vunpack.c.l.b16 %v3517
        %v3554 = vunpack.c.l.b16 %v3518
        %v3555 = vunpack.c.l.b16 %v3519
        %v3556 = vunpack.c.l.b16 %v3520
        %v3557 = vunpack.c.l.b16 %v3521
        %v3558 = vunpack.c.l.b16 %v3522
        %v3559 = vunpack.c.l.b16 %v3523
        %v3560 = vunpack.c.l.b16 %v3524
        %v3561 = vunpack.c.l.b16 %v3525
        %v3562 = vunpack.c.l.b16 %v3526
        %v3563 = vpack.c.b16 %v3548, %v3547
        %v3564 = vpack.c.b16 %v3550, %v3549
        %v3565 = vpack.c.b16 %v3552, %v3551
        %v3566 = vpack.c.b16 %v3554, %v3553
        %v3567 = vpack.c.b16 %v3556, %v3555
        %v3568 = vpack.c.b16 %v3558, %v3557
        %v3569 = vpack.c.b16 %v3560, %v3559
        %v3570 = vpack.c.b16 %v3562, %v3561
        %3579 = vmatpush.bf16.msra.mxu0 %v3570
        %3580 = vmatpush.bf16.msra.mxu0 %v3569
        %3581 = vmatpush.bf16.msra.mxu0 %v3568
        %3582 = vmatpush.bf16.msra.mxu0 %v3567
        %3583 = vmatpush.bf16.msra.mxu0 %v3566
        %3584 = vmatpush.bf16.msra.mxu0 %v3565
        %3585 = vmatpush.bf16.msra.mxu0 %v3564
        %3586 = vmatpush.bf16.msra.mxu0 %v3563
        %3587 = vmatmul.bf16.gmra.mxu0 %v3447
        %v3588 = vpop.f32.mrf.mxu0
        %v3589 = vadd.f32 %v3529, %v3588
        %v3590 = vpop.f32.mrf.mxu0
        %v3591 = vadd.f32 %v3529, %v3590
        %3592 = vmatmul.bf16.gmra.mxu0 %v3448
        %v3593 = vpop.f32.mrf.mxu0
        %v3594 = vadd.f32 %v3529, %v3593
        %v3595 = vpop.f32.mrf.mxu0
        %v3596 = vadd.f32 %v3529, %v3595
        %3597 = vmatmul.bf16.gmra.mxu0 %v3449
        %v3598 = vpop.f32.mrf.mxu0
        %v3599 = vadd.f32 %v3529, %v3598
        %v3600 = vpop.f32.mrf.mxu0
        %v3601 = vadd.f32 %v3529, %v3600
        %3602 = vmatmul.bf16.gmra.mxu0 %v3450
        %v3603 = vpop.f32.mrf.mxu0
        %v3604 = vadd.f32 %v3529, %v3603
        %v3605 = vpop.f32.mrf.mxu0
        %v3606 = vadd.f32 %v3529, %v3605
        %3607 = vmatmul.bf16.gmra.mxu0 %v3451
        %v3608 = vpop.f32.mrf.mxu0
        %v3609 = vadd.f32 %v3529, %v3608
        %v3610 = vpop.f32.mrf.mxu0
        %v3611 = vadd.f32 %v3529, %v3610
        %3612 = vmatmul.bf16.gmra.mxu0 %v3452
        %v3613 = vpop.f32.mrf.mxu0
        %v3614 = vadd.f32 %v3529, %v3613
        %v3615 = vpop.f32.mrf.mxu0
        %v3616 = vadd.f32 %v3529, %v3615
        %3617 = vmatmul.bf16.gmra.mxu0 %v3453
        %v3618 = vpop.f32.mrf.mxu0
        %v3619 = vadd.f32 %v3529, %v3618
        %v3620 = vpop.f32.mrf.mxu0
        %v3621 = vadd.f32 %v3529, %v3620
        %3622 = vmatmul.bf16.gmra.mxu0 %v3454
        %v3623 = vpop.f32.mrf.mxu0
        %v3624 = vadd.f32 %v3529, %v3623
        %v3625 = vpop.f32.mrf.mxu0
        %v3626 = vadd.f32 %v3529, %v3625
        %3627 = vmatmul.bf16.gmra.mxu0 %v3495
        %v3628 = vpop.f32.mrf.mxu0
        %v3629 = vadd.f32 %v3529, %v3628
        %v3630 = vpop.f32.mrf.mxu0
        %v3631 = vadd.f32 %v3529, %v3630
        %3632 = vmatmul.bf16.gmra.mxu0 %v3496
        %v3633 = vpop.f32.mrf.mxu0
        %v3634 = vadd.f32 %v3529, %v3633
        %v3635 = vpop.f32.mrf.mxu0
        %v3636 = vadd.f32 %v3529, %v3635
        %3637 = vmatmul.bf16.gmra.mxu0 %v3497
        %v3638 = vpop.f32.mrf.mxu0
        %v3639 = vadd.f32 %v3529, %v3638
        %v3640 = vpop.f32.mrf.mxu0
        %v3641 = vadd.f32 %v3529, %v3640
        %3642 = vmatmul.bf16.gmra.mxu0 %v3498
        %v3643 = vpop.f32.mrf.mxu0
        %v3644 = vadd.f32 %v3529, %v3643
        %v3645 = vpop.f32.mrf.mxu0
        %v3646 = vadd.f32 %v3529, %v3645
        %3647 = vmatmul.bf16.gmra.mxu0 %v3499
        %v3648 = vpop.f32.mrf.mxu0
        %v3649 = vadd.f32 %v3529, %v3648
        %v3650 = vpop.f32.mrf.mxu0
        %v3651 = vadd.f32 %v3529, %v3650
        %3652 = vmatmul.bf16.gmra.mxu0 %v3500
        %v3653 = vpop.f32.mrf.mxu0
        %v3654 = vadd.f32 %v3529, %v3653
        %v3655 = vpop.f32.mrf.mxu0
        %v3656 = vadd.f32 %v3529, %v3655
        %3657 = vmatmul.bf16.gmra.mxu0 %v3501
        %v3658 = vpop.f32.mrf.mxu0
        %v3659 = vadd.f32 %v3529, %v3658
        %v3660 = vpop.f32.mrf.mxu0
        %v3661 = vadd.f32 %v3529, %v3660
        %3662 = vmatmul.bf16.gmra.mxu0 %v3502
        %v3663 = vpop.f32.mrf.mxu0
        %v3664 = vadd.f32 %v3529, %v3663
        %v3665 = vpop.f32.mrf.mxu0
        %v3666 = vadd.f32 %v3529, %v3665
        %3667 = vdwg.mxu0
        %v3668 = vld [vmem:[#allocation2] sm:$0xff]
        %v3669 = vld [vmem:[#allocation2 + $0x8] sm:$0xff]
        %v3670 = vld [vmem:[#allocation2 + $0x10] sm:$0xff]
        %v3671 = vld [vmem:[#allocation2 + $0x18] sm:$0xff]
        %v3672 = vld [vmem:[#allocation2 + $0x20] sm:$0xff]
        %v3673 = vld [vmem:[#allocation2 + $0x28] sm:$0xff]
        %v3674 = vld [vmem:[#allocation2 + $0x30] sm:$0xff]
        %v3675 = vld [vmem:[#allocation2 + $0x38] sm:$0xff]
        %v3676 = vld [vmem:[#allocation2 + $0x40] sm:$0xff]
        %v3677 = vld [vmem:[#allocation2 + $0x48] sm:$0xff]
        %v3678 = vld [vmem:[#allocation2 + $0x50] sm:$0xff]
        %v3679 = vld [vmem:[#allocation2 + $0x58] sm:$0xff]
        %v3680 = vld [vmem:[#allocation2 + $0x60] sm:$0xff]
        %v3681 = vld [vmem:[#allocation2 + $0x68] sm:$0xff]
        %v3682 = vld [vmem:[#allocation2 + $0x70] sm:$0xff]
        %v3683 = vld [vmem:[#allocation2 + $0x78] sm:$0xff]
        %v3684 = vld [vmem:[#allocation2 + $0x80] sm:$0xff]
        %v3685 = vld [vmem:[#allocation2 + $0x88] sm:$0xff]
        %v3686 = vld [vmem:[#allocation2 + $0x90] sm:$0xff]
        %v3687 = vld [vmem:[#allocation2 + $0x98] sm:$0xff]
        %v3688 = vld [vmem:[#allocation2 + $0xa0] sm:$0xff]
        %v3689 = vld [vmem:[#allocation2 + $0xa8] sm:$0xff]
        %v3690 = vld [vmem:[#allocation2 + $0xb0] sm:$0xff]
        %v3691 = vld [vmem:[#allocation2 + $0xb8] sm:$0xff]
        %v3692 = vld [vmem:[#allocation2 + $0xc0] sm:$0xff]
        %v3693 = vld [vmem:[#allocation2 + $0xc8] sm:$0xff]
        %v3694 = vld [vmem:[#allocation2 + $0xd0] sm:$0xff]
        %v3695 = vld [vmem:[#allocation2 + $0xd8] sm:$0xff]
        %v3696 = vld [vmem:[#allocation2 + $0xe0] sm:$0xff]
        %v3697 = vld [vmem:[#allocation2 + $0xe8] sm:$0xff]
        %v3698 = vld [vmem:[#allocation2 + $0xf0] sm:$0xff]
        %v3699 = vld [vmem:[#allocation2 + $0xf8] sm:$0xff]
        %v3700 = vadd.f32 %v3668, %v3589
        %v3701 = vadd.f32 %v3669, %v3591
        %v3702 = vadd.f32 %v3670, %v3594
        %v3703 = vadd.f32 %v3671, %v3596
        %v3704 = vadd.f32 %v3672, %v3599
        %v3705 = vadd.f32 %v3673, %v3601
        %v3706 = vadd.f32 %v3674, %v3604
        %v3707 = vadd.f32 %v3675, %v3606
        %v3708 = vadd.f32 %v3676, %v3609
        %v3709 = vadd.f32 %v3677, %v3611
        %v3710 = vadd.f32 %v3678, %v3614
        %v3711 = vadd.f32 %v3679, %v3616
        %v3712 = vadd.f32 %v3680, %v3619
        %v3713 = vadd.f32 %v3681, %v3621
        %v3714 = vadd.f32 %v3682, %v3624
        %v3715 = vadd.f32 %v3683, %v3626
        %v3716 = vadd.f32 %v3684, %v3629
        %v3717 = vadd.f32 %v3685, %v3631
        %v3718 = vadd.f32 %v3686, %v3634
        %v3719 = vadd.f32 %v3687, %v3636
        %v3720 = vadd.f32 %v3688, %v3639
        %v3721 = vadd.f32 %v3689, %v3641
        %v3722 = vadd.f32 %v3690, %v3644
        %v3723 = vadd.f32 %v3691, %v3646
        %v3724 = vadd.f32 %v3692, %v3649
        %v3725 = vadd.f32 %v3693, %v3651
        %v3726 = vadd.f32 %v3694, %v3654
        %v3727 = vadd.f32 %v3695, %v3656
        %v3728 = vadd.f32 %v3696, %v3659
        %v3729 = vadd.f32 %v3697, %v3661
        %v3730 = vadd.f32 %v3698, %v3664
        %v3731 = vadd.f32 %v3699, %v3666
        %3732 = vadd.xlane.f32.xlu0 %v3700
        %v3733 = vpop.xlane.xlu0 %3732
        %3734 = vadd.xlane.f32.xlu0 %v3701
        %v3735 = vpop.xlane.xlu0 %3734
        %3736 = vadd.xlane.f32.xlu0 %v3702
        %v3737 = vpop.xlane.xlu0 %3736
        %3738 = vadd.xlane.f32.xlu0 %v3703
        %v3739 = vpop.xlane.xlu0 %3738
        %3740 = vadd.xlane.f32.xlu0 %v3704
        %v3741 = vpop.xlane.xlu0 %3740
        %3742 = vadd.xlane.f32.xlu0 %v3705
        %v3743 = vpop.xlane.xlu0 %3742
        %3744 = vadd.xlane.f32.xlu0 %v3706
        %v3745 = vpop.xlane.xlu0 %3744
        %3746 = vadd.xlane.f32.xlu0 %v3707
        %v3747 = vpop.xlane.xlu0 %3746
        %3748 = vadd.xlane.f32.xlu0 %v3708
        %v3749 = vpop.xlane.xlu0 %3748
        %3750 = vadd.xlane.f32.xlu0 %v3709
        %v3751 = vpop.xlane.xlu0 %3750
        %3752 = vadd.xlane.f32.xlu0 %v3710
        %v3753 = vpop.xlane.xlu0 %3752
        %3754 = vadd.xlane.f32.xlu0 %v3711
        %v3755 = vpop.xlane.xlu0 %3754
        %3756 = vadd.xlane.f32.xlu0 %v3712
        %v3757 = vpop.xlane.xlu0 %3756
        %3758 = vadd.xlane.f32.xlu0 %v3713
        %v3759 = vpop.xlane.xlu0 %3758
        %3760 = vadd.xlane.f32.xlu0 %v3714
        %v3761 = vpop.xlane.xlu0 %3760
        %3762 = vadd.xlane.f32.xlu0 %v3715
        %v3763 = vpop.xlane.xlu0 %3762
        %3764 = vadd.xlane.f32.xlu0 %v3716
        %v3765 = vpop.xlane.xlu0 %3764
        %3766 = vadd.xlane.f32.xlu0 %v3717
        %v3767 = vpop.xlane.xlu0 %3766
        %3768 = vadd.xlane.f32.xlu0 %v3718
        %v3769 = vpop.xlane.xlu0 %3768
        %3770 = vadd.xlane.f32.xlu0 %v3719
        %v3771 = vpop.xlane.xlu0 %3770
        %3772 = vadd.xlane.f32.xlu0 %v3720
        %v3773 = vpop.xlane.xlu0 %3772
        %3774 = vadd.xlane.f32.xlu0 %v3721
        %v3775 = vpop.xlane.xlu0 %3774
        %3776 = vadd.xlane.f32.xlu0 %v3722
        %v3777 = vpop.xlane.xlu0 %3776
        %3778 = vadd.xlane.f32.xlu0 %v3723
        %v3779 = vpop.xlane.xlu0 %3778
        %3780 = vadd.xlane.f32.xlu0 %v3724
        %v3781 = vpop.xlane.xlu0 %3780
        %3782 = vadd.xlane.f32.xlu0 %v3725
        %v3783 = vpop.xlane.xlu0 %3782
        %3784 = vadd.xlane.f32.xlu0 %v3726
        %v3785 = vpop.xlane.xlu0 %3784
        %3786 = vadd.xlane.f32.xlu0 %v3727
        %v3787 = vpop.xlane.xlu0 %3786
        %3788 = vadd.xlane.f32.xlu0 %v3728
        %v3789 = vpop.xlane.xlu0 %3788
        %3790 = vadd.xlane.f32.xlu0 %v3729
        %v3791 = vpop.xlane.xlu0 %3790
        %3792 = vadd.xlane.f32.xlu0 %v3730
        %v3793 = vpop.xlane.xlu0 %3792
        %3794 = vadd.xlane.f32.xlu0 %v3731
        %v3795 = vpop.xlane.xlu0 %3794
        %v3796 = vrcp.pop 128.0
        %v3797 = vmul.f32 128.0, %v3796
        %v3798 = vsub.f32 1.0, %v3797
        %v3799 = vmul.f32 %v3796, %v3798
        %v3800 = vadd.f32 %v3796, %v3799
        %vm3801 = vweird.f32 %v3796
        %v3802 = vsel %vm3801, %v3796, %v3800
        %v3803 = vmul.f32 %v3733, %v3802
        %v3804 = vmul.f32 %v3735, %v3802
        %v3805 = vmul.f32 %v3737, %v3802
        %v3806 = vmul.f32 %v3739, %v3802
        %v3807 = vmul.f32 %v3741, %v3802
        %v3808 = vmul.f32 %v3743, %v3802
        %v3809 = vmul.f32 %v3745, %v3802
        %v3810 = vmul.f32 %v3747, %v3802
        %v3811 = vmul.f32 %v3749, %v3802
        %v3812 = vmul.f32 %v3751, %v3802
        %v3813 = vmul.f32 %v3753, %v3802
        %v3814 = vmul.f32 %v3755, %v3802
        %v3815 = vmul.f32 %v3757, %v3802
        %v3816 = vmul.f32 %v3759, %v3802
        %v3817 = vmul.f32 %v3761, %v3802
        %v3818 = vmul.f32 %v3763, %v3802
        %v3819 = vmul.f32 %v3765, %v3802
        %v3820 = vmul.f32 %v3767, %v3802
        %v3821 = vmul.f32 %v3769, %v3802
        %v3822 = vmul.f32 %v3771, %v3802
        %v3823 = vmul.f32 %v3773, %v3802
        %v3824 = vmul.f32 %v3775, %v3802
        %v3825 = vmul.f32 %v3777, %v3802
        %v3826 = vmul.f32 %v3779, %v3802
        %v3827 = vmul.f32 %v3781, %v3802
        %v3828 = vmul.f32 %v3783, %v3802
        %v3829 = vmul.f32 %v3785, %v3802
        %v3830 = vmul.f32 %v3787, %v3802
        %v3831 = vmul.f32 %v3789, %v3802
        %v3832 = vmul.f32 %v3791, %v3802
        %v3833 = vmul.f32 %v3793, %v3802
        %v3834 = vmul.f32 %v3795, %v3802
        %v3835 = vsub.f32 %v3700, %v3803
        %v3836 = vsub.f32 %v3701, %v3804
        %v3837 = vsub.f32 %v3702, %v3805
        %v3838 = vsub.f32 %v3703, %v3806
        %v3839 = vsub.f32 %v3704, %v3807
        %v3840 = vsub.f32 %v3705, %v3808
        %v3841 = vsub.f32 %v3706, %v3809
        %v3842 = vsub.f32 %v3707, %v3810
        %v3843 = vsub.f32 %v3708, %v3811
        %v3844 = vsub.f32 %v3709, %v3812
        %v3845 = vsub.f32 %v3710, %v3813
        %v3846 = vsub.f32 %v3711, %v3814
        %v3847 = vsub.f32 %v3712, %v3815
        %v3848 = vsub.f32 %v3713, %v3816
        %v3849 = vsub.f32 %v3714, %v3817
        %v3850 = vsub.f32 %v3715, %v3818
        %v3851 = vsub.f32 %v3716, %v3819
        %v3852 = vsub.f32 %v3717, %v3820
        %v3853 = vsub.f32 %v3718, %v3821
        %v3854 = vsub.f32 %v3719, %v3822
        %v3855 = vsub.f32 %v3720, %v3823
        %v3856 = vsub.f32 %v3721, %v3824
        %v3857 = vsub.f32 %v3722, %v3825
        %v3858 = vsub.f32 %v3723, %v3826
        %v3859 = vsub.f32 %v3724, %v3827
        %v3860 = vsub.f32 %v3725, %v3828
        %v3861 = vsub.f32 %v3726, %v3829
        %v3862 = vsub.f32 %v3727, %v3830
        %v3863 = vsub.f32 %v3728, %v3831
        %v3864 = vsub.f32 %v3729, %v3832
        %v3865 = vsub.f32 %v3730, %v3833
        %v3866 = vsub.f32 %v3731, %v3834
        %v3867 = vmul.f32 %v3835, %v3835
        %v3868 = vmul.f32 %v3836, %v3836
        %v3869 = vmul.f32 %v3837, %v3837
        %v3870 = vmul.f32 %v3838, %v3838
        %v3871 = vmul.f32 %v3839, %v3839
        %v3872 = vmul.f32 %v3840, %v3840
        %v3873 = vmul.f32 %v3841, %v3841
        %v3874 = vmul.f32 %v3842, %v3842
        %v3875 = vmul.f32 %v3843, %v3843
        %v3876 = vmul.f32 %v3844, %v3844
        %v3877 = vmul.f32 %v3845, %v3845
        %v3878 = vmul.f32 %v3846, %v3846
        %v3879 = vmul.f32 %v3847, %v3847
        %v3880 = vmul.f32 %v3848, %v3848
        %v3881 = vmul.f32 %v3849, %v3849
        %v3882 = vmul.f32 %v3850, %v3850
        %v3883 = vmul.f32 %v3851, %v3851
        %v3884 = vmul.f32 %v3852, %v3852
        %v3885 = vmul.f32 %v3853, %v3853
        %v3886 = vmul.f32 %v3854, %v3854
        %v3887 = vmul.f32 %v3855, %v3855
        %v3888 = vmul.f32 %v3856, %v3856
        %v3889 = vmul.f32 %v3857, %v3857
        %v3890 = vmul.f32 %v3858, %v3858
        %v3891 = vmul.f32 %v3859, %v3859
        %v3892 = vmul.f32 %v3860, %v3860
        %v3893 = vmul.f32 %v3861, %v3861
        %v3894 = vmul.f32 %v3862, %v3862
        %v3895 = vmul.f32 %v3863, %v3863
        %v3896 = vmul.f32 %v3864, %v3864
        %v3897 = vmul.f32 %v3865, %v3865
        %v3898 = vmul.f32 %v3866, %v3866
        %3899 = vadd.xlane.f32.xlu0 %v3867
        %v3900 = vpop.xlane.xlu0 %3899
        %3901 = vadd.xlane.f32.xlu0 %v3868
        %v3902 = vpop.xlane.xlu0 %3901
        %3903 = vadd.xlane.f32.xlu0 %v3869
        %v3904 = vpop.xlane.xlu0 %3903
        %3905 = vadd.xlane.f32.xlu0 %v3870
        %v3906 = vpop.xlane.xlu0 %3905
        %3907 = vadd.xlane.f32.xlu0 %v3871
        %v3908 = vpop.xlane.xlu0 %3907
        %3909 = vadd.xlane.f32.xlu0 %v3872
        %v3910 = vpop.xlane.xlu0 %3909
        %3911 = vadd.xlane.f32.xlu0 %v3873
        %v3912 = vpop.xlane.xlu0 %3911
        %3913 = vadd.xlane.f32.xlu0 %v3874
        %v3914 = vpop.xlane.xlu0 %3913
        %3915 = vadd.xlane.f32.xlu0 %v3875
        %v3916 = vpop.xlane.xlu0 %3915
        %3917 = vadd.xlane.f32.xlu0 %v3876
        %v3918 = vpop.xlane.xlu0 %3917
        %3919 = vadd.xlane.f32.xlu0 %v3877
        %v3920 = vpop.xlane.xlu0 %3919
        %3921 = vadd.xlane.f32.xlu0 %v3878
        %v3922 = vpop.xlane.xlu0 %3921
        %3923 = vadd.xlane.f32.xlu0 %v3879
        %v3924 = vpop.xlane.xlu0 %3923
        %3925 = vadd.xlane.f32.xlu0 %v3880
        %v3926 = vpop.xlane.xlu0 %3925
        %3927 = vadd.xlane.f32.xlu0 %v3881
        %v3928 = vpop.xlane.xlu0 %3927
        %3929 = vadd.xlane.f32.xlu0 %v3882
        %v3930 = vpop.xlane.xlu0 %3929
        %3931 = vadd.xlane.f32.xlu0 %v3883
        %v3932 = vpop.xlane.xlu0 %3931
        %3933 = vadd.xlane.f32.xlu0 %v3884
        %v3934 = vpop.xlane.xlu0 %3933
        %3935 = vadd.xlane.f32.xlu0 %v3885
        %v3936 = vpop.xlane.xlu0 %3935
        %3937 = vadd.xlane.f32.xlu0 %v3886
        %v3938 = vpop.xlane.xlu0 %3937
        %3939 = vadd.xlane.f32.xlu0 %v3887
        %v3940 = vpop.xlane.xlu0 %3939
        %3941 = vadd.xlane.f32.xlu0 %v3888
        %v3942 = vpop.xlane.xlu0 %3941
        %3943 = vadd.xlane.f32.xlu0 %v3889
        %v3944 = vpop.xlane.xlu0 %3943
        %3945 = vadd.xlane.f32.xlu0 %v3890
        %v3946 = vpop.xlane.xlu0 %3945
        %3947 = vadd.xlane.f32.xlu0 %v3891
        %v3948 = vpop.xlane.xlu0 %3947
        %3949 = vadd.xlane.f32.xlu0 %v3892
        %v3950 = vpop.xlane.xlu0 %3949
        %3951 = vadd.xlane.f32.xlu0 %v3893
        %v3952 = vpop.xlane.xlu0 %3951
        %3953 = vadd.xlane.f32.xlu0 %v3894
        %v3954 = vpop.xlane.xlu0 %3953
        %3955 = vadd.xlane.f32.xlu0 %v3895
        %v3956 = vpop.xlane.xlu0 %3955
        %3957 = vadd.xlane.f32.xlu0 %v3896
        %v3958 = vpop.xlane.xlu0 %3957
        %3959 = vadd.xlane.f32.xlu0 %v3897
        %v3960 = vpop.xlane.xlu0 %3959
        %3961 = vadd.xlane.f32.xlu0 %v3898
        %v3962 = vpop.xlane.xlu0 %3961
        %v3963 = vmul.f32 %v3900, %v3802
        %v3964 = vmul.f32 %v3902, %v3802
        %v3965 = vmul.f32 %v3904, %v3802
        %v3966 = vmul.f32 %v3906, %v3802
        %v3967 = vmul.f32 %v3908, %v3802
        %v3968 = vmul.f32 %v3910, %v3802
        %v3969 = vmul.f32 %v3912, %v3802
        %v3970 = vmul.f32 %v3914, %v3802
        %v3971 = vmul.f32 %v3916, %v3802
        %v3972 = vmul.f32 %v3918, %v3802
        %v3973 = vmul.f32 %v3920, %v3802
        %v3974 = vmul.f32 %v3922, %v3802
        %v3975 = vmul.f32 %v3924, %v3802
        %v3976 = vmul.f32 %v3926, %v3802
        %v3977 = vmul.f32 %v3928, %v3802
        %v3978 = vmul.f32 %v3930, %v3802
        %v3979 = vmul.f32 %v3932, %v3802
        %v3980 = vmul.f32 %v3934, %v3802
        %v3981 = vmul.f32 %v3936, %v3802
        %v3982 = vmul.f32 %v3938, %v3802
        %v3983 = vmul.f32 %v3940, %v3802
        %v3984 = vmul.f32 %v3942, %v3802
        %v3985 = vmul.f32 %v3944, %v3802
        %v3986 = vmul.f32 %v3946, %v3802
        %v3987 = vmul.f32 %v3948, %v3802
        %v3988 = vmul.f32 %v3950, %v3802
        %v3989 = vmul.f32 %v3952, %v3802
        %v3990 = vmul.f32 %v3954, %v3802
        %v3991 = vmul.f32 %v3956, %v3802
        %v3992 = vmul.f32 %v3958, %v3802
        %v3993 = vmul.f32 %v3960, %v3802
        %v3994 = vmul.f32 %v3962, %v3802
        %v3995 = vadd.f32 %v3963, 1e-05
        %v3996 = vadd.f32 %v3964, 1e-05
        %v3997 = vadd.f32 %v3965, 1e-05
        %v3998 = vadd.f32 %v3966, 1e-05
        %v3999 = vadd.f32 %v3967, 1e-05
        %v4000 = vadd.f32 %v3968, 1e-05
        %v4001 = vadd.f32 %v3969, 1e-05
        %v4002 = vadd.f32 %v3970, 1e-05
        %v4003 = vadd.f32 %v3971, 1e-05
        %v4004 = vadd.f32 %v3972, 1e-05
        %v4005 = vadd.f32 %v3973, 1e-05
        %v4006 = vadd.f32 %v3974, 1e-05
        %v4007 = vadd.f32 %v3975, 1e-05
        %v4008 = vadd.f32 %v3976, 1e-05
        %v4009 = vadd.f32 %v3977, 1e-05
        %v4010 = vadd.f32 %v3978, 1e-05
        %v4011 = vadd.f32 %v3979, 1e-05
        %v4012 = vadd.f32 %v3980, 1e-05
        %v4013 = vadd.f32 %v3981, 1e-05
        %v4014 = vadd.f32 %v3982, 1e-05
        %v4015 = vadd.f32 %v3983, 1e-05
        %v4016 = vadd.f32 %v3984, 1e-05
        %v4017 = vadd.f32 %v3985, 1e-05
        %v4018 = vadd.f32 %v3986, 1e-05
        %v4019 = vadd.f32 %v3987, 1e-05
        %v4020 = vadd.f32 %v3988, 1e-05
        %v4021 = vadd.f32 %v3989, 1e-05
        %v4022 = vadd.f32 %v3990, 1e-05
        %v4023 = vadd.f32 %v3991, 1e-05
        %v4024 = vadd.f32 %v3992, 1e-05
        %v4025 = vadd.f32 %v3993, 1e-05
        %v4026 = vadd.f32 %v3994, 1e-05
        %v4027 = vrsqrt.pop %v3995
        %v4028 = vmul.f32 %v4027, %v3995
        %v4029 = vmul.f32 %v4028, %v4027
        %v4030 = vmul.f32 0.5, %v4029
        %v4031 = vsub.f32 1.5, %v4030
        %v4032 = vmul.f32 %v4027, %v4031
        %vm4033 = vweird.f32 %v3995
        %vm4034 = vweird.f32 %v4027
        %vm4035 = vmor %vm4033, %vm4034
        %v4036 = vsel %vm4035, %v4027, %v4032
        %v4037 = vrsqrt.pop %v3996
        %v4038 = vmul.f32 %v4037, %v3996
        %v4039 = vmul.f32 %v4038, %v4037
        %v4040 = vmul.f32 0.5, %v4039
        %v4041 = vsub.f32 1.5, %v4040
        %v4042 = vmul.f32 %v4037, %v4041
        %vm4043 = vweird.f32 %v3996
        %vm4044 = vweird.f32 %v4037
        %vm4045 = vmor %vm4043, %vm4044
        %v4046 = vsel %vm4045, %v4037, %v4042
        %v4047 = vrsqrt.pop %v3997
        %v4048 = vmul.f32 %v4047, %v3997
        %v4049 = vmul.f32 %v4048, %v4047
        %v4050 = vmul.f32 0.5, %v4049
        %v4051 = vsub.f32 1.5, %v4050
        %v4052 = vmul.f32 %v4047, %v4051
        %vm4053 = vweird.f32 %v3997
        %vm4054 = vweird.f32 %v4047
        %vm4055 = vmor %vm4053, %vm4054
        %v4056 = vsel %vm4055, %v4047, %v4052
        %v4057 = vrsqrt.pop %v3998
        %v4058 = vmul.f32 %v4057, %v3998
        %v4059 = vmul.f32 %v4058, %v4057
        %v4060 = vmul.f32 0.5, %v4059
        %v4061 = vsub.f32 1.5, %v4060
        %v4062 = vmul.f32 %v4057, %v4061
        %vm4063 = vweird.f32 %v3998
        %vm4064 = vweird.f32 %v4057
        %vm4065 = vmor %vm4063, %vm4064
        %v4066 = vsel %vm4065, %v4057, %v4062
        %v4067 = vrsqrt.pop %v3999
        %v4068 = vmul.f32 %v4067, %v3999
        %v4069 = vmul.f32 %v4068, %v4067
        %v4070 = vmul.f32 0.5, %v4069
        %v4071 = vsub.f32 1.5, %v4070
        %v4072 = vmul.f32 %v4067, %v4071
        %vm4073 = vweird.f32 %v3999
        %vm4074 = vweird.f32 %v4067
        %vm4075 = vmor %vm4073, %vm4074
        %v4076 = vsel %vm4075, %v4067, %v4072
        %v4077 = vrsqrt.pop %v4000
        %v4078 = vmul.f32 %v4077, %v4000
        %v4079 = vmul.f32 %v4078, %v4077
        %v4080 = vmul.f32 0.5, %v4079
        %v4081 = vsub.f32 1.5, %v4080
        %v4082 = vmul.f32 %v4077, %v4081
        %vm4083 = vweird.f32 %v4000
        %vm4084 = vweird.f32 %v4077
        %vm4085 = vmor %vm4083, %vm4084
        %v4086 = vsel %vm4085, %v4077, %v4082
        %v4087 = vrsqrt.pop %v4001
        %v4088 = vmul.f32 %v4087, %v4001
        %v4089 = vmul.f32 %v4088, %v4087
        %v4090 = vmul.f32 0.5, %v4089
        %v4091 = vsub.f32 1.5, %v4090
        %v4092 = vmul.f32 %v4087, %v4091
        %vm4093 = vweird.f32 %v4001
        %vm4094 = vweird.f32 %v4087
        %vm4095 = vmor %vm4093, %vm4094
        %v4096 = vsel %vm4095, %v4087, %v4092
        %v4097 = vrsqrt.pop %v4002
        %v4098 = vmul.f32 %v4097, %v4002
        %v4099 = vmul.f32 %v4098, %v4097
        %v4100 = vmul.f32 0.5, %v4099
        %v4101 = vsub.f32 1.5, %v4100
        %v4102 = vmul.f32 %v4097, %v4101
        %vm4103 = vweird.f32 %v4002
        %vm4104 = vweird.f32 %v4097
        %vm4105 = vmor %vm4103, %vm4104
        %v4106 = vsel %vm4105, %v4097, %v4102
        %v4107 = vrsqrt.pop %v4003
        %v4108 = vmul.f32 %v4107, %v4003
        %v4109 = vmul.f32 %v4108, %v4107
        %v4110 = vmul.f32 0.5, %v4109
        %v4111 = vsub.f32 1.5, %v4110
        %v4112 = vmul.f32 %v4107, %v4111
        %vm4113 = vweird.f32 %v4003
        %vm4114 = vweird.f32 %v4107
        %vm4115 = vmor %vm4113, %vm4114
        %v4116 = vsel %vm4115, %v4107, %v4112
        %v4117 = vrsqrt.pop %v4004
        %v4118 = vmul.f32 %v4117, %v4004
        %v4119 = vmul.f32 %v4118, %v4117
        %v4120 = vmul.f32 0.5, %v4119
        %v4121 = vsub.f32 1.5, %v4120
        %v4122 = vmul.f32 %v4117, %v4121
        %vm4123 = vweird.f32 %v4004
        %vm4124 = vweird.f32 %v4117
        %vm4125 = vmor %vm4123, %vm4124
        %v4126 = vsel %vm4125, %v4117, %v4122
        %v4127 = vrsqrt.pop %v4005
        %v4128 = vmul.f32 %v4127, %v4005
        %v4129 = vmul.f32 %v4128, %v4127
        %v4130 = vmul.f32 0.5, %v4129
        %v4131 = vsub.f32 1.5, %v4130
        %v4132 = vmul.f32 %v4127, %v4131
        %vm4133 = vweird.f32 %v4005
        %vm4134 = vweird.f32 %v4127
        %vm4135 = vmor %vm4133, %vm4134
        %v4136 = vsel %vm4135, %v4127, %v4132
        %v4137 = vrsqrt.pop %v4006
        %v4138 = vmul.f32 %v4137, %v4006
        %v4139 = vmul.f32 %v4138, %v4137
        %v4140 = vmul.f32 0.5, %v4139
        %v4141 = vsub.f32 1.5, %v4140
        %v4142 = vmul.f32 %v4137, %v4141
        %vm4143 = vweird.f32 %v4006
        %vm4144 = vweird.f32 %v4137
        %vm4145 = vmor %vm4143, %vm4144
        %v4146 = vsel %vm4145, %v4137, %v4142
        %v4147 = vrsqrt.pop %v4007
        %v4148 = vmul.f32 %v4147, %v4007
        %v4149 = vmul.f32 %v4148, %v4147
        %v4150 = vmul.f32 0.5, %v4149
        %v4151 = vsub.f32 1.5, %v4150
        %v4152 = vmul.f32 %v4147, %v4151
        %vm4153 = vweird.f32 %v4007
        %vm4154 = vweird.f32 %v4147
        %vm4155 = vmor %vm4153, %vm4154
        %v4156 = vsel %vm4155, %v4147, %v4152
        %v4157 = vrsqrt.pop %v4008
        %v4158 = vmul.f32 %v4157, %v4008
        %v4159 = vmul.f32 %v4158, %v4157
        %v4160 = vmul.f32 0.5, %v4159
        %v4161 = vsub.f32 1.5, %v4160
        %v4162 = vmul.f32 %v4157, %v4161
        %vm4163 = vweird.f32 %v4008
        %vm4164 = vweird.f32 %v4157
        %vm4165 = vmor %vm4163, %vm4164
        %v4166 = vsel %vm4165, %v4157, %v4162
        %v4167 = vrsqrt.pop %v4009
        %v4168 = vmul.f32 %v4167, %v4009
        %v4169 = vmul.f32 %v4168, %v4167
        %v4170 = vmul.f32 0.5, %v4169
        %v4171 = vsub.f32 1.5, %v4170
        %v4172 = vmul.f32 %v4167, %v4171
        %vm4173 = vweird.f32 %v4009
        %vm4174 = vweird.f32 %v4167
        %vm4175 = vmor %vm4173, %vm4174
        %v4176 = vsel %vm4175, %v4167, %v4172
        %v4177 = vrsqrt.pop %v4010
        %v4178 = vmul.f32 %v4177, %v4010
        %v4179 = vmul.f32 %v4178, %v4177
        %v4180 = vmul.f32 0.5, %v4179
        %v4181 = vsub.f32 1.5, %v4180
        %v4182 = vmul.f32 %v4177, %v4181
        %vm4183 = vweird.f32 %v4010
        %vm4184 = vweird.f32 %v4177
        %vm4185 = vmor %vm4183, %vm4184
        %v4186 = vsel %vm4185, %v4177, %v4182
        %v4187 = vrsqrt.pop %v4011
        %v4188 = vmul.f32 %v4187, %v4011
        %v4189 = vmul.f32 %v4188, %v4187
        %v4190 = vmul.f32 0.5, %v4189
        %v4191 = vsub.f32 1.5, %v4190
        %v4192 = vmul.f32 %v4187, %v4191
        %vm4193 = vweird.f32 %v4011
        %vm4194 = vweird.f32 %v4187
        %vm4195 = vmor %vm4193, %vm4194
        %v4196 = vsel %vm4195, %v4187, %v4192
        %v4197 = vrsqrt.pop %v4012
        %v4198 = vmul.f32 %v4197, %v4012
        %v4199 = vmul.f32 %v4198, %v4197
        %v4200 = vmul.f32 0.5, %v4199
        %v4201 = vsub.f32 1.5, %v4200
        %v4202 = vmul.f32 %v4197, %v4201
        %vm4203 = vweird.f32 %v4012
        %vm4204 = vweird.f32 %v4197
        %vm4205 = vmor %vm4203, %vm4204
        %v4206 = vsel %vm4205, %v4197, %v4202
        %v4207 = vrsqrt.pop %v4013
        %v4208 = vmul.f32 %v4207, %v4013
        %v4209 = vmul.f32 %v4208, %v4207
        %v4210 = vmul.f32 0.5, %v4209
        %v4211 = vsub.f32 1.5, %v4210
        %v4212 = vmul.f32 %v4207, %v4211
        %vm4213 = vweird.f32 %v4013
        %vm4214 = vweird.f32 %v4207
        %vm4215 = vmor %vm4213, %vm4214
        %v4216 = vsel %vm4215, %v4207, %v4212
        %v4217 = vrsqrt.pop %v4014
        %v4218 = vmul.f32 %v4217, %v4014
        %v4219 = vmul.f32 %v4218, %v4217
        %v4220 = vmul.f32 0.5, %v4219
        %v4221 = vsub.f32 1.5, %v4220
        %v4222 = vmul.f32 %v4217, %v4221
        %vm4223 = vweird.f32 %v4014
        %vm4224 = vweird.f32 %v4217
        %vm4225 = vmor %vm4223, %vm4224
        %v4226 = vsel %vm4225, %v4217, %v4222
        %v4227 = vrsqrt.pop %v4015
        %v4228 = vmul.f32 %v4227, %v4015
        %v4229 = vmul.f32 %v4228, %v4227
        %v4230 = vmul.f32 0.5, %v4229
        %v4231 = vsub.f32 1.5, %v4230
        %v4232 = vmul.f32 %v4227, %v4231
        %vm4233 = vweird.f32 %v4015
        %vm4234 = vweird.f32 %v4227
        %vm4235 = vmor %vm4233, %vm4234
        %v4236 = vsel %vm4235, %v4227, %v4232
        %v4237 = vrsqrt.pop %v4016
        %v4238 = vmul.f32 %v4237, %v4016
        %v4239 = vmul.f32 %v4238, %v4237
        %v4240 = vmul.f32 0.5, %v4239
        %v4241 = vsub.f32 1.5, %v4240
        %v4242 = vmul.f32 %v4237, %v4241
        %vm4243 = vweird.f32 %v4016
        %vm4244 = vweird.f32 %v4237
        %vm4245 = vmor %vm4243, %vm4244
        %v4246 = vsel %vm4245, %v4237, %v4242
        %v4247 = vrsqrt.pop %v4017
        %v4248 = vmul.f32 %v4247, %v4017
        %v4249 = vmul.f32 %v4248, %v4247
        %v4250 = vmul.f32 0.5, %v4249
        %v4251 = vsub.f32 1.5, %v4250
        %v4252 = vmul.f32 %v4247, %v4251
        %vm4253 = vweird.f32 %v4017
        %vm4254 = vweird.f32 %v4247
        %vm4255 = vmor %vm4253, %vm4254
        %v4256 = vsel %vm4255, %v4247, %v4252
        %v4257 = vrsqrt.pop %v4018
        %v4258 = vmul.f32 %v4257, %v4018
        %v4259 = vmul.f32 %v4258, %v4257
        %v4260 = vmul.f32 0.5, %v4259
        %v4261 = vsub.f32 1.5, %v4260
        %v4262 = vmul.f32 %v4257, %v4261
        %vm4263 = vweird.f32 %v4018
        %vm4264 = vweird.f32 %v4257
        %vm4265 = vmor %vm4263, %vm4264
        %v4266 = vsel %vm4265, %v4257, %v4262
        %v4267 = vrsqrt.pop %v4019
        %v4268 = vmul.f32 %v4267, %v4019
        %v4269 = vmul.f32 %v4268, %v4267
        %v4270 = vmul.f32 0.5, %v4269
        %v4271 = vsub.f32 1.5, %v4270
        %v4272 = vmul.f32 %v4267, %v4271
        %vm4273 = vweird.f32 %v4019
        %vm4274 = vweird.f32 %v4267
        %vm4275 = vmor %vm4273, %vm4274
        %v4276 = vsel %vm4275, %v4267, %v4272
        %v4277 = vrsqrt.pop %v4020
        %v4278 = vmul.f32 %v4277, %v4020
        %v4279 = vmul.f32 %v4278, %v4277
        %v4280 = vmul.f32 0.5, %v4279
        %v4281 = vsub.f32 1.5, %v4280
        %v4282 = vmul.f32 %v4277, %v4281
        %vm4283 = vweird.f32 %v4020
        %vm4284 = vweird.f32 %v4277
        %vm4285 = vmor %vm4283, %vm4284
        %v4286 = vsel %vm4285, %v4277, %v4282
        %v4287 = vrsqrt.pop %v4021
        %v4288 = vmul.f32 %v4287, %v4021
        %v4289 = vmul.f32 %v4288, %v4287
        %v4290 = vmul.f32 0.5, %v4289
        %v4291 = vsub.f32 1.5, %v4290
        %v4292 = vmul.f32 %v4287, %v4291
        %vm4293 = vweird.f32 %v4021
        %vm4294 = vweird.f32 %v4287
        %vm4295 = vmor %vm4293, %vm4294
        %v4296 = vsel %vm4295, %v4287, %v4292
        %v4297 = vrsqrt.pop %v4022
        %v4298 = vmul.f32 %v4297, %v4022
        %v4299 = vmul.f32 %v4298, %v4297
        %v4300 = vmul.f32 0.5, %v4299
        %v4301 = vsub.f32 1.5, %v4300
        %v4302 = vmul.f32 %v4297, %v4301
        %vm4303 = vweird.f32 %v4022
        %vm4304 = vweird.f32 %v4297
        %vm4305 = vmor %vm4303, %vm4304
        %v4306 = vsel %vm4305, %v4297, %v4302
        %v4307 = vrsqrt.pop %v4023
        %v4308 = vmul.f32 %v4307, %v4023
        %v4309 = vmul.f32 %v4308, %v4307
        %v4310 = vmul.f32 0.5, %v4309
        %v4311 = vsub.f32 1.5, %v4310
        %v4312 = vmul.f32 %v4307, %v4311
        %vm4313 = vweird.f32 %v4023
        %vm4314 = vweird.f32 %v4307
        %vm4315 = vmor %vm4313, %vm4314
        %v4316 = vsel %vm4315, %v4307, %v4312
        %v4317 = vrsqrt.pop %v4024
        %v4318 = vmul.f32 %v4317, %v4024
        %v4319 = vmul.f32 %v4318, %v4317
        %v4320 = vmul.f32 0.5, %v4319
        %v4321 = vsub.f32 1.5, %v4320
        %v4322 = vmul.f32 %v4317, %v4321
        %vm4323 = vweird.f32 %v4024
        %vm4324 = vweird.f32 %v4317
        %vm4325 = vmor %vm4323, %vm4324
        %v4326 = vsel %vm4325, %v4317, %v4322
        %v4327 = vrsqrt.pop %v4025
        %v4328 = vmul.f32 %v4327, %v4025
        %v4329 = vmul.f32 %v4328, %v4327
        %v4330 = vmul.f32 0.5, %v4329
        %v4331 = vsub.f32 1.5, %v4330
        %v4332 = vmul.f32 %v4327, %v4331
        %vm4333 = vweird.f32 %v4025
        %vm4334 = vweird.f32 %v4327
        %vm4335 = vmor %vm4333, %vm4334
        %v4336 = vsel %vm4335, %v4327, %v4332
        %v4337 = vrsqrt.pop %v4026
        %v4338 = vmul.f32 %v4337, %v4026
        %v4339 = vmul.f32 %v4338, %v4337
        %v4340 = vmul.f32 0.5, %v4339
        %v4341 = vsub.f32 1.5, %v4340
        %v4342 = vmul.f32 %v4337, %v4341
        %vm4343 = vweird.f32 %v4026
        %vm4344 = vweird.f32 %v4337
        %vm4345 = vmor %vm4343, %vm4344
        %v4346 = vsel %vm4345, %v4337, %v4342
        %v4347 = vmul.f32 %v3835, %v4036
        %v4348 = vmul.f32 %v3836, %v4046
        %v4349 = vmul.f32 %v3837, %v4056
        %v4350 = vmul.f32 %v3838, %v4066
        %v4351 = vmul.f32 %v3839, %v4076
        %v4352 = vmul.f32 %v3840, %v4086
        %v4353 = vmul.f32 %v3841, %v4096
        %v4354 = vmul.f32 %v3842, %v4106
        %v4355 = vmul.f32 %v3843, %v4116
        %v4356 = vmul.f32 %v3844, %v4126
        %v4357 = vmul.f32 %v3845, %v4136
        %v4358 = vmul.f32 %v3846, %v4146
        %v4359 = vmul.f32 %v3847, %v4156
        %v4360 = vmul.f32 %v3848, %v4166
        %v4361 = vmul.f32 %v3849, %v4176
        %v4362 = vmul.f32 %v3850, %v4186
        %v4363 = vmul.f32 %v3851, %v4196
        %v4364 = vmul.f32 %v3852, %v4206
        %v4365 = vmul.f32 %v3853, %v4216
        %v4366 = vmul.f32 %v3854, %v4226
        %v4367 = vmul.f32 %v3855, %v4236
        %v4368 = vmul.f32 %v3856, %v4246
        %v4369 = vmul.f32 %v3857, %v4256
        %v4370 = vmul.f32 %v3858, %v4266
        %v4371 = vmul.f32 %v3859, %v4276
        %v4372 = vmul.f32 %v3860, %v4286
        %v4373 = vmul.f32 %v3861, %v4296
        %v4374 = vmul.f32 %v3862, %v4306
        %v4375 = vmul.f32 %v3863, %v4316
        %v4376 = vmul.f32 %v3864, %v4326
        %v4377 = vmul.f32 %v3865, %v4336
        %v4378 = vmul.f32 %v3866, %v4346
        %v4379 = vld [vmem:[%s784] sm:$0x1]
        %v4381 = vperm.slane %v4379, 0
        %v4383 = vmul.f32 %v4347, %v4381
        %v4384 = vmul.f32 %v4348, %v4381
        %v4385 = vmul.f32 %v4349, %v4381
        %v4386 = vmul.f32 %v4350, %v4381
        %v4387 = vmul.f32 %v4351, %v4381
        %v4388 = vmul.f32 %v4352, %v4381
        %v4389 = vmul.f32 %v4353, %v4381
        %v4390 = vmul.f32 %v4354, %v4381
        %v4391 = vmul.f32 %v4355, %v4381
        %v4392 = vmul.f32 %v4356, %v4381
        %v4393 = vmul.f32 %v4357, %v4381
        %v4394 = vmul.f32 %v4358, %v4381
        %v4395 = vmul.f32 %v4359, %v4381
        %v4396 = vmul.f32 %v4360, %v4381
        %v4397 = vmul.f32 %v4361, %v4381
        %v4398 = vmul.f32 %v4362, %v4381
        %v4399 = vmul.f32 %v4363, %v4381
        %v4400 = vmul.f32 %v4364, %v4381
        %v4401 = vmul.f32 %v4365, %v4381
        %v4402 = vmul.f32 %v4366, %v4381
        %v4403 = vmul.f32 %v4367, %v4381
        %v4404 = vmul.f32 %v4368, %v4381
        %v4405 = vmul.f32 %v4369, %v4381
        %v4406 = vmul.f32 %v4370, %v4381
        %v4407 = vmul.f32 %v4371, %v4381
        %v4408 = vmul.f32 %v4372, %v4381
        %v4409 = vmul.f32 %v4373, %v4381
        %v4410 = vmul.f32 %v4374, %v4381
        %v4411 = vmul.f32 %v4375, %v4381
        %v4412 = vmul.f32 %v4376, %v4381
        %v4413 = vmul.f32 %v4377, %v4381
        %v4414 = vmul.f32 %v4378, %v4381
        %v4415 = vld [vmem:[%s787] sm:$0x1]
        %v4417 = vperm.slane %v4415, 0
        %v4419 = vadd.f32 %v4383, %v4417
        %v4420 = vadd.f32 %v4384, %v4417
        %v4421 = vadd.f32 %v4385, %v4417
        %v4422 = vadd.f32 %v4386, %v4417
        %v4423 = vadd.f32 %v4387, %v4417
        %v4424 = vadd.f32 %v4388, %v4417
        %v4425 = vadd.f32 %v4389, %v4417
        %v4426 = vadd.f32 %v4390, %v4417
        %v4427 = vadd.f32 %v4391, %v4417
        %v4428 = vadd.f32 %v4392, %v4417
        %v4429 = vadd.f32 %v4393, %v4417
        %v4430 = vadd.f32 %v4394, %v4417
        %v4431 = vadd.f32 %v4395, %v4417
        %v4432 = vadd.f32 %v4396, %v4417
        %v4433 = vadd.f32 %v4397, %v4417
        %v4434 = vadd.f32 %v4398, %v4417
        %v4435 = vadd.f32 %v4399, %v4417
        %v4436 = vadd.f32 %v4400, %v4417
        %v4437 = vadd.f32 %v4401, %v4417
        %v4438 = vadd.f32 %v4402, %v4417
        %v4439 = vadd.f32 %v4403, %v4417
        %v4440 = vadd.f32 %v4404, %v4417
        %v4441 = vadd.f32 %v4405, %v4417
        %v4442 = vadd.f32 %v4406, %v4417
        %v4443 = vadd.f32 %v4407, %v4417
        %v4444 = vadd.f32 %v4408, %v4417
        %v4445 = vadd.f32 %v4409, %v4417
        %v4446 = vadd.f32 %v4410, %v4417
        %v4447 = vadd.f32 %v4411, %v4417
        %v4448 = vadd.f32 %v4412, %v4417
        %v4449 = vadd.f32 %v4413, %v4417
        %v4450 = vadd.f32 %v4414, %v4417
        %4451 = vst [vmem:[#allocation2] sm:$0xff] %v4419
        %4452 = vst [vmem:[#allocation2 + $0x8] sm:$0xff] %v4420
        %4453 = vst [vmem:[#allocation2 + $0x10] sm:$0xff] %v4421
        %4454 = vst [vmem:[#allocation2 + $0x18] sm:$0xff] %v4422
        %4455 = vst [vmem:[#allocation2 + $0x20] sm:$0xff] %v4423
        %4456 = vst [vmem:[#allocation2 + $0x28] sm:$0xff] %v4424
        %4457 = vst [vmem:[#allocation2 + $0x30] sm:$0xff] %v4425
        %4458 = vst [vmem:[#allocation2 + $0x38] sm:$0xff] %v4426
        %4459 = vst [vmem:[#allocation2 + $0x40] sm:$0xff] %v4427
        %4460 = vst [vmem:[#allocation2 + $0x48] sm:$0xff] %v4428
        %4461 = vst [vmem:[#allocation2 + $0x50] sm:$0xff] %v4429
        %4462 = vst [vmem:[#allocation2 + $0x58] sm:$0xff] %v4430
        %4463 = vst [vmem:[#allocation2 + $0x60] sm:$0xff] %v4431
        %4464 = vst [vmem:[#allocation2 + $0x68] sm:$0xff] %v4432
        %4465 = vst [vmem:[#allocation2 + $0x70] sm:$0xff] %v4433
        %4466 = vst [vmem:[#allocation2 + $0x78] sm:$0xff] %v4434
        %4467 = vst [vmem:[#allocation2 + $0x80] sm:$0xff] %v4435
        %4468 = vst [vmem:[#allocation2 + $0x88] sm:$0xff] %v4436
        %4469 = vst [vmem:[#allocation2 + $0x90] sm:$0xff] %v4437
        %4470 = vst [vmem:[#allocation2 + $0x98] sm:$0xff] %v4438
        %4471 = vst [vmem:[#allocation2 + $0xa0] sm:$0xff] %v4439
        %4472 = vst [vmem:[#allocation2 + $0xa8] sm:$0xff] %v4440
        %4473 = vst [vmem:[#allocation2 + $0xb0] sm:$0xff] %v4441
        %4474 = vst [vmem:[#allocation2 + $0xb8] sm:$0xff] %v4442
        %4475 = vst [vmem:[#allocation2 + $0xc0] sm:$0xff] %v4443
        %4476 = vst [vmem:[#allocation2 + $0xc8] sm:$0xff] %v4444
        %4477 = vst [vmem:[#allocation2 + $0xd0] sm:$0xff] %v4445
        %4478 = vst [vmem:[#allocation2 + $0xd8] sm:$0xff] %v4446
        %4479 = vst [vmem:[#allocation2 + $0xe0] sm:$0xff] %v4447
        %4480 = vst [vmem:[#allocation2 + $0xe8] sm:$0xff] %v4448
        %4481 = vst [vmem:[#allocation2 + $0xf0] sm:$0xff] %v4449
        %4482 = vst [vmem:[#allocation2 + $0xf8] sm:$0xff] %v4450
        %v4483 = vld [vmem:[#allocation2] sm:$0xff]
        %v4484 = vld [vmem:[#allocation2 + $0x8] sm:$0xff]
        %v4485 = vld [vmem:[#allocation2 + $0x10] sm:$0xff]
        %v4486 = vld [vmem:[#allocation2 + $0x18] sm:$0xff]
        %v4487 = vld [vmem:[#allocation2 + $0x20] sm:$0xff]
        %v4488 = vld [vmem:[#allocation2 + $0x28] sm:$0xff]
        %v4489 = vld [vmem:[#allocation2 + $0x30] sm:$0xff]
        %v4490 = vld [vmem:[#allocation2 + $0x38] sm:$0xff]
        %v4491 = vld [vmem:[#allocation2 + $0x40] sm:$0xff]
        %v4492 = vld [vmem:[#allocation2 + $0x48] sm:$0xff]
        %v4493 = vld [vmem:[#allocation2 + $0x50] sm:$0xff]
        %v4494 = vld [vmem:[#allocation2 + $0x58] sm:$0xff]
        %v4495 = vld [vmem:[#allocation2 + $0x60] sm:$0xff]
        %v4496 = vld [vmem:[#allocation2 + $0x68] sm:$0xff]
        %v4497 = vld [vmem:[#allocation2 + $0x70] sm:$0xff]
        %v4498 = vld [vmem:[#allocation2 + $0x78] sm:$0xff]
        %v4499 = vld [vmem:[#allocation2 + $0x80] sm:$0xff]
        %v4500 = vld [vmem:[#allocation2 + $0x88] sm:$0xff]
        %v4501 = vld [vmem:[#allocation2 + $0x90] sm:$0xff]
        %v4502 = vld [vmem:[#allocation2 + $0x98] sm:$0xff]
        %v4503 = vld [vmem:[#allocation2 + $0xa0] sm:$0xff]
        %v4504 = vld [vmem:[#allocation2 + $0xa8] sm:$0xff]
        %v4505 = vld [vmem:[#allocation2 + $0xb0] sm:$0xff]
        %v4506 = vld [vmem:[#allocation2 + $0xb8] sm:$0xff]
        %v4507 = vld [vmem:[#allocation2 + $0xc0] sm:$0xff]
        %v4508 = vld [vmem:[#allocation2 + $0xc8] sm:$0xff]
        %v4509 = vld [vmem:[#allocation2 + $0xd0] sm:$0xff]
        %v4510 = vld [vmem:[#allocation2 + $0xd8] sm:$0xff]
        %v4511 = vld [vmem:[#allocation2 + $0xe0] sm:$0xff]
        %v4512 = vld [vmem:[#allocation2 + $0xe8] sm:$0xff]
        %v4513 = vld [vmem:[#allocation2 + $0xf0] sm:$0xff]
        %v4514 = vld [vmem:[#allocation2 + $0xf8] sm:$0xff]
        %v4515 = vpack.c.bf16 %v4484, %v4483
        %v4516 = vpack.c.bf16 %v4486, %v4485
        %v4517 = vpack.c.bf16 %v4488, %v4487
        %v4518 = vpack.c.bf16 %v4490, %v4489
        %v4519 = vpack.c.bf16 %v4492, %v4491
        %v4520 = vpack.c.bf16 %v4494, %v4493
        %v4521 = vpack.c.bf16 %v4496, %v4495
        %v4522 = vpack.c.bf16 %v4498, %v4497
        %v4523 = vpack.c.bf16 %v4500, %v4499
        %v4524 = vpack.c.bf16 %v4502, %v4501
        %v4525 = vpack.c.bf16 %v4504, %v4503
        %v4526 = vpack.c.bf16 %v4506, %v4505
        %v4527 = vpack.c.bf16 %v4508, %v4507
        %v4528 = vpack.c.bf16 %v4510, %v4509
        %v4529 = vpack.c.bf16 %v4512, %v4511
        %v4530 = vpack.c.bf16 %v4514, %v4513
        %v4531 = vld [vmem:[%s769] sm:$0xff]
        %v4532 = vld [vmem:[%s769 + $0x40] sm:$0xff]
        %v4533 = vld [vmem:[%s769 + $0x80] sm:$0xff]
        %v4534 = vld [vmem:[%s769 + $0xc0] sm:$0xff]
        %v4535 = vld [vmem:[%s769 + $0x100] sm:$0xff]
        %v4536 = vld [vmem:[%s769 + $0x140] sm:$0xff]
        %v4537 = vld [vmem:[%s769 + $0x180] sm:$0xff]
        %v4538 = vld [vmem:[%s769 + $0x1c0] sm:$0xff]
        %v4539 = vld [vmem:[%s769 + $0x200] sm:$0xff]
        %v4540 = vld [vmem:[%s769 + $0x240] sm:$0xff]
        %v4541 = vld [vmem:[%s769 + $0x280] sm:$0xff]
        %v4542 = vld [vmem:[%s769 + $0x2c0] sm:$0xff]
        %v4543 = vld [vmem:[%s769 + $0x300] sm:$0xff]
        %v4544 = vld [vmem:[%s769 + $0x340] sm:$0xff]
        %v4545 = vld [vmem:[%s769 + $0x380] sm:$0xff]
        %v4546 = vld [vmem:[%s769 + $0x3c0] sm:$0xff]
        %v4547 = vld [vmem:[%s773] sm:$0x3]
        %v4549 = vperm.slane %v4547, 0
        %v4550 = vperm.slane %v4547, 1
        %v4569 = vunpack.c.l.b16 %v4531
        %v4570 = vunpack.c.h.b16 %v4531
        %v4571 = vunpack.c.l.b16 %v4532
        %v4572 = vunpack.c.h.b16 %v4532
        %v4573 = vunpack.c.l.b16 %v4533
        %v4574 = vunpack.c.h.b16 %v4533
        %v4575 = vunpack.c.l.b16 %v4534
        %v4576 = vunpack.c.h.b16 %v4534
        %v4577 = vunpack.c.l.b16 %v4535
        %v4578 = vunpack.c.h.b16 %v4535
        %v4579 = vunpack.c.l.b16 %v4536
        %v4580 = vunpack.c.h.b16 %v4536
        %v4581 = vunpack.c.l.b16 %v4537
        %v4582 = vunpack.c.h.b16 %v4537
        %v4583 = vunpack.c.l.b16 %v4538
        %v4584 = vunpack.c.h.b16 %v4538
        %v4585 = vunpack.c.l.b16 %v4539
        %v4586 = vunpack.c.h.b16 %v4539
        %v4587 = vunpack.c.l.b16 %v4540
        %v4588 = vunpack.c.h.b16 %v4540
        %v4589 = vunpack.c.l.b16 %v4541
        %v4590 = vunpack.c.h.b16 %v4541
        %v4591 = vunpack.c.l.b16 %v4542
        %v4592 = vunpack.c.h.b16 %v4542
        %v4593 = vunpack.c.l.b16 %v4543
        %v4594 = vunpack.c.h.b16 %v4543
        %v4595 = vunpack.c.l.b16 %v4544
        %v4596 = vunpack.c.h.b16 %v4544
        %v4597 = vunpack.c.l.b16 %v4545
        %v4598 = vunpack.c.h.b16 %v4545
        %v4599 = vunpack.c.l.b16 %v4546
        %v4600 = vunpack.c.h.b16 %v4546
        %v4601 = vpack.c.b16 %v4571, %v4569
        %v4602 = vpack.c.b16 %v4572, %v4570
        %v4603 = vpack.c.b16 %v4575, %v4573
        %v4604 = vpack.c.b16 %v4576, %v4574
        %v4605 = vpack.c.b16 %v4579, %v4577
        %v4606 = vpack.c.b16 %v4580, %v4578
        %v4607 = vpack.c.b16 %v4583, %v4581
        %v4608 = vpack.c.b16 %v4584, %v4582
        %v4609 = vpack.c.b16 %v4587, %v4585
        %v4610 = vpack.c.b16 %v4588, %v4586
        %v4611 = vpack.c.b16 %v4591, %v4589
        %v4612 = vpack.c.b16 %v4592, %v4590
        %v4613 = vpack.c.b16 %v4595, %v4593
        %v4614 = vpack.c.b16 %v4596, %v4594
        %v4615 = vpack.c.b16 %v4599, %v4597
        %v4616 = vpack.c.b16 %v4600, %v4598
        %4633 = vmatpush.bf16.msra.mxu0 %v4615
        %4634 = vmatpush.bf16.msra.mxu0 %v4613
        %4635 = vmatpush.bf16.msra.mxu0 %v4611
        %4636 = vmatpush.bf16.msra.mxu0 %v4609
        %4637 = vmatpush.bf16.msra.mxu0 %v4607
        %4638 = vmatpush.bf16.msra.mxu0 %v4605
        %4639 = vmatpush.bf16.msra.mxu0 %v4603
        %4640 = vmatpush.bf16.msra.mxu0 %v4601
        %4641 = vmatmul.bf16.gmra.mxu0 %v4515
        %v4642 = vpop.f32.mrf.mxu0
        %v4643 = vadd.f32 %v4549, %v4642
        %v4644 = vpop.f32.mrf.mxu0
        %v4645 = vadd.f32 %v4549, %v4644
        %4646 = vmatmul.bf16.gmra.mxu0 %v4516
        %v4647 = vpop.f32.mrf.mxu0
        %v4648 = vadd.f32 %v4549, %v4647
        %v4649 = vpop.f32.mrf.mxu0
        %v4650 = vadd.f32 %v4549, %v4649
        %4651 = vmatmul.bf16.gmra.mxu0 %v4517
        %v4652 = vpop.f32.mrf.mxu0
        %v4653 = vadd.f32 %v4549, %v4652
        %v4654 = vpop.f32.mrf.mxu0
        %v4655 = vadd.f32 %v4549, %v4654
        %4656 = vmatmul.bf16.gmra.mxu0 %v4518
        %v4657 = vpop.f32.mrf.mxu0
        %v4658 = vadd.f32 %v4549, %v4657
        %v4659 = vpop.f32.mrf.mxu0
        %v4660 = vadd.f32 %v4549, %v4659
        %4661 = vmatmul.bf16.gmra.mxu0 %v4519
        %v4662 = vpop.f32.mrf.mxu0
        %v4663 = vadd.f32 %v4549, %v4662
        %v4664 = vpop.f32.mrf.mxu0
        %v4665 = vadd.f32 %v4549, %v4664
        %4666 = vmatmul.bf16.gmra.mxu0 %v4520
        %v4667 = vpop.f32.mrf.mxu0
        %v4668 = vadd.f32 %v4549, %v4667
        %v4669 = vpop.f32.mrf.mxu0
        %v4670 = vadd.f32 %v4549, %v4669
        %4671 = vmatmul.bf16.gmra.mxu0 %v4521
        %v4672 = vpop.f32.mrf.mxu0
        %v4673 = vadd.f32 %v4549, %v4672
        %v4674 = vpop.f32.mrf.mxu0
        %v4675 = vadd.f32 %v4549, %v4674
        %4676 = vmatmul.bf16.gmra.mxu0 %v4522
        %v4677 = vpop.f32.mrf.mxu0
        %v4678 = vadd.f32 %v4549, %v4677
        %v4679 = vpop.f32.mrf.mxu0
        %v4680 = vadd.f32 %v4549, %v4679
        %4681 = vmatmul.bf16.gmra.mxu0 %v4523
        %v4682 = vpop.f32.mrf.mxu0
        %v4683 = vadd.f32 %v4549, %v4682
        %v4684 = vpop.f32.mrf.mxu0
        %v4685 = vadd.f32 %v4549, %v4684
        %4686 = vmatmul.bf16.gmra.mxu0 %v4524
        %v4687 = vpop.f32.mrf.mxu0
        %v4688 = vadd.f32 %v4549, %v4687
        %v4689 = vpop.f32.mrf.mxu0
        %v4690 = vadd.f32 %v4549, %v4689
        %4691 = vmatmul.bf16.gmra.mxu0 %v4525
        %v4692 = vpop.f32.mrf.mxu0
        %v4693 = vadd.f32 %v4549, %v4692
        %v4694 = vpop.f32.mrf.mxu0
        %v4695 = vadd.f32 %v4549, %v4694
        %4696 = vmatmul.bf16.gmra.mxu0 %v4526
        %v4697 = vpop.f32.mrf.mxu0
        %v4698 = vadd.f32 %v4549, %v4697
        %v4699 = vpop.f32.mrf.mxu0
        %v4700 = vadd.f32 %v4549, %v4699
        %4701 = vmatmul.bf16.gmra.mxu0 %v4527
        %v4702 = vpop.f32.mrf.mxu0
        %v4703 = vadd.f32 %v4549, %v4702
        %v4704 = vpop.f32.mrf.mxu0
        %v4705 = vadd.f32 %v4549, %v4704
        %4706 = vmatmul.bf16.gmra.mxu0 %v4528
        %v4707 = vpop.f32.mrf.mxu0
        %v4708 = vadd.f32 %v4549, %v4707
        %v4709 = vpop.f32.mrf.mxu0
        %v4710 = vadd.f32 %v4549, %v4709
        %4711 = vmatmul.bf16.gmra.mxu0 %v4529
        %v4712 = vpop.f32.mrf.mxu0
        %v4713 = vadd.f32 %v4549, %v4712
        %v4714 = vpop.f32.mrf.mxu0
        %v4715 = vadd.f32 %v4549, %v4714
        %4716 = vmatmul.bf16.gmra.mxu0 %v4530
        %v4717 = vpop.f32.mrf.mxu0
        %v4718 = vadd.f32 %v4549, %v4717
        %v4719 = vpop.f32.mrf.mxu0
        %v4720 = vadd.f32 %v4549, %v4719
        %4721 = vdwg.mxu0
        %4722 = vmatpush.bf16.msra.mxu0 %v4616
        %4723 = vmatpush.bf16.msra.mxu0 %v4614
        %4724 = vmatpush.bf16.msra.mxu0 %v4612
        %4725 = vmatpush.bf16.msra.mxu0 %v4610
        %4726 = vmatpush.bf16.msra.mxu0 %v4608
        %4727 = vmatpush.bf16.msra.mxu0 %v4606
        %4728 = vmatpush.bf16.msra.mxu0 %v4604
        %4729 = vmatpush.bf16.msra.mxu0 %v4602
        %4730 = vmatmul.bf16.gmra.mxu0 %v4515
        %v4731 = vpop.f32.mrf.mxu0
        %v4732 = vadd.f32 %v4550, %v4731
        %v4733 = vpop.f32.mrf.mxu0
        %v4734 = vadd.f32 %v4550, %v4733
        %4735 = vmatmul.bf16.gmra.mxu0 %v4516
        %v4736 = vpop.f32.mrf.mxu0
        %v4737 = vadd.f32 %v4550, %v4736
        %v4738 = vpop.f32.mrf.mxu0
        %v4739 = vadd.f32 %v4550, %v4738
        %4740 = vmatmul.bf16.gmra.mxu0 %v4517
        %v4741 = vpop.f32.mrf.mxu0
        %v4742 = vadd.f32 %v4550, %v4741
        %v4743 = vpop.f32.mrf.mxu0
        %v4744 = vadd.f32 %v4550, %v4743
        %4745 = vmatmul.bf16.gmra.mxu0 %v4518
        %v4746 = vpop.f32.mrf.mxu0
        %v4747 = vadd.f32 %v4550, %v4746
        %v4748 = vpop.f32.mrf.mxu0
        %v4749 = vadd.f32 %v4550, %v4748
        %4750 = vmatmul.bf16.gmra.mxu0 %v4519
        %v4751 = vpop.f32.mrf.mxu0
        %v4752 = vadd.f32 %v4550, %v4751
        %v4753 = vpop.f32.mrf.mxu0
        %v4754 = vadd.f32 %v4550, %v4753
        %4755 = vmatmul.bf16.gmra.mxu0 %v4520
        %v4756 = vpop.f32.mrf.mxu0
        %v4757 = vadd.f32 %v4550, %v4756
        %v4758 = vpop.f32.mrf.mxu0
        %v4759 = vadd.f32 %v4550, %v4758
        %4760 = vmatmul.bf16.gmra.mxu0 %v4521
        %v4761 = vpop.f32.mrf.mxu0
        %v4762 = vadd.f32 %v4550, %v4761
        %v4763 = vpop.f32.mrf.mxu0
        %v4764 = vadd.f32 %v4550, %v4763
        %4765 = vmatmul.bf16.gmra.mxu0 %v4522
        %v4766 = vpop.f32.mrf.mxu0
        %v4767 = vadd.f32 %v4550, %v4766
        %v4768 = vpop.f32.mrf.mxu0
        %v4769 = vadd.f32 %v4550, %v4768
        %4770 = vmatmul.bf16.gmra.mxu0 %v4523
        %v4771 = vpop.f32.mrf.mxu0
        %v4772 = vadd.f32 %v4550, %v4771
        %v4773 = vpop.f32.mrf.mxu0
        %v4774 = vadd.f32 %v4550, %v4773
        %4775 = vmatmul.bf16.gmra.mxu0 %v4524
        %v4776 = vpop.f32.mrf.mxu0
        %v4777 = vadd.f32 %v4550, %v4776
        %v4778 = vpop.f32.mrf.mxu0
        %v4779 = vadd.f32 %v4550, %v4778
        %4780 = vmatmul.bf16.gmra.mxu0 %v4525
        %v4781 = vpop.f32.mrf.mxu0
        %v4782 = vadd.f32 %v4550, %v4781
        %v4783 = vpop.f32.mrf.mxu0
        %v4784 = vadd.f32 %v4550, %v4783
        %4785 = vmatmul.bf16.gmra.mxu0 %v4526
        %v4786 = vpop.f32.mrf.mxu0
        %v4787 = vadd.f32 %v4550, %v4786
        %v4788 = vpop.f32.mrf.mxu0
        %v4789 = vadd.f32 %v4550, %v4788
        %4790 = vmatmul.bf16.gmra.mxu0 %v4527
        %v4791 = vpop.f32.mrf.mxu0
        %v4792 = vadd.f32 %v4550, %v4791
        %v4793 = vpop.f32.mrf.mxu0
        %v4794 = vadd.f32 %v4550, %v4793
        %4795 = vmatmul.bf16.gmra.mxu0 %v4528
        %v4796 = vpop.f32.mrf.mxu0
        %v4797 = vadd.f32 %v4550, %v4796
        %v4798 = vpop.f32.mrf.mxu0
        %v4799 = vadd.f32 %v4550, %v4798
        %4800 = vmatmul.bf16.gmra.mxu0 %v4529
        %v4801 = vpop.f32.mrf.mxu0
        %v4802 = vadd.f32 %v4550, %v4801
        %v4803 = vpop.f32.mrf.mxu0
        %v4804 = vadd.f32 %v4550, %v4803
        %4805 = vmatmul.bf16.gmra.mxu0 %v4530
        %v4806 = vpop.f32.mrf.mxu0
        %v4807 = vadd.f32 %v4550, %v4806
        %v4808 = vpop.f32.mrf.mxu0
        %v4809 = vadd.f32 %v4550, %v4808
        %4810 = vdwg.mxu0
        %v4811 = vmax.f32 %v4643, 0.0
        %v4812 = vmax.f32 %v4732, 0.0
        %v4813 = vmax.f32 %v4645, 0.0
        %v4814 = vmax.f32 %v4734, 0.0
        %v4815 = vmax.f32 %v4648, 0.0
        %v4816 = vmax.f32 %v4737, 0.0
        %v4817 = vmax.f32 %v4650, 0.0
        %v4818 = vmax.f32 %v4739, 0.0
        %v4819 = vmax.f32 %v4653, 0.0
        %v4820 = vmax.f32 %v4742, 0.0
        %v4821 = vmax.f32 %v4655, 0.0
        %v4822 = vmax.f32 %v4744, 0.0
        %v4823 = vmax.f32 %v4658, 0.0
        %v4824 = vmax.f32 %v4747, 0.0
        %v4825 = vmax.f32 %v4660, 0.0
        %v4826 = vmax.f32 %v4749, 0.0
        %v4827 = vmax.f32 %v4663, 0.0
        %v4828 = vmax.f32 %v4752, 0.0
        %v4829 = vmax.f32 %v4665, 0.0
        %v4830 = vmax.f32 %v4754, 0.0
        %v4831 = vmax.f32 %v4668, 0.0
        %v4832 = vmax.f32 %v4757, 0.0
        %v4833 = vmax.f32 %v4670, 0.0
        %v4834 = vmax.f32 %v4759, 0.0
        %v4835 = vmax.f32 %v4673, 0.0
        %v4836 = vmax.f32 %v4762, 0.0
        %v4837 = vmax.f32 %v4675, 0.0
        %v4838 = vmax.f32 %v4764, 0.0
        %v4839 = vmax.f32 %v4678, 0.0
        %v4840 = vmax.f32 %v4767, 0.0
        %v4841 = vmax.f32 %v4680, 0.0
        %v4842 = vmax.f32 %v4769, 0.0
        %v4843 = vmax.f32 %v4683, 0.0
        %v4844 = vmax.f32 %v4772, 0.0
        %v4845 = vmax.f32 %v4685, 0.0
        %v4846 = vmax.f32 %v4774, 0.0
        %v4847 = vmax.f32 %v4688, 0.0
        %v4848 = vmax.f32 %v4777, 0.0
        %v4849 = vmax.f32 %v4690, 0.0
        %v4850 = vmax.f32 %v4779, 0.0
        %v4851 = vmax.f32 %v4693, 0.0
        %v4852 = vmax.f32 %v4782, 0.0
        %v4853 = vmax.f32 %v4695, 0.0
        %v4854 = vmax.f32 %v4784, 0.0
        %v4855 = vmax.f32 %v4698, 0.0
        %v4856 = vmax.f32 %v4787, 0.0
        %v4857 = vmax.f32 %v4700, 0.0
        %v4858 = vmax.f32 %v4789, 0.0
        %v4859 = vmax.f32 %v4703, 0.0
        %v4860 = vmax.f32 %v4792, 0.0
        %v4861 = vmax.f32 %v4705, 0.0
        %v4862 = vmax.f32 %v4794, 0.0
        %v4863 = vmax.f32 %v4708, 0.0
        %v4864 = vmax.f32 %v4797, 0.0
        %v4865 = vmax.f32 %v4710, 0.0
        %v4866 = vmax.f32 %v4799, 0.0
        %v4867 = vmax.f32 %v4713, 0.0
        %v4868 = vmax.f32 %v4802, 0.0
        %v4869 = vmax.f32 %v4715, 0.0
        %v4870 = vmax.f32 %v4804, 0.0
        %v4871 = vmax.f32 %v4718, 0.0
        %v4872 = vmax.f32 %v4807, 0.0
        %v4873 = vmax.f32 %v4720, 0.0
        %v4874 = vmax.f32 %v4809, 0.0
        %v4875 = vpack.c.bf16 %v4813, %v4811
        %v4876 = vpack.c.bf16 %v4814, %v4812
        %v4877 = vpack.c.bf16 %v4817, %v4815
        %v4878 = vpack.c.bf16 %v4818, %v4816
        %v4879 = vpack.c.bf16 %v4821, %v4819
        %v4880 = vpack.c.bf16 %v4822, %v4820
        %v4881 = vpack.c.bf16 %v4825, %v4823
        %v4882 = vpack.c.bf16 %v4826, %v4824
        %v4883 = vpack.c.bf16 %v4829, %v4827
        %v4884 = vpack.c.bf16 %v4830, %v4828
        %v4885 = vpack.c.bf16 %v4833, %v4831
        %v4886 = vpack.c.bf16 %v4834, %v4832
        %v4887 = vpack.c.bf16 %v4837, %v4835
        %v4888 = vpack.c.bf16 %v4838, %v4836
        %v4889 = vpack.c.bf16 %v4841, %v4839
        %v4890 = vpack.c.bf16 %v4842, %v4840
        %v4891 = vpack.c.bf16 %v4845, %v4843
        %v4892 = vpack.c.bf16 %v4846, %v4844
        %v4893 = vpack.c.bf16 %v4849, %v4847
        %v4894 = vpack.c.bf16 %v4850, %v4848
        %v4895 = vpack.c.bf16 %v4853, %v4851
        %v4896 = vpack.c.bf16 %v4854, %v4852
        %v4897 = vpack.c.bf16 %v4857, %v4855
        %v4898 = vpack.c.bf16 %v4858, %v4856
        %v4899 = vpack.c.bf16 %v4861, %v4859
        %v4900 = vpack.c.bf16 %v4862, %v4860
        %v4901 = vpack.c.bf16 %v4865, %v4863
        %v4902 = vpack.c.bf16 %v4866, %v4864
        %v4903 = vpack.c.bf16 %v4869, %v4867
        %v4904 = vpack.c.bf16 %v4870, %v4868
        %v4905 = vpack.c.bf16 %v4873, %v4871
        %v4906 = vpack.c.bf16 %v4874, %v4872
        %v4907 = vld [vmem:[%s778] sm:$0xf]
        %v4908 = vld [vmem:[%s778 + $0x4] sm:$0xf]
        %v4909 = vld [vmem:[%s778 + $0x8] sm:$0xf]
        %v4910 = vld [vmem:[%s778 + $0xc] sm:$0xf]
        %v4911 = vld [vmem:[%s778 + $0x10] sm:$0xf]
        %v4912 = vld [vmem:[%s778 + $0x14] sm:$0xf]
        %v4913 = vld [vmem:[%s778 + $0x18] sm:$0xf]
        %v4914 = vld [vmem:[%s778 + $0x1c] sm:$0xf]
        %v4915 = vld [vmem:[%s778 + $0x20] sm:$0xf]
        %v4916 = vld [vmem:[%s778 + $0x24] sm:$0xf]
        %v4917 = vld [vmem:[%s778 + $0x28] sm:$0xf]
        %v4918 = vld [vmem:[%s778 + $0x2c] sm:$0xf]
        %v4919 = vld [vmem:[%s778 + $0x30] sm:$0xf]
        %v4920 = vld [vmem:[%s778 + $0x34] sm:$0xf]
        %v4921 = vld [vmem:[%s778 + $0x38] sm:$0xf]
        %v4922 = vld [vmem:[%s778 + $0x3c] sm:$0xf]
        %v4923 = vld [vmem:[%s778 + $0x40] sm:$0xf]
        %v4924 = vld [vmem:[%s778 + $0x44] sm:$0xf]
        %v4925 = vld [vmem:[%s778 + $0x48] sm:$0xf]
        %v4926 = vld [vmem:[%s778 + $0x4c] sm:$0xf]
        %v4927 = vld [vmem:[%s778 + $0x50] sm:$0xf]
        %v4928 = vld [vmem:[%s778 + $0x54] sm:$0xf]
        %v4929 = vld [vmem:[%s778 + $0x58] sm:$0xf]
        %v4930 = vld [vmem:[%s778 + $0x5c] sm:$0xf]
        %v4931 = vld [vmem:[%s778 + $0x60] sm:$0xf]
        %v4932 = vld [vmem:[%s778 + $0x64] sm:$0xf]
        %v4933 = vld [vmem:[%s778 + $0x68] sm:$0xf]
        %v4934 = vld [vmem:[%s778 + $0x6c] sm:$0xf]
        %v4935 = vld [vmem:[%s778 + $0x70] sm:$0xf]
        %v4936 = vld [vmem:[%s778 + $0x74] sm:$0xf]
        %v4937 = vld [vmem:[%s778 + $0x78] sm:$0xf]
        %v4938 = vld [vmem:[%s778 + $0x7c] sm:$0xf]
        %v4939 = vld [vmem:[%s769 + $0x8] sm:$0xff]
        %v4940 = vld [vmem:[%s769 + $0x48] sm:$0xff]
        %v4941 = vld [vmem:[%s769 + $0x88] sm:$0xff]
        %v4942 = vld [vmem:[%s769 + $0xc8] sm:$0xff]
        %v4943 = vld [vmem:[%s769 + $0x108] sm:$0xff]
        %v4944 = vld [vmem:[%s769 + $0x148] sm:$0xff]
        %v4945 = vld [vmem:[%s769 + $0x188] sm:$0xff]
        %v4946 = vld [vmem:[%s769 + $0x1c8] sm:$0xff]
        %v4947 = vld [vmem:[%s769 + $0x208] sm:$0xff]
        %v4948 = vld [vmem:[%s769 + $0x248] sm:$0xff]
        %v4949 = vld [vmem:[%s769 + $0x288] sm:$0xff]
        %v4950 = vld [vmem:[%s769 + $0x2c8] sm:$0xff]
        %v4951 = vld [vmem:[%s769 + $0x308] sm:$0xff]
        %v4952 = vld [vmem:[%s769 + $0x348] sm:$0xff]
        %v4953 = vld [vmem:[%s769 + $0x388] sm:$0xff]
        %v4954 = vld [vmem:[%s769 + $0x3c8] sm:$0xff]
        %v4955 = vld [vmem:[%s773 + $0x2] sm:$0x3]
        %v4957 = vperm.slane %v4955, 0
        %v4958 = vperm.slane %v4955, 1
        %v4977 = vunpack.c.l.b16 %v4939
        %v4978 = vunpack.c.h.b16 %v4939
        %v4979 = vunpack.c.l.b16 %v4940
        %v4980 = vunpack.c.h.b16 %v4940
        %v4981 = vunpack.c.l.b16 %v4941
        %v4982 = vunpack.c.h.b16 %v4941
        %v4983 = vunpack.c.l.b16 %v4942
        %v4984 = vunpack.c.h.b16 %v4942
        %v4985 = vunpack.c.l.b16 %v4943
        %v4986 = vunpack.c.h.b16 %v4943
        %v4987 = vunpack.c.l.b16 %v4944
        %v4988 = vunpack.c.h.b16 %v4944
        %v4989 = vunpack.c.l.b16 %v4945
        %v4990 = vunpack.c.h.b16 %v4945
        %v4991 = vunpack.c.l.b16 %v4946
        %v4992 = vunpack.c.h.b16 %v4946
        %v4993 = vunpack.c.l.b16 %v4947
        %v4994 = vunpack.c.h.b16 %v4947
        %v4995 = vunpack.c.l.b16 %v4948
        %v4996 = vunpack.c.h.b16 %v4948
        %v4997 = vunpack.c.l.b16 %v4949
        %v4998 = vunpack.c.h.b16 %v4949
        %v4999 = vunpack.c.l.b16 %v4950
        %v5000 = vunpack.c.h.b16 %v4950
        %v5001 = vunpack.c.l.b16 %v4951
        %v5002 = vunpack.c.h.b16 %v4951
        %v5003 = vunpack.c.l.b16 %v4952
        %v5004 = vunpack.c.h.b16 %v4952
        %v5005 = vunpack.c.l.b16 %v4953
        %v5006 = vunpack.c.h.b16 %v4953
        %v5007 = vunpack.c.l.b16 %v4954
        %v5008 = vunpack.c.h.b16 %v4954
        %v5009 = vpack.c.b16 %v4979, %v4977
        %v5010 = vpack.c.b16 %v4980, %v4978
        %v5011 = vpack.c.b16 %v4983, %v4981
        %v5012 = vpack.c.b16 %v4984, %v4982
        %v5013 = vpack.c.b16 %v4987, %v4985
        %v5014 = vpack.c.b16 %v4988, %v4986
        %v5015 = vpack.c.b16 %v4991, %v4989
        %v5016 = vpack.c.b16 %v4992, %v4990
        %v5017 = vpack.c.b16 %v4995, %v4993
        %v5018 = vpack.c.b16 %v4996, %v4994
        %v5019 = vpack.c.b16 %v4999, %v4997
        %v5020 = vpack.c.b16 %v5000, %v4998
        %v5021 = vpack.c.b16 %v5003, %v5001
        %v5022 = vpack.c.b16 %v5004, %v5002
        %v5023 = vpack.c.b16 %v5007, %v5005
        %v5024 = vpack.c.b16 %v5008, %v5006
        %5041 = vmatpush.bf16.msra.mxu0 %v5023
        %5042 = vmatpush.bf16.msra.mxu0 %v5021
        %5043 = vmatpush.bf16.msra.mxu0 %v5019
        %5044 = vmatpush.bf16.msra.mxu0 %v5017
        %5045 = vmatpush.bf16.msra.mxu0 %v5015
        %5046 = vmatpush.bf16.msra.mxu0 %v5013
        %5047 = vmatpush.bf16.msra.mxu0 %v5011
        %5048 = vmatpush.bf16.msra.mxu0 %v5009
        %5049 = vmatmul.bf16.gmra.mxu0 %v4515
        %v5050 = vpop.f32.mrf.mxu0
        %v5051 = vadd.f32 %v4957, %v5050
        %v5052 = vpop.f32.mrf.mxu0
        %v5053 = vadd.f32 %v4957, %v5052
        %5054 = vmatmul.bf16.gmra.mxu0 %v4516
        %v5055 = vpop.f32.mrf.mxu0
        %v5056 = vadd.f32 %v4957, %v5055
        %v5057 = vpop.f32.mrf.mxu0
        %v5058 = vadd.f32 %v4957, %v5057
        %5059 = vmatmul.bf16.gmra.mxu0 %v4517
        %v5060 = vpop.f32.mrf.mxu0
        %v5061 = vadd.f32 %v4957, %v5060
        %v5062 = vpop.f32.mrf.mxu0
        %v5063 = vadd.f32 %v4957, %v5062
        %5064 = vmatmul.bf16.gmra.mxu0 %v4518
        %v5065 = vpop.f32.mrf.mxu0
        %v5066 = vadd.f32 %v4957, %v5065
        %v5067 = vpop.f32.mrf.mxu0
        %v5068 = vadd.f32 %v4957, %v5067
        %5069 = vmatmul.bf16.gmra.mxu0 %v4519
        %v5070 = vpop.f32.mrf.mxu0
        %v5071 = vadd.f32 %v4957, %v5070
        %v5072 = vpop.f32.mrf.mxu0
        %v5073 = vadd.f32 %v4957, %v5072
        %5074 = vmatmul.bf16.gmra.mxu0 %v4520
        %v5075 = vpop.f32.mrf.mxu0
        %v5076 = vadd.f32 %v4957, %v5075
        %v5077 = vpop.f32.mrf.mxu0
        %v5078 = vadd.f32 %v4957, %v5077
        %5079 = vmatmul.bf16.gmra.mxu0 %v4521
        %v5080 = vpop.f32.mrf.mxu0
        %v5081 = vadd.f32 %v4957, %v5080
        %v5082 = vpop.f32.mrf.mxu0
        %v5083 = vadd.f32 %v4957, %v5082
        %5084 = vmatmul.bf16.gmra.mxu0 %v4522
        %v5085 = vpop.f32.mrf.mxu0
        %v5086 = vadd.f32 %v4957, %v5085
        %v5087 = vpop.f32.mrf.mxu0
        %v5088 = vadd.f32 %v4957, %v5087
        %5089 = vmatmul.bf16.gmra.mxu0 %v4523
        %v5090 = vpop.f32.mrf.mxu0
        %v5091 = vadd.f32 %v4957, %v5090
        %v5092 = vpop.f32.mrf.mxu0
        %v5093 = vadd.f32 %v4957, %v5092
        %5094 = vmatmul.bf16.gmra.mxu0 %v4524
        %v5095 = vpop.f32.mrf.mxu0
        %v5096 = vadd.f32 %v4957, %v5095
        %v5097 = vpop.f32.mrf.mxu0
        %v5098 = vadd.f32 %v4957, %v5097
        %5099 = vmatmul.bf16.gmra.mxu0 %v4525
        %v5100 = vpop.f32.mrf.mxu0
        %v5101 = vadd.f32 %v4957, %v5100
        %v5102 = vpop.f32.mrf.mxu0
        %v5103 = vadd.f32 %v4957, %v5102
        %5104 = vmatmul.bf16.gmra.mxu0 %v4526
        %v5105 = vpop.f32.mrf.mxu0
        %v5106 = vadd.f32 %v4957, %v5105
        %v5107 = vpop.f32.mrf.mxu0
        %v5108 = vadd.f32 %v4957, %v5107
        %5109 = vmatmul.bf16.gmra.mxu0 %v4527
        %v5110 = vpop.f32.mrf.mxu0
        %v5111 = vadd.f32 %v4957, %v5110
        %v5112 = vpop.f32.mrf.mxu0
        %v5113 = vadd.f32 %v4957, %v5112
        %5114 = vmatmul.bf16.gmra.mxu0 %v4528
        %v5115 = vpop.f32.mrf.mxu0
        %v5116 = vadd.f32 %v4957, %v5115
        %v5117 = vpop.f32.mrf.mxu0
        %v5118 = vadd.f32 %v4957, %v5117
        %5119 = vmatmul.bf16.gmra.mxu0 %v4529
        %v5120 = vpop.f32.mrf.mxu0
        %v5121 = vadd.f32 %v4957, %v5120
        %v5122 = vpop.f32.mrf.mxu0
        %v5123 = vadd.f32 %v4957, %v5122
        %5124 = vmatmul.bf16.gmra.mxu0 %v4530
        %v5125 = vpop.f32.mrf.mxu0
        %v5126 = vadd.f32 %v4957, %v5125
        %v5127 = vpop.f32.mrf.mxu0
        %v5128 = vadd.f32 %v4957, %v5127
        %5129 = vdwg.mxu0
        %5130 = vmatpush.bf16.msra.mxu0 %v5024
        %5131 = vmatpush.bf16.msra.mxu0 %v5022
        %5132 = vmatpush.bf16.msra.mxu0 %v5020
        %5133 = vmatpush.bf16.msra.mxu0 %v5018
        %5134 = vmatpush.bf16.msra.mxu0 %v5016
        %5135 = vmatpush.bf16.msra.mxu0 %v5014
        %5136 = vmatpush.bf16.msra.mxu0 %v5012
        %5137 = vmatpush.bf16.msra.mxu0 %v5010
        %5138 = vmatmul.bf16.gmra.mxu0 %v4515
        %v5139 = vpop.f32.mrf.mxu0
        %v5140 = vadd.f32 %v4958, %v5139
        %v5141 = vpop.f32.mrf.mxu0
        %v5142 = vadd.f32 %v4958, %v5141
        %5143 = vmatmul.bf16.gmra.mxu0 %v4516
        %v5144 = vpop.f32.mrf.mxu0
        %v5145 = vadd.f32 %v4958, %v5144
        %v5146 = vpop.f32.mrf.mxu0
        %v5147 = vadd.f32 %v4958, %v5146
        %5148 = vmatmul.bf16.gmra.mxu0 %v4517
        %v5149 = vpop.f32.mrf.mxu0
        %v5150 = vadd.f32 %v4958, %v5149
        %v5151 = vpop.f32.mrf.mxu0
        %v5152 = vadd.f32 %v4958, %v5151
        %5153 = vmatmul.bf16.gmra.mxu0 %v4518
        %v5154 = vpop.f32.mrf.mxu0
        %v5155 = vadd.f32 %v4958, %v5154
        %v5156 = vpop.f32.mrf.mxu0
        %v5157 = vadd.f32 %v4958, %v5156
        %5158 = vmatmul.bf16.gmra.mxu0 %v4519
        %v5159 = vpop.f32.mrf.mxu0
        %v5160 = vadd.f32 %v4958, %v5159
        %v5161 = vpop.f32.mrf.mxu0
        %v5162 = vadd.f32 %v4958, %v5161
        %5163 = vmatmul.bf16.gmra.mxu0 %v4520
        %v5164 = vpop.f32.mrf.mxu0
        %v5165 = vadd.f32 %v4958, %v5164
        %v5166 = vpop.f32.mrf.mxu0
        %v5167 = vadd.f32 %v4958, %v5166
        %5168 = vmatmul.bf16.gmra.mxu0 %v4521
        %v5169 = vpop.f32.mrf.mxu0
        %v5170 = vadd.f32 %v4958, %v5169
        %v5171 = vpop.f32.mrf.mxu0
        %v5172 = vadd.f32 %v4958, %v5171
        %5173 = vmatmul.bf16.gmra.mxu0 %v4522
        %v5174 = vpop.f32.mrf.mxu0
        %v5175 = vadd.f32 %v4958, %v5174
        %v5176 = vpop.f32.mrf.mxu0
        %v5177 = vadd.f32 %v4958, %v5176
        %5178 = vmatmul.bf16.gmra.mxu0 %v4523
        %v5179 = vpop.f32.mrf.mxu0
        %v5180 = vadd.f32 %v4958, %v5179
        %v5181 = vpop.f32.mrf.mxu0
        %v5182 = vadd.f32 %v4958, %v5181
        %5183 = vmatmul.bf16.gmra.mxu0 %v4524
        %v5184 = vpop.f32.mrf.mxu0
        %v5185 = vadd.f32 %v4958, %v5184
        %v5186 = vpop.f32.mrf.mxu0
        %v5187 = vadd.f32 %v4958, %v5186
        %5188 = vmatmul.bf16.gmra.mxu0 %v4525
        %v5189 = vpop.f32.mrf.mxu0
        %v5190 = vadd.f32 %v4958, %v5189
        %v5191 = vpop.f32.mrf.mxu0
        %v5192 = vadd.f32 %v4958, %v5191
        %5193 = vmatmul.bf16.gmra.mxu0 %v4526
        %v5194 = vpop.f32.mrf.mxu0
        %v5195 = vadd.f32 %v4958, %v5194
        %v5196 = vpop.f32.mrf.mxu0
        %v5197 = vadd.f32 %v4958, %v5196
        %5198 = vmatmul.bf16.gmra.mxu0 %v4527
        %v5199 = vpop.f32.mrf.mxu0
        %v5200 = vadd.f32 %v4958, %v5199
        %v5201 = vpop.f32.mrf.mxu0
        %v5202 = vadd.f32 %v4958, %v5201
        %5203 = vmatmul.bf16.gmra.mxu0 %v4528
        %v5204 = vpop.f32.mrf.mxu0
        %v5205 = vadd.f32 %v4958, %v5204
        %v5206 = vpop.f32.mrf.mxu0
        %v5207 = vadd.f32 %v4958, %v5206
        %5208 = vmatmul.bf16.gmra.mxu0 %v4529
        %v5209 = vpop.f32.mrf.mxu0
        %v5210 = vadd.f32 %v4958, %v5209
        %v5211 = vpop.f32.mrf.mxu0
        %v5212 = vadd.f32 %v4958, %v5211
        %5213 = vmatmul.bf16.gmra.mxu0 %v4530
        %v5214 = vpop.f32.mrf.mxu0
        %v5215 = vadd.f32 %v4958, %v5214
        %v5216 = vpop.f32.mrf.mxu0
        %v5217 = vadd.f32 %v4958, %v5216
        %5218 = vdwg.mxu0
        %v5219 = vmax.f32 %v5051, 0.0
        %v5220 = vmax.f32 %v5140, 0.0
        %v5221 = vmax.f32 %v5053, 0.0
        %v5222 = vmax.f32 %v5142, 0.0
        %v5223 = vmax.f32 %v5056, 0.0
        %v5224 = vmax.f32 %v5145, 0.0
        %v5225 = vmax.f32 %v5058, 0.0
        %v5226 = vmax.f32 %v5147, 0.0
        %v5227 = vmax.f32 %v5061, 0.0
        %v5228 = vmax.f32 %v5150, 0.0
        %v5229 = vmax.f32 %v5063, 0.0
        %v5230 = vmax.f32 %v5152, 0.0
        %v5231 = vmax.f32 %v5066, 0.0
        %v5232 = vmax.f32 %v5155, 0.0
        %v5233 = vmax.f32 %v5068, 0.0
        %v5234 = vmax.f32 %v5157, 0.0
        %v5235 = vmax.f32 %v5071, 0.0
        %v5236 = vmax.f32 %v5160, 0.0
        %v5237 = vmax.f32 %v5073, 0.0
        %v5238 = vmax.f32 %v5162, 0.0
        %v5239 = vmax.f32 %v5076, 0.0
        %v5240 = vmax.f32 %v5165, 0.0
        %v5241 = vmax.f32 %v5078, 0.0
        %v5242 = vmax.f32 %v5167, 0.0
        %v5243 = vmax.f32 %v5081, 0.0
        %v5244 = vmax.f32 %v5170, 0.0
        %v5245 = vmax.f32 %v5083, 0.0
        %v5246 = vmax.f32 %v5172, 0.0
        %v5247 = vmax.f32 %v5086, 0.0
        %v5248 = vmax.f32 %v5175, 0.0
        %v5249 = vmax.f32 %v5088, 0.0
        %v5250 = vmax.f32 %v5177, 0.0
        %v5251 = vmax.f32 %v5091, 0.0
        %v5252 = vmax.f32 %v5180, 0.0
        %v5253 = vmax.f32 %v5093, 0.0
        %v5254 = vmax.f32 %v5182, 0.0
        %v5255 = vmax.f32 %v5096, 0.0
        %v5256 = vmax.f32 %v5185, 0.0
        %v5257 = vmax.f32 %v5098, 0.0
        %v5258 = vmax.f32 %v5187, 0.0
        %v5259 = vmax.f32 %v5101, 0.0
        %v5260 = vmax.f32 %v5190, 0.0
        %v5261 = vmax.f32 %v5103, 0.0
        %v5262 = vmax.f32 %v5192, 0.0
        %v5263 = vmax.f32 %v5106, 0.0
        %v5264 = vmax.f32 %v5195, 0.0
        %v5265 = vmax.f32 %v5108, 0.0
        %v5266 = vmax.f32 %v5197, 0.0
        %v5267 = vmax.f32 %v5111, 0.0
        %v5268 = vmax.f32 %v5200, 0.0
        %v5269 = vmax.f32 %v5113, 0.0
        %v5270 = vmax.f32 %v5202, 0.0
        %v5271 = vmax.f32 %v5116, 0.0
        %v5272 = vmax.f32 %v5205, 0.0
        %v5273 = vmax.f32 %v5118, 0.0
        %v5274 = vmax.f32 %v5207, 0.0
        %v5275 = vmax.f32 %v5121, 0.0
        %v5276 = vmax.f32 %v5210, 0.0
        %v5277 = vmax.f32 %v5123, 0.0
        %v5278 = vmax.f32 %v5212, 0.0
        %v5279 = vmax.f32 %v5126, 0.0
        %v5280 = vmax.f32 %v5215, 0.0
        %v5281 = vmax.f32 %v5128, 0.0
        %v5282 = vmax.f32 %v5217, 0.0
        %v5283 = vpack.c.bf16 %v5221, %v5219
        %v5284 = vpack.c.bf16 %v5222, %v5220
        %v5285 = vpack.c.bf16 %v5225, %v5223
        %v5286 = vpack.c.bf16 %v5226, %v5224
        %v5287 = vpack.c.bf16 %v5229, %v5227
        %v5288 = vpack.c.bf16 %v5230, %v5228
        %v5289 = vpack.c.bf16 %v5233, %v5231
        %v5290 = vpack.c.bf16 %v5234, %v5232
        %v5291 = vpack.c.bf16 %v5237, %v5235
        %v5292 = vpack.c.bf16 %v5238, %v5236
        %v5293 = vpack.c.bf16 %v5241, %v5239
        %v5294 = vpack.c.bf16 %v5242, %v5240
        %v5295 = vpack.c.bf16 %v5245, %v5243
        %v5296 = vpack.c.bf16 %v5246, %v5244
        %v5297 = vpack.c.bf16 %v5249, %v5247
        %v5298 = vpack.c.bf16 %v5250, %v5248
        %v5299 = vpack.c.bf16 %v5253, %v5251
        %v5300 = vpack.c.bf16 %v5254, %v5252
        %v5301 = vpack.c.bf16 %v5257, %v5255
        %v5302 = vpack.c.bf16 %v5258, %v5256
        %v5303 = vpack.c.bf16 %v5261, %v5259
        %v5304 = vpack.c.bf16 %v5262, %v5260
        %v5305 = vpack.c.bf16 %v5265, %v5263
        %v5306 = vpack.c.bf16 %v5266, %v5264
        %v5307 = vpack.c.bf16 %v5269, %v5267
        %v5308 = vpack.c.bf16 %v5270, %v5268
        %v5309 = vpack.c.bf16 %v5273, %v5271
        %v5310 = vpack.c.bf16 %v5274, %v5272
        %v5311 = vpack.c.bf16 %v5277, %v5275
        %v5312 = vpack.c.bf16 %v5278, %v5276
        %v5313 = vpack.c.bf16 %v5281, %v5279
        %v5314 = vpack.c.bf16 %v5282, %v5280
        %v5315 = vld [vmem:[%s778 + $0x80] sm:$0xf]
        %v5316 = vld [vmem:[%s778 + $0x84] sm:$0xf]
        %v5317 = vld [vmem:[%s778 + $0x88] sm:$0xf]
        %v5318 = vld [vmem:[%s778 + $0x8c] sm:$0xf]
        %v5319 = vld [vmem:[%s778 + $0x90] sm:$0xf]
        %v5320 = vld [vmem:[%s778 + $0x94] sm:$0xf]
        %v5321 = vld [vmem:[%s778 + $0x98] sm:$0xf]
        %v5322 = vld [vmem:[%s778 + $0x9c] sm:$0xf]
        %v5323 = vld [vmem:[%s778 + $0xa0] sm:$0xf]
        %v5324 = vld [vmem:[%s778 + $0xa4] sm:$0xf]
        %v5325 = vld [vmem:[%s778 + $0xa8] sm:$0xf]
        %v5326 = vld [vmem:[%s778 + $0xac] sm:$0xf]
        %v5327 = vld [vmem:[%s778 + $0xb0] sm:$0xf]
        %v5328 = vld [vmem:[%s778 + $0xb4] sm:$0xf]
        %v5329 = vld [vmem:[%s778 + $0xb8] sm:$0xf]
        %v5330 = vld [vmem:[%s778 + $0xbc] sm:$0xf]
        %v5331 = vld [vmem:[%s778 + $0xc0] sm:$0xf]
        %v5332 = vld [vmem:[%s778 + $0xc4] sm:$0xf]
        %v5333 = vld [vmem:[%s778 + $0xc8] sm:$0xf]
        %v5334 = vld [vmem:[%s778 + $0xcc] sm:$0xf]
        %v5335 = vld [vmem:[%s778 + $0xd0] sm:$0xf]
        %v5336 = vld [vmem:[%s778 + $0xd4] sm:$0xf]
        %v5337 = vld [vmem:[%s778 + $0xd8] sm:$0xf]
        %v5338 = vld [vmem:[%s778 + $0xdc] sm:$0xf]
        %v5339 = vld [vmem:[%s778 + $0xe0] sm:$0xf]
        %v5340 = vld [vmem:[%s778 + $0xe4] sm:$0xf]
        %v5341 = vld [vmem:[%s778 + $0xe8] sm:$0xf]
        %v5342 = vld [vmem:[%s778 + $0xec] sm:$0xf]
        %v5343 = vld [vmem:[%s778 + $0xf0] sm:$0xf]
        %v5344 = vld [vmem:[%s778 + $0xf4] sm:$0xf]
        %v5345 = vld [vmem:[%s778 + $0xf8] sm:$0xf]
        %v5346 = vld [vmem:[%s778 + $0xfc] sm:$0xf]
        %v5379 = vunpack.c.l.b16 %v5315
        %v5380 = vunpack.c.l.b16 %v5316
        %v5381 = vunpack.c.l.b16 %v5317
        %v5382 = vunpack.c.l.b16 %v5318
        %v5383 = vunpack.c.l.b16 %v5319
        %v5384 = vunpack.c.l.b16 %v5320
        %v5385 = vunpack.c.l.b16 %v5321
        %v5386 = vunpack.c.l.b16 %v5322
        %v5387 = vunpack.c.l.b16 %v5323
        %v5388 = vunpack.c.l.b16 %v5324
        %v5389 = vunpack.c.l.b16 %v5325
        %v5390 = vunpack.c.l.b16 %v5326
        %v5391 = vunpack.c.l.b16 %v5327
        %v5392 = vunpack.c.l.b16 %v5328
        %v5393 = vunpack.c.l.b16 %v5329
        %v5394 = vunpack.c.l.b16 %v5330
        %v5395 = vunpack.c.l.b16 %v5331
        %v5396 = vunpack.c.l.b16 %v5332
        %v5397 = vunpack.c.l.b16 %v5333
        %v5398 = vunpack.c.l.b16 %v5334
        %v5399 = vunpack.c.l.b16 %v5335
        %v5400 = vunpack.c.l.b16 %v5336
        %v5401 = vunpack.c.l.b16 %v5337
        %v5402 = vunpack.c.l.b16 %v5338
        %v5403 = vunpack.c.l.b16 %v5339
        %v5404 = vunpack.c.l.b16 %v5340
        %v5405 = vunpack.c.l.b16 %v5341
        %v5406 = vunpack.c.l.b16 %v5342
        %v5407 = vunpack.c.l.b16 %v5343
        %v5408 = vunpack.c.l.b16 %v5344
        %v5409 = vunpack.c.l.b16 %v5345
        %v5410 = vunpack.c.l.b16 %v5346
        %v5411 = vpack.c.b16 %v5380, %v5379
        %v5412 = vpack.c.b16 %v5382, %v5381
        %v5413 = vpack.c.b16 %v5384, %v5383
        %v5414 = vpack.c.b16 %v5386, %v5385
        %v5415 = vpack.c.b16 %v5388, %v5387
        %v5416 = vpack.c.b16 %v5390, %v5389
        %v5417 = vpack.c.b16 %v5392, %v5391
        %v5418 = vpack.c.b16 %v5394, %v5393
        %v5419 = vpack.c.b16 %v5396, %v5395
        %v5420 = vpack.c.b16 %v5398, %v5397
        %v5421 = vpack.c.b16 %v5400, %v5399
        %v5422 = vpack.c.b16 %v5402, %v5401
        %v5423 = vpack.c.b16 %v5404, %v5403
        %v5424 = vpack.c.b16 %v5406, %v5405
        %v5425 = vpack.c.b16 %v5408, %v5407
        %v5426 = vpack.c.b16 %v5410, %v5409
        %5443 = vmatpush.bf16.msra.mxu0 %v5418
        %5444 = vmatpush.bf16.msra.mxu0 %v5417
        %5445 = vmatpush.bf16.msra.mxu0 %v5416
        %5446 = vmatpush.bf16.msra.mxu0 %v5415
        %5447 = vmatpush.bf16.msra.mxu0 %v5414
        %5448 = vmatpush.bf16.msra.mxu0 %v5413
        %5449 = vmatpush.bf16.msra.mxu0 %v5412
        %5450 = vmatpush.bf16.msra.mxu0 %v5411
        %5451 = vmatmul.bf16.gmra.mxu0 %v5283
        %v5452 = vpop.f32.mrf.mxu0
        %v5453 = vadd.f32 0.0, %v5452
        %v5454 = vpop.f32.mrf.mxu0
        %v5455 = vadd.f32 0.0, %v5454
        %5456 = vmatmul.bf16.gmra.mxu0 %v5285
        %v5457 = vpop.f32.mrf.mxu0
        %v5458 = vadd.f32 0.0, %v5457
        %v5459 = vpop.f32.mrf.mxu0
        %v5460 = vadd.f32 0.0, %v5459
        %5461 = vmatmul.bf16.gmra.mxu0 %v5287
        %v5462 = vpop.f32.mrf.mxu0
        %v5463 = vadd.f32 0.0, %v5462
        %v5464 = vpop.f32.mrf.mxu0
        %v5465 = vadd.f32 0.0, %v5464
        %5466 = vmatmul.bf16.gmra.mxu0 %v5289
        %v5467 = vpop.f32.mrf.mxu0
        %v5468 = vadd.f32 0.0, %v5467
        %v5469 = vpop.f32.mrf.mxu0
        %v5470 = vadd.f32 0.0, %v5469
        %5471 = vmatmul.bf16.gmra.mxu0 %v5291
        %v5472 = vpop.f32.mrf.mxu0
        %v5473 = vadd.f32 0.0, %v5472
        %v5474 = vpop.f32.mrf.mxu0
        %v5475 = vadd.f32 0.0, %v5474
        %5476 = vmatmul.bf16.gmra.mxu0 %v5293
        %v5477 = vpop.f32.mrf.mxu0
        %v5478 = vadd.f32 0.0, %v5477
        %v5479 = vpop.f32.mrf.mxu0
        %v5480 = vadd.f32 0.0, %v5479
        %5481 = vmatmul.bf16.gmra.mxu0 %v5295
        %v5482 = vpop.f32.mrf.mxu0
        %v5483 = vadd.f32 0.0, %v5482
        %v5484 = vpop.f32.mrf.mxu0
        %v5485 = vadd.f32 0.0, %v5484
        %5486 = vmatmul.bf16.gmra.mxu0 %v5297
        %v5487 = vpop.f32.mrf.mxu0
        %v5488 = vadd.f32 0.0, %v5487
        %v5489 = vpop.f32.mrf.mxu0
        %v5490 = vadd.f32 0.0, %v5489
        %5491 = vmatmul.bf16.gmra.mxu0 %v5299
        %v5492 = vpop.f32.mrf.mxu0
        %v5493 = vadd.f32 0.0, %v5492
        %v5494 = vpop.f32.mrf.mxu0
        %v5495 = vadd.f32 0.0, %v5494
        %5496 = vmatmul.bf16.gmra.mxu0 %v5301
        %v5497 = vpop.f32.mrf.mxu0
        %v5498 = vadd.f32 0.0, %v5497
        %v5499 = vpop.f32.mrf.mxu0
        %v5500 = vadd.f32 0.0, %v5499
        %5501 = vmatmul.bf16.gmra.mxu0 %v5303
        %v5502 = vpop.f32.mrf.mxu0
        %v5503 = vadd.f32 0.0, %v5502
        %v5504 = vpop.f32.mrf.mxu0
        %v5505 = vadd.f32 0.0, %v5504
        %5506 = vmatmul.bf16.gmra.mxu0 %v5305
        %v5507 = vpop.f32.mrf.mxu0
        %v5508 = vadd.f32 0.0, %v5507
        %v5509 = vpop.f32.mrf.mxu0
        %v5510 = vadd.f32 0.0, %v5509
        %5511 = vmatmul.bf16.gmra.mxu0 %v5307
        %v5512 = vpop.f32.mrf.mxu0
        %v5513 = vadd.f32 0.0, %v5512
        %v5514 = vpop.f32.mrf.mxu0
        %v5515 = vadd.f32 0.0, %v5514
        %5516 = vmatmul.bf16.gmra.mxu0 %v5309
        %v5517 = vpop.f32.mrf.mxu0
        %v5518 = vadd.f32 0.0, %v5517
        %v5519 = vpop.f32.mrf.mxu0
        %v5520 = vadd.f32 0.0, %v5519
        %5521 = vmatmul.bf16.gmra.mxu0 %v5311
        %v5522 = vpop.f32.mrf.mxu0
        %v5523 = vadd.f32 0.0, %v5522
        %v5524 = vpop.f32.mrf.mxu0
        %v5525 = vadd.f32 0.0, %v5524
        %5526 = vmatmul.bf16.gmra.mxu0 %v5313
        %v5527 = vpop.f32.mrf.mxu0
        %v5528 = vadd.f32 0.0, %v5527
        %v5529 = vpop.f32.mrf.mxu0
        %v5530 = vadd.f32 0.0, %v5529
        %5531 = vdwg.mxu0
        %5532 = vmatpush.bf16.msra.mxu0 %v5426
        %5533 = vmatpush.bf16.msra.mxu0 %v5425
        %5534 = vmatpush.bf16.msra.mxu0 %v5424
        %5535 = vmatpush.bf16.msra.mxu0 %v5423
        %5536 = vmatpush.bf16.msra.mxu0 %v5422
        %5537 = vmatpush.bf16.msra.mxu0 %v5421
        %5538 = vmatpush.bf16.msra.mxu0 %v5420
        %5539 = vmatpush.bf16.msra.mxu0 %v5419
        %5540 = vmatmul.bf16.gmra.mxu0 %v5284
        %v5541 = vpop.f32.mrf.mxu0
        %v5542 = vadd.f32 %v5453, %v5541
        %v5543 = vpop.f32.mrf.mxu0
        %v5544 = vadd.f32 %v5455, %v5543
        %5545 = vmatmul.bf16.gmra.mxu0 %v5286
        %v5546 = vpop.f32.mrf.mxu0
        %v5547 = vadd.f32 %v5458, %v5546
        %v5548 = vpop.f32.mrf.mxu0
        %v5549 = vadd.f32 %v5460, %v5548
        %5550 = vmatmul.bf16.gmra.mxu0 %v5288
        %v5551 = vpop.f32.mrf.mxu0
        %v5552 = vadd.f32 %v5463, %v5551
        %v5553 = vpop.f32.mrf.mxu0
        %v5554 = vadd.f32 %v5465, %v5553
        %5555 = vmatmul.bf16.gmra.mxu0 %v5290
        %v5556 = vpop.f32.mrf.mxu0
        %v5557 = vadd.f32 %v5468, %v5556
        %v5558 = vpop.f32.mrf.mxu0
        %v5559 = vadd.f32 %v5470, %v5558
        %5560 = vmatmul.bf16.gmra.mxu0 %v5292
        %v5561 = vpop.f32.mrf.mxu0
        %v5562 = vadd.f32 %v5473, %v5561
        %v5563 = vpop.f32.mrf.mxu0
        %v5564 = vadd.f32 %v5475, %v5563
        %5565 = vmatmul.bf16.gmra.mxu0 %v5294
        %v5566 = vpop.f32.mrf.mxu0
        %v5567 = vadd.f32 %v5478, %v5566
        %v5568 = vpop.f32.mrf.mxu0
        %v5569 = vadd.f32 %v5480, %v5568
        %5570 = vmatmul.bf16.gmra.mxu0 %v5296
        %v5571 = vpop.f32.mrf.mxu0
        %v5572 = vadd.f32 %v5483, %v5571
        %v5573 = vpop.f32.mrf.mxu0
        %v5574 = vadd.f32 %v5485, %v5573
        %5575 = vmatmul.bf16.gmra.mxu0 %v5298
        %v5576 = vpop.f32.mrf.mxu0
        %v5577 = vadd.f32 %v5488, %v5576
        %v5578 = vpop.f32.mrf.mxu0
        %v5579 = vadd.f32 %v5490, %v5578
        %5580 = vmatmul.bf16.gmra.mxu0 %v5300
        %v5581 = vpop.f32.mrf.mxu0
        %v5582 = vadd.f32 %v5493, %v5581
        %v5583 = vpop.f32.mrf.mxu0
        %v5584 = vadd.f32 %v5495, %v5583
        %5585 = vmatmul.bf16.gmra.mxu0 %v5302
        %v5586 = vpop.f32.mrf.mxu0
        %v5587 = vadd.f32 %v5498, %v5586
        %v5588 = vpop.f32.mrf.mxu0
        %v5589 = vadd.f32 %v5500, %v5588
        %5590 = vmatmul.bf16.gmra.mxu0 %v5304
        %v5591 = vpop.f32.mrf.mxu0
        %v5592 = vadd.f32 %v5503, %v5591
        %v5593 = vpop.f32.mrf.mxu0
        %v5594 = vadd.f32 %v5505, %v5593
        %5595 = vmatmul.bf16.gmra.mxu0 %v5306
        %v5596 = vpop.f32.mrf.mxu0
        %v5597 = vadd.f32 %v5508, %v5596
        %v5598 = vpop.f32.mrf.mxu0
        %v5599 = vadd.f32 %v5510, %v5598
        %5600 = vmatmul.bf16.gmra.mxu0 %v5308
        %v5601 = vpop.f32.mrf.mxu0
        %v5602 = vadd.f32 %v5513, %v5601
        %v5603 = vpop.f32.mrf.mxu0
        %v5604 = vadd.f32 %v5515, %v5603
        %5605 = vmatmul.bf16.gmra.mxu0 %v5310
        %v5606 = vpop.f32.mrf.mxu0
        %v5607 = vadd.f32 %v5518, %v5606
        %v5608 = vpop.f32.mrf.mxu0
        %v5609 = vadd.f32 %v5520, %v5608
        %5610 = vmatmul.bf16.gmra.mxu0 %v5312
        %v5611 = vpop.f32.mrf.mxu0
        %v5612 = vadd.f32 %v5523, %v5611
        %v5613 = vpop.f32.mrf.mxu0
        %v5614 = vadd.f32 %v5525, %v5613
        %5615 = vmatmul.bf16.gmra.mxu0 %v5314
        %v5616 = vpop.f32.mrf.mxu0
        %v5617 = vadd.f32 %v5528, %v5616
        %v5618 = vpop.f32.mrf.mxu0
        %v5619 = vadd.f32 %v5530, %v5618
        %5620 = vdwg.mxu0
        %v5653 = vunpack.c.l.b16 %v4907
        %v5654 = vunpack.c.l.b16 %v4908
        %v5655 = vunpack.c.l.b16 %v4909
        %v5656 = vunpack.c.l.b16 %v4910
        %v5657 = vunpack.c.l.b16 %v4911
        %v5658 = vunpack.c.l.b16 %v4912
        %v5659 = vunpack.c.l.b16 %v4913
        %v5660 = vunpack.c.l.b16 %v4914
        %v5661 = vunpack.c.l.b16 %v4915
        %v5662 = vunpack.c.l.b16 %v4916
        %v5663 = vunpack.c.l.b16 %v4917
        %v5664 = vunpack.c.l.b16 %v4918
        %v5665 = vunpack.c.l.b16 %v4919
        %v5666 = vunpack.c.l.b16 %v4920
        %v5667 = vunpack.c.l.b16 %v4921
        %v5668 = vunpack.c.l.b16 %v4922
        %v5669 = vunpack.c.l.b16 %v4923
        %v5670 = vunpack.c.l.b16 %v4924
        %v5671 = vunpack.c.l.b16 %v4925
        %v5672 = vunpack.c.l.b16 %v4926
        %v5673 = vunpack.c.l.b16 %v4927
        %v5674 = vunpack.c.l.b16 %v4928
        %v5675 = vunpack.c.l.b16 %v4929
        %v5676 = vunpack.c.l.b16 %v4930
        %v5677 = vunpack.c.l.b16 %v4931
        %v5678 = vunpack.c.l.b16 %v4932
        %v5679 = vunpack.c.l.b16 %v4933
        %v5680 = vunpack.c.l.b16 %v4934
        %v5681 = vunpack.c.l.b16 %v4935
        %v5682 = vunpack.c.l.b16 %v4936
        %v5683 = vunpack.c.l.b16 %v4937
        %v5684 = vunpack.c.l.b16 %v4938
        %v5685 = vpack.c.b16 %v5654, %v5653
        %v5686 = vpack.c.b16 %v5656, %v5655
        %v5687 = vpack.c.b16 %v5658, %v5657
        %v5688 = vpack.c.b16 %v5660, %v5659
        %v5689 = vpack.c.b16 %v5662, %v5661
        %v5690 = vpack.c.b16 %v5664, %v5663
        %v5691 = vpack.c.b16 %v5666, %v5665
        %v5692 = vpack.c.b16 %v5668, %v5667
        %v5693 = vpack.c.b16 %v5670, %v5669
        %v5694 = vpack.c.b16 %v5672, %v5671
        %v5695 = vpack.c.b16 %v5674, %v5673
        %v5696 = vpack.c.b16 %v5676, %v5675
        %v5697 = vpack.c.b16 %v5678, %v5677
        %v5698 = vpack.c.b16 %v5680, %v5679
        %v5699 = vpack.c.b16 %v5682, %v5681
        %v5700 = vpack.c.b16 %v5684, %v5683
        %5717 = vmatpush.bf16.msra.mxu0 %v5692
        %5718 = vmatpush.bf16.msra.mxu0 %v5691
        %5719 = vmatpush.bf16.msra.mxu0 %v5690
        %5720 = vmatpush.bf16.msra.mxu0 %v5689
        %5721 = vmatpush.bf16.msra.mxu0 %v5688
        %5722 = vmatpush.bf16.msra.mxu0 %v5687
        %5723 = vmatpush.bf16.msra.mxu0 %v5686
        %5724 = vmatpush.bf16.msra.mxu0 %v5685
        %5725 = vmatmul.bf16.gmra.mxu0 %v4875
        %v5726 = vpop.f32.mrf.mxu0
        %v5727 = vadd.f32 %v5542, %v5726
        %v5728 = vpop.f32.mrf.mxu0
        %v5729 = vadd.f32 %v5544, %v5728
        %5730 = vmatmul.bf16.gmra.mxu0 %v4877
        %v5731 = vpop.f32.mrf.mxu0
        %v5732 = vadd.f32 %v5547, %v5731
        %v5733 = vpop.f32.mrf.mxu0
        %v5734 = vadd.f32 %v5549, %v5733
        %5735 = vmatmul.bf16.gmra.mxu0 %v4879
        %v5736 = vpop.f32.mrf.mxu0
        %v5737 = vadd.f32 %v5552, %v5736
        %v5738 = vpop.f32.mrf.mxu0
        %v5739 = vadd.f32 %v5554, %v5738
        %5740 = vmatmul.bf16.gmra.mxu0 %v4881
        %v5741 = vpop.f32.mrf.mxu0
        %v5742 = vadd.f32 %v5557, %v5741
        %v5743 = vpop.f32.mrf.mxu0
        %v5744 = vadd.f32 %v5559, %v5743
        %5745 = vmatmul.bf16.gmra.mxu0 %v4883
        %v5746 = vpop.f32.mrf.mxu0
        %v5747 = vadd.f32 %v5562, %v5746
        %v5748 = vpop.f32.mrf.mxu0
        %v5749 = vadd.f32 %v5564, %v5748
        %5750 = vmatmul.bf16.gmra.mxu0 %v4885
        %v5751 = vpop.f32.mrf.mxu0
        %v5752 = vadd.f32 %v5567, %v5751
        %v5753 = vpop.f32.mrf.mxu0
        %v5754 = vadd.f32 %v5569, %v5753
        %5755 = vmatmul.bf16.gmra.mxu0 %v4887
        %v5756 = vpop.f32.mrf.mxu0
        %v5757 = vadd.f32 %v5572, %v5756
        %v5758 = vpop.f32.mrf.mxu0
        %v5759 = vadd.f32 %v5574, %v5758
        %5760 = vmatmul.bf16.gmra.mxu0 %v4889
        %v5761 = vpop.f32.mrf.mxu0
        %v5762 = vadd.f32 %v5577, %v5761
        %v5763 = vpop.f32.mrf.mxu0
        %v5764 = vadd.f32 %v5579, %v5763
        %5765 = vmatmul.bf16.gmra.mxu0 %v4891
        %v5766 = vpop.f32.mrf.mxu0
        %v5767 = vadd.f32 %v5582, %v5766
        %v5768 = vpop.f32.mrf.mxu0
        %v5769 = vadd.f32 %v5584, %v5768
        %5770 = vmatmul.bf16.gmra.mxu0 %v4893
        %v5771 = vpop.f32.mrf.mxu0
        %v5772 = vadd.f32 %v5587, %v5771
        %v5773 = vpop.f32.mrf.mxu0
        %v5774 = vadd.f32 %v5589, %v5773
        %5775 = vmatmul.bf16.gmra.mxu0 %v4895
        %v5776 = vpop.f32.mrf.mxu0
        %v5777 = vadd.f32 %v5592, %v5776
        %v5778 = vpop.f32.mrf.mxu0
        %v5779 = vadd.f32 %v5594, %v5778
        %5780 = vmatmul.bf16.gmra.mxu0 %v4897
        %v5781 = vpop.f32.mrf.mxu0
        %v5782 = vadd.f32 %v5597, %v5781
        %v5783 = vpop.f32.mrf.mxu0
        %v5784 = vadd.f32 %v5599, %v5783
        %5785 = vmatmul.bf16.gmra.mxu0 %v4899
        %v5786 = vpop.f32.mrf.mxu0
        %v5787 = vadd.f32 %v5602, %v5786
        %v5788 = vpop.f32.mrf.mxu0
        %v5789 = vadd.f32 %v5604, %v5788
        %5790 = vmatmul.bf16.gmra.mxu0 %v4901
        %v5791 = vpop.f32.mrf.mxu0
        %v5792 = vadd.f32 %v5607, %v5791
        %v5793 = vpop.f32.mrf.mxu0
        %v5794 = vadd.f32 %v5609, %v5793
        %5795 = vmatmul.bf16.gmra.mxu0 %v4903
        %v5796 = vpop.f32.mrf.mxu0
        %v5797 = vadd.f32 %v5612, %v5796
        %v5798 = vpop.f32.mrf.mxu0
        %v5799 = vadd.f32 %v5614, %v5798
        %5800 = vmatmul.bf16.gmra.mxu0 %v4905
        %v5801 = vpop.f32.mrf.mxu0
        %v5802 = vadd.f32 %v5617, %v5801
        %v5803 = vpop.f32.mrf.mxu0
        %v5804 = vadd.f32 %v5619, %v5803
        %5805 = vdwg.mxu0
        %5806 = vmatpush.bf16.msra.mxu0 %v5700
        %5807 = vmatpush.bf16.msra.mxu0 %v5699
        %5808 = vmatpush.bf16.msra.mxu0 %v5698
        %5809 = vmatpush.bf16.msra.mxu0 %v5697
        %5810 = vmatpush.bf16.msra.mxu0 %v5696
        %5811 = vmatpush.bf16.msra.mxu0 %v5695
        %5812 = vmatpush.bf16.msra.mxu0 %v5694
        %5813 = vmatpush.bf16.msra.mxu0 %v5693
        %5814 = vmatmul.bf16.gmra.mxu0 %v4876
        %v5815 = vpop.f32.mrf.mxu0
        %v5816 = vadd.f32 %v5727, %v5815
        %v5817 = vpop.f32.mrf.mxu0
        %v5818 = vadd.f32 %v5729, %v5817
        %5819 = vmatmul.bf16.gmra.mxu0 %v4878
        %v5820 = vpop.f32.mrf.mxu0
        %v5821 = vadd.f32 %v5732, %v5820
        %v5822 = vpop.f32.mrf.mxu0
        %v5823 = vadd.f32 %v5734, %v5822
        %5824 = vmatmul.bf16.gmra.mxu0 %v4880
        %v5825 = vpop.f32.mrf.mxu0
        %v5826 = vadd.f32 %v5737, %v5825
        %v5827 = vpop.f32.mrf.mxu0
        %v5828 = vadd.f32 %v5739, %v5827
        %5829 = vmatmul.bf16.gmra.mxu0 %v4882
        %v5830 = vpop.f32.mrf.mxu0
        %v5831 = vadd.f32 %v5742, %v5830
        %v5832 = vpop.f32.mrf.mxu0
        %v5833 = vadd.f32 %v5744, %v5832
        %5834 = vmatmul.bf16.gmra.mxu0 %v4884
        %v5835 = vpop.f32.mrf.mxu0
        %v5836 = vadd.f32 %v5747, %v5835
        %v5837 = vpop.f32.mrf.mxu0
        %v5838 = vadd.f32 %v5749, %v5837
        %5839 = vmatmul.bf16.gmra.mxu0 %v4886
        %v5840 = vpop.f32.mrf.mxu0
        %v5841 = vadd.f32 %v5752, %v5840
        %v5842 = vpop.f32.mrf.mxu0
        %v5843 = vadd.f32 %v5754, %v5842
        %5844 = vmatmul.bf16.gmra.mxu0 %v4888
        %v5845 = vpop.f32.mrf.mxu0
        %v5846 = vadd.f32 %v5757, %v5845
        %v5847 = vpop.f32.mrf.mxu0
        %v5848 = vadd.f32 %v5759, %v5847
        %5849 = vmatmul.bf16.gmra.mxu0 %v4890
        %v5850 = vpop.f32.mrf.mxu0
        %v5851 = vadd.f32 %v5762, %v5850
        %v5852 = vpop.f32.mrf.mxu0
        %v5853 = vadd.f32 %v5764, %v5852
        %5854 = vmatmul.bf16.gmra.mxu0 %v4892
        %v5855 = vpop.f32.mrf.mxu0
        %v5856 = vadd.f32 %v5767, %v5855
        %v5857 = vpop.f32.mrf.mxu0
        %v5858 = vadd.f32 %v5769, %v5857
        %5859 = vmatmul.bf16.gmra.mxu0 %v4894
        %v5860 = vpop.f32.mrf.mxu0
        %v5861 = vadd.f32 %v5772, %v5860
        %v5862 = vpop.f32.mrf.mxu0
        %v5863 = vadd.f32 %v5774, %v5862
        %5864 = vmatmul.bf16.gmra.mxu0 %v4896
        %v5865 = vpop.f32.mrf.mxu0
        %v5866 = vadd.f32 %v5777, %v5865
        %v5867 = vpop.f32.mrf.mxu0
        %v5868 = vadd.f32 %v5779, %v5867
        %5869 = vmatmul.bf16.gmra.mxu0 %v4898
        %v5870 = vpop.f32.mrf.mxu0
        %v5871 = vadd.f32 %v5782, %v5870
        %v5872 = vpop.f32.mrf.mxu0
        %v5873 = vadd.f32 %v5784, %v5872
        %5874 = vmatmul.bf16.gmra.mxu0 %v4900
        %v5875 = vpop.f32.mrf.mxu0
        %v5876 = vadd.f32 %v5787, %v5875
        %v5877 = vpop.f32.mrf.mxu0
        %v5878 = vadd.f32 %v5789, %v5877
        %5879 = vmatmul.bf16.gmra.mxu0 %v4902
        %v5880 = vpop.f32.mrf.mxu0
        %v5881 = vadd.f32 %v5792, %v5880
        %v5882 = vpop.f32.mrf.mxu0
        %v5883 = vadd.f32 %v5794, %v5882
        %5884 = vmatmul.bf16.gmra.mxu0 %v4904
        %v5885 = vpop.f32.mrf.mxu0
        %v5886 = vadd.f32 %v5797, %v5885
        %v5887 = vpop.f32.mrf.mxu0
        %v5888 = vadd.f32 %v5799, %v5887
        %5889 = vmatmul.bf16.gmra.mxu0 %v4906
        %v5890 = vpop.f32.mrf.mxu0
        %v5891 = vadd.f32 %v5802, %v5890
        %v5892 = vpop.f32.mrf.mxu0
        %v5893 = vadd.f32 %v5804, %v5892
        %5894 = vdwg.mxu0
        %v5895 = vld [vmem:[%s769 + $0x10] sm:$0xff]
        %v5896 = vld [vmem:[%s769 + $0x50] sm:$0xff]
        %v5897 = vld [vmem:[%s769 + $0x90] sm:$0xff]
        %v5898 = vld [vmem:[%s769 + $0xd0] sm:$0xff]
        %v5899 = vld [vmem:[%s769 + $0x110] sm:$0xff]
        %v5900 = vld [vmem:[%s769 + $0x150] sm:$0xff]
        %v5901 = vld [vmem:[%s769 + $0x190] sm:$0xff]
        %v5902 = vld [vmem:[%s769 + $0x1d0] sm:$0xff]
        %v5903 = vld [vmem:[%s769 + $0x210] sm:$0xff]
        %v5904 = vld [vmem:[%s769 + $0x250] sm:$0xff]
        %v5905 = vld [vmem:[%s769 + $0x290] sm:$0xff]
        %v5906 = vld [vmem:[%s769 + $0x2d0] sm:$0xff]
        %v5907 = vld [vmem:[%s769 + $0x310] sm:$0xff]
        %v5908 = vld [vmem:[%s769 + $0x350] sm:$0xff]
        %v5909 = vld [vmem:[%s769 + $0x390] sm:$0xff]
        %v5910 = vld [vmem:[%s769 + $0x3d0] sm:$0xff]
        %v5911 = vld [vmem:[%s773 + $0x4] sm:$0x3]
        %v5913 = vperm.slane %v5911, 0
        %v5914 = vperm.slane %v5911, 1
        %v5933 = vunpack.c.l.b16 %v5895
        %v5934 = vunpack.c.h.b16 %v5895
        %v5935 = vunpack.c.l.b16 %v5896
        %v5936 = vunpack.c.h.b16 %v5896
        %v5937 = vunpack.c.l.b16 %v5897
        %v5938 = vunpack.c.h.b16 %v5897
        %v5939 = vunpack.c.l.b16 %v5898
        %v5940 = vunpack.c.h.b16 %v5898
        %v5941 = vunpack.c.l.b16 %v5899
        %v5942 = vunpack.c.h.b16 %v5899
        %v5943 = vunpack.c.l.b16 %v5900
        %v5944 = vunpack.c.h.b16 %v5900
        %v5945 = vunpack.c.l.b16 %v5901
        %v5946 = vunpack.c.h.b16 %v5901
        %v5947 = vunpack.c.l.b16 %v5902
        %v5948 = vunpack.c.h.b16 %v5902
        %v5949 = vunpack.c.l.b16 %v5903
        %v5950 = vunpack.c.h.b16 %v5903
        %v5951 = vunpack.c.l.b16 %v5904
        %v5952 = vunpack.c.h.b16 %v5904
        %v5953 = vunpack.c.l.b16 %v5905
        %v5954 = vunpack.c.h.b16 %v5905
        %v5955 = vunpack.c.l.b16 %v5906
        %v5956 = vunpack.c.h.b16 %v5906
        %v5957 = vunpack.c.l.b16 %v5907
        %v5958 = vunpack.c.h.b16 %v5907
        %v5959 = vunpack.c.l.b16 %v5908
        %v5960 = vunpack.c.h.b16 %v5908
        %v5961 = vunpack.c.l.b16 %v5909
        %v5962 = vunpack.c.h.b16 %v5909
        %v5963 = vunpack.c.l.b16 %v5910
        %v5964 = vunpack.c.h.b16 %v5910
        %v5965 = vpack.c.b16 %v5935, %v5933
        %v5966 = vpack.c.b16 %v5936, %v5934
        %v5967 = vpack.c.b16 %v5939, %v5937
        %v5968 = vpack.c.b16 %v5940, %v5938
        %v5969 = vpack.c.b16 %v5943, %v5941
        %v5970 = vpack.c.b16 %v5944, %v5942
        %v5971 = vpack.c.b16 %v5947, %v5945
        %v5972 = vpack.c.b16 %v5948, %v5946
        %v5973 = vpack.c.b16 %v5951, %v5949
        %v5974 = vpack.c.b16 %v5952, %v5950
        %v5975 = vpack.c.b16 %v5955, %v5953
        %v5976 = vpack.c.b16 %v5956, %v5954
        %v5977 = vpack.c.b16 %v5959, %v5957
        %v5978 = vpack.c.b16 %v5960, %v5958
        %v5979 = vpack.c.b16 %v5963, %v5961
        %v5980 = vpack.c.b16 %v5964, %v5962
        %5997 = vmatpush.bf16.msra.mxu0 %v5979
        %5998 = vmatpush.bf16.msra.mxu0 %v5977
        %5999 = vmatpush.bf16.msra.mxu0 %v5975
        %6000 = vmatpush.bf16.msra.mxu0 %v5973
        %6001 = vmatpush.bf16.msra.mxu0 %v5971
        %6002 = vmatpush.bf16.msra.mxu0 %v5969
        %6003 = vmatpush.bf16.msra.mxu0 %v5967
        %6004 = vmatpush.bf16.msra.mxu0 %v5965
        %6005 = vmatmul.bf16.gmra.mxu0 %v4515
        %v6006 = vpop.f32.mrf.mxu0
        %v6007 = vadd.f32 %v5913, %v6006
        %v6008 = vpop.f32.mrf.mxu0
        %v6009 = vadd.f32 %v5913, %v6008
        %6010 = vmatmul.bf16.gmra.mxu0 %v4516
        %v6011 = vpop.f32.mrf.mxu0
        %v6012 = vadd.f32 %v5913, %v6011
        %v6013 = vpop.f32.mrf.mxu0
        %v6014 = vadd.f32 %v5913, %v6013
        %6015 = vmatmul.bf16.gmra.mxu0 %v4517
        %v6016 = vpop.f32.mrf.mxu0
        %v6017 = vadd.f32 %v5913, %v6016
        %v6018 = vpop.f32.mrf.mxu0
        %v6019 = vadd.f32 %v5913, %v6018
        %6020 = vmatmul.bf16.gmra.mxu0 %v4518
        %v6021 = vpop.f32.mrf.mxu0
        %v6022 = vadd.f32 %v5913, %v6021
        %v6023 = vpop.f32.mrf.mxu0
        %v6024 = vadd.f32 %v5913, %v6023
        %6025 = vmatmul.bf16.gmra.mxu0 %v4519
        %v6026 = vpop.f32.mrf.mxu0
        %v6027 = vadd.f32 %v5913, %v6026
        %v6028 = vpop.f32.mrf.mxu0
        %v6029 = vadd.f32 %v5913, %v6028
        %6030 = vmatmul.bf16.gmra.mxu0 %v4520
        %v6031 = vpop.f32.mrf.mxu0
        %v6032 = vadd.f32 %v5913, %v6031
        %v6033 = vpop.f32.mrf.mxu0
        %v6034 = vadd.f32 %v5913, %v6033
        %6035 = vmatmul.bf16.gmra.mxu0 %v4521
        %v6036 = vpop.f32.mrf.mxu0
        %v6037 = vadd.f32 %v5913, %v6036
        %v6038 = vpop.f32.mrf.mxu0
        %v6039 = vadd.f32 %v5913, %v6038
        %6040 = vmatmul.bf16.gmra.mxu0 %v4522
        %v6041 = vpop.f32.mrf.mxu0
        %v6042 = vadd.f32 %v5913, %v6041
        %v6043 = vpop.f32.mrf.mxu0
        %v6044 = vadd.f32 %v5913, %v6043
        %6045 = vmatmul.bf16.gmra.mxu0 %v4523
        %v6046 = vpop.f32.mrf.mxu0
        %v6047 = vadd.f32 %v5913, %v6046
        %v6048 = vpop.f32.mrf.mxu0
        %v6049 = vadd.f32 %v5913, %v6048
        %6050 = vmatmul.bf16.gmra.mxu0 %v4524
        %v6051 = vpop.f32.mrf.mxu0
        %v6052 = vadd.f32 %v5913, %v6051
        %v6053 = vpop.f32.mrf.mxu0
        %v6054 = vadd.f32 %v5913, %v6053
        %6055 = vmatmul.bf16.gmra.mxu0 %v4525
        %v6056 = vpop.f32.mrf.mxu0
        %v6057 = vadd.f32 %v5913, %v6056
        %v6058 = vpop.f32.mrf.mxu0
        %v6059 = vadd.f32 %v5913, %v6058
        %6060 = vmatmul.bf16.gmra.mxu0 %v4526
        %v6061 = vpop.f32.mrf.mxu0
        %v6062 = vadd.f32 %v5913, %v6061
        %v6063 = vpop.f32.mrf.mxu0
        %v6064 = vadd.f32 %v5913, %v6063
        %6065 = vmatmul.bf16.gmra.mxu0 %v4527
        %v6066 = vpop.f32.mrf.mxu0
        %v6067 = vadd.f32 %v5913, %v6066
        %v6068 = vpop.f32.mrf.mxu0
        %v6069 = vadd.f32 %v5913, %v6068
        %6070 = vmatmul.bf16.gmra.mxu0 %v4528
        %v6071 = vpop.f32.mrf.mxu0
        %v6072 = vadd.f32 %v5913, %v6071
        %v6073 = vpop.f32.mrf.mxu0
        %v6074 = vadd.f32 %v5913, %v6073
        %6075 = vmatmul.bf16.gmra.mxu0 %v4529
        %v6076 = vpop.f32.mrf.mxu0
        %v6077 = vadd.f32 %v5913, %v6076
        %v6078 = vpop.f32.mrf.mxu0
        %v6079 = vadd.f32 %v5913, %v6078
        %6080 = vmatmul.bf16.gmra.mxu0 %v4530
        %v6081 = vpop.f32.mrf.mxu0
        %v6082 = vadd.f32 %v5913, %v6081
        %v6083 = vpop.f32.mrf.mxu0
        %v6084 = vadd.f32 %v5913, %v6083
        %6085 = vdwg.mxu0
        %6086 = vmatpush.bf16.msra.mxu0 %v5980
        %6087 = vmatpush.bf16.msra.mxu0 %v5978
        %6088 = vmatpush.bf16.msra.mxu0 %v5976
        %6089 = vmatpush.bf16.msra.mxu0 %v5974
        %6090 = vmatpush.bf16.msra.mxu0 %v5972
        %6091 = vmatpush.bf16.msra.mxu0 %v5970
        %6092 = vmatpush.bf16.msra.mxu0 %v5968
        %6093 = vmatpush.bf16.msra.mxu0 %v5966
        %6094 = vmatmul.bf16.gmra.mxu0 %v4515
        %v6095 = vpop.f32.mrf.mxu0
        %v6096 = vadd.f32 %v5914, %v6095
        %v6097 = vpop.f32.mrf.mxu0
        %v6098 = vadd.f32 %v5914, %v6097
        %6099 = vmatmul.bf16.gmra.mxu0 %v4516
        %v6100 = vpop.f32.mrf.mxu0
        %v6101 = vadd.f32 %v5914, %v6100
        %v6102 = vpop.f32.mrf.mxu0
        %v6103 = vadd.f32 %v5914, %v6102
        %6104 = vmatmul.bf16.gmra.mxu0 %v4517
        %v6105 = vpop.f32.mrf.mxu0
        %v6106 = vadd.f32 %v5914, %v6105
        %v6107 = vpop.f32.mrf.mxu0
        %v6108 = vadd.f32 %v5914, %v6107
        %6109 = vmatmul.bf16.gmra.mxu0 %v4518
        %v6110 = vpop.f32.mrf.mxu0
        %v6111 = vadd.f32 %v5914, %v6110
        %v6112 = vpop.f32.mrf.mxu0
        %v6113 = vadd.f32 %v5914, %v6112
        %6114 = vmatmul.bf16.gmra.mxu0 %v4519
        %v6115 = vpop.f32.mrf.mxu0
        %v6116 = vadd.f32 %v5914, %v6115
        %v6117 = vpop.f32.mrf.mxu0
        %v6118 = vadd.f32 %v5914, %v6117
        %6119 = vmatmul.bf16.gmra.mxu0 %v4520
        %v6120 = vpop.f32.mrf.mxu0
        %v6121 = vadd.f32 %v5914, %v6120
        %v6122 = vpop.f32.mrf.mxu0
        %v6123 = vadd.f32 %v5914, %v6122
        %6124 = vmatmul.bf16.gmra.mxu0 %v4521
        %v6125 = vpop.f32.mrf.mxu0
        %v6126 = vadd.f32 %v5914, %v6125
        %v6127 = vpop.f32.mrf.mxu0
        %v6128 = vadd.f32 %v5914, %v6127
        %6129 = vmatmul.bf16.gmra.mxu0 %v4522
        %v6130 = vpop.f32.mrf.mxu0
        %v6131 = vadd.f32 %v5914, %v6130
        %v6132 = vpop.f32.mrf.mxu0
        %v6133 = vadd.f32 %v5914, %v6132
        %6134 = vmatmul.bf16.gmra.mxu0 %v4523
        %v6135 = vpop.f32.mrf.mxu0
        %v6136 = vadd.f32 %v5914, %v6135
        %v6137 = vpop.f32.mrf.mxu0
        %v6138 = vadd.f32 %v5914, %v6137
        %6139 = vmatmul.bf16.gmra.mxu0 %v4524
        %v6140 = vpop.f32.mrf.mxu0
        %v6141 = vadd.f32 %v5914, %v6140
        %v6142 = vpop.f32.mrf.mxu0
        %v6143 = vadd.f32 %v5914, %v6142
        %6144 = vmatmul.bf16.gmra.mxu0 %v4525
        %v6145 = vpop.f32.mrf.mxu0
        %v6146 = vadd.f32 %v5914, %v6145
        %v6147 = vpop.f32.mrf.mxu0
        %v6148 = vadd.f32 %v5914, %v6147
        %6149 = vmatmul.bf16.gmra.mxu0 %v4526
        %v6150 = vpop.f32.mrf.mxu0
        %v6151 = vadd.f32 %v5914, %v6150
        %v6152 = vpop.f32.mrf.mxu0
        %v6153 = vadd.f32 %v5914, %v6152
        %6154 = vmatmul.bf16.gmra.mxu0 %v4527
        %v6155 = vpop.f32.mrf.mxu0
        %v6156 = vadd.f32 %v5914, %v6155
        %v6157 = vpop.f32.mrf.mxu0
        %v6158 = vadd.f32 %v5914, %v6157
        %6159 = vmatmul.bf16.gmra.mxu0 %v4528
        %v6160 = vpop.f32.mrf.mxu0
        %v6161 = vadd.f32 %v5914, %v6160
        %v6162 = vpop.f32.mrf.mxu0
        %v6163 = vadd.f32 %v5914, %v6162
        %6164 = vmatmul.bf16.gmra.mxu0 %v4529
        %v6165 = vpop.f32.mrf.mxu0
        %v6166 = vadd.f32 %v5914, %v6165
        %v6167 = vpop.f32.mrf.mxu0
        %v6168 = vadd.f32 %v5914, %v6167
        %6169 = vmatmul.bf16.gmra.mxu0 %v4530
        %v6170 = vpop.f32.mrf.mxu0
        %v6171 = vadd.f32 %v5914, %v6170
        %v6172 = vpop.f32.mrf.mxu0
        %v6173 = vadd.f32 %v5914, %v6172
        %6174 = vdwg.mxu0
        %v6175 = vmax.f32 %v6007, 0.0
        %v6176 = vmax.f32 %v6096, 0.0
        %v6177 = vmax.f32 %v6009, 0.0
        %v6178 = vmax.f32 %v6098, 0.0
        %v6179 = vmax.f32 %v6012, 0.0
        %v6180 = vmax.f32 %v6101, 0.0
        %v6181 = vmax.f32 %v6014, 0.0
        %v6182 = vmax.f32 %v6103, 0.0
        %v6183 = vmax.f32 %v6017, 0.0
        %v6184 = vmax.f32 %v6106, 0.0
        %v6185 = vmax.f32 %v6019, 0.0
        %v6186 = vmax.f32 %v6108, 0.0
        %v6187 = vmax.f32 %v6022, 0.0
        %v6188 = vmax.f32 %v6111, 0.0
        %v6189 = vmax.f32 %v6024, 0.0
        %v6190 = vmax.f32 %v6113, 0.0
        %v6191 = vmax.f32 %v6027, 0.0
        %v6192 = vmax.f32 %v6116, 0.0
        %v6193 = vmax.f32 %v6029, 0.0
        %v6194 = vmax.f32 %v6118, 0.0
        %v6195 = vmax.f32 %v6032, 0.0
        %v6196 = vmax.f32 %v6121, 0.0
        %v6197 = vmax.f32 %v6034, 0.0
        %v6198 = vmax.f32 %v6123, 0.0
        %v6199 = vmax.f32 %v6037, 0.0
        %v6200 = vmax.f32 %v6126, 0.0
        %v6201 = vmax.f32 %v6039, 0.0
        %v6202 = vmax.f32 %v6128, 0.0
        %v6203 = vmax.f32 %v6042, 0.0
        %v6204 = vmax.f32 %v6131, 0.0
        %v6205 = vmax.f32 %v6044, 0.0
        %v6206 = vmax.f32 %v6133, 0.0
        %v6207 = vmax.f32 %v6047, 0.0
        %v6208 = vmax.f32 %v6136, 0.0
        %v6209 = vmax.f32 %v6049, 0.0
        %v6210 = vmax.f32 %v6138, 0.0
        %v6211 = vmax.f32 %v6052, 0.0
        %v6212 = vmax.f32 %v6141, 0.0
        %v6213 = vmax.f32 %v6054, 0.0
        %v6214 = vmax.f32 %v6143, 0.0
        %v6215 = vmax.f32 %v6057, 0.0
        %v6216 = vmax.f32 %v6146, 0.0
        %v6217 = vmax.f32 %v6059, 0.0
        %v6218 = vmax.f32 %v6148, 0.0
        %v6219 = vmax.f32 %v6062, 0.0
        %v6220 = vmax.f32 %v6151, 0.0
        %v6221 = vmax.f32 %v6064, 0.0
        %v6222 = vmax.f32 %v6153, 0.0
        %v6223 = vmax.f32 %v6067, 0.0
        %v6224 = vmax.f32 %v6156, 0.0
        %v6225 = vmax.f32 %v6069, 0.0
        %v6226 = vmax.f32 %v6158, 0.0
        %v6227 = vmax.f32 %v6072, 0.0
        %v6228 = vmax.f32 %v6161, 0.0
        %v6229 = vmax.f32 %v6074, 0.0
        %v6230 = vmax.f32 %v6163, 0.0
        %v6231 = vmax.f32 %v6077, 0.0
        %v6232 = vmax.f32 %v6166, 0.0
        %v6233 = vmax.f32 %v6079, 0.0
        %v6234 = vmax.f32 %v6168, 0.0
        %v6235 = vmax.f32 %v6082, 0.0
        %v6236 = vmax.f32 %v6171, 0.0
        %v6237 = vmax.f32 %v6084, 0.0
        %v6238 = vmax.f32 %v6173, 0.0
        %v6239 = vpack.c.bf16 %v6177, %v6175
        %v6240 = vpack.c.bf16 %v6178, %v6176
        %v6241 = vpack.c.bf16 %v6181, %v6179
        %v6242 = vpack.c.bf16 %v6182, %v6180
        %v6243 = vpack.c.bf16 %v6185, %v6183
        %v6244 = vpack.c.bf16 %v6186, %v6184
        %v6245 = vpack.c.bf16 %v6189, %v6187
        %v6246 = vpack.c.bf16 %v6190, %v6188
        %v6247 = vpack.c.bf16 %v6193, %v6191
        %v6248 = vpack.c.bf16 %v6194, %v6192
        %v6249 = vpack.c.bf16 %v6197, %v6195
        %v6250 = vpack.c.bf16 %v6198, %v6196
        %v6251 = vpack.c.bf16 %v6201, %v6199
        %v6252 = vpack.c.bf16 %v6202, %v6200
        %v6253 = vpack.c.bf16 %v6205, %v6203
        %v6254 = vpack.c.bf16 %v6206, %v6204
        %v6255 = vpack.c.bf16 %v6209, %v6207
        %v6256 = vpack.c.bf16 %v6210, %v6208
        %v6257 = vpack.c.bf16 %v6213, %v6211
        %v6258 = vpack.c.bf16 %v6214, %v6212
        %v6259 = vpack.c.bf16 %v6217, %v6215
        %v6260 = vpack.c.bf16 %v6218, %v6216
        %v6261 = vpack.c.bf16 %v6221, %v6219
        %v6262 = vpack.c.bf16 %v6222, %v6220
        %v6263 = vpack.c.bf16 %v6225, %v6223
        %v6264 = vpack.c.bf16 %v6226, %v6224
        %v6265 = vpack.c.bf16 %v6229, %v6227
        %v6266 = vpack.c.bf16 %v6230, %v6228
        %v6267 = vpack.c.bf16 %v6233, %v6231
        %v6268 = vpack.c.bf16 %v6234, %v6232
        %v6269 = vpack.c.bf16 %v6237, %v6235
        %v6270 = vpack.c.bf16 %v6238, %v6236
        %v6271 = vld [vmem:[%s778 + $0x100] sm:$0xf]
        %v6272 = vld [vmem:[%s778 + $0x104] sm:$0xf]
        %v6273 = vld [vmem:[%s778 + $0x108] sm:$0xf]
        %v6274 = vld [vmem:[%s778 + $0x10c] sm:$0xf]
        %v6275 = vld [vmem:[%s778 + $0x110] sm:$0xf]
        %v6276 = vld [vmem:[%s778 + $0x114] sm:$0xf]
        %v6277 = vld [vmem:[%s778 + $0x118] sm:$0xf]
        %v6278 = vld [vmem:[%s778 + $0x11c] sm:$0xf]
        %v6279 = vld [vmem:[%s778 + $0x120] sm:$0xf]
        %v6280 = vld [vmem:[%s778 + $0x124] sm:$0xf]
        %v6281 = vld [vmem:[%s778 + $0x128] sm:$0xf]
        %v6282 = vld [vmem:[%s778 + $0x12c] sm:$0xf]
        %v6283 = vld [vmem:[%s778 + $0x130] sm:$0xf]
        %v6284 = vld [vmem:[%s778 + $0x134] sm:$0xf]
        %v6285 = vld [vmem:[%s778 + $0x138] sm:$0xf]
        %v6286 = vld [vmem:[%s778 + $0x13c] sm:$0xf]
        %v6287 = vld [vmem:[%s778 + $0x140] sm:$0xf]
        %v6288 = vld [vmem:[%s778 + $0x144] sm:$0xf]
        %v6289 = vld [vmem:[%s778 + $0x148] sm:$0xf]
        %v6290 = vld [vmem:[%s778 + $0x14c] sm:$0xf]
        %v6291 = vld [vmem:[%s778 + $0x150] sm:$0xf]
        %v6292 = vld [vmem:[%s778 + $0x154] sm:$0xf]
        %v6293 = vld [vmem:[%s778 + $0x158] sm:$0xf]
        %v6294 = vld [vmem:[%s778 + $0x15c] sm:$0xf]
        %v6295 = vld [vmem:[%s778 + $0x160] sm:$0xf]
        %v6296 = vld [vmem:[%s778 + $0x164] sm:$0xf]
        %v6297 = vld [vmem:[%s778 + $0x168] sm:$0xf]
        %v6298 = vld [vmem:[%s778 + $0x16c] sm:$0xf]
        %v6299 = vld [vmem:[%s778 + $0x170] sm:$0xf]
        %v6300 = vld [vmem:[%s778 + $0x174] sm:$0xf]
        %v6301 = vld [vmem:[%s778 + $0x178] sm:$0xf]
        %v6302 = vld [vmem:[%s778 + $0x17c] sm:$0xf]
        %v6335 = vunpack.c.l.b16 %v6271
        %v6336 = vunpack.c.l.b16 %v6272
        %v6337 = vunpack.c.l.b16 %v6273
        %v6338 = vunpack.c.l.b16 %v6274
        %v6339 = vunpack.c.l.b16 %v6275
        %v6340 = vunpack.c.l.b16 %v6276
        %v6341 = vunpack.c.l.b16 %v6277
        %v6342 = vunpack.c.l.b16 %v6278
        %v6343 = vunpack.c.l.b16 %v6279
        %v6344 = vunpack.c.l.b16 %v6280
        %v6345 = vunpack.c.l.b16 %v6281
        %v6346 = vunpack.c.l.b16 %v6282
        %v6347 = vunpack.c.l.b16 %v6283
        %v6348 = vunpack.c.l.b16 %v6284
        %v6349 = vunpack.c.l.b16 %v6285
        %v6350 = vunpack.c.l.b16 %v6286
        %v6351 = vunpack.c.l.b16 %v6287
        %v6352 = vunpack.c.l.b16 %v6288
        %v6353 = vunpack.c.l.b16 %v6289
        %v6354 = vunpack.c.l.b16 %v6290
        %v6355 = vunpack.c.l.b16 %v6291
        %v6356 = vunpack.c.l.b16 %v6292
        %v6357 = vunpack.c.l.b16 %v6293
        %v6358 = vunpack.c.l.b16 %v6294
        %v6359 = vunpack.c.l.b16 %v6295
        %v6360 = vunpack.c.l.b16 %v6296
        %v6361 = vunpack.c.l.b16 %v6297
        %v6362 = vunpack.c.l.b16 %v6298
        %v6363 = vunpack.c.l.b16 %v6299
        %v6364 = vunpack.c.l.b16 %v6300
        %v6365 = vunpack.c.l.b16 %v6301
        %v6366 = vunpack.c.l.b16 %v6302
        %v6367 = vpack.c.b16 %v6336, %v6335
        %v6368 = vpack.c.b16 %v6338, %v6337
        %v6369 = vpack.c.b16 %v6340, %v6339
        %v6370 = vpack.c.b16 %v6342, %v6341
        %v6371 = vpack.c.b16 %v6344, %v6343
        %v6372 = vpack.c.b16 %v6346, %v6345
        %v6373 = vpack.c.b16 %v6348, %v6347
        %v6374 = vpack.c.b16 %v6350, %v6349
        %v6375 = vpack.c.b16 %v6352, %v6351
        %v6376 = vpack.c.b16 %v6354, %v6353
        %v6377 = vpack.c.b16 %v6356, %v6355
        %v6378 = vpack.c.b16 %v6358, %v6357
        %v6379 = vpack.c.b16 %v6360, %v6359
        %v6380 = vpack.c.b16 %v6362, %v6361
        %v6381 = vpack.c.b16 %v6364, %v6363
        %v6382 = vpack.c.b16 %v6366, %v6365
        %6399 = vmatpush.bf16.msra.mxu0 %v6374
        %6400 = vmatpush.bf16.msra.mxu0 %v6373
        %6401 = vmatpush.bf16.msra.mxu0 %v6372
        %6402 = vmatpush.bf16.msra.mxu0 %v6371
        %6403 = vmatpush.bf16.msra.mxu0 %v6370
        %6404 = vmatpush.bf16.msra.mxu0 %v6369
        %6405 = vmatpush.bf16.msra.mxu0 %v6368
        %6406 = vmatpush.bf16.msra.mxu0 %v6367
        %6407 = vmatmul.bf16.gmra.mxu0 %v6239
        %v6408 = vpop.f32.mrf.mxu0
        %v6409 = vadd.f32 0.0, %v6408
        %v6410 = vpop.f32.mrf.mxu0
        %v6411 = vadd.f32 0.0, %v6410
        %6412 = vmatmul.bf16.gmra.mxu0 %v6241
        %v6413 = vpop.f32.mrf.mxu0
        %v6414 = vadd.f32 0.0, %v6413
        %v6415 = vpop.f32.mrf.mxu0
        %v6416 = vadd.f32 0.0, %v6415
        %6417 = vmatmul.bf16.gmra.mxu0 %v6243
        %v6418 = vpop.f32.mrf.mxu0
        %v6419 = vadd.f32 0.0, %v6418
        %v6420 = vpop.f32.mrf.mxu0
        %v6421 = vadd.f32 0.0, %v6420
        %6422 = vmatmul.bf16.gmra.mxu0 %v6245
        %v6423 = vpop.f32.mrf.mxu0
        %v6424 = vadd.f32 0.0, %v6423
        %v6425 = vpop.f32.mrf.mxu0
        %v6426 = vadd.f32 0.0, %v6425
        %6427 = vmatmul.bf16.gmra.mxu0 %v6247
        %v6428 = vpop.f32.mrf.mxu0
        %v6429 = vadd.f32 0.0, %v6428
        %v6430 = vpop.f32.mrf.mxu0
        %v6431 = vadd.f32 0.0, %v6430
        %6432 = vmatmul.bf16.gmra.mxu0 %v6249
        %v6433 = vpop.f32.mrf.mxu0
        %v6434 = vadd.f32 0.0, %v6433
        %v6435 = vpop.f32.mrf.mxu0
        %v6436 = vadd.f32 0.0, %v6435
        %6437 = vmatmul.bf16.gmra.mxu0 %v6251
        %v6438 = vpop.f32.mrf.mxu0
        %v6439 = vadd.f32 0.0, %v6438
        %v6440 = vpop.f32.mrf.mxu0
        %v6441 = vadd.f32 0.0, %v6440
        %6442 = vmatmul.bf16.gmra.mxu0 %v6253
        %v6443 = vpop.f32.mrf.mxu0
        %v6444 = vadd.f32 0.0, %v6443
        %v6445 = vpop.f32.mrf.mxu0
        %v6446 = vadd.f32 0.0, %v6445
        %6447 = vmatmul.bf16.gmra.mxu0 %v6255
        %v6448 = vpop.f32.mrf.mxu0
        %v6449 = vadd.f32 0.0, %v6448
        %v6450 = vpop.f32.mrf.mxu0
        %v6451 = vadd.f32 0.0, %v6450
        %6452 = vmatmul.bf16.gmra.mxu0 %v6257
        %v6453 = vpop.f32.mrf.mxu0
        %v6454 = vadd.f32 0.0, %v6453
        %v6455 = vpop.f32.mrf.mxu0
        %v6456 = vadd.f32 0.0, %v6455
        %6457 = vmatmul.bf16.gmra.mxu0 %v6259
        %v6458 = vpop.f32.mrf.mxu0
        %v6459 = vadd.f32 0.0, %v6458
        %v6460 = vpop.f32.mrf.mxu0
        %v6461 = vadd.f32 0.0, %v6460
        %6462 = vmatmul.bf16.gmra.mxu0 %v6261
        %v6463 = vpop.f32.mrf.mxu0
        %v6464 = vadd.f32 0.0, %v6463
        %v6465 = vpop.f32.mrf.mxu0
        %v6466 = vadd.f32 0.0, %v6465
        %6467 = vmatmul.bf16.gmra.mxu0 %v6263
        %v6468 = vpop.f32.mrf.mxu0
        %v6469 = vadd.f32 0.0, %v6468
        %v6470 = vpop.f32.mrf.mxu0
        %v6471 = vadd.f32 0.0, %v6470
        %6472 = vmatmul.bf16.gmra.mxu0 %v6265
        %v6473 = vpop.f32.mrf.mxu0
        %v6474 = vadd.f32 0.0, %v6473
        %v6475 = vpop.f32.mrf.mxu0
        %v6476 = vadd.f32 0.0, %v6475
        %6477 = vmatmul.bf16.gmra.mxu0 %v6267
        %v6478 = vpop.f32.mrf.mxu0
        %v6479 = vadd.f32 0.0, %v6478
        %v6480 = vpop.f32.mrf.mxu0
        %v6481 = vadd.f32 0.0, %v6480
        %6482 = vmatmul.bf16.gmra.mxu0 %v6269
        %v6483 = vpop.f32.mrf.mxu0
        %v6484 = vadd.f32 0.0, %v6483
        %v6485 = vpop.f32.mrf.mxu0
        %v6486 = vadd.f32 0.0, %v6485
        %6487 = vdwg.mxu0
        %6488 = vmatpush.bf16.msra.mxu0 %v6382
        %6489 = vmatpush.bf16.msra.mxu0 %v6381
        %6490 = vmatpush.bf16.msra.mxu0 %v6380
        %6491 = vmatpush.bf16.msra.mxu0 %v6379
        %6492 = vmatpush.bf16.msra.mxu0 %v6378
        %6493 = vmatpush.bf16.msra.mxu0 %v6377
        %6494 = vmatpush.bf16.msra.mxu0 %v6376
        %6495 = vmatpush.bf16.msra.mxu0 %v6375
        %6496 = vmatmul.bf16.gmra.mxu0 %v6240
        %v6497 = vpop.f32.mrf.mxu0
        %v6498 = vadd.f32 %v6409, %v6497
        %v6499 = vpop.f32.mrf.mxu0
        %v6500 = vadd.f32 %v6411, %v6499
        %6501 = vmatmul.bf16.gmra.mxu0 %v6242
        %v6502 = vpop.f32.mrf.mxu0
        %v6503 = vadd.f32 %v6414, %v6502
        %v6504 = vpop.f32.mrf.mxu0
        %v6505 = vadd.f32 %v6416, %v6504
        %6506 = vmatmul.bf16.gmra.mxu0 %v6244
        %v6507 = vpop.f32.mrf.mxu0
        %v6508 = vadd.f32 %v6419, %v6507
        %v6509 = vpop.f32.mrf.mxu0
        %v6510 = vadd.f32 %v6421, %v6509
        %6511 = vmatmul.bf16.gmra.mxu0 %v6246
        %v6512 = vpop.f32.mrf.mxu0
        %v6513 = vadd.f32 %v6424, %v6512
        %v6514 = vpop.f32.mrf.mxu0
        %v6515 = vadd.f32 %v6426, %v6514
        %6516 = vmatmul.bf16.gmra.mxu0 %v6248
        %v6517 = vpop.f32.mrf.mxu0
        %v6518 = vadd.f32 %v6429, %v6517
        %v6519 = vpop.f32.mrf.mxu0
        %v6520 = vadd.f32 %v6431, %v6519
        %6521 = vmatmul.bf16.gmra.mxu0 %v6250
        %v6522 = vpop.f32.mrf.mxu0
        %v6523 = vadd.f32 %v6434, %v6522
        %v6524 = vpop.f32.mrf.mxu0
        %v6525 = vadd.f32 %v6436, %v6524
        %6526 = vmatmul.bf16.gmra.mxu0 %v6252
        %v6527 = vpop.f32.mrf.mxu0
        %v6528 = vadd.f32 %v6439, %v6527
        %v6529 = vpop.f32.mrf.mxu0
        %v6530 = vadd.f32 %v6441, %v6529
        %6531 = vmatmul.bf16.gmra.mxu0 %v6254
        %v6532 = vpop.f32.mrf.mxu0
        %v6533 = vadd.f32 %v6444, %v6532
        %v6534 = vpop.f32.mrf.mxu0
        %v6535 = vadd.f32 %v6446, %v6534
        %6536 = vmatmul.bf16.gmra.mxu0 %v6256
        %v6537 = vpop.f32.mrf.mxu0
        %v6538 = vadd.f32 %v6449, %v6537
        %v6539 = vpop.f32.mrf.mxu0
        %v6540 = vadd.f32 %v6451, %v6539
        %6541 = vmatmul.bf16.gmra.mxu0 %v6258
        %v6542 = vpop.f32.mrf.mxu0
        %v6543 = vadd.f32 %v6454, %v6542
        %v6544 = vpop.f32.mrf.mxu0
        %v6545 = vadd.f32 %v6456, %v6544
        %6546 = vmatmul.bf16.gmra.mxu0 %v6260
        %v6547 = vpop.f32.mrf.mxu0
        %v6548 = vadd.f32 %v6459, %v6547
        %v6549 = vpop.f32.mrf.mxu0
        %v6550 = vadd.f32 %v6461, %v6549
        %6551 = vmatmul.bf16.gmra.mxu0 %v6262
        %v6552 = vpop.f32.mrf.mxu0
        %v6553 = vadd.f32 %v6464, %v6552
        %v6554 = vpop.f32.mrf.mxu0
        %v6555 = vadd.f32 %v6466, %v6554
        %6556 = vmatmul.bf16.gmra.mxu0 %v6264
        %v6557 = vpop.f32.mrf.mxu0
        %v6558 = vadd.f32 %v6469, %v6557
        %v6559 = vpop.f32.mrf.mxu0
        %v6560 = vadd.f32 %v6471, %v6559
        %6561 = vmatmul.bf16.gmra.mxu0 %v6266
        %v6562 = vpop.f32.mrf.mxu0
        %v6563 = vadd.f32 %v6474, %v6562
        %v6564 = vpop.f32.mrf.mxu0
        %v6565 = vadd.f32 %v6476, %v6564
        %6566 = vmatmul.bf16.gmra.mxu0 %v6268
        %v6567 = vpop.f32.mrf.mxu0
        %v6568 = vadd.f32 %v6479, %v6567
        %v6569 = vpop.f32.mrf.mxu0
        %v6570 = vadd.f32 %v6481, %v6569
        %6571 = vmatmul.bf16.gmra.mxu0 %v6270
        %v6572 = vpop.f32.mrf.mxu0
        %v6573 = vadd.f32 %v6484, %v6572
        %v6574 = vpop.f32.mrf.mxu0
        %v6575 = vadd.f32 %v6486, %v6574
        %6576 = vdwg.mxu0
        %v6577 = vadd.f32 %v5816, %v6498
        %v6578 = vadd.f32 %v5818, %v6500
        %v6579 = vadd.f32 %v5821, %v6503
        %v6580 = vadd.f32 %v5823, %v6505
        %v6581 = vadd.f32 %v5826, %v6508
        %v6582 = vadd.f32 %v5828, %v6510
        %v6583 = vadd.f32 %v5831, %v6513
        %v6584 = vadd.f32 %v5833, %v6515
        %v6585 = vadd.f32 %v5836, %v6518
        %v6586 = vadd.f32 %v5838, %v6520
        %v6587 = vadd.f32 %v5841, %v6523
        %v6588 = vadd.f32 %v5843, %v6525
        %v6589 = vadd.f32 %v5846, %v6528
        %v6590 = vadd.f32 %v5848, %v6530
        %v6591 = vadd.f32 %v5851, %v6533
        %v6592 = vadd.f32 %v5853, %v6535
        %v6593 = vadd.f32 %v5856, %v6538
        %v6594 = vadd.f32 %v5858, %v6540
        %v6595 = vadd.f32 %v5861, %v6543
        %v6596 = vadd.f32 %v5863, %v6545
        %v6597 = vadd.f32 %v5866, %v6548
        %v6598 = vadd.f32 %v5868, %v6550
        %v6599 = vadd.f32 %v5871, %v6553
        %v6600 = vadd.f32 %v5873, %v6555
        %v6601 = vadd.f32 %v5876, %v6558
        %v6602 = vadd.f32 %v5878, %v6560
        %v6603 = vadd.f32 %v5881, %v6563
        %v6604 = vadd.f32 %v5883, %v6565
        %v6605 = vadd.f32 %v5886, %v6568
        %v6606 = vadd.f32 %v5888, %v6570
        %v6607 = vadd.f32 %v5891, %v6573
        %v6608 = vadd.f32 %v5893, %v6575
        %v6609 = vld [vmem:[%s769 + $0x18] sm:$0xff]
        %v6610 = vld [vmem:[%s769 + $0x58] sm:$0xff]
        %v6611 = vld [vmem:[%s769 + $0x98] sm:$0xff]
        %v6612 = vld [vmem:[%s769 + $0xd8] sm:$0xff]
        %v6613 = vld [vmem:[%s769 + $0x118] sm:$0xff]
        %v6614 = vld [vmem:[%s769 + $0x158] sm:$0xff]
        %v6615 = vld [vmem:[%s769 + $0x198] sm:$0xff]
        %v6616 = vld [vmem:[%s769 + $0x1d8] sm:$0xff]
        %v6617 = vld [vmem:[%s769 + $0x218] sm:$0xff]
        %v6618 = vld [vmem:[%s769 + $0x258] sm:$0xff]
        %v6619 = vld [vmem:[%s769 + $0x298] sm:$0xff]
        %v6620 = vld [vmem:[%s769 + $0x2d8] sm:$0xff]
        %v6621 = vld [vmem:[%s769 + $0x318] sm:$0xff]
        %v6622 = vld [vmem:[%s769 + $0x358] sm:$0xff]
        %v6623 = vld [vmem:[%s769 + $0x398] sm:$0xff]
        %v6624 = vld [vmem:[%s769 + $0x3d8] sm:$0xff]
        %v6625 = vld [vmem:[%s773 + $0x6] sm:$0x3]
        %v6627 = vperm.slane %v6625, 0
        %v6628 = vperm.slane %v6625, 1
        %v6647 = vunpack.c.l.b16 %v6609
        %v6648 = vunpack.c.h.b16 %v6609
        %v6649 = vunpack.c.l.b16 %v6610
        %v6650 = vunpack.c.h.b16 %v6610
        %v6651 = vunpack.c.l.b16 %v6611
        %v6652 = vunpack.c.h.b16 %v6611
        %v6653 = vunpack.c.l.b16 %v6612
        %v6654 = vunpack.c.h.b16 %v6612
        %v6655 = vunpack.c.l.b16 %v6613
        %v6656 = vunpack.c.h.b16 %v6613
        %v6657 = vunpack.c.l.b16 %v6614
        %v6658 = vunpack.c.h.b16 %v6614
        %v6659 = vunpack.c.l.b16 %v6615
        %v6660 = vunpack.c.h.b16 %v6615
        %v6661 = vunpack.c.l.b16 %v6616
        %v6662 = vunpack.c.h.b16 %v6616
        %v6663 = vunpack.c.l.b16 %v6617
        %v6664 = vunpack.c.h.b16 %v6617
        %v6665 = vunpack.c.l.b16 %v6618
        %v6666 = vunpack.c.h.b16 %v6618
        %v6667 = vunpack.c.l.b16 %v6619
        %v6668 = vunpack.c.h.b16 %v6619
        %v6669 = vunpack.c.l.b16 %v6620
        %v6670 = vunpack.c.h.b16 %v6620
        %v6671 = vunpack.c.l.b16 %v6621
        %v6672 = vunpack.c.h.b16 %v6621
        %v6673 = vunpack.c.l.b16 %v6622
        %v6674 = vunpack.c.h.b16 %v6622
        %v6675 = vunpack.c.l.b16 %v6623
        %v6676 = vunpack.c.h.b16 %v6623
        %v6677 = vunpack.c.l.b16 %v6624
        %v6678 = vunpack.c.h.b16 %v6624
        %v6679 = vpack.c.b16 %v6649, %v6647
        %v6680 = vpack.c.b16 %v6650, %v6648
        %v6681 = vpack.c.b16 %v6653, %v6651
        %v6682 = vpack.c.b16 %v6654, %v6652
        %v6683 = vpack.c.b16 %v6657, %v6655
        %v6684 = vpack.c.b16 %v6658, %v6656
        %v6685 = vpack.c.b16 %v6661, %v6659
        %v6686 = vpack.c.b16 %v6662, %v6660
        %v6687 = vpack.c.b16 %v6665, %v6663
        %v6688 = vpack.c.b16 %v6666, %v6664
        %v6689 = vpack.c.b16 %v6669, %v6667
        %v6690 = vpack.c.b16 %v6670, %v6668
        %v6691 = vpack.c.b16 %v6673, %v6671
        %v6692 = vpack.c.b16 %v6674, %v6672
        %v6693 = vpack.c.b16 %v6677, %v6675
        %v6694 = vpack.c.b16 %v6678, %v6676
        %6711 = vmatpush.bf16.msra.mxu0 %v6693
        %6712 = vmatpush.bf16.msra.mxu0 %v6691
        %6713 = vmatpush.bf16.msra.mxu0 %v6689
        %6714 = vmatpush.bf16.msra.mxu0 %v6687
        %6715 = vmatpush.bf16.msra.mxu0 %v6685
        %6716 = vmatpush.bf16.msra.mxu0 %v6683
        %6717 = vmatpush.bf16.msra.mxu0 %v6681
        %6718 = vmatpush.bf16.msra.mxu0 %v6679
        %6719 = vmatmul.bf16.gmra.mxu0 %v4515
        %v6720 = vpop.f32.mrf.mxu0
        %v6721 = vadd.f32 %v6627, %v6720
        %v6722 = vpop.f32.mrf.mxu0
        %v6723 = vadd.f32 %v6627, %v6722
        %6724 = vmatmul.bf16.gmra.mxu0 %v4516
        %v6725 = vpop.f32.mrf.mxu0
        %v6726 = vadd.f32 %v6627, %v6725
        %v6727 = vpop.f32.mrf.mxu0
        %v6728 = vadd.f32 %v6627, %v6727
        %6729 = vmatmul.bf16.gmra.mxu0 %v4517
        %v6730 = vpop.f32.mrf.mxu0
        %v6731 = vadd.f32 %v6627, %v6730
        %v6732 = vpop.f32.mrf.mxu0
        %v6733 = vadd.f32 %v6627, %v6732
        %6734 = vmatmul.bf16.gmra.mxu0 %v4518
        %v6735 = vpop.f32.mrf.mxu0
        %v6736 = vadd.f32 %v6627, %v6735
        %v6737 = vpop.f32.mrf.mxu0
        %v6738 = vadd.f32 %v6627, %v6737
        %6739 = vmatmul.bf16.gmra.mxu0 %v4519
        %v6740 = vpop.f32.mrf.mxu0
        %v6741 = vadd.f32 %v6627, %v6740
        %v6742 = vpop.f32.mrf.mxu0
        %v6743 = vadd.f32 %v6627, %v6742
        %6744 = vmatmul.bf16.gmra.mxu0 %v4520
        %v6745 = vpop.f32.mrf.mxu0
        %v6746 = vadd.f32 %v6627, %v6745
        %v6747 = vpop.f32.mrf.mxu0
        %v6748 = vadd.f32 %v6627, %v6747
        %6749 = vmatmul.bf16.gmra.mxu0 %v4521
        %v6750 = vpop.f32.mrf.mxu0
        %v6751 = vadd.f32 %v6627, %v6750
        %v6752 = vpop.f32.mrf.mxu0
        %v6753 = vadd.f32 %v6627, %v6752
        %6754 = vmatmul.bf16.gmra.mxu0 %v4522
        %v6755 = vpop.f32.mrf.mxu0
        %v6756 = vadd.f32 %v6627, %v6755
        %v6757 = vpop.f32.mrf.mxu0
        %v6758 = vadd.f32 %v6627, %v6757
        %6759 = vmatmul.bf16.gmra.mxu0 %v4523
        %v6760 = vpop.f32.mrf.mxu0
        %v6761 = vadd.f32 %v6627, %v6760
        %v6762 = vpop.f32.mrf.mxu0
        %v6763 = vadd.f32 %v6627, %v6762
        %6764 = vmatmul.bf16.gmra.mxu0 %v4524
        %v6765 = vpop.f32.mrf.mxu0
        %v6766 = vadd.f32 %v6627, %v6765
        %v6767 = vpop.f32.mrf.mxu0
        %v6768 = vadd.f32 %v6627, %v6767
        %6769 = vmatmul.bf16.gmra.mxu0 %v4525
        %v6770 = vpop.f32.mrf.mxu0
        %v6771 = vadd.f32 %v6627, %v6770
        %v6772 = vpop.f32.mrf.mxu0
        %v6773 = vadd.f32 %v6627, %v6772
        %6774 = vmatmul.bf16.gmra.mxu0 %v4526
        %v6775 = vpop.f32.mrf.mxu0
        %v6776 = vadd.f32 %v6627, %v6775
        %v6777 = vpop.f32.mrf.mxu0
        %v6778 = vadd.f32 %v6627, %v6777
        %6779 = vmatmul.bf16.gmra.mxu0 %v4527
        %v6780 = vpop.f32.mrf.mxu0
        %v6781 = vadd.f32 %v6627, %v6780
        %v6782 = vpop.f32.mrf.mxu0
        %v6783 = vadd.f32 %v6627, %v6782
        %6784 = vmatmul.bf16.gmra.mxu0 %v4528
        %v6785 = vpop.f32.mrf.mxu0
        %v6786 = vadd.f32 %v6627, %v6785
        %v6787 = vpop.f32.mrf.mxu0
        %v6788 = vadd.f32 %v6627, %v6787
        %6789 = vmatmul.bf16.gmra.mxu0 %v4529
        %v6790 = vpop.f32.mrf.mxu0
        %v6791 = vadd.f32 %v6627, %v6790
        %v6792 = vpop.f32.mrf.mxu0
        %v6793 = vadd.f32 %v6627, %v6792
        %6794 = vmatmul.bf16.gmra.mxu0 %v4530
        %v6795 = vpop.f32.mrf.mxu0
        %v6796 = vadd.f32 %v6627, %v6795
        %v6797 = vpop.f32.mrf.mxu0
        %v6798 = vadd.f32 %v6627, %v6797
        %6799 = vdwg.mxu0
        %6800 = vmatpush.bf16.msra.mxu0 %v6694
        %6801 = vmatpush.bf16.msra.mxu0 %v6692
        %6802 = vmatpush.bf16.msra.mxu0 %v6690
        %6803 = vmatpush.bf16.msra.mxu0 %v6688
        %6804 = vmatpush.bf16.msra.mxu0 %v6686
        %6805 = vmatpush.bf16.msra.mxu0 %v6684
        %6806 = vmatpush.bf16.msra.mxu0 %v6682
        %6807 = vmatpush.bf16.msra.mxu0 %v6680
        %6808 = vmatmul.bf16.gmra.mxu0 %v4515
        %v6809 = vpop.f32.mrf.mxu0
        %v6810 = vadd.f32 %v6628, %v6809
        %v6811 = vpop.f32.mrf.mxu0
        %v6812 = vadd.f32 %v6628, %v6811
        %6813 = vmatmul.bf16.gmra.mxu0 %v4516
        %v6814 = vpop.f32.mrf.mxu0
        %v6815 = vadd.f32 %v6628, %v6814
        %v6816 = vpop.f32.mrf.mxu0
        %v6817 = vadd.f32 %v6628, %v6816
        %6818 = vmatmul.bf16.gmra.mxu0 %v4517
        %v6819 = vpop.f32.mrf.mxu0
        %v6820 = vadd.f32 %v6628, %v6819
        %v6821 = vpop.f32.mrf.mxu0
        %v6822 = vadd.f32 %v6628, %v6821
        %6823 = vmatmul.bf16.gmra.mxu0 %v4518
        %v6824 = vpop.f32.mrf.mxu0
        %v6825 = vadd.f32 %v6628, %v6824
        %v6826 = vpop.f32.mrf.mxu0
        %v6827 = vadd.f32 %v6628, %v6826
        %6828 = vmatmul.bf16.gmra.mxu0 %v4519
        %v6829 = vpop.f32.mrf.mxu0
        %v6830 = vadd.f32 %v6628, %v6829
        %v6831 = vpop.f32.mrf.mxu0
        %v6832 = vadd.f32 %v6628, %v6831
        %6833 = vmatmul.bf16.gmra.mxu0 %v4520
        %v6834 = vpop.f32.mrf.mxu0
        %v6835 = vadd.f32 %v6628, %v6834
        %v6836 = vpop.f32.mrf.mxu0
        %v6837 = vadd.f32 %v6628, %v6836
        %6838 = vmatmul.bf16.gmra.mxu0 %v4521
        %v6839 = vpop.f32.mrf.mxu0
        %v6840 = vadd.f32 %v6628, %v6839
        %v6841 = vpop.f32.mrf.mxu0
        %v6842 = vadd.f32 %v6628, %v6841
        %6843 = vmatmul.bf16.gmra.mxu0 %v4522
        %v6844 = vpop.f32.mrf.mxu0
        %v6845 = vadd.f32 %v6628, %v6844
        %v6846 = vpop.f32.mrf.mxu0
        %v6847 = vadd.f32 %v6628, %v6846
        %6848 = vmatmul.bf16.gmra.mxu0 %v4523
        %v6849 = vpop.f32.mrf.mxu0
        %v6850 = vadd.f32 %v6628, %v6849
        %v6851 = vpop.f32.mrf.mxu0
        %v6852 = vadd.f32 %v6628, %v6851
        %6853 = vmatmul.bf16.gmra.mxu0 %v4524
        %v6854 = vpop.f32.mrf.mxu0
        %v6855 = vadd.f32 %v6628, %v6854
        %v6856 = vpop.f32.mrf.mxu0
        %v6857 = vadd.f32 %v6628, %v6856
        %6858 = vmatmul.bf16.gmra.mxu0 %v4525
        %v6859 = vpop.f32.mrf.mxu0
        %v6860 = vadd.f32 %v6628, %v6859
        %v6861 = vpop.f32.mrf.mxu0
        %v6862 = vadd.f32 %v6628, %v6861
        %6863 = vmatmul.bf16.gmra.mxu0 %v4526
        %v6864 = vpop.f32.mrf.mxu0
        %v6865 = vadd.f32 %v6628, %v6864
        %v6866 = vpop.f32.mrf.mxu0
        %v6867 = vadd.f32 %v6628, %v6866
        %6868 = vmatmul.bf16.gmra.mxu0 %v4527
        %v6869 = vpop.f32.mrf.mxu0
        %v6870 = vadd.f32 %v6628, %v6869
        %v6871 = vpop.f32.mrf.mxu0
        %v6872 = vadd.f32 %v6628, %v6871
        %6873 = vmatmul.bf16.gmra.mxu0 %v4528
        %v6874 = vpop.f32.mrf.mxu0
        %v6875 = vadd.f32 %v6628, %v6874
        %v6876 = vpop.f32.mrf.mxu0
        %v6877 = vadd.f32 %v6628, %v6876
        %6878 = vmatmul.bf16.gmra.mxu0 %v4529
        %v6879 = vpop.f32.mrf.mxu0
        %v6880 = vadd.f32 %v6628, %v6879
        %v6881 = vpop.f32.mrf.mxu0
        %v6882 = vadd.f32 %v6628, %v6881
        %6883 = vmatmul.bf16.gmra.mxu0 %v4530
        %v6884 = vpop.f32.mrf.mxu0
        %v6885 = vadd.f32 %v6628, %v6884
        %v6886 = vpop.f32.mrf.mxu0
        %v6887 = vadd.f32 %v6628, %v6886
        %6888 = vdwg.mxu0
        %v6889 = vmax.f32 %v6721, 0.0
        %v6890 = vmax.f32 %v6810, 0.0
        %v6891 = vmax.f32 %v6723, 0.0
        %v6892 = vmax.f32 %v6812, 0.0
        %v6893 = vmax.f32 %v6726, 0.0
        %v6894 = vmax.f32 %v6815, 0.0
        %v6895 = vmax.f32 %v6728, 0.0
        %v6896 = vmax.f32 %v6817, 0.0
        %v6897 = vmax.f32 %v6731, 0.0
        %v6898 = vmax.f32 %v6820, 0.0
        %v6899 = vmax.f32 %v6733, 0.0
        %v6900 = vmax.f32 %v6822, 0.0
        %v6901 = vmax.f32 %v6736, 0.0
        %v6902 = vmax.f32 %v6825, 0.0
        %v6903 = vmax.f32 %v6738, 0.0
        %v6904 = vmax.f32 %v6827, 0.0
        %v6905 = vmax.f32 %v6741, 0.0
        %v6906 = vmax.f32 %v6830, 0.0
        %v6907 = vmax.f32 %v6743, 0.0
        %v6908 = vmax.f32 %v6832, 0.0
        %v6909 = vmax.f32 %v6746, 0.0
        %v6910 = vmax.f32 %v6835, 0.0
        %v6911 = vmax.f32 %v6748, 0.0
        %v6912 = vmax.f32 %v6837, 0.0
        %v6913 = vmax.f32 %v6751, 0.0
        %v6914 = vmax.f32 %v6840, 0.0
        %v6915 = vmax.f32 %v6753, 0.0
        %v6916 = vmax.f32 %v6842, 0.0
        %v6917 = vmax.f32 %v6756, 0.0
        %v6918 = vmax.f32 %v6845, 0.0
        %v6919 = vmax.f32 %v6758, 0.0
        %v6920 = vmax.f32 %v6847, 0.0
        %v6921 = vmax.f32 %v6761, 0.0
        %v6922 = vmax.f32 %v6850, 0.0
        %v6923 = vmax.f32 %v6763, 0.0
        %v6924 = vmax.f32 %v6852, 0.0
        %v6925 = vmax.f32 %v6766, 0.0
        %v6926 = vmax.f32 %v6855, 0.0
        %v6927 = vmax.f32 %v6768, 0.0
        %v6928 = vmax.f32 %v6857, 0.0
        %v6929 = vmax.f32 %v6771, 0.0
        %v6930 = vmax.f32 %v6860, 0.0
        %v6931 = vmax.f32 %v6773, 0.0
        %v6932 = vmax.f32 %v6862, 0.0
        %v6933 = vmax.f32 %v6776, 0.0
        %v6934 = vmax.f32 %v6865, 0.0
        %v6935 = vmax.f32 %v6778, 0.0
        %v6936 = vmax.f32 %v6867, 0.0
        %v6937 = vmax.f32 %v6781, 0.0
        %v6938 = vmax.f32 %v6870, 0.0
        %v6939 = vmax.f32 %v6783, 0.0
        %v6940 = vmax.f32 %v6872, 0.0
        %v6941 = vmax.f32 %v6786, 0.0
        %v6942 = vmax.f32 %v6875, 0.0
        %v6943 = vmax.f32 %v6788, 0.0
        %v6944 = vmax.f32 %v6877, 0.0
        %v6945 = vmax.f32 %v6791, 0.0
        %v6946 = vmax.f32 %v6880, 0.0
        %v6947 = vmax.f32 %v6793, 0.0
        %v6948 = vmax.f32 %v6882, 0.0
        %v6949 = vmax.f32 %v6796, 0.0
        %v6950 = vmax.f32 %v6885, 0.0
        %v6951 = vmax.f32 %v6798, 0.0
        %v6952 = vmax.f32 %v6887, 0.0
        %v6953 = vpack.c.bf16 %v6891, %v6889
        %v6954 = vpack.c.bf16 %v6892, %v6890
        %v6955 = vpack.c.bf16 %v6895, %v6893
        %v6956 = vpack.c.bf16 %v6896, %v6894
        %v6957 = vpack.c.bf16 %v6899, %v6897
        %v6958 = vpack.c.bf16 %v6900, %v6898
        %v6959 = vpack.c.bf16 %v6903, %v6901
        %v6960 = vpack.c.bf16 %v6904, %v6902
        %v6961 = vpack.c.bf16 %v6907, %v6905
        %v6962 = vpack.c.bf16 %v6908, %v6906
        %v6963 = vpack.c.bf16 %v6911, %v6909
        %v6964 = vpack.c.bf16 %v6912, %v6910
        %v6965 = vpack.c.bf16 %v6915, %v6913
        %v6966 = vpack.c.bf16 %v6916, %v6914
        %v6967 = vpack.c.bf16 %v6919, %v6917
        %v6968 = vpack.c.bf16 %v6920, %v6918
        %v6969 = vpack.c.bf16 %v6923, %v6921
        %v6970 = vpack.c.bf16 %v6924, %v6922
        %v6971 = vpack.c.bf16 %v6927, %v6925
        %v6972 = vpack.c.bf16 %v6928, %v6926
        %v6973 = vpack.c.bf16 %v6931, %v6929
        %v6974 = vpack.c.bf16 %v6932, %v6930
        %v6975 = vpack.c.bf16 %v6935, %v6933
        %v6976 = vpack.c.bf16 %v6936, %v6934
        %v6977 = vpack.c.bf16 %v6939, %v6937
        %v6978 = vpack.c.bf16 %v6940, %v6938
        %v6979 = vpack.c.bf16 %v6943, %v6941
        %v6980 = vpack.c.bf16 %v6944, %v6942
        %v6981 = vpack.c.bf16 %v6947, %v6945
        %v6982 = vpack.c.bf16 %v6948, %v6946
        %v6983 = vpack.c.bf16 %v6951, %v6949
        %v6984 = vpack.c.bf16 %v6952, %v6950
        %v6985 = vld [vmem:[%s778 + $0x180] sm:$0xf]
        %v6986 = vld [vmem:[%s778 + $0x184] sm:$0xf]
        %v6987 = vld [vmem:[%s778 + $0x188] sm:$0xf]
        %v6988 = vld [vmem:[%s778 + $0x18c] sm:$0xf]
        %v6989 = vld [vmem:[%s778 + $0x190] sm:$0xf]
        %v6990 = vld [vmem:[%s778 + $0x194] sm:$0xf]
        %v6991 = vld [vmem:[%s778 + $0x198] sm:$0xf]
        %v6992 = vld [vmem:[%s778 + $0x19c] sm:$0xf]
        %v6993 = vld [vmem:[%s778 + $0x1a0] sm:$0xf]
        %v6994 = vld [vmem:[%s778 + $0x1a4] sm:$0xf]
        %v6995 = vld [vmem:[%s778 + $0x1a8] sm:$0xf]
        %v6996 = vld [vmem:[%s778 + $0x1ac] sm:$0xf]
        %v6997 = vld [vmem:[%s778 + $0x1b0] sm:$0xf]
        %v6998 = vld [vmem:[%s778 + $0x1b4] sm:$0xf]
        %v6999 = vld [vmem:[%s778 + $0x1b8] sm:$0xf]
        %v7000 = vld [vmem:[%s778 + $0x1bc] sm:$0xf]
        %v7001 = vld [vmem:[%s778 + $0x1c0] sm:$0xf]
        %v7002 = vld [vmem:[%s778 + $0x1c4] sm:$0xf]
        %v7003 = vld [vmem:[%s778 + $0x1c8] sm:$0xf]
        %v7004 = vld [vmem:[%s778 + $0x1cc] sm:$0xf]
        %v7005 = vld [vmem:[%s778 + $0x1d0] sm:$0xf]
        %v7006 = vld [vmem:[%s778 + $0x1d4] sm:$0xf]
        %v7007 = vld [vmem:[%s778 + $0x1d8] sm:$0xf]
        %v7008 = vld [vmem:[%s778 + $0x1dc] sm:$0xf]
        %v7009 = vld [vmem:[%s778 + $0x1e0] sm:$0xf]
        %v7010 = vld [vmem:[%s778 + $0x1e4] sm:$0xf]
        %v7011 = vld [vmem:[%s778 + $0x1e8] sm:$0xf]
        %v7012 = vld [vmem:[%s778 + $0x1ec] sm:$0xf]
        %v7013 = vld [vmem:[%s778 + $0x1f0] sm:$0xf]
        %v7014 = vld [vmem:[%s778 + $0x1f4] sm:$0xf]
        %v7015 = vld [vmem:[%s778 + $0x1f8] sm:$0xf]
        %v7016 = vld [vmem:[%s778 + $0x1fc] sm:$0xf]
        %v7049 = vunpack.c.l.b16 %v6985
        %v7050 = vunpack.c.l.b16 %v6986
        %v7051 = vunpack.c.l.b16 %v6987
        %v7052 = vunpack.c.l.b16 %v6988
        %v7053 = vunpack.c.l.b16 %v6989
        %v7054 = vunpack.c.l.b16 %v6990
        %v7055 = vunpack.c.l.b16 %v6991
        %v7056 = vunpack.c.l.b16 %v6992
        %v7057 = vunpack.c.l.b16 %v6993
        %v7058 = vunpack.c.l.b16 %v6994
        %v7059 = vunpack.c.l.b16 %v6995
        %v7060 = vunpack.c.l.b16 %v6996
        %v7061 = vunpack.c.l.b16 %v6997
        %v7062 = vunpack.c.l.b16 %v6998
        %v7063 = vunpack.c.l.b16 %v6999
        %v7064 = vunpack.c.l.b16 %v7000
        %v7065 = vunpack.c.l.b16 %v7001
        %v7066 = vunpack.c.l.b16 %v7002
        %v7067 = vunpack.c.l.b16 %v7003
        %v7068 = vunpack.c.l.b16 %v7004
        %v7069 = vunpack.c.l.b16 %v7005
        %v7070 = vunpack.c.l.b16 %v7006
        %v7071 = vunpack.c.l.b16 %v7007
        %v7072 = vunpack.c.l.b16 %v7008
        %v7073 = vunpack.c.l.b16 %v7009
        %v7074 = vunpack.c.l.b16 %v7010
        %v7075 = vunpack.c.l.b16 %v7011
        %v7076 = vunpack.c.l.b16 %v7012
        %v7077 = vunpack.c.l.b16 %v7013
        %v7078 = vunpack.c.l.b16 %v7014
        %v7079 = vunpack.c.l.b16 %v7015
        %v7080 = vunpack.c.l.b16 %v7016
        %v7081 = vpack.c.b16 %v7050, %v7049
        %v7082 = vpack.c.b16 %v7052, %v7051
        %v7083 = vpack.c.b16 %v7054, %v7053
        %v7084 = vpack.c.b16 %v7056, %v7055
        %v7085 = vpack.c.b16 %v7058, %v7057
        %v7086 = vpack.c.b16 %v7060, %v7059
        %v7087 = vpack.c.b16 %v7062, %v7061
        %v7088 = vpack.c.b16 %v7064, %v7063
        %v7089 = vpack.c.b16 %v7066, %v7065
        %v7090 = vpack.c.b16 %v7068, %v7067
        %v7091 = vpack.c.b16 %v7070, %v7069
        %v7092 = vpack.c.b16 %v7072, %v7071
        %v7093 = vpack.c.b16 %v7074, %v7073
        %v7094 = vpack.c.b16 %v7076, %v7075
        %v7095 = vpack.c.b16 %v7078, %v7077
        %v7096 = vpack.c.b16 %v7080, %v7079
        %7113 = vmatpush.bf16.msra.mxu0 %v7088
        %7114 = vmatpush.bf16.msra.mxu0 %v7087
        %7115 = vmatpush.bf16.msra.mxu0 %v7086
        %7116 = vmatpush.bf16.msra.mxu0 %v7085
        %7117 = vmatpush.bf16.msra.mxu0 %v7084
        %7118 = vmatpush.bf16.msra.mxu0 %v7083
        %7119 = vmatpush.bf16.msra.mxu0 %v7082
        %7120 = vmatpush.bf16.msra.mxu0 %v7081
        %7121 = vmatmul.bf16.gmra.mxu0 %v6953
        %v7122 = vpop.f32.mrf.mxu0
        %v7123 = vadd.f32 0.0, %v7122
        %v7124 = vpop.f32.mrf.mxu0
        %v7125 = vadd.f32 0.0, %v7124
        %7126 = vmatmul.bf16.gmra.mxu0 %v6955
        %v7127 = vpop.f32.mrf.mxu0
        %v7128 = vadd.f32 0.0, %v7127
        %v7129 = vpop.f32.mrf.mxu0
        %v7130 = vadd.f32 0.0, %v7129
        %7131 = vmatmul.bf16.gmra.mxu0 %v6957
        %v7132 = vpop.f32.mrf.mxu0
        %v7133 = vadd.f32 0.0, %v7132
        %v7134 = vpop.f32.mrf.mxu0
        %v7135 = vadd.f32 0.0, %v7134
        %7136 = vmatmul.bf16.gmra.mxu0 %v6959
        %v7137 = vpop.f32.mrf.mxu0
        %v7138 = vadd.f32 0.0, %v7137
        %v7139 = vpop.f32.mrf.mxu0
        %v7140 = vadd.f32 0.0, %v7139
        %7141 = vmatmul.bf16.gmra.mxu0 %v6961
        %v7142 = vpop.f32.mrf.mxu0
        %v7143 = vadd.f32 0.0, %v7142
        %v7144 = vpop.f32.mrf.mxu0
        %v7145 = vadd.f32 0.0, %v7144
        %7146 = vmatmul.bf16.gmra.mxu0 %v6963
        %v7147 = vpop.f32.mrf.mxu0
        %v7148 = vadd.f32 0.0, %v7147
        %v7149 = vpop.f32.mrf.mxu0
        %v7150 = vadd.f32 0.0, %v7149
        %7151 = vmatmul.bf16.gmra.mxu0 %v6965
        %v7152 = vpop.f32.mrf.mxu0
        %v7153 = vadd.f32 0.0, %v7152
        %v7154 = vpop.f32.mrf.mxu0
        %v7155 = vadd.f32 0.0, %v7154
        %7156 = vmatmul.bf16.gmra.mxu0 %v6967
        %v7157 = vpop.f32.mrf.mxu0
        %v7158 = vadd.f32 0.0, %v7157
        %v7159 = vpop.f32.mrf.mxu0
        %v7160 = vadd.f32 0.0, %v7159
        %7161 = vmatmul.bf16.gmra.mxu0 %v6969
        %v7162 = vpop.f32.mrf.mxu0
        %v7163 = vadd.f32 0.0, %v7162
        %v7164 = vpop.f32.mrf.mxu0
        %v7165 = vadd.f32 0.0, %v7164
        %7166 = vmatmul.bf16.gmra.mxu0 %v6971
        %v7167 = vpop.f32.mrf.mxu0
        %v7168 = vadd.f32 0.0, %v7167
        %v7169 = vpop.f32.mrf.mxu0
        %v7170 = vadd.f32 0.0, %v7169
        %7171 = vmatmul.bf16.gmra.mxu0 %v6973
        %v7172 = vpop.f32.mrf.mxu0
        %v7173 = vadd.f32 0.0, %v7172
        %v7174 = vpop.f32.mrf.mxu0
        %v7175 = vadd.f32 0.0, %v7174
        %7176 = vmatmul.bf16.gmra.mxu0 %v6975
        %v7177 = vpop.f32.mrf.mxu0
        %v7178 = vadd.f32 0.0, %v7177
        %v7179 = vpop.f32.mrf.mxu0
        %v7180 = vadd.f32 0.0, %v7179
        %7181 = vmatmul.bf16.gmra.mxu0 %v6977
        %v7182 = vpop.f32.mrf.mxu0
        %v7183 = vadd.f32 0.0, %v7182
        %v7184 = vpop.f32.mrf.mxu0
        %v7185 = vadd.f32 0.0, %v7184
        %7186 = vmatmul.bf16.gmra.mxu0 %v6979
        %v7187 = vpop.f32.mrf.mxu0
        %v7188 = vadd.f32 0.0, %v7187
        %v7189 = vpop.f32.mrf.mxu0
        %v7190 = vadd.f32 0.0, %v7189
        %7191 = vmatmul.bf16.gmra.mxu0 %v6981
        %v7192 = vpop.f32.mrf.mxu0
        %v7193 = vadd.f32 0.0, %v7192
        %v7194 = vpop.f32.mrf.mxu0
        %v7195 = vadd.f32 0.0, %v7194
        %7196 = vmatmul.bf16.gmra.mxu0 %v6983
        %v7197 = vpop.f32.mrf.mxu0
        %v7198 = vadd.f32 0.0, %v7197
        %v7199 = vpop.f32.mrf.mxu0
        %v7200 = vadd.f32 0.0, %v7199
        %7201 = vdwg.mxu0
        %7202 = vmatpush.bf16.msra.mxu0 %v7096
        %7203 = vmatpush.bf16.msra.mxu0 %v7095
        %7204 = vmatpush.bf16.msra.mxu0 %v7094
        %7205 = vmatpush.bf16.msra.mxu0 %v7093
        %7206 = vmatpush.bf16.msra.mxu0 %v7092
        %7207 = vmatpush.bf16.msra.mxu0 %v7091
        %7208 = vmatpush.bf16.msra.mxu0 %v7090
        %7209 = vmatpush.bf16.msra.mxu0 %v7089
        %7210 = vmatmul.bf16.gmra.mxu0 %v6954
        %v7211 = vpop.f32.mrf.mxu0
        %v7212 = vadd.f32 %v7123, %v7211
        %v7213 = vpop.f32.mrf.mxu0
        %v7214 = vadd.f32 %v7125, %v7213
        %7215 = vmatmul.bf16.gmra.mxu0 %v6956
        %v7216 = vpop.f32.mrf.mxu0
        %v7217 = vadd.f32 %v7128, %v7216
        %v7218 = vpop.f32.mrf.mxu0
        %v7219 = vadd.f32 %v7130, %v7218
        %7220 = vmatmul.bf16.gmra.mxu0 %v6958
        %v7221 = vpop.f32.mrf.mxu0
        %v7222 = vadd.f32 %v7133, %v7221
        %v7223 = vpop.f32.mrf.mxu0
        %v7224 = vadd.f32 %v7135, %v7223
        %7225 = vmatmul.bf16.gmra.mxu0 %v6960
        %v7226 = vpop.f32.mrf.mxu0
        %v7227 = vadd.f32 %v7138, %v7226
        %v7228 = vpop.f32.mrf.mxu0
        %v7229 = vadd.f32 %v7140, %v7228
        %7230 = vmatmul.bf16.gmra.mxu0 %v6962
        %v7231 = vpop.f32.mrf.mxu0
        %v7232 = vadd.f32 %v7143, %v7231
        %v7233 = vpop.f32.mrf.mxu0
        %v7234 = vadd.f32 %v7145, %v7233
        %7235 = vmatmul.bf16.gmra.mxu0 %v6964
        %v7236 = vpop.f32.mrf.mxu0
        %v7237 = vadd.f32 %v7148, %v7236
        %v7238 = vpop.f32.mrf.mxu0
        %v7239 = vadd.f32 %v7150, %v7238
        %7240 = vmatmul.bf16.gmra.mxu0 %v6966
        %v7241 = vpop.f32.mrf.mxu0
        %v7242 = vadd.f32 %v7153, %v7241
        %v7243 = vpop.f32.mrf.mxu0
        %v7244 = vadd.f32 %v7155, %v7243
        %7245 = vmatmul.bf16.gmra.mxu0 %v6968
        %v7246 = vpop.f32.mrf.mxu0
        %v7247 = vadd.f32 %v7158, %v7246
        %v7248 = vpop.f32.mrf.mxu0
        %v7249 = vadd.f32 %v7160, %v7248
        %7250 = vmatmul.bf16.gmra.mxu0 %v6970
        %v7251 = vpop.f32.mrf.mxu0
        %v7252 = vadd.f32 %v7163, %v7251
        %v7253 = vpop.f32.mrf.mxu0
        %v7254 = vadd.f32 %v7165, %v7253
        %7255 = vmatmul.bf16.gmra.mxu0 %v6972
        %v7256 = vpop.f32.mrf.mxu0
        %v7257 = vadd.f32 %v7168, %v7256
        %v7258 = vpop.f32.mrf.mxu0
        %v7259 = vadd.f32 %v7170, %v7258
        %7260 = vmatmul.bf16.gmra.mxu0 %v6974
        %v7261 = vpop.f32.mrf.mxu0
        %v7262 = vadd.f32 %v7173, %v7261
        %v7263 = vpop.f32.mrf.mxu0
        %v7264 = vadd.f32 %v7175, %v7263
        %7265 = vmatmul.bf16.gmra.mxu0 %v6976
        %v7266 = vpop.f32.mrf.mxu0
        %v7267 = vadd.f32 %v7178, %v7266
        %v7268 = vpop.f32.mrf.mxu0
        %v7269 = vadd.f32 %v7180, %v7268
        %7270 = vmatmul.bf16.gmra.mxu0 %v6978
        %v7271 = vpop.f32.mrf.mxu0
        %v7272 = vadd.f32 %v7183, %v7271
        %v7273 = vpop.f32.mrf.mxu0
        %v7274 = vadd.f32 %v7185, %v7273
        %7275 = vmatmul.bf16.gmra.mxu0 %v6980
        %v7276 = vpop.f32.mrf.mxu0
        %v7277 = vadd.f32 %v7188, %v7276
        %v7278 = vpop.f32.mrf.mxu0
        %v7279 = vadd.f32 %v7190, %v7278
        %7280 = vmatmul.bf16.gmra.mxu0 %v6982
        %v7281 = vpop.f32.mrf.mxu0
        %v7282 = vadd.f32 %v7193, %v7281
        %v7283 = vpop.f32.mrf.mxu0
        %v7284 = vadd.f32 %v7195, %v7283
        %7285 = vmatmul.bf16.gmra.mxu0 %v6984
        %v7286 = vpop.f32.mrf.mxu0
        %v7287 = vadd.f32 %v7198, %v7286
        %v7288 = vpop.f32.mrf.mxu0
        %v7289 = vadd.f32 %v7200, %v7288
        %7290 = vdwg.mxu0
        %v7291 = vadd.f32 %v6577, %v7212
        %v7292 = vadd.f32 %v6578, %v7214
        %v7293 = vadd.f32 %v6579, %v7217
        %v7294 = vadd.f32 %v6580, %v7219
        %v7295 = vadd.f32 %v6581, %v7222
        %v7296 = vadd.f32 %v6582, %v7224
        %v7297 = vadd.f32 %v6583, %v7227
        %v7298 = vadd.f32 %v6584, %v7229
        %v7299 = vadd.f32 %v6585, %v7232
        %v7300 = vadd.f32 %v6586, %v7234
        %v7301 = vadd.f32 %v6587, %v7237
        %v7302 = vadd.f32 %v6588, %v7239
        %v7303 = vadd.f32 %v6589, %v7242
        %v7304 = vadd.f32 %v6590, %v7244
        %v7305 = vadd.f32 %v6591, %v7247
        %v7306 = vadd.f32 %v6592, %v7249
        %v7307 = vadd.f32 %v6593, %v7252
        %v7308 = vadd.f32 %v6594, %v7254
        %v7309 = vadd.f32 %v6595, %v7257
        %v7310 = vadd.f32 %v6596, %v7259
        %v7311 = vadd.f32 %v6597, %v7262
        %v7312 = vadd.f32 %v6598, %v7264
        %v7313 = vadd.f32 %v6599, %v7267
        %v7314 = vadd.f32 %v6600, %v7269
        %v7315 = vadd.f32 %v6601, %v7272
        %v7316 = vadd.f32 %v6602, %v7274
        %v7317 = vadd.f32 %v6603, %v7277
        %v7318 = vadd.f32 %v6604, %v7279
        %v7319 = vadd.f32 %v6605, %v7282
        %v7320 = vadd.f32 %v6606, %v7284
        %v7321 = vadd.f32 %v6607, %v7287
        %v7322 = vadd.f32 %v6608, %v7289
        %v7323 = vld [vmem:[%s769 + $0x20] sm:$0xff]
        %v7324 = vld [vmem:[%s769 + $0x60] sm:$0xff]
        %v7325 = vld [vmem:[%s769 + $0xa0] sm:$0xff]
        %v7326 = vld [vmem:[%s769 + $0xe0] sm:$0xff]
        %v7327 = vld [vmem:[%s769 + $0x120] sm:$0xff]
        %v7328 = vld [vmem:[%s769 + $0x160] sm:$0xff]
        %v7329 = vld [vmem:[%s769 + $0x1a0] sm:$0xff]
        %v7330 = vld [vmem:[%s769 + $0x1e0] sm:$0xff]
        %v7331 = vld [vmem:[%s769 + $0x220] sm:$0xff]
        %v7332 = vld [vmem:[%s769 + $0x260] sm:$0xff]
        %v7333 = vld [vmem:[%s769 + $0x2a0] sm:$0xff]
        %v7334 = vld [vmem:[%s769 + $0x2e0] sm:$0xff]
        %v7335 = vld [vmem:[%s769 + $0x320] sm:$0xff]
        %v7336 = vld [vmem:[%s769 + $0x360] sm:$0xff]
        %v7337 = vld [vmem:[%s769 + $0x3a0] sm:$0xff]
        %v7338 = vld [vmem:[%s769 + $0x3e0] sm:$0xff]
        %v7339 = vld [vmem:[%s773 + $0x8] sm:$0x3]
        %v7341 = vperm.slane %v7339, 0
        %v7342 = vperm.slane %v7339, 1
        %v7361 = vunpack.c.l.b16 %v7323
        %v7362 = vunpack.c.h.b16 %v7323
        %v7363 = vunpack.c.l.b16 %v7324
        %v7364 = vunpack.c.h.b16 %v7324
        %v7365 = vunpack.c.l.b16 %v7325
        %v7366 = vunpack.c.h.b16 %v7325
        %v7367 = vunpack.c.l.b16 %v7326
        %v7368 = vunpack.c.h.b16 %v7326
        %v7369 = vunpack.c.l.b16 %v7327
        %v7370 = vunpack.c.h.b16 %v7327
        %v7371 = vunpack.c.l.b16 %v7328
        %v7372 = vunpack.c.h.b16 %v7328
        %v7373 = vunpack.c.l.b16 %v7329
        %v7374 = vunpack.c.h.b16 %v7329
        %v7375 = vunpack.c.l.b16 %v7330
        %v7376 = vunpack.c.h.b16 %v7330
        %v7377 = vunpack.c.l.b16 %v7331
        %v7378 = vunpack.c.h.b16 %v7331
        %v7379 = vunpack.c.l.b16 %v7332
        %v7380 = vunpack.c.h.b16 %v7332
        %v7381 = vunpack.c.l.b16 %v7333
        %v7382 = vunpack.c.h.b16 %v7333
        %v7383 = vunpack.c.l.b16 %v7334
        %v7384 = vunpack.c.h.b16 %v7334
        %v7385 = vunpack.c.l.b16 %v7335
        %v7386 = vunpack.c.h.b16 %v7335
        %v7387 = vunpack.c.l.b16 %v7336
        %v7388 = vunpack.c.h.b16 %v7336
        %v7389 = vunpack.c.l.b16 %v7337
        %v7390 = vunpack.c.h.b16 %v7337
        %v7391 = vunpack.c.l.b16 %v7338
        %v7392 = vunpack.c.h.b16 %v7338
        %v7393 = vpack.c.b16 %v7363, %v7361
        %v7394 = vpack.c.b16 %v7364, %v7362
        %v7395 = vpack.c.b16 %v7367, %v7365
        %v7396 = vpack.c.b16 %v7368, %v7366
        %v7397 = vpack.c.b16 %v7371, %v7369
        %v7398 = vpack.c.b16 %v7372, %v7370
        %v7399 = vpack.c.b16 %v7375, %v7373
        %v7400 = vpack.c.b16 %v7376, %v7374
        %v7401 = vpack.c.b16 %v7379, %v7377
        %v7402 = vpack.c.b16 %v7380, %v7378
        %v7403 = vpack.c.b16 %v7383, %v7381
        %v7404 = vpack.c.b16 %v7384, %v7382
        %v7405 = vpack.c.b16 %v7387, %v7385
        %v7406 = vpack.c.b16 %v7388, %v7386
        %v7407 = vpack.c.b16 %v7391, %v7389
        %v7408 = vpack.c.b16 %v7392, %v7390
        %7425 = vmatpush.bf16.msra.mxu0 %v7407
        %7426 = vmatpush.bf16.msra.mxu0 %v7405
        %7427 = vmatpush.bf16.msra.mxu0 %v7403
        %7428 = vmatpush.bf16.msra.mxu0 %v7401
        %7429 = vmatpush.bf16.msra.mxu0 %v7399
        %7430 = vmatpush.bf16.msra.mxu0 %v7397
        %7431 = vmatpush.bf16.msra.mxu0 %v7395
        %7432 = vmatpush.bf16.msra.mxu0 %v7393
        %7433 = vmatmul.bf16.gmra.mxu0 %v4515
        %v7434 = vpop.f32.mrf.mxu0
        %v7435 = vadd.f32 %v7341, %v7434
        %v7436 = vpop.f32.mrf.mxu0
        %v7437 = vadd.f32 %v7341, %v7436
        %7438 = vmatmul.bf16.gmra.mxu0 %v4516
        %v7439 = vpop.f32.mrf.mxu0
        %v7440 = vadd.f32 %v7341, %v7439
        %v7441 = vpop.f32.mrf.mxu0
        %v7442 = vadd.f32 %v7341, %v7441
        %7443 = vmatmul.bf16.gmra.mxu0 %v4517
        %v7444 = vpop.f32.mrf.mxu0
        %v7445 = vadd.f32 %v7341, %v7444
        %v7446 = vpop.f32.mrf.mxu0
        %v7447 = vadd.f32 %v7341, %v7446
        %7448 = vmatmul.bf16.gmra.mxu0 %v4518
        %v7449 = vpop.f32.mrf.mxu0
        %v7450 = vadd.f32 %v7341, %v7449
        %v7451 = vpop.f32.mrf.mxu0
        %v7452 = vadd.f32 %v7341, %v7451
        %7453 = vmatmul.bf16.gmra.mxu0 %v4519
        %v7454 = vpop.f32.mrf.mxu0
        %v7455 = vadd.f32 %v7341, %v7454
        %v7456 = vpop.f32.mrf.mxu0
        %v7457 = vadd.f32 %v7341, %v7456
        %7458 = vmatmul.bf16.gmra.mxu0 %v4520
        %v7459 = vpop.f32.mrf.mxu0
        %v7460 = vadd.f32 %v7341, %v7459
        %v7461 = vpop.f32.mrf.mxu0
        %v7462 = vadd.f32 %v7341, %v7461
        %7463 = vmatmul.bf16.gmra.mxu0 %v4521
        %v7464 = vpop.f32.mrf.mxu0
        %v7465 = vadd.f32 %v7341, %v7464
        %v7466 = vpop.f32.mrf.mxu0
        %v7467 = vadd.f32 %v7341, %v7466
        %7468 = vmatmul.bf16.gmra.mxu0 %v4522
        %v7469 = vpop.f32.mrf.mxu0
        %v7470 = vadd.f32 %v7341, %v7469
        %v7471 = vpop.f32.mrf.mxu0
        %v7472 = vadd.f32 %v7341, %v7471
        %7473 = vmatmul.bf16.gmra.mxu0 %v4523
        %v7474 = vpop.f32.mrf.mxu0
        %v7475 = vadd.f32 %v7341, %v7474
        %v7476 = vpop.f32.mrf.mxu0
        %v7477 = vadd.f32 %v7341, %v7476
        %7478 = vmatmul.bf16.gmra.mxu0 %v4524
        %v7479 = vpop.f32.mrf.mxu0
        %v7480 = vadd.f32 %v7341, %v7479
        %v7481 = vpop.f32.mrf.mxu0
        %v7482 = vadd.f32 %v7341, %v7481
        %7483 = vmatmul.bf16.gmra.mxu0 %v4525
        %v7484 = vpop.f32.mrf.mxu0
        %v7485 = vadd.f32 %v7341, %v7484
        %v7486 = vpop.f32.mrf.mxu0
        %v7487 = vadd.f32 %v7341, %v7486
        %7488 = vmatmul.bf16.gmra.mxu0 %v4526
        %v7489 = vpop.f32.mrf.mxu0
        %v7490 = vadd.f32 %v7341, %v7489
        %v7491 = vpop.f32.mrf.mxu0
        %v7492 = vadd.f32 %v7341, %v7491
        %7493 = vmatmul.bf16.gmra.mxu0 %v4527
        %v7494 = vpop.f32.mrf.mxu0
        %v7495 = vadd.f32 %v7341, %v7494
        %v7496 = vpop.f32.mrf.mxu0
        %v7497 = vadd.f32 %v7341, %v7496
        %7498 = vmatmul.bf16.gmra.mxu0 %v4528
        %v7499 = vpop.f32.mrf.mxu0
        %v7500 = vadd.f32 %v7341, %v7499
        %v7501 = vpop.f32.mrf.mxu0
        %v7502 = vadd.f32 %v7341, %v7501
        %7503 = vmatmul.bf16.gmra.mxu0 %v4529
        %v7504 = vpop.f32.mrf.mxu0
        %v7505 = vadd.f32 %v7341, %v7504
        %v7506 = vpop.f32.mrf.mxu0
        %v7507 = vadd.f32 %v7341, %v7506
        %7508 = vmatmul.bf16.gmra.mxu0 %v4530
        %v7509 = vpop.f32.mrf.mxu0
        %v7510 = vadd.f32 %v7341, %v7509
        %v7511 = vpop.f32.mrf.mxu0
        %v7512 = vadd.f32 %v7341, %v7511
        %7513 = vdwg.mxu0
        %7514 = vmatpush.bf16.msra.mxu0 %v7408
        %7515 = vmatpush.bf16.msra.mxu0 %v7406
        %7516 = vmatpush.bf16.msra.mxu0 %v7404
        %7517 = vmatpush.bf16.msra.mxu0 %v7402
        %7518 = vmatpush.bf16.msra.mxu0 %v7400
        %7519 = vmatpush.bf16.msra.mxu0 %v7398
        %7520 = vmatpush.bf16.msra.mxu0 %v7396
        %7521 = vmatpush.bf16.msra.mxu0 %v7394
        %7522 = vmatmul.bf16.gmra.mxu0 %v4515
        %v7523 = vpop.f32.mrf.mxu0
        %v7524 = vadd.f32 %v7342, %v7523
        %v7525 = vpop.f32.mrf.mxu0
        %v7526 = vadd.f32 %v7342, %v7525
        %7527 = vmatmul.bf16.gmra.mxu0 %v4516
        %v7528 = vpop.f32.mrf.mxu0
        %v7529 = vadd.f32 %v7342, %v7528
        %v7530 = vpop.f32.mrf.mxu0
        %v7531 = vadd.f32 %v7342, %v7530
        %7532 = vmatmul.bf16.gmra.mxu0 %v4517
        %v7533 = vpop.f32.mrf.mxu0
        %v7534 = vadd.f32 %v7342, %v7533
        %v7535 = vpop.f32.mrf.mxu0
        %v7536 = vadd.f32 %v7342, %v7535
        %7537 = vmatmul.bf16.gmra.mxu0 %v4518
        %v7538 = vpop.f32.mrf.mxu0
        %v7539 = vadd.f32 %v7342, %v7538
        %v7540 = vpop.f32.mrf.mxu0
        %v7541 = vadd.f32 %v7342, %v7540
        %7542 = vmatmul.bf16.gmra.mxu0 %v4519
        %v7543 = vpop.f32.mrf.mxu0
        %v7544 = vadd.f32 %v7342, %v7543
        %v7545 = vpop.f32.mrf.mxu0
        %v7546 = vadd.f32 %v7342, %v7545
        %7547 = vmatmul.bf16.gmra.mxu0 %v4520
        %v7548 = vpop.f32.mrf.mxu0
        %v7549 = vadd.f32 %v7342, %v7548
        %v7550 = vpop.f32.mrf.mxu0
        %v7551 = vadd.f32 %v7342, %v7550
        %7552 = vmatmul.bf16.gmra.mxu0 %v4521
        %v7553 = vpop.f32.mrf.mxu0
        %v7554 = vadd.f32 %v7342, %v7553
        %v7555 = vpop.f32.mrf.mxu0
        %v7556 = vadd.f32 %v7342, %v7555
        %7557 = vmatmul.bf16.gmra.mxu0 %v4522
        %v7558 = vpop.f32.mrf.mxu0
        %v7559 = vadd.f32 %v7342, %v7558
        %v7560 = vpop.f32.mrf.mxu0
        %v7561 = vadd.f32 %v7342, %v7560
        %7562 = vmatmul.bf16.gmra.mxu0 %v4523
        %v7563 = vpop.f32.mrf.mxu0
        %v7564 = vadd.f32 %v7342, %v7563
        %v7565 = vpop.f32.mrf.mxu0
        %v7566 = vadd.f32 %v7342, %v7565
        %7567 = vmatmul.bf16.gmra.mxu0 %v4524
        %v7568 = vpop.f32.mrf.mxu0
        %v7569 = vadd.f32 %v7342, %v7568
        %v7570 = vpop.f32.mrf.mxu0
        %v7571 = vadd.f32 %v7342, %v7570
        %7572 = vmatmul.bf16.gmra.mxu0 %v4525
        %v7573 = vpop.f32.mrf.mxu0
        %v7574 = vadd.f32 %v7342, %v7573
        %v7575 = vpop.f32.mrf.mxu0
        %v7576 = vadd.f32 %v7342, %v7575
        %7577 = vmatmul.bf16.gmra.mxu0 %v4526
        %v7578 = vpop.f32.mrf.mxu0
        %v7579 = vadd.f32 %v7342, %v7578
        %v7580 = vpop.f32.mrf.mxu0
        %v7581 = vadd.f32 %v7342, %v7580
        %7582 = vmatmul.bf16.gmra.mxu0 %v4527
        %v7583 = vpop.f32.mrf.mxu0
        %v7584 = vadd.f32 %v7342, %v7583
        %v7585 = vpop.f32.mrf.mxu0
        %v7586 = vadd.f32 %v7342, %v7585
        %7587 = vmatmul.bf16.gmra.mxu0 %v4528
        %v7588 = vpop.f32.mrf.mxu0
        %v7589 = vadd.f32 %v7342, %v7588
        %v7590 = vpop.f32.mrf.mxu0
        %v7591 = vadd.f32 %v7342, %v7590
        %7592 = vmatmul.bf16.gmra.mxu0 %v4529
        %v7593 = vpop.f32.mrf.mxu0
        %v7594 = vadd.f32 %v7342, %v7593
        %v7595 = vpop.f32.mrf.mxu0
        %v7596 = vadd.f32 %v7342, %v7595
        %7597 = vmatmul.bf16.gmra.mxu0 %v4530
        %v7598 = vpop.f32.mrf.mxu0
        %v7599 = vadd.f32 %v7342, %v7598
        %v7600 = vpop.f32.mrf.mxu0
        %v7601 = vadd.f32 %v7342, %v7600
        %7602 = vdwg.mxu0
        %v7603 = vmax.f32 %v7435, 0.0
        %v7604 = vmax.f32 %v7524, 0.0
        %v7605 = vmax.f32 %v7437, 0.0
        %v7606 = vmax.f32 %v7526, 0.0
        %v7607 = vmax.f32 %v7440, 0.0
        %v7608 = vmax.f32 %v7529, 0.0
        %v7609 = vmax.f32 %v7442, 0.0
        %v7610 = vmax.f32 %v7531, 0.0
        %v7611 = vmax.f32 %v7445, 0.0
        %v7612 = vmax.f32 %v7534, 0.0
        %v7613 = vmax.f32 %v7447, 0.0
        %v7614 = vmax.f32 %v7536, 0.0
        %v7615 = vmax.f32 %v7450, 0.0
        %v7616 = vmax.f32 %v7539, 0.0
        %v7617 = vmax.f32 %v7452, 0.0
        %v7618 = vmax.f32 %v7541, 0.0
        %v7619 = vmax.f32 %v7455, 0.0
        %v7620 = vmax.f32 %v7544, 0.0
        %v7621 = vmax.f32 %v7457, 0.0
        %v7622 = vmax.f32 %v7546, 0.0
        %v7623 = vmax.f32 %v7460, 0.0
        %v7624 = vmax.f32 %v7549, 0.0
        %v7625 = vmax.f32 %v7462, 0.0
        %v7626 = vmax.f32 %v7551, 0.0
        %v7627 = vmax.f32 %v7465, 0.0
        %v7628 = vmax.f32 %v7554, 0.0
        %v7629 = vmax.f32 %v7467, 0.0
        %v7630 = vmax.f32 %v7556, 0.0
        %v7631 = vmax.f32 %v7470, 0.0
        %v7632 = vmax.f32 %v7559, 0.0
        %v7633 = vmax.f32 %v7472, 0.0
        %v7634 = vmax.f32 %v7561, 0.0
        %v7635 = vmax.f32 %v7475, 0.0
        %v7636 = vmax.f32 %v7564, 0.0
        %v7637 = vmax.f32 %v7477, 0.0
        %v7638 = vmax.f32 %v7566, 0.0
        %v7639 = vmax.f32 %v7480, 0.0
        %v7640 = vmax.f32 %v7569, 0.0
        %v7641 = vmax.f32 %v7482, 0.0
        %v7642 = vmax.f32 %v7571, 0.0
        %v7643 = vmax.f32 %v7485, 0.0
        %v7644 = vmax.f32 %v7574, 0.0
        %v7645 = vmax.f32 %v7487, 0.0
        %v7646 = vmax.f32 %v7576, 0.0
        %v7647 = vmax.f32 %v7490, 0.0
        %v7648 = vmax.f32 %v7579, 0.0
        %v7649 = vmax.f32 %v7492, 0.0
        %v7650 = vmax.f32 %v7581, 0.0
        %v7651 = vmax.f32 %v7495, 0.0
        %v7652 = vmax.f32 %v7584, 0.0
        %v7653 = vmax.f32 %v7497, 0.0
        %v7654 = vmax.f32 %v7586, 0.0
        %v7655 = vmax.f32 %v7500, 0.0
        %v7656 = vmax.f32 %v7589, 0.0
        %v7657 = vmax.f32 %v7502, 0.0
        %v7658 = vmax.f32 %v7591, 0.0
        %v7659 = vmax.f32 %v7505, 0.0
        %v7660 = vmax.f32 %v7594, 0.0
        %v7661 = vmax.f32 %v7507, 0.0
        %v7662 = vmax.f32 %v7596, 0.0
        %v7663 = vmax.f32 %v7510, 0.0
        %v7664 = vmax.f32 %v7599, 0.0
        %v7665 = vmax.f32 %v7512, 0.0
        %v7666 = vmax.f32 %v7601, 0.0
        %v7667 = vpack.c.bf16 %v7605, %v7603
        %v7668 = vpack.c.bf16 %v7606, %v7604
        %v7669 = vpack.c.bf16 %v7609, %v7607
        %v7670 = vpack.c.bf16 %v7610, %v7608
        %v7671 = vpack.c.bf16 %v7613, %v7611
        %v7672 = vpack.c.bf16 %v7614, %v7612
        %v7673 = vpack.c.bf16 %v7617, %v7615
        %v7674 = vpack.c.bf16 %v7618, %v7616
        %v7675 = vpack.c.bf16 %v7621, %v7619
        %v7676 = vpack.c.bf16 %v7622, %v7620
        %v7677 = vpack.c.bf16 %v7625, %v7623
        %v7678 = vpack.c.bf16 %v7626, %v7624
        %v7679 = vpack.c.bf16 %v7629, %v7627
        %v7680 = vpack.c.bf16 %v7630, %v7628
        %v7681 = vpack.c.bf16 %v7633, %v7631
        %v7682 = vpack.c.bf16 %v7634, %v7632
        %v7683 = vpack.c.bf16 %v7637, %v7635
        %v7684 = vpack.c.bf16 %v7638, %v7636
        %v7685 = vpack.c.bf16 %v7641, %v7639
        %v7686 = vpack.c.bf16 %v7642, %v7640
        %v7687 = vpack.c.bf16 %v7645, %v7643
        %v7688 = vpack.c.bf16 %v7646, %v7644
        %v7689 = vpack.c.bf16 %v7649, %v7647
        %v7690 = vpack.c.bf16 %v7650, %v7648
        %v7691 = vpack.c.bf16 %v7653, %v7651
        %v7692 = vpack.c.bf16 %v7654, %v7652
        %v7693 = vpack.c.bf16 %v7657, %v7655
        %v7694 = vpack.c.bf16 %v7658, %v7656
        %v7695 = vpack.c.bf16 %v7661, %v7659
        %v7696 = vpack.c.bf16 %v7662, %v7660
        %v7697 = vpack.c.bf16 %v7665, %v7663
        %v7698 = vpack.c.bf16 %v7666, %v7664
        %v7699 = vld [vmem:[%s778 + $0x200] sm:$0xf]
        %v7700 = vld [vmem:[%s778 + $0x204] sm:$0xf]
        %v7701 = vld [vmem:[%s778 + $0x208] sm:$0xf]
        %v7702 = vld [vmem:[%s778 + $0x20c] sm:$0xf]
        %v7703 = vld [vmem:[%s778 + $0x210] sm:$0xf]
        %v7704 = vld [vmem:[%s778 + $0x214] sm:$0xf]
        %v7705 = vld [vmem:[%s778 + $0x218] sm:$0xf]
        %v7706 = vld [vmem:[%s778 + $0x21c] sm:$0xf]
        %v7707 = vld [vmem:[%s778 + $0x220] sm:$0xf]
        %v7708 = vld [vmem:[%s778 + $0x224] sm:$0xf]
        %v7709 = vld [vmem:[%s778 + $0x228] sm:$0xf]
        %v7710 = vld [vmem:[%s778 + $0x22c] sm:$0xf]
        %v7711 = vld [vmem:[%s778 + $0x230] sm:$0xf]
        %v7712 = vld [vmem:[%s778 + $0x234] sm:$0xf]
        %v7713 = vld [vmem:[%s778 + $0x238] sm:$0xf]
        %v7714 = vld [vmem:[%s778 + $0x23c] sm:$0xf]
        %v7715 = vld [vmem:[%s778 + $0x240] sm:$0xf]
        %v7716 = vld [vmem:[%s778 + $0x244] sm:$0xf]
        %v7717 = vld [vmem:[%s778 + $0x248] sm:$0xf]
        %v7718 = vld [vmem:[%s778 + $0x24c] sm:$0xf]
        %v7719 = vld [vmem:[%s778 + $0x250] sm:$0xf]
        %v7720 = vld [vmem:[%s778 + $0x254] sm:$0xf]
        %v7721 = vld [vmem:[%s778 + $0x258] sm:$0xf]
        %v7722 = vld [vmem:[%s778 + $0x25c] sm:$0xf]
        %v7723 = vld [vmem:[%s778 + $0x260] sm:$0xf]
        %v7724 = vld [vmem:[%s778 + $0x264] sm:$0xf]
        %v7725 = vld [vmem:[%s778 + $0x268] sm:$0xf]
        %v7726 = vld [vmem:[%s778 + $0x26c] sm:$0xf]
        %v7727 = vld [vmem:[%s778 + $0x270] sm:$0xf]
        %v7728 = vld [vmem:[%s778 + $0x274] sm:$0xf]
        %v7729 = vld [vmem:[%s778 + $0x278] sm:$0xf]
        %v7730 = vld [vmem:[%s778 + $0x27c] sm:$0xf]
        %v7763 = vunpack.c.l.b16 %v7699
        %v7764 = vunpack.c.l.b16 %v7700
        %v7765 = vunpack.c.l.b16 %v7701
        %v7766 = vunpack.c.l.b16 %v7702
        %v7767 = vunpack.c.l.b16 %v7703
        %v7768 = vunpack.c.l.b16 %v7704
        %v7769 = vunpack.c.l.b16 %v7705
        %v7770 = vunpack.c.l.b16 %v7706
        %v7771 = vunpack.c.l.b16 %v7707
        %v7772 = vunpack.c.l.b16 %v7708
        %v7773 = vunpack.c.l.b16 %v7709
        %v7774 = vunpack.c.l.b16 %v7710
        %v7775 = vunpack.c.l.b16 %v7711
        %v7776 = vunpack.c.l.b16 %v7712
        %v7777 = vunpack.c.l.b16 %v7713
        %v7778 = vunpack.c.l.b16 %v7714
        %v7779 = vunpack.c.l.b16 %v7715
        %v7780 = vunpack.c.l.b16 %v7716
        %v7781 = vunpack.c.l.b16 %v7717
        %v7782 = vunpack.c.l.b16 %v7718
        %v7783 = vunpack.c.l.b16 %v7719
        %v7784 = vunpack.c.l.b16 %v7720
        %v7785 = vunpack.c.l.b16 %v7721
        %v7786 = vunpack.c.l.b16 %v7722
        %v7787 = vunpack.c.l.b16 %v7723
        %v7788 = vunpack.c.l.b16 %v7724
        %v7789 = vunpack.c.l.b16 %v7725
        %v7790 = vunpack.c.l.b16 %v7726
        %v7791 = vunpack.c.l.b16 %v7727
        %v7792 = vunpack.c.l.b16 %v7728
        %v7793 = vunpack.c.l.b16 %v7729
        %v7794 = vunpack.c.l.b16 %v7730
        %v7795 = vpack.c.b16 %v7764, %v7763
        %v7796 = vpack.c.b16 %v7766, %v7765
        %v7797 = vpack.c.b16 %v7768, %v7767
        %v7798 = vpack.c.b16 %v7770, %v7769
        %v7799 = vpack.c.b16 %v7772, %v7771
        %v7800 = vpack.c.b16 %v7774, %v7773
        %v7801 = vpack.c.b16 %v7776, %v7775
        %v7802 = vpack.c.b16 %v7778, %v7777
        %v7803 = vpack.c.b16 %v7780, %v7779
        %v7804 = vpack.c.b16 %v7782, %v7781
        %v7805 = vpack.c.b16 %v7784, %v7783
        %v7806 = vpack.c.b16 %v7786, %v7785
        %v7807 = vpack.c.b16 %v7788, %v7787
        %v7808 = vpack.c.b16 %v7790, %v7789
        %v7809 = vpack.c.b16 %v7792, %v7791
        %v7810 = vpack.c.b16 %v7794, %v7793
        %7827 = vmatpush.bf16.msra.mxu0 %v7802
        %7828 = vmatpush.bf16.msra.mxu0 %v7801
        %7829 = vmatpush.bf16.msra.mxu0 %v7800
        %7830 = vmatpush.bf16.msra.mxu0 %v7799
        %7831 = vmatpush.bf16.msra.mxu0 %v7798
        %7832 = vmatpush.bf16.msra.mxu0 %v7797
        %7833 = vmatpush.bf16.msra.mxu0 %v7796
        %7834 = vmatpush.bf16.msra.mxu0 %v7795
        %7835 = vmatmul.bf16.gmra.mxu0 %v7667
        %v7836 = vpop.f32.mrf.mxu0
        %v7837 = vadd.f32 0.0, %v7836
        %v7838 = vpop.f32.mrf.mxu0
        %v7839 = vadd.f32 0.0, %v7838
        %7840 = vmatmul.bf16.gmra.mxu0 %v7669
        %v7841 = vpop.f32.mrf.mxu0
        %v7842 = vadd.f32 0.0, %v7841
        %v7843 = vpop.f32.mrf.mxu0
        %v7844 = vadd.f32 0.0, %v7843
        %7845 = vmatmul.bf16.gmra.mxu0 %v7671
        %v7846 = vpop.f32.mrf.mxu0
        %v7847 = vadd.f32 0.0, %v7846
        %v7848 = vpop.f32.mrf.mxu0
        %v7849 = vadd.f32 0.0, %v7848
        %7850 = vmatmul.bf16.gmra.mxu0 %v7673
        %v7851 = vpop.f32.mrf.mxu0
        %v7852 = vadd.f32 0.0, %v7851
        %v7853 = vpop.f32.mrf.mxu0
        %v7854 = vadd.f32 0.0, %v7853
        %7855 = vmatmul.bf16.gmra.mxu0 %v7675
        %v7856 = vpop.f32.mrf.mxu0
        %v7857 = vadd.f32 0.0, %v7856
        %v7858 = vpop.f32.mrf.mxu0
        %v7859 = vadd.f32 0.0, %v7858
        %7860 = vmatmul.bf16.gmra.mxu0 %v7677
        %v7861 = vpop.f32.mrf.mxu0
        %v7862 = vadd.f32 0.0, %v7861
        %v7863 = vpop.f32.mrf.mxu0
        %v7864 = vadd.f32 0.0, %v7863
        %7865 = vmatmul.bf16.gmra.mxu0 %v7679
        %v7866 = vpop.f32.mrf.mxu0
        %v7867 = vadd.f32 0.0, %v7866
        %v7868 = vpop.f32.mrf.mxu0
        %v7869 = vadd.f32 0.0, %v7868
        %7870 = vmatmul.bf16.gmra.mxu0 %v7681
        %v7871 = vpop.f32.mrf.mxu0
        %v7872 = vadd.f32 0.0, %v7871
        %v7873 = vpop.f32.mrf.mxu0
        %v7874 = vadd.f32 0.0, %v7873
        %7875 = vmatmul.bf16.gmra.mxu0 %v7683
        %v7876 = vpop.f32.mrf.mxu0
        %v7877 = vadd.f32 0.0, %v7876
        %v7878 = vpop.f32.mrf.mxu0
        %v7879 = vadd.f32 0.0, %v7878
        %7880 = vmatmul.bf16.gmra.mxu0 %v7685
        %v7881 = vpop.f32.mrf.mxu0
        %v7882 = vadd.f32 0.0, %v7881
        %v7883 = vpop.f32.mrf.mxu0
        %v7884 = vadd.f32 0.0, %v7883
        %7885 = vmatmul.bf16.gmra.mxu0 %v7687
        %v7886 = vpop.f32.mrf.mxu0
        %v7887 = vadd.f32 0.0, %v7886
        %v7888 = vpop.f32.mrf.mxu0
        %v7889 = vadd.f32 0.0, %v7888
        %7890 = vmatmul.bf16.gmra.mxu0 %v7689
        %v7891 = vpop.f32.mrf.mxu0
        %v7892 = vadd.f32 0.0, %v7891
        %v7893 = vpop.f32.mrf.mxu0
        %v7894 = vadd.f32 0.0, %v7893
        %7895 = vmatmul.bf16.gmra.mxu0 %v7691
        %v7896 = vpop.f32.mrf.mxu0
        %v7897 = vadd.f32 0.0, %v7896
        %v7898 = vpop.f32.mrf.mxu0
        %v7899 = vadd.f32 0.0, %v7898
        %7900 = vmatmul.bf16.gmra.mxu0 %v7693
        %v7901 = vpop.f32.mrf.mxu0
        %v7902 = vadd.f32 0.0, %v7901
        %v7903 = vpop.f32.mrf.mxu0
        %v7904 = vadd.f32 0.0, %v7903
        %7905 = vmatmul.bf16.gmra.mxu0 %v7695
        %v7906 = vpop.f32.mrf.mxu0
        %v7907 = vadd.f32 0.0, %v7906
        %v7908 = vpop.f32.mrf.mxu0
        %v7909 = vadd.f32 0.0, %v7908
        %7910 = vmatmul.bf16.gmra.mxu0 %v7697
        %v7911 = vpop.f32.mrf.mxu0
        %v7912 = vadd.f32 0.0, %v7911
        %v7913 = vpop.f32.mrf.mxu0
        %v7914 = vadd.f32 0.0, %v7913
        %7915 = vdwg.mxu0
        %7916 = vmatpush.bf16.msra.mxu0 %v7810
        %7917 = vmatpush.bf16.msra.mxu0 %v7809
        %7918 = vmatpush.bf16.msra.mxu0 %v7808
        %7919 = vmatpush.bf16.msra.mxu0 %v7807
        %7920 = vmatpush.bf16.msra.mxu0 %v7806
        %7921 = vmatpush.bf16.msra.mxu0 %v7805
        %7922 = vmatpush.bf16.msra.mxu0 %v7804
        %7923 = vmatpush.bf16.msra.mxu0 %v7803
        %7924 = vmatmul.bf16.gmra.mxu0 %v7668
        %v7925 = vpop.f32.mrf.mxu0
        %v7926 = vadd.f32 %v7837, %v7925
        %v7927 = vpop.f32.mrf.mxu0
        %v7928 = vadd.f32 %v7839, %v7927
        %7929 = vmatmul.bf16.gmra.mxu0 %v7670
        %v7930 = vpop.f32.mrf.mxu0
        %v7931 = vadd.f32 %v7842, %v7930
        %v7932 = vpop.f32.mrf.mxu0
        %v7933 = vadd.f32 %v7844, %v7932
        %7934 = vmatmul.bf16.gmra.mxu0 %v7672
        %v7935 = vpop.f32.mrf.mxu0
        %v7936 = vadd.f32 %v7847, %v7935
        %v7937 = vpop.f32.mrf.mxu0
        %v7938 = vadd.f32 %v7849, %v7937
        %7939 = vmatmul.bf16.gmra.mxu0 %v7674
        %v7940 = vpop.f32.mrf.mxu0
        %v7941 = vadd.f32 %v7852, %v7940
        %v7942 = vpop.f32.mrf.mxu0
        %v7943 = vadd.f32 %v7854, %v7942
        %7944 = vmatmul.bf16.gmra.mxu0 %v7676
        %v7945 = vpop.f32.mrf.mxu0
        %v7946 = vadd.f32 %v7857, %v7945
        %v7947 = vpop.f32.mrf.mxu0
        %v7948 = vadd.f32 %v7859, %v7947
        %7949 = vmatmul.bf16.gmra.mxu0 %v7678
        %v7950 = vpop.f32.mrf.mxu0
        %v7951 = vadd.f32 %v7862, %v7950
        %v7952 = vpop.f32.mrf.mxu0
        %v7953 = vadd.f32 %v7864, %v7952
        %7954 = vmatmul.bf16.gmra.mxu0 %v7680
        %v7955 = vpop.f32.mrf.mxu0
        %v7956 = vadd.f32 %v7867, %v7955
        %v7957 = vpop.f32.mrf.mxu0
        %v7958 = vadd.f32 %v7869, %v7957
        %7959 = vmatmul.bf16.gmra.mxu0 %v7682
        %v7960 = vpop.f32.mrf.mxu0
        %v7961 = vadd.f32 %v7872, %v7960
        %v7962 = vpop.f32.mrf.mxu0
        %v7963 = vadd.f32 %v7874, %v7962
        %7964 = vmatmul.bf16.gmra.mxu0 %v7684
        %v7965 = vpop.f32.mrf.mxu0
        %v7966 = vadd.f32 %v7877, %v7965
        %v7967 = vpop.f32.mrf.mxu0
        %v7968 = vadd.f32 %v7879, %v7967
        %7969 = vmatmul.bf16.gmra.mxu0 %v7686
        %v7970 = vpop.f32.mrf.mxu0
        %v7971 = vadd.f32 %v7882, %v7970
        %v7972 = vpop.f32.mrf.mxu0
        %v7973 = vadd.f32 %v7884, %v7972
        %7974 = vmatmul.bf16.gmra.mxu0 %v7688
        %v7975 = vpop.f32.mrf.mxu0
        %v7976 = vadd.f32 %v7887, %v7975
        %v7977 = vpop.f32.mrf.mxu0
        %v7978 = vadd.f32 %v7889, %v7977
        %7979 = vmatmul.bf16.gmra.mxu0 %v7690
        %v7980 = vpop.f32.mrf.mxu0
        %v7981 = vadd.f32 %v7892, %v7980
        %v7982 = vpop.f32.mrf.mxu0
        %v7983 = vadd.f32 %v7894, %v7982
        %7984 = vmatmul.bf16.gmra.mxu0 %v7692
        %v7985 = vpop.f32.mrf.mxu0
        %v7986 = vadd.f32 %v7897, %v7985
        %v7987 = vpop.f32.mrf.mxu0
        %v7988 = vadd.f32 %v7899, %v7987
        %7989 = vmatmul.bf16.gmra.mxu0 %v7694
        %v7990 = vpop.f32.mrf.mxu0
        %v7991 = vadd.f32 %v7902, %v7990
        %v7992 = vpop.f32.mrf.mxu0
        %v7993 = vadd.f32 %v7904, %v7992
        %7994 = vmatmul.bf16.gmra.mxu0 %v7696
        %v7995 = vpop.f32.mrf.mxu0
        %v7996 = vadd.f32 %v7907, %v7995
        %v7997 = vpop.f32.mrf.mxu0
        %v7998 = vadd.f32 %v7909, %v7997
        %7999 = vmatmul.bf16.gmra.mxu0 %v7698
        %v8000 = vpop.f32.mrf.mxu0
        %v8001 = vadd.f32 %v7912, %v8000
        %v8002 = vpop.f32.mrf.mxu0
        %v8003 = vadd.f32 %v7914, %v8002
        %8004 = vdwg.mxu0
        %v8005 = vadd.f32 %v7291, %v7926
        %v8006 = vadd.f32 %v7292, %v7928
        %v8007 = vadd.f32 %v7293, %v7931
        %v8008 = vadd.f32 %v7294, %v7933
        %v8009 = vadd.f32 %v7295, %v7936
        %v8010 = vadd.f32 %v7296, %v7938
        %v8011 = vadd.f32 %v7297, %v7941
        %v8012 = vadd.f32 %v7298, %v7943
        %v8013 = vadd.f32 %v7299, %v7946
        %v8014 = vadd.f32 %v7300, %v7948
        %v8015 = vadd.f32 %v7301, %v7951
        %v8016 = vadd.f32 %v7302, %v7953
        %v8017 = vadd.f32 %v7303, %v7956
        %v8018 = vadd.f32 %v7304, %v7958
        %v8019 = vadd.f32 %v7305, %v7961
        %v8020 = vadd.f32 %v7306, %v7963
        %v8021 = vadd.f32 %v7307, %v7966
        %v8022 = vadd.f32 %v7308, %v7968
        %v8023 = vadd.f32 %v7309, %v7971
        %v8024 = vadd.f32 %v7310, %v7973
        %v8025 = vadd.f32 %v7311, %v7976
        %v8026 = vadd.f32 %v7312, %v7978
        %v8027 = vadd.f32 %v7313, %v7981
        %v8028 = vadd.f32 %v7314, %v7983
        %v8029 = vadd.f32 %v7315, %v7986
        %v8030 = vadd.f32 %v7316, %v7988
        %v8031 = vadd.f32 %v7317, %v7991
        %v8032 = vadd.f32 %v7318, %v7993
        %v8033 = vadd.f32 %v7319, %v7996
        %v8034 = vadd.f32 %v7320, %v7998
        %v8035 = vadd.f32 %v7321, %v8001
        %v8036 = vadd.f32 %v7322, %v8003
        %v8037 = vld [vmem:[%s769 + $0x28] sm:$0xff]
        %v8038 = vld [vmem:[%s769 + $0x68] sm:$0xff]
        %v8039 = vld [vmem:[%s769 + $0xa8] sm:$0xff]
        %v8040 = vld [vmem:[%s769 + $0xe8] sm:$0xff]
        %v8041 = vld [vmem:[%s769 + $0x128] sm:$0xff]
        %v8042 = vld [vmem:[%s769 + $0x168] sm:$0xff]
        %v8043 = vld [vmem:[%s769 + $0x1a8] sm:$0xff]
        %v8044 = vld [vmem:[%s769 + $0x1e8] sm:$0xff]
        %v8045 = vld [vmem:[%s769 + $0x228] sm:$0xff]
        %v8046 = vld [vmem:[%s769 + $0x268] sm:$0xff]
        %v8047 = vld [vmem:[%s769 + $0x2a8] sm:$0xff]
        %v8048 = vld [vmem:[%s769 + $0x2e8] sm:$0xff]
        %v8049 = vld [vmem:[%s769 + $0x328] sm:$0xff]
        %v8050 = vld [vmem:[%s769 + $0x368] sm:$0xff]
        %v8051 = vld [vmem:[%s769 + $0x3a8] sm:$0xff]
        %v8052 = vld [vmem:[%s769 + $0x3e8] sm:$0xff]
        %v8053 = vld [vmem:[%s773 + $0xa] sm:$0x3]
        %v8055 = vperm.slane %v8053, 0
        %v8056 = vperm.slane %v8053, 1
        %v8075 = vunpack.c.l.b16 %v8037
        %v8076 = vunpack.c.h.b16 %v8037
        %v8077 = vunpack.c.l.b16 %v8038
        %v8078 = vunpack.c.h.b16 %v8038
        %v8079 = vunpack.c.l.b16 %v8039
        %v8080 = vunpack.c.h.b16 %v8039
        %v8081 = vunpack.c.l.b16 %v8040
        %v8082 = vunpack.c.h.b16 %v8040
        %v8083 = vunpack.c.l.b16 %v8041
        %v8084 = vunpack.c.h.b16 %v8041
        %v8085 = vunpack.c.l.b16 %v8042
        %v8086 = vunpack.c.h.b16 %v8042
        %v8087 = vunpack.c.l.b16 %v8043
        %v8088 = vunpack.c.h.b16 %v8043
        %v8089 = vunpack.c.l.b16 %v8044
        %v8090 = vunpack.c.h.b16 %v8044
        %v8091 = vunpack.c.l.b16 %v8045
        %v8092 = vunpack.c.h.b16 %v8045
        %v8093 = vunpack.c.l.b16 %v8046
        %v8094 = vunpack.c.h.b16 %v8046
        %v8095 = vunpack.c.l.b16 %v8047
        %v8096 = vunpack.c.h.b16 %v8047
        %v8097 = vunpack.c.l.b16 %v8048
        %v8098 = vunpack.c.h.b16 %v8048
        %v8099 = vunpack.c.l.b16 %v8049
        %v8100 = vunpack.c.h.b16 %v8049
        %v8101 = vunpack.c.l.b16 %v8050
        %v8102 = vunpack.c.h.b16 %v8050
        %v8103 = vunpack.c.l.b16 %v8051
        %v8104 = vunpack.c.h.b16 %v8051
        %v8105 = vunpack.c.l.b16 %v8052
        %v8106 = vunpack.c.h.b16 %v8052
        %v8107 = vpack.c.b16 %v8077, %v8075
        %v8108 = vpack.c.b16 %v8078, %v8076
        %v8109 = vpack.c.b16 %v8081, %v8079
        %v8110 = vpack.c.b16 %v8082, %v8080
        %v8111 = vpack.c.b16 %v8085, %v8083
        %v8112 = vpack.c.b16 %v8086, %v8084
        %v8113 = vpack.c.b16 %v8089, %v8087
        %v8114 = vpack.c.b16 %v8090, %v8088
        %v8115 = vpack.c.b16 %v8093, %v8091
        %v8116 = vpack.c.b16 %v8094, %v8092
        %v8117 = vpack.c.b16 %v8097, %v8095
        %v8118 = vpack.c.b16 %v8098, %v8096
        %v8119 = vpack.c.b16 %v8101, %v8099
        %v8120 = vpack.c.b16 %v8102, %v8100
        %v8121 = vpack.c.b16 %v8105, %v8103
        %v8122 = vpack.c.b16 %v8106, %v8104
        %8139 = vmatpush.bf16.msra.mxu0 %v8121
        %8140 = vmatpush.bf16.msra.mxu0 %v8119
        %8141 = vmatpush.bf16.msra.mxu0 %v8117
        %8142 = vmatpush.bf16.msra.mxu0 %v8115
        %8143 = vmatpush.bf16.msra.mxu0 %v8113
        %8144 = vmatpush.bf16.msra.mxu0 %v8111
        %8145 = vmatpush.bf16.msra.mxu0 %v8109
        %8146 = vmatpush.bf16.msra.mxu0 %v8107
        %8147 = vmatmul.bf16.gmra.mxu0 %v4515
        %v8148 = vpop.f32.mrf.mxu0
        %v8149 = vadd.f32 %v8055, %v8148
        %v8150 = vpop.f32.mrf.mxu0
        %v8151 = vadd.f32 %v8055, %v8150
        %8152 = vmatmul.bf16.gmra.mxu0 %v4516
        %v8153 = vpop.f32.mrf.mxu0
        %v8154 = vadd.f32 %v8055, %v8153
        %v8155 = vpop.f32.mrf.mxu0
        %v8156 = vadd.f32 %v8055, %v8155
        %8157 = vmatmul.bf16.gmra.mxu0 %v4517
        %v8158 = vpop.f32.mrf.mxu0
        %v8159 = vadd.f32 %v8055, %v8158
        %v8160 = vpop.f32.mrf.mxu0
        %v8161 = vadd.f32 %v8055, %v8160
        %8162 = vmatmul.bf16.gmra.mxu0 %v4518
        %v8163 = vpop.f32.mrf.mxu0
        %v8164 = vadd.f32 %v8055, %v8163
        %v8165 = vpop.f32.mrf.mxu0
        %v8166 = vadd.f32 %v8055, %v8165
        %8167 = vmatmul.bf16.gmra.mxu0 %v4519
        %v8168 = vpop.f32.mrf.mxu0
        %v8169 = vadd.f32 %v8055, %v8168
        %v8170 = vpop.f32.mrf.mxu0
        %v8171 = vadd.f32 %v8055, %v8170
        %8172 = vmatmul.bf16.gmra.mxu0 %v4520
        %v8173 = vpop.f32.mrf.mxu0
        %v8174 = vadd.f32 %v8055, %v8173
        %v8175 = vpop.f32.mrf.mxu0
        %v8176 = vadd.f32 %v8055, %v8175
        %8177 = vmatmul.bf16.gmra.mxu0 %v4521
        %v8178 = vpop.f32.mrf.mxu0
        %v8179 = vadd.f32 %v8055, %v8178
        %v8180 = vpop.f32.mrf.mxu0
        %v8181 = vadd.f32 %v8055, %v8180
        %8182 = vmatmul.bf16.gmra.mxu0 %v4522
        %v8183 = vpop.f32.mrf.mxu0
        %v8184 = vadd.f32 %v8055, %v8183
        %v8185 = vpop.f32.mrf.mxu0
        %v8186 = vadd.f32 %v8055, %v8185
        %8187 = vmatmul.bf16.gmra.mxu0 %v4523
        %v8188 = vpop.f32.mrf.mxu0
        %v8189 = vadd.f32 %v8055, %v8188
        %v8190 = vpop.f32.mrf.mxu0
        %v8191 = vadd.f32 %v8055, %v8190
        %8192 = vmatmul.bf16.gmra.mxu0 %v4524
        %v8193 = vpop.f32.mrf.mxu0
        %v8194 = vadd.f32 %v8055, %v8193
        %v8195 = vpop.f32.mrf.mxu0
        %v8196 = vadd.f32 %v8055, %v8195
        %8197 = vmatmul.bf16.gmra.mxu0 %v4525
        %v8198 = vpop.f32.mrf.mxu0
        %v8199 = vadd.f32 %v8055, %v8198
        %v8200 = vpop.f32.mrf.mxu0
        %v8201 = vadd.f32 %v8055, %v8200
        %8202 = vmatmul.bf16.gmra.mxu0 %v4526
        %v8203 = vpop.f32.mrf.mxu0
        %v8204 = vadd.f32 %v8055, %v8203
        %v8205 = vpop.f32.mrf.mxu0
        %v8206 = vadd.f32 %v8055, %v8205
        %8207 = vmatmul.bf16.gmra.mxu0 %v4527
        %v8208 = vpop.f32.mrf.mxu0
        %v8209 = vadd.f32 %v8055, %v8208
        %v8210 = vpop.f32.mrf.mxu0
        %v8211 = vadd.f32 %v8055, %v8210
        %8212 = vmatmul.bf16.gmra.mxu0 %v4528
        %v8213 = vpop.f32.mrf.mxu0
        %v8214 = vadd.f32 %v8055, %v8213
        %v8215 = vpop.f32.mrf.mxu0
        %v8216 = vadd.f32 %v8055, %v8215
        %8217 = vmatmul.bf16.gmra.mxu0 %v4529
        %v8218 = vpop.f32.mrf.mxu0
        %v8219 = vadd.f32 %v8055, %v8218
        %v8220 = vpop.f32.mrf.mxu0
        %v8221 = vadd.f32 %v8055, %v8220
        %8222 = vmatmul.bf16.gmra.mxu0 %v4530
        %v8223 = vpop.f32.mrf.mxu0
        %v8224 = vadd.f32 %v8055, %v8223
        %v8225 = vpop.f32.mrf.mxu0
        %v8226 = vadd.f32 %v8055, %v8225
        %8227 = vdwg.mxu0
        %8228 = vmatpush.bf16.msra.mxu0 %v8122
        %8229 = vmatpush.bf16.msra.mxu0 %v8120
        %8230 = vmatpush.bf16.msra.mxu0 %v8118
        %8231 = vmatpush.bf16.msra.mxu0 %v8116
        %8232 = vmatpush.bf16.msra.mxu0 %v8114
        %8233 = vmatpush.bf16.msra.mxu0 %v8112
        %8234 = vmatpush.bf16.msra.mxu0 %v8110
        %8235 = vmatpush.bf16.msra.mxu0 %v8108
        %8236 = vmatmul.bf16.gmra.mxu0 %v4515
        %v8237 = vpop.f32.mrf.mxu0
        %v8238 = vadd.f32 %v8056, %v8237
        %v8239 = vpop.f32.mrf.mxu0
        %v8240 = vadd.f32 %v8056, %v8239
        %8241 = vmatmul.bf16.gmra.mxu0 %v4516
        %v8242 = vpop.f32.mrf.mxu0
        %v8243 = vadd.f32 %v8056, %v8242
        %v8244 = vpop.f32.mrf.mxu0
        %v8245 = vadd.f32 %v8056, %v8244
        %8246 = vmatmul.bf16.gmra.mxu0 %v4517
        %v8247 = vpop.f32.mrf.mxu0
        %v8248 = vadd.f32 %v8056, %v8247
        %v8249 = vpop.f32.mrf.mxu0
        %v8250 = vadd.f32 %v8056, %v8249
        %8251 = vmatmul.bf16.gmra.mxu0 %v4518
        %v8252 = vpop.f32.mrf.mxu0
        %v8253 = vadd.f32 %v8056, %v8252
        %v8254 = vpop.f32.mrf.mxu0
        %v8255 = vadd.f32 %v8056, %v8254
        %8256 = vmatmul.bf16.gmra.mxu0 %v4519
        %v8257 = vpop.f32.mrf.mxu0
        %v8258 = vadd.f32 %v8056, %v8257
        %v8259 = vpop.f32.mrf.mxu0
        %v8260 = vadd.f32 %v8056, %v8259
        %8261 = vmatmul.bf16.gmra.mxu0 %v4520
        %v8262 = vpop.f32.mrf.mxu0
        %v8263 = vadd.f32 %v8056, %v8262
        %v8264 = vpop.f32.mrf.mxu0
        %v8265 = vadd.f32 %v8056, %v8264
        %8266 = vmatmul.bf16.gmra.mxu0 %v4521
        %v8267 = vpop.f32.mrf.mxu0
        %v8268 = vadd.f32 %v8056, %v8267
        %v8269 = vpop.f32.mrf.mxu0
        %v8270 = vadd.f32 %v8056, %v8269
        %8271 = vmatmul.bf16.gmra.mxu0 %v4522
        %v8272 = vpop.f32.mrf.mxu0
        %v8273 = vadd.f32 %v8056, %v8272
        %v8274 = vpop.f32.mrf.mxu0
        %v8275 = vadd.f32 %v8056, %v8274
        %8276 = vmatmul.bf16.gmra.mxu0 %v4523
        %v8277 = vpop.f32.mrf.mxu0
        %v8278 = vadd.f32 %v8056, %v8277
        %v8279 = vpop.f32.mrf.mxu0
        %v8280 = vadd.f32 %v8056, %v8279
        %8281 = vmatmul.bf16.gmra.mxu0 %v4524
        %v8282 = vpop.f32.mrf.mxu0
        %v8283 = vadd.f32 %v8056, %v8282
        %v8284 = vpop.f32.mrf.mxu0
        %v8285 = vadd.f32 %v8056, %v8284
        %8286 = vmatmul.bf16.gmra.mxu0 %v4525
        %v8287 = vpop.f32.mrf.mxu0
        %v8288 = vadd.f32 %v8056, %v8287
        %v8289 = vpop.f32.mrf.mxu0
        %v8290 = vadd.f32 %v8056, %v8289
        %8291 = vmatmul.bf16.gmra.mxu0 %v4526
        %v8292 = vpop.f32.mrf.mxu0
        %v8293 = vadd.f32 %v8056, %v8292
        %v8294 = vpop.f32.mrf.mxu0
        %v8295 = vadd.f32 %v8056, %v8294
        %8296 = vmatmul.bf16.gmra.mxu0 %v4527
        %v8297 = vpop.f32.mrf.mxu0
        %v8298 = vadd.f32 %v8056, %v8297
        %v8299 = vpop.f32.mrf.mxu0
        %v8300 = vadd.f32 %v8056, %v8299
        %8301 = vmatmul.bf16.gmra.mxu0 %v4528
        %v8302 = vpop.f32.mrf.mxu0
        %v8303 = vadd.f32 %v8056, %v8302
        %v8304 = vpop.f32.mrf.mxu0
        %v8305 = vadd.f32 %v8056, %v8304
        %8306 = vmatmul.bf16.gmra.mxu0 %v4529
        %v8307 = vpop.f32.mrf.mxu0
        %v8308 = vadd.f32 %v8056, %v8307
        %v8309 = vpop.f32.mrf.mxu0
        %v8310 = vadd.f32 %v8056, %v8309
        %8311 = vmatmul.bf16.gmra.mxu0 %v4530
        %v8312 = vpop.f32.mrf.mxu0
        %v8313 = vadd.f32 %v8056, %v8312
        %v8314 = vpop.f32.mrf.mxu0
        %v8315 = vadd.f32 %v8056, %v8314
        %8316 = vdwg.mxu0
        %v8317 = vmax.f32 %v8149, 0.0
        %v8318 = vmax.f32 %v8238, 0.0
        %v8319 = vmax.f32 %v8151, 0.0
        %v8320 = vmax.f32 %v8240, 0.0
        %v8321 = vmax.f32 %v8154, 0.0
        %v8322 = vmax.f32 %v8243, 0.0
        %v8323 = vmax.f32 %v8156, 0.0
        %v8324 = vmax.f32 %v8245, 0.0
        %v8325 = vmax.f32 %v8159, 0.0
        %v8326 = vmax.f32 %v8248, 0.0
        %v8327 = vmax.f32 %v8161, 0.0
        %v8328 = vmax.f32 %v8250, 0.0
        %v8329 = vmax.f32 %v8164, 0.0
        %v8330 = vmax.f32 %v8253, 0.0
        %v8331 = vmax.f32 %v8166, 0.0
        %v8332 = vmax.f32 %v8255, 0.0
        %v8333 = vmax.f32 %v8169, 0.0
        %v8334 = vmax.f32 %v8258, 0.0
        %v8335 = vmax.f32 %v8171, 0.0
        %v8336 = vmax.f32 %v8260, 0.0
        %v8337 = vmax.f32 %v8174, 0.0
        %v8338 = vmax.f32 %v8263, 0.0
        %v8339 = vmax.f32 %v8176, 0.0
        %v8340 = vmax.f32 %v8265, 0.0
        %v8341 = vmax.f32 %v8179, 0.0
        %v8342 = vmax.f32 %v8268, 0.0
        %v8343 = vmax.f32 %v8181, 0.0
        %v8344 = vmax.f32 %v8270, 0.0
        %v8345 = vmax.f32 %v8184, 0.0
        %v8346 = vmax.f32 %v8273, 0.0
        %v8347 = vmax.f32 %v8186, 0.0
        %v8348 = vmax.f32 %v8275, 0.0
        %v8349 = vmax.f32 %v8189, 0.0
        %v8350 = vmax.f32 %v8278, 0.0
        %v8351 = vmax.f32 %v8191, 0.0
        %v8352 = vmax.f32 %v8280, 0.0
        %v8353 = vmax.f32 %v8194, 0.0
        %v8354 = vmax.f32 %v8283, 0.0
        %v8355 = vmax.f32 %v8196, 0.0
        %v8356 = vmax.f32 %v8285, 0.0
        %v8357 = vmax.f32 %v8199, 0.0
        %v8358 = vmax.f32 %v8288, 0.0
        %v8359 = vmax.f32 %v8201, 0.0
        %v8360 = vmax.f32 %v8290, 0.0
        %v8361 = vmax.f32 %v8204, 0.0
        %v8362 = vmax.f32 %v8293, 0.0
        %v8363 = vmax.f32 %v8206, 0.0
        %v8364 = vmax.f32 %v8295, 0.0
        %v8365 = vmax.f32 %v8209, 0.0
        %v8366 = vmax.f32 %v8298, 0.0
        %v8367 = vmax.f32 %v8211, 0.0
        %v8368 = vmax.f32 %v8300, 0.0
        %v8369 = vmax.f32 %v8214, 0.0
        %v8370 = vmax.f32 %v8303, 0.0
        %v8371 = vmax.f32 %v8216, 0.0
        %v8372 = vmax.f32 %v8305, 0.0
        %v8373 = vmax.f32 %v8219, 0.0
        %v8374 = vmax.f32 %v8308, 0.0
        %v8375 = vmax.f32 %v8221, 0.0
        %v8376 = vmax.f32 %v8310, 0.0
        %v8377 = vmax.f32 %v8224, 0.0
        %v8378 = vmax.f32 %v8313, 0.0
        %v8379 = vmax.f32 %v8226, 0.0
        %v8380 = vmax.f32 %v8315, 0.0
        %v8381 = vpack.c.bf16 %v8319, %v8317
        %v8382 = vpack.c.bf16 %v8320, %v8318
        %v8383 = vpack.c.bf16 %v8323, %v8321
        %v8384 = vpack.c.bf16 %v8324, %v8322
        %v8385 = vpack.c.bf16 %v8327, %v8325
        %v8386 = vpack.c.bf16 %v8328, %v8326
        %v8387 = vpack.c.bf16 %v8331, %v8329
        %v8388 = vpack.c.bf16 %v8332, %v8330
        %v8389 = vpack.c.bf16 %v8335, %v8333
        %v8390 = vpack.c.bf16 %v8336, %v8334
        %v8391 = vpack.c.bf16 %v8339, %v8337
        %v8392 = vpack.c.bf16 %v8340, %v8338
        %v8393 = vpack.c.bf16 %v8343, %v8341
        %v8394 = vpack.c.bf16 %v8344, %v8342
        %v8395 = vpack.c.bf16 %v8347, %v8345
        %v8396 = vpack.c.bf16 %v8348, %v8346
        %v8397 = vpack.c.bf16 %v8351, %v8349
        %v8398 = vpack.c.bf16 %v8352, %v8350
        %v8399 = vpack.c.bf16 %v8355, %v8353
        %v8400 = vpack.c.bf16 %v8356, %v8354
        %v8401 = vpack.c.bf16 %v8359, %v8357
        %v8402 = vpack.c.bf16 %v8360, %v8358
        %v8403 = vpack.c.bf16 %v8363, %v8361
        %v8404 = vpack.c.bf16 %v8364, %v8362
        %v8405 = vpack.c.bf16 %v8367, %v8365
        %v8406 = vpack.c.bf16 %v8368, %v8366
        %v8407 = vpack.c.bf16 %v8371, %v8369
        %v8408 = vpack.c.bf16 %v8372, %v8370
        %v8409 = vpack.c.bf16 %v8375, %v8373
        %v8410 = vpack.c.bf16 %v8376, %v8374
        %v8411 = vpack.c.bf16 %v8379, %v8377
        %v8412 = vpack.c.bf16 %v8380, %v8378
        %v8413 = vld [vmem:[%s778 + $0x280] sm:$0xf]
        %v8414 = vld [vmem:[%s778 + $0x284] sm:$0xf]
        %v8415 = vld [vmem:[%s778 + $0x288] sm:$0xf]
        %v8416 = vld [vmem:[%s778 + $0x28c] sm:$0xf]
        %v8417 = vld [vmem:[%s778 + $0x290] sm:$0xf]
        %v8418 = vld [vmem:[%s778 + $0x294] sm:$0xf]
        %v8419 = vld [vmem:[%s778 + $0x298] sm:$0xf]
        %v8420 = vld [vmem:[%s778 + $0x29c] sm:$0xf]
        %v8421 = vld [vmem:[%s778 + $0x2a0] sm:$0xf]
        %v8422 = vld [vmem:[%s778 + $0x2a4] sm:$0xf]
        %v8423 = vld [vmem:[%s778 + $0x2a8] sm:$0xf]
        %v8424 = vld [vmem:[%s778 + $0x2ac] sm:$0xf]
        %v8425 = vld [vmem:[%s778 + $0x2b0] sm:$0xf]
        %v8426 = vld [vmem:[%s778 + $0x2b4] sm:$0xf]
        %v8427 = vld [vmem:[%s778 + $0x2b8] sm:$0xf]
        %v8428 = vld [vmem:[%s778 + $0x2bc] sm:$0xf]
        %v8429 = vld [vmem:[%s778 + $0x2c0] sm:$0xf]
        %v8430 = vld [vmem:[%s778 + $0x2c4] sm:$0xf]
        %v8431 = vld [vmem:[%s778 + $0x2c8] sm:$0xf]
        %v8432 = vld [vmem:[%s778 + $0x2cc] sm:$0xf]
        %v8433 = vld [vmem:[%s778 + $0x2d0] sm:$0xf]
        %v8434 = vld [vmem:[%s778 + $0x2d4] sm:$0xf]
        %v8435 = vld [vmem:[%s778 + $0x2d8] sm:$0xf]
        %v8436 = vld [vmem:[%s778 + $0x2dc] sm:$0xf]
        %v8437 = vld [vmem:[%s778 + $0x2e0] sm:$0xf]
        %v8438 = vld [vmem:[%s778 + $0x2e4] sm:$0xf]
        %v8439 = vld [vmem:[%s778 + $0x2e8] sm:$0xf]
        %v8440 = vld [vmem:[%s778 + $0x2ec] sm:$0xf]
        %v8441 = vld [vmem:[%s778 + $0x2f0] sm:$0xf]
        %v8442 = vld [vmem:[%s778 + $0x2f4] sm:$0xf]
        %v8443 = vld [vmem:[%s778 + $0x2f8] sm:$0xf]
        %v8444 = vld [vmem:[%s778 + $0x2fc] sm:$0xf]
        %v8477 = vunpack.c.l.b16 %v8413
        %v8478 = vunpack.c.l.b16 %v8414
        %v8479 = vunpack.c.l.b16 %v8415
        %v8480 = vunpack.c.l.b16 %v8416
        %v8481 = vunpack.c.l.b16 %v8417
        %v8482 = vunpack.c.l.b16 %v8418
        %v8483 = vunpack.c.l.b16 %v8419
        %v8484 = vunpack.c.l.b16 %v8420
        %v8485 = vunpack.c.l.b16 %v8421
        %v8486 = vunpack.c.l.b16 %v8422
        %v8487 = vunpack.c.l.b16 %v8423
        %v8488 = vunpack.c.l.b16 %v8424
        %v8489 = vunpack.c.l.b16 %v8425
        %v8490 = vunpack.c.l.b16 %v8426
        %v8491 = vunpack.c.l.b16 %v8427
        %v8492 = vunpack.c.l.b16 %v8428
        %v8493 = vunpack.c.l.b16 %v8429
        %v8494 = vunpack.c.l.b16 %v8430
        %v8495 = vunpack.c.l.b16 %v8431
        %v8496 = vunpack.c.l.b16 %v8432
        %v8497 = vunpack.c.l.b16 %v8433
        %v8498 = vunpack.c.l.b16 %v8434
        %v8499 = vunpack.c.l.b16 %v8435
        %v8500 = vunpack.c.l.b16 %v8436
        %v8501 = vunpack.c.l.b16 %v8437
        %v8502 = vunpack.c.l.b16 %v8438
        %v8503 = vunpack.c.l.b16 %v8439
        %v8504 = vunpack.c.l.b16 %v8440
        %v8505 = vunpack.c.l.b16 %v8441
        %v8506 = vunpack.c.l.b16 %v8442
        %v8507 = vunpack.c.l.b16 %v8443
        %v8508 = vunpack.c.l.b16 %v8444
        %v8509 = vpack.c.b16 %v8478, %v8477
        %v8510 = vpack.c.b16 %v8480, %v8479
        %v8511 = vpack.c.b16 %v8482, %v8481
        %v8512 = vpack.c.b16 %v8484, %v8483
        %v8513 = vpack.c.b16 %v8486, %v8485
        %v8514 = vpack.c.b16 %v8488, %v8487
        %v8515 = vpack.c.b16 %v8490, %v8489
        %v8516 = vpack.c.b16 %v8492, %v8491
        %v8517 = vpack.c.b16 %v8494, %v8493
        %v8518 = vpack.c.b16 %v8496, %v8495
        %v8519 = vpack.c.b16 %v8498, %v8497
        %v8520 = vpack.c.b16 %v8500, %v8499
        %v8521 = vpack.c.b16 %v8502, %v8501
        %v8522 = vpack.c.b16 %v8504, %v8503
        %v8523 = vpack.c.b16 %v8506, %v8505
        %v8524 = vpack.c.b16 %v8508, %v8507
        %8541 = vmatpush.bf16.msra.mxu0 %v8516
        %8542 = vmatpush.bf16.msra.mxu0 %v8515
        %8543 = vmatpush.bf16.msra.mxu0 %v8514
        %8544 = vmatpush.bf16.msra.mxu0 %v8513
        %8545 = vmatpush.bf16.msra.mxu0 %v8512
        %8546 = vmatpush.bf16.msra.mxu0 %v8511
        %8547 = vmatpush.bf16.msra.mxu0 %v8510
        %8548 = vmatpush.bf16.msra.mxu0 %v8509
        %8549 = vmatmul.bf16.gmra.mxu0 %v8381
        %v8550 = vpop.f32.mrf.mxu0
        %v8551 = vadd.f32 0.0, %v8550
        %v8552 = vpop.f32.mrf.mxu0
        %v8553 = vadd.f32 0.0, %v8552
        %8554 = vmatmul.bf16.gmra.mxu0 %v8383
        %v8555 = vpop.f32.mrf.mxu0
        %v8556 = vadd.f32 0.0, %v8555
        %v8557 = vpop.f32.mrf.mxu0
        %v8558 = vadd.f32 0.0, %v8557
        %8559 = vmatmul.bf16.gmra.mxu0 %v8385
        %v8560 = vpop.f32.mrf.mxu0
        %v8561 = vadd.f32 0.0, %v8560
        %v8562 = vpop.f32.mrf.mxu0
        %v8563 = vadd.f32 0.0, %v8562
        %8564 = vmatmul.bf16.gmra.mxu0 %v8387
        %v8565 = vpop.f32.mrf.mxu0
        %v8566 = vadd.f32 0.0, %v8565
        %v8567 = vpop.f32.mrf.mxu0
        %v8568 = vadd.f32 0.0, %v8567
        %8569 = vmatmul.bf16.gmra.mxu0 %v8389
        %v8570 = vpop.f32.mrf.mxu0
        %v8571 = vadd.f32 0.0, %v8570
        %v8572 = vpop.f32.mrf.mxu0
        %v8573 = vadd.f32 0.0, %v8572
        %8574 = vmatmul.bf16.gmra.mxu0 %v8391
        %v8575 = vpop.f32.mrf.mxu0
        %v8576 = vadd.f32 0.0, %v8575
        %v8577 = vpop.f32.mrf.mxu0
        %v8578 = vadd.f32 0.0, %v8577
        %8579 = vmatmul.bf16.gmra.mxu0 %v8393
        %v8580 = vpop.f32.mrf.mxu0
        %v8581 = vadd.f32 0.0, %v8580
        %v8582 = vpop.f32.mrf.mxu0
        %v8583 = vadd.f32 0.0, %v8582
        %8584 = vmatmul.bf16.gmra.mxu0 %v8395
        %v8585 = vpop.f32.mrf.mxu0
        %v8586 = vadd.f32 0.0, %v8585
        %v8587 = vpop.f32.mrf.mxu0
        %v8588 = vadd.f32 0.0, %v8587
        %8589 = vmatmul.bf16.gmra.mxu0 %v8397
        %v8590 = vpop.f32.mrf.mxu0
        %v8591 = vadd.f32 0.0, %v8590
        %v8592 = vpop.f32.mrf.mxu0
        %v8593 = vadd.f32 0.0, %v8592
        %8594 = vmatmul.bf16.gmra.mxu0 %v8399
        %v8595 = vpop.f32.mrf.mxu0
        %v8596 = vadd.f32 0.0, %v8595
        %v8597 = vpop.f32.mrf.mxu0
        %v8598 = vadd.f32 0.0, %v8597
        %8599 = vmatmul.bf16.gmra.mxu0 %v8401
        %v8600 = vpop.f32.mrf.mxu0
        %v8601 = vadd.f32 0.0, %v8600
        %v8602 = vpop.f32.mrf.mxu0
        %v8603 = vadd.f32 0.0, %v8602
        %8604 = vmatmul.bf16.gmra.mxu0 %v8403
        %v8605 = vpop.f32.mrf.mxu0
        %v8606 = vadd.f32 0.0, %v8605
        %v8607 = vpop.f32.mrf.mxu0
        %v8608 = vadd.f32 0.0, %v8607
        %8609 = vmatmul.bf16.gmra.mxu0 %v8405
        %v8610 = vpop.f32.mrf.mxu0
        %v8611 = vadd.f32 0.0, %v8610
        %v8612 = vpop.f32.mrf.mxu0
        %v8613 = vadd.f32 0.0, %v8612
        %8614 = vmatmul.bf16.gmra.mxu0 %v8407
        %v8615 = vpop.f32.mrf.mxu0
        %v8616 = vadd.f32 0.0, %v8615
        %v8617 = vpop.f32.mrf.mxu0
        %v8618 = vadd.f32 0.0, %v8617
        %8619 = vmatmul.bf16.gmra.mxu0 %v8409
        %v8620 = vpop.f32.mrf.mxu0
        %v8621 = vadd.f32 0.0, %v8620
        %v8622 = vpop.f32.mrf.mxu0
        %v8623 = vadd.f32 0.0, %v8622
        %8624 = vmatmul.bf16.gmra.mxu0 %v8411
        %v8625 = vpop.f32.mrf.mxu0
        %v8626 = vadd.f32 0.0, %v8625
        %v8627 = vpop.f32.mrf.mxu0
        %v8628 = vadd.f32 0.0, %v8627
        %8629 = vdwg.mxu0
        %8630 = vmatpush.bf16.msra.mxu0 %v8524
        %8631 = vmatpush.bf16.msra.mxu0 %v8523
        %8632 = vmatpush.bf16.msra.mxu0 %v8522
        %8633 = vmatpush.bf16.msra.mxu0 %v8521
        %8634 = vmatpush.bf16.msra.mxu0 %v8520
        %8635 = vmatpush.bf16.msra.mxu0 %v8519
        %8636 = vmatpush.bf16.msra.mxu0 %v8518
        %8637 = vmatpush.bf16.msra.mxu0 %v8517
        %8638 = vmatmul.bf16.gmra.mxu0 %v8382
        %v8639 = vpop.f32.mrf.mxu0
        %v8640 = vadd.f32 %v8551, %v8639
        %v8641 = vpop.f32.mrf.mxu0
        %v8642 = vadd.f32 %v8553, %v8641
        %8643 = vmatmul.bf16.gmra.mxu0 %v8384
        %v8644 = vpop.f32.mrf.mxu0
        %v8645 = vadd.f32 %v8556, %v8644
        %v8646 = vpop.f32.mrf.mxu0
        %v8647 = vadd.f32 %v8558, %v8646
        %8648 = vmatmul.bf16.gmra.mxu0 %v8386
        %v8649 = vpop.f32.mrf.mxu0
        %v8650 = vadd.f32 %v8561, %v8649
        %v8651 = vpop.f32.mrf.mxu0
        %v8652 = vadd.f32 %v8563, %v8651
        %8653 = vmatmul.bf16.gmra.mxu0 %v8388
        %v8654 = vpop.f32.mrf.mxu0
        %v8655 = vadd.f32 %v8566, %v8654
        %v8656 = vpop.f32.mrf.mxu0
        %v8657 = vadd.f32 %v8568, %v8656
        %8658 = vmatmul.bf16.gmra.mxu0 %v8390
        %v8659 = vpop.f32.mrf.mxu0
        %v8660 = vadd.f32 %v8571, %v8659
        %v8661 = vpop.f32.mrf.mxu0
        %v8662 = vadd.f32 %v8573, %v8661
        %8663 = vmatmul.bf16.gmra.mxu0 %v8392
        %v8664 = vpop.f32.mrf.mxu0
        %v8665 = vadd.f32 %v8576, %v8664
        %v8666 = vpop.f32.mrf.mxu0
        %v8667 = vadd.f32 %v8578, %v8666
        %8668 = vmatmul.bf16.gmra.mxu0 %v8394
        %v8669 = vpop.f32.mrf.mxu0
        %v8670 = vadd.f32 %v8581, %v8669
        %v8671 = vpop.f32.mrf.mxu0
        %v8672 = vadd.f32 %v8583, %v8671
        %8673 = vmatmul.bf16.gmra.mxu0 %v8396
        %v8674 = vpop.f32.mrf.mxu0
        %v8675 = vadd.f32 %v8586, %v8674
        %v8676 = vpop.f32.mrf.mxu0
        %v8677 = vadd.f32 %v8588, %v8676
        %8678 = vmatmul.bf16.gmra.mxu0 %v8398
        %v8679 = vpop.f32.mrf.mxu0
        %v8680 = vadd.f32 %v8591, %v8679
        %v8681 = vpop.f32.mrf.mxu0
        %v8682 = vadd.f32 %v8593, %v8681
        %8683 = vmatmul.bf16.gmra.mxu0 %v8400
        %v8684 = vpop.f32.mrf.mxu0
        %v8685 = vadd.f32 %v8596, %v8684
        %v8686 = vpop.f32.mrf.mxu0
        %v8687 = vadd.f32 %v8598, %v8686
        %8688 = vmatmul.bf16.gmra.mxu0 %v8402
        %v8689 = vpop.f32.mrf.mxu0
        %v8690 = vadd.f32 %v8601, %v8689
        %v8691 = vpop.f32.mrf.mxu0
        %v8692 = vadd.f32 %v8603, %v8691
        %8693 = vmatmul.bf16.gmra.mxu0 %v8404
        %v8694 = vpop.f32.mrf.mxu0
        %v8695 = vadd.f32 %v8606, %v8694
        %v8696 = vpop.f32.mrf.mxu0
        %v8697 = vadd.f32 %v8608, %v8696
        %8698 = vmatmul.bf16.gmra.mxu0 %v8406
        %v8699 = vpop.f32.mrf.mxu0
        %v8700 = vadd.f32 %v8611, %v8699
        %v8701 = vpop.f32.mrf.mxu0
        %v8702 = vadd.f32 %v8613, %v8701
        %8703 = vmatmul.bf16.gmra.mxu0 %v8408
        %v8704 = vpop.f32.mrf.mxu0
        %v8705 = vadd.f32 %v8616, %v8704
        %v8706 = vpop.f32.mrf.mxu0
        %v8707 = vadd.f32 %v8618, %v8706
        %8708 = vmatmul.bf16.gmra.mxu0 %v8410
        %v8709 = vpop.f32.mrf.mxu0
        %v8710 = vadd.f32 %v8621, %v8709
        %v8711 = vpop.f32.mrf.mxu0
        %v8712 = vadd.f32 %v8623, %v8711
        %8713 = vmatmul.bf16.gmra.mxu0 %v8412
        %v8714 = vpop.f32.mrf.mxu0
        %v8715 = vadd.f32 %v8626, %v8714
        %v8716 = vpop.f32.mrf.mxu0
        %v8717 = vadd.f32 %v8628, %v8716
        %8718 = vdwg.mxu0
        %v8719 = vadd.f32 %v8005, %v8640
        %v8720 = vadd.f32 %v8006, %v8642
        %v8721 = vadd.f32 %v8007, %v8645
        %v8722 = vadd.f32 %v8008, %v8647
        %v8723 = vadd.f32 %v8009, %v8650
        %v8724 = vadd.f32 %v8010, %v8652
        %v8725 = vadd.f32 %v8011, %v8655
        %v8726 = vadd.f32 %v8012, %v8657
        %v8727 = vadd.f32 %v8013, %v8660
        %v8728 = vadd.f32 %v8014, %v8662
        %v8729 = vadd.f32 %v8015, %v8665
        %v8730 = vadd.f32 %v8016, %v8667
        %v8731 = vadd.f32 %v8017, %v8670
        %v8732 = vadd.f32 %v8018, %v8672
        %v8733 = vadd.f32 %v8019, %v8675
        %v8734 = vadd.f32 %v8020, %v8677
        %v8735 = vadd.f32 %v8021, %v8680
        %v8736 = vadd.f32 %v8022, %v8682
        %v8737 = vadd.f32 %v8023, %v8685
        %v8738 = vadd.f32 %v8024, %v8687
        %v8739 = vadd.f32 %v8025, %v8690
        %v8740 = vadd.f32 %v8026, %v8692
        %v8741 = vadd.f32 %v8027, %v8695
        %v8742 = vadd.f32 %v8028, %v8697
        %v8743 = vadd.f32 %v8029, %v8700
        %v8744 = vadd.f32 %v8030, %v8702
        %v8745 = vadd.f32 %v8031, %v8705
        %v8746 = vadd.f32 %v8032, %v8707
        %v8747 = vadd.f32 %v8033, %v8710
        %v8748 = vadd.f32 %v8034, %v8712
        %v8749 = vadd.f32 %v8035, %v8715
        %v8750 = vadd.f32 %v8036, %v8717
        %v8751 = vld [vmem:[%s769 + $0x30] sm:$0xff]
        %v8752 = vld [vmem:[%s769 + $0x70] sm:$0xff]
        %v8753 = vld [vmem:[%s769 + $0xb0] sm:$0xff]
        %v8754 = vld [vmem:[%s769 + $0xf0] sm:$0xff]
        %v8755 = vld [vmem:[%s769 + $0x130] sm:$0xff]
        %v8756 = vld [vmem:[%s769 + $0x170] sm:$0xff]
        %v8757 = vld [vmem:[%s769 + $0x1b0] sm:$0xff]
        %v8758 = vld [vmem:[%s769 + $0x1f0] sm:$0xff]
        %v8759 = vld [vmem:[%s769 + $0x230] sm:$0xff]
        %v8760 = vld [vmem:[%s769 + $0x270] sm:$0xff]
        %v8761 = vld [vmem:[%s769 + $0x2b0] sm:$0xff]
        %v8762 = vld [vmem:[%s769 + $0x2f0] sm:$0xff]
        %v8763 = vld [vmem:[%s769 + $0x330] sm:$0xff]
        %v8764 = vld [vmem:[%s769 + $0x370] sm:$0xff]
        %v8765 = vld [vmem:[%s769 + $0x3b0] sm:$0xff]
        %v8766 = vld [vmem:[%s769 + $0x3f0] sm:$0xff]
        %v8767 = vld [vmem:[%s773 + $0xc] sm:$0x3]
        %v8769 = vperm.slane %v8767, 0
        %v8770 = vperm.slane %v8767, 1
        %v8789 = vunpack.c.l.b16 %v8751
        %v8790 = vunpack.c.h.b16 %v8751
        %v8791 = vunpack.c.l.b16 %v8752
        %v8792 = vunpack.c.h.b16 %v8752
        %v8793 = vunpack.c.l.b16 %v8753
        %v8794 = vunpack.c.h.b16 %v8753
        %v8795 = vunpack.c.l.b16 %v8754
        %v8796 = vunpack.c.h.b16 %v8754
        %v8797 = vunpack.c.l.b16 %v8755
        %v8798 = vunpack.c.h.b16 %v8755
        %v8799 = vunpack.c.l.b16 %v8756
        %v8800 = vunpack.c.h.b16 %v8756
        %v8801 = vunpack.c.l.b16 %v8757
        %v8802 = vunpack.c.h.b16 %v8757
        %v8803 = vunpack.c.l.b16 %v8758
        %v8804 = vunpack.c.h.b16 %v8758
        %v8805 = vunpack.c.l.b16 %v8759
        %v8806 = vunpack.c.h.b16 %v8759
        %v8807 = vunpack.c.l.b16 %v8760
        %v8808 = vunpack.c.h.b16 %v8760
        %v8809 = vunpack.c.l.b16 %v8761
        %v8810 = vunpack.c.h.b16 %v8761
        %v8811 = vunpack.c.l.b16 %v8762
        %v8812 = vunpack.c.h.b16 %v8762
        %v8813 = vunpack.c.l.b16 %v8763
        %v8814 = vunpack.c.h.b16 %v8763
        %v8815 = vunpack.c.l.b16 %v8764
        %v8816 = vunpack.c.h.b16 %v8764
        %v8817 = vunpack.c.l.b16 %v8765
        %v8818 = vunpack.c.h.b16 %v8765
        %v8819 = vunpack.c.l.b16 %v8766
        %v8820 = vunpack.c.h.b16 %v8766
        %v8821 = vpack.c.b16 %v8791, %v8789
        %v8822 = vpack.c.b16 %v8792, %v8790
        %v8823 = vpack.c.b16 %v8795, %v8793
        %v8824 = vpack.c.b16 %v8796, %v8794
        %v8825 = vpack.c.b16 %v8799, %v8797
        %v8826 = vpack.c.b16 %v8800, %v8798
        %v8827 = vpack.c.b16 %v8803, %v8801
        %v8828 = vpack.c.b16 %v8804, %v8802
        %v8829 = vpack.c.b16 %v8807, %v8805
        %v8830 = vpack.c.b16 %v8808, %v8806
        %v8831 = vpack.c.b16 %v8811, %v8809
        %v8832 = vpack.c.b16 %v8812, %v8810
        %v8833 = vpack.c.b16 %v8815, %v8813
        %v8834 = vpack.c.b16 %v8816, %v8814
        %v8835 = vpack.c.b16 %v8819, %v8817
        %v8836 = vpack.c.b16 %v8820, %v8818
        %8853 = vmatpush.bf16.msra.mxu0 %v8835
        %8854 = vmatpush.bf16.msra.mxu0 %v8833
        %8855 = vmatpush.bf16.msra.mxu0 %v8831
        %8856 = vmatpush.bf16.msra.mxu0 %v8829
        %8857 = vmatpush.bf16.msra.mxu0 %v8827
        %8858 = vmatpush.bf16.msra.mxu0 %v8825
        %8859 = vmatpush.bf16.msra.mxu0 %v8823
        %8860 = vmatpush.bf16.msra.mxu0 %v8821
        %8861 = vmatmul.bf16.gmra.mxu0 %v4515
        %v8862 = vpop.f32.mrf.mxu0
        %v8863 = vadd.f32 %v8769, %v8862
        %v8864 = vpop.f32.mrf.mxu0
        %v8865 = vadd.f32 %v8769, %v8864
        %8866 = vmatmul.bf16.gmra.mxu0 %v4516
        %v8867 = vpop.f32.mrf.mxu0
        %v8868 = vadd.f32 %v8769, %v8867
        %v8869 = vpop.f32.mrf.mxu0
        %v8870 = vadd.f32 %v8769, %v8869
        %8871 = vmatmul.bf16.gmra.mxu0 %v4517
        %v8872 = vpop.f32.mrf.mxu0
        %v8873 = vadd.f32 %v8769, %v8872
        %v8874 = vpop.f32.mrf.mxu0
        %v8875 = vadd.f32 %v8769, %v8874
        %8876 = vmatmul.bf16.gmra.mxu0 %v4518
        %v8877 = vpop.f32.mrf.mxu0
        %v8878 = vadd.f32 %v8769, %v8877
        %v8879 = vpop.f32.mrf.mxu0
        %v8880 = vadd.f32 %v8769, %v8879
        %8881 = vmatmul.bf16.gmra.mxu0 %v4519
        %v8882 = vpop.f32.mrf.mxu0
        %v8883 = vadd.f32 %v8769, %v8882
        %v8884 = vpop.f32.mrf.mxu0
        %v8885 = vadd.f32 %v8769, %v8884
        %8886 = vmatmul.bf16.gmra.mxu0 %v4520
        %v8887 = vpop.f32.mrf.mxu0
        %v8888 = vadd.f32 %v8769, %v8887
        %v8889 = vpop.f32.mrf.mxu0
        %v8890 = vadd.f32 %v8769, %v8889
        %8891 = vmatmul.bf16.gmra.mxu0 %v4521
        %v8892 = vpop.f32.mrf.mxu0
        %v8893 = vadd.f32 %v8769, %v8892
        %v8894 = vpop.f32.mrf.mxu0
        %v8895 = vadd.f32 %v8769, %v8894
        %8896 = vmatmul.bf16.gmra.mxu0 %v4522
        %v8897 = vpop.f32.mrf.mxu0
        %v8898 = vadd.f32 %v8769, %v8897
        %v8899 = vpop.f32.mrf.mxu0
        %v8900 = vadd.f32 %v8769, %v8899
        %8901 = vmatmul.bf16.gmra.mxu0 %v4523
        %v8902 = vpop.f32.mrf.mxu0
        %v8903 = vadd.f32 %v8769, %v8902
        %v8904 = vpop.f32.mrf.mxu0
        %v8905 = vadd.f32 %v8769, %v8904
        %8906 = vmatmul.bf16.gmra.mxu0 %v4524
        %v8907 = vpop.f32.mrf.mxu0
        %v8908 = vadd.f32 %v8769, %v8907
        %v8909 = vpop.f32.mrf.mxu0
        %v8910 = vadd.f32 %v8769, %v8909
        %8911 = vmatmul.bf16.gmra.mxu0 %v4525
        %v8912 = vpop.f32.mrf.mxu0
        %v8913 = vadd.f32 %v8769, %v8912
        %v8914 = vpop.f32.mrf.mxu0
        %v8915 = vadd.f32 %v8769, %v8914
        %8916 = vmatmul.bf16.gmra.mxu0 %v4526
        %v8917 = vpop.f32.mrf.mxu0
        %v8918 = vadd.f32 %v8769, %v8917
        %v8919 = vpop.f32.mrf.mxu0
        %v8920 = vadd.f32 %v8769, %v8919
        %8921 = vmatmul.bf16.gmra.mxu0 %v4527
        %v8922 = vpop.f32.mrf.mxu0
        %v8923 = vadd.f32 %v8769, %v8922
        %v8924 = vpop.f32.mrf.mxu0
        %v8925 = vadd.f32 %v8769, %v8924
        %8926 = vmatmul.bf16.gmra.mxu0 %v4528
        %v8927 = vpop.f32.mrf.mxu0
        %v8928 = vadd.f32 %v8769, %v8927
        %v8929 = vpop.f32.mrf.mxu0
        %v8930 = vadd.f32 %v8769, %v8929
        %8931 = vmatmul.bf16.gmra.mxu0 %v4529
        %v8932 = vpop.f32.mrf.mxu0
        %v8933 = vadd.f32 %v8769, %v8932
        %v8934 = vpop.f32.mrf.mxu0
        %v8935 = vadd.f32 %v8769, %v8934
        %8936 = vmatmul.bf16.gmra.mxu0 %v4530
        %v8937 = vpop.f32.mrf.mxu0
        %v8938 = vadd.f32 %v8769, %v8937
        %v8939 = vpop.f32.mrf.mxu0
        %v8940 = vadd.f32 %v8769, %v8939
        %8941 = vdwg.mxu0
        %8942 = vmatpush.bf16.msra.mxu0 %v8836
        %8943 = vmatpush.bf16.msra.mxu0 %v8834
        %8944 = vmatpush.bf16.msra.mxu0 %v8832
        %8945 = vmatpush.bf16.msra.mxu0 %v8830
        %8946 = vmatpush.bf16.msra.mxu0 %v8828
        %8947 = vmatpush.bf16.msra.mxu0 %v8826
        %8948 = vmatpush.bf16.msra.mxu0 %v8824
        %8949 = vmatpush.bf16.msra.mxu0 %v8822
        %8950 = vmatmul.bf16.gmra.mxu0 %v4515
        %v8951 = vpop.f32.mrf.mxu0
        %v8952 = vadd.f32 %v8770, %v8951
        %v8953 = vpop.f32.mrf.mxu0
        %v8954 = vadd.f32 %v8770, %v8953
        %8955 = vmatmul.bf16.gmra.mxu0 %v4516
        %v8956 = vpop.f32.mrf.mxu0
        %v8957 = vadd.f32 %v8770, %v8956
        %v8958 = vpop.f32.mrf.mxu0
        %v8959 = vadd.f32 %v8770, %v8958
        %8960 = vmatmul.bf16.gmra.mxu0 %v4517
        %v8961 = vpop.f32.mrf.mxu0
        %v8962 = vadd.f32 %v8770, %v8961
        %v8963 = vpop.f32.mrf.mxu0
        %v8964 = vadd.f32 %v8770, %v8963
        %8965 = vmatmul.bf16.gmra.mxu0 %v4518
        %v8966 = vpop.f32.mrf.mxu0
        %v8967 = vadd.f32 %v8770, %v8966
        %v8968 = vpop.f32.mrf.mxu0
        %v8969 = vadd.f32 %v8770, %v8968
        %8970 = vmatmul.bf16.gmra.mxu0 %v4519
        %v8971 = vpop.f32.mrf.mxu0
        %v8972 = vadd.f32 %v8770, %v8971
        %v8973 = vpop.f32.mrf.mxu0
        %v8974 = vadd.f32 %v8770, %v8973
        %8975 = vmatmul.bf16.gmra.mxu0 %v4520
        %v8976 = vpop.f32.mrf.mxu0
        %v8977 = vadd.f32 %v8770, %v8976
        %v8978 = vpop.f32.mrf.mxu0
        %v8979 = vadd.f32 %v8770, %v8978
        %8980 = vmatmul.bf16.gmra.mxu0 %v4521
        %v8981 = vpop.f32.mrf.mxu0
        %v8982 = vadd.f32 %v8770, %v8981
        %v8983 = vpop.f32.mrf.mxu0
        %v8984 = vadd.f32 %v8770, %v8983
        %8985 = vmatmul.bf16.gmra.mxu0 %v4522
        %v8986 = vpop.f32.mrf.mxu0
        %v8987 = vadd.f32 %v8770, %v8986
        %v8988 = vpop.f32.mrf.mxu0
        %v8989 = vadd.f32 %v8770, %v8988
        %8990 = vmatmul.bf16.gmra.mxu0 %v4523
        %v8991 = vpop.f32.mrf.mxu0
        %v8992 = vadd.f32 %v8770, %v8991
        %v8993 = vpop.f32.mrf.mxu0
        %v8994 = vadd.f32 %v8770, %v8993
        %8995 = vmatmul.bf16.gmra.mxu0 %v4524
        %v8996 = vpop.f32.mrf.mxu0
        %v8997 = vadd.f32 %v8770, %v8996
        %v8998 = vpop.f32.mrf.mxu0
        %v8999 = vadd.f32 %v8770, %v8998
        %9000 = vmatmul.bf16.gmra.mxu0 %v4525
        %v9001 = vpop.f32.mrf.mxu0
        %v9002 = vadd.f32 %v8770, %v9001
        %v9003 = vpop.f32.mrf.mxu0
        %v9004 = vadd.f32 %v8770, %v9003
        %9005 = vmatmul.bf16.gmra.mxu0 %v4526
        %v9006 = vpop.f32.mrf.mxu0
        %v9007 = vadd.f32 %v8770, %v9006
        %v9008 = vpop.f32.mrf.mxu0
        %v9009 = vadd.f32 %v8770, %v9008
        %9010 = vmatmul.bf16.gmra.mxu0 %v4527
        %v9011 = vpop.f32.mrf.mxu0
        %v9012 = vadd.f32 %v8770, %v9011
        %v9013 = vpop.f32.mrf.mxu0
        %v9014 = vadd.f32 %v8770, %v9013
        %9015 = vmatmul.bf16.gmra.mxu0 %v4528
        %v9016 = vpop.f32.mrf.mxu0
        %v9017 = vadd.f32 %v8770, %v9016
        %v9018 = vpop.f32.mrf.mxu0
        %v9019 = vadd.f32 %v8770, %v9018
        %9020 = vmatmul.bf16.gmra.mxu0 %v4529
        %v9021 = vpop.f32.mrf.mxu0
        %v9022 = vadd.f32 %v8770, %v9021
        %v9023 = vpop.f32.mrf.mxu0
        %v9024 = vadd.f32 %v8770, %v9023
        %9025 = vmatmul.bf16.gmra.mxu0 %v4530
        %v9026 = vpop.f32.mrf.mxu0
        %v9027 = vadd.f32 %v8770, %v9026
        %v9028 = vpop.f32.mrf.mxu0
        %v9029 = vadd.f32 %v8770, %v9028
        %9030 = vdwg.mxu0
        %v9031 = vmax.f32 %v8863, 0.0
        %v9032 = vmax.f32 %v8952, 0.0
        %v9033 = vmax.f32 %v8865, 0.0
        %v9034 = vmax.f32 %v8954, 0.0
        %v9035 = vmax.f32 %v8868, 0.0
        %v9036 = vmax.f32 %v8957, 0.0
        %v9037 = vmax.f32 %v8870, 0.0
        %v9038 = vmax.f32 %v8959, 0.0
        %v9039 = vmax.f32 %v8873, 0.0
        %v9040 = vmax.f32 %v8962, 0.0
        %v9041 = vmax.f32 %v8875, 0.0
        %v9042 = vmax.f32 %v8964, 0.0
        %v9043 = vmax.f32 %v8878, 0.0
        %v9044 = vmax.f32 %v8967, 0.0
        %v9045 = vmax.f32 %v8880, 0.0
        %v9046 = vmax.f32 %v8969, 0.0
        %v9047 = vmax.f32 %v8883, 0.0
        %v9048 = vmax.f32 %v8972, 0.0
        %v9049 = vmax.f32 %v8885, 0.0
        %v9050 = vmax.f32 %v8974, 0.0
        %v9051 = vmax.f32 %v8888, 0.0
        %v9052 = vmax.f32 %v8977, 0.0
        %v9053 = vmax.f32 %v8890, 0.0
        %v9054 = vmax.f32 %v8979, 0.0
        %v9055 = vmax.f32 %v8893, 0.0
        %v9056 = vmax.f32 %v8982, 0.0
        %v9057 = vmax.f32 %v8895, 0.0
        %v9058 = vmax.f32 %v8984, 0.0
        %v9059 = vmax.f32 %v8898, 0.0
        %v9060 = vmax.f32 %v8987, 0.0
        %v9061 = vmax.f32 %v8900, 0.0
        %v9062 = vmax.f32 %v8989, 0.0
        %v9063 = vmax.f32 %v8903, 0.0
        %v9064 = vmax.f32 %v8992, 0.0
        %v9065 = vmax.f32 %v8905, 0.0
        %v9066 = vmax.f32 %v8994, 0.0
        %v9067 = vmax.f32 %v8908, 0.0
        %v9068 = vmax.f32 %v8997, 0.0
        %v9069 = vmax.f32 %v8910, 0.0
        %v9070 = vmax.f32 %v8999, 0.0
        %v9071 = vmax.f32 %v8913, 0.0
        %v9072 = vmax.f32 %v9002, 0.0
        %v9073 = vmax.f32 %v8915, 0.0
        %v9074 = vmax.f32 %v9004, 0.0
        %v9075 = vmax.f32 %v8918, 0.0
        %v9076 = vmax.f32 %v9007, 0.0
        %v9077 = vmax.f32 %v8920, 0.0
        %v9078 = vmax.f32 %v9009, 0.0
        %v9079 = vmax.f32 %v8923, 0.0
        %v9080 = vmax.f32 %v9012, 0.0
        %v9081 = vmax.f32 %v8925, 0.0
        %v9082 = vmax.f32 %v9014, 0.0
        %v9083 = vmax.f32 %v8928, 0.0
        %v9084 = vmax.f32 %v9017, 0.0
        %v9085 = vmax.f32 %v8930, 0.0
        %v9086 = vmax.f32 %v9019, 0.0
        %v9087 = vmax.f32 %v8933, 0.0
        %v9088 = vmax.f32 %v9022, 0.0
        %v9089 = vmax.f32 %v8935, 0.0
        %v9090 = vmax.f32 %v9024, 0.0
        %v9091 = vmax.f32 %v8938, 0.0
        %v9092 = vmax.f32 %v9027, 0.0
        %v9093 = vmax.f32 %v8940, 0.0
        %v9094 = vmax.f32 %v9029, 0.0
        %v9095 = vpack.c.bf16 %v9033, %v9031
        %v9096 = vpack.c.bf16 %v9034, %v9032
        %v9097 = vpack.c.bf16 %v9037, %v9035
        %v9098 = vpack.c.bf16 %v9038, %v9036
        %v9099 = vpack.c.bf16 %v9041, %v9039
        %v9100 = vpack.c.bf16 %v9042, %v9040
        %v9101 = vpack.c.bf16 %v9045, %v9043
        %v9102 = vpack.c.bf16 %v9046, %v9044
        %v9103 = vpack.c.bf16 %v9049, %v9047
        %v9104 = vpack.c.bf16 %v9050, %v9048
        %v9105 = vpack.c.bf16 %v9053, %v9051
        %v9106 = vpack.c.bf16 %v9054, %v9052
        %v9107 = vpack.c.bf16 %v9057, %v9055
        %v9108 = vpack.c.bf16 %v9058, %v9056
        %v9109 = vpack.c.bf16 %v9061, %v9059
        %v9110 = vpack.c.bf16 %v9062, %v9060
        %v9111 = vpack.c.bf16 %v9065, %v9063
        %v9112 = vpack.c.bf16 %v9066, %v9064
        %v9113 = vpack.c.bf16 %v9069, %v9067
        %v9114 = vpack.c.bf16 %v9070, %v9068
        %v9115 = vpack.c.bf16 %v9073, %v9071
        %v9116 = vpack.c.bf16 %v9074, %v9072
        %v9117 = vpack.c.bf16 %v9077, %v9075
        %v9118 = vpack.c.bf16 %v9078, %v9076
        %v9119 = vpack.c.bf16 %v9081, %v9079
        %v9120 = vpack.c.bf16 %v9082, %v9080
        %v9121 = vpack.c.bf16 %v9085, %v9083
        %v9122 = vpack.c.bf16 %v9086, %v9084
        %v9123 = vpack.c.bf16 %v9089, %v9087
        %v9124 = vpack.c.bf16 %v9090, %v9088
        %v9125 = vpack.c.bf16 %v9093, %v9091
        %v9126 = vpack.c.bf16 %v9094, %v9092
        %v9127 = vld [vmem:[%s778 + $0x300] sm:$0xf]
        %v9128 = vld [vmem:[%s778 + $0x304] sm:$0xf]
        %v9129 = vld [vmem:[%s778 + $0x308] sm:$0xf]
        %v9130 = vld [vmem:[%s778 + $0x30c] sm:$0xf]
        %v9131 = vld [vmem:[%s778 + $0x310] sm:$0xf]
        %v9132 = vld [vmem:[%s778 + $0x314] sm:$0xf]
        %v9133 = vld [vmem:[%s778 + $0x318] sm:$0xf]
        %v9134 = vld [vmem:[%s778 + $0x31c] sm:$0xf]
        %v9135 = vld [vmem:[%s778 + $0x320] sm:$0xf]
        %v9136 = vld [vmem:[%s778 + $0x324] sm:$0xf]
        %v9137 = vld [vmem:[%s778 + $0x328] sm:$0xf]
        %v9138 = vld [vmem:[%s778 + $0x32c] sm:$0xf]
        %v9139 = vld [vmem:[%s778 + $0x330] sm:$0xf]
        %v9140 = vld [vmem:[%s778 + $0x334] sm:$0xf]
        %v9141 = vld [vmem:[%s778 + $0x338] sm:$0xf]
        %v9142 = vld [vmem:[%s778 + $0x33c] sm:$0xf]
        %v9143 = vld [vmem:[%s778 + $0x340] sm:$0xf]
        %v9144 = vld [vmem:[%s778 + $0x344] sm:$0xf]
        %v9145 = vld [vmem:[%s778 + $0x348] sm:$0xf]
        %v9146 = vld [vmem:[%s778 + $0x34c] sm:$0xf]
        %v9147 = vld [vmem:[%s778 + $0x350] sm:$0xf]
        %v9148 = vld [vmem:[%s778 + $0x354] sm:$0xf]
        %v9149 = vld [vmem:[%s778 + $0x358] sm:$0xf]
        %v9150 = vld [vmem:[%s778 + $0x35c] sm:$0xf]
        %v9151 = vld [vmem:[%s778 + $0x360] sm:$0xf]
        %v9152 = vld [vmem:[%s778 + $0x364] sm:$0xf]
        %v9153 = vld [vmem:[%s778 + $0x368] sm:$0xf]
        %v9154 = vld [vmem:[%s778 + $0x36c] sm:$0xf]
        %v9155 = vld [vmem:[%s778 + $0x370] sm:$0xf]
        %v9156 = vld [vmem:[%s778 + $0x374] sm:$0xf]
        %v9157 = vld [vmem:[%s778 + $0x378] sm:$0xf]
        %v9158 = vld [vmem:[%s778 + $0x37c] sm:$0xf]
        %v9191 = vunpack.c.l.b16 %v9127
        %v9192 = vunpack.c.l.b16 %v9128
        %v9193 = vunpack.c.l.b16 %v9129
        %v9194 = vunpack.c.l.b16 %v9130
        %v9195 = vunpack.c.l.b16 %v9131
        %v9196 = vunpack.c.l.b16 %v9132
        %v9197 = vunpack.c.l.b16 %v9133
        %v9198 = vunpack.c.l.b16 %v9134
        %v9199 = vunpack.c.l.b16 %v9135
        %v9200 = vunpack.c.l.b16 %v9136
        %v9201 = vunpack.c.l.b16 %v9137
        %v9202 = vunpack.c.l.b16 %v9138
        %v9203 = vunpack.c.l.b16 %v9139
        %v9204 = vunpack.c.l.b16 %v9140
        %v9205 = vunpack.c.l.b16 %v9141
        %v9206 = vunpack.c.l.b16 %v9142
        %v9207 = vunpack.c.l.b16 %v9143
        %v9208 = vunpack.c.l.b16 %v9144
        %v9209 = vunpack.c.l.b16 %v9145
        %v9210 = vunpack.c.l.b16 %v9146
        %v9211 = vunpack.c.l.b16 %v9147
        %v9212 = vunpack.c.l.b16 %v9148
        %v9213 = vunpack.c.l.b16 %v9149
        %v9214 = vunpack.c.l.b16 %v9150
        %v9215 = vunpack.c.l.b16 %v9151
        %v9216 = vunpack.c.l.b16 %v9152
        %v9217 = vunpack.c.l.b16 %v9153
        %v9218 = vunpack.c.l.b16 %v9154
        %v9219 = vunpack.c.l.b16 %v9155
        %v9220 = vunpack.c.l.b16 %v9156
        %v9221 = vunpack.c.l.b16 %v9157
        %v9222 = vunpack.c.l.b16 %v9158
        %v9223 = vpack.c.b16 %v9192, %v9191
        %v9224 = vpack.c.b16 %v9194, %v9193
        %v9225 = vpack.c.b16 %v9196, %v9195
        %v9226 = vpack.c.b16 %v9198, %v9197
        %v9227 = vpack.c.b16 %v9200, %v9199
        %v9228 = vpack.c.b16 %v9202, %v9201
        %v9229 = vpack.c.b16 %v9204, %v9203
        %v9230 = vpack.c.b16 %v9206, %v9205
        %v9231 = vpack.c.b16 %v9208, %v9207
        %v9232 = vpack.c.b16 %v9210, %v9209
        %v9233 = vpack.c.b16 %v9212, %v9211
        %v9234 = vpack.c.b16 %v9214, %v9213
        %v9235 = vpack.c.b16 %v9216, %v9215
        %v9236 = vpack.c.b16 %v9218, %v9217
        %v9237 = vpack.c.b16 %v9220, %v9219
        %v9238 = vpack.c.b16 %v9222, %v9221
        %9255 = vmatpush.bf16.msra.mxu0 %v9230
        %9256 = vmatpush.bf16.msra.mxu0 %v9229
        %9257 = vmatpush.bf16.msra.mxu0 %v9228
        %9258 = vmatpush.bf16.msra.mxu0 %v9227
        %9259 = vmatpush.bf16.msra.mxu0 %v9226
        %9260 = vmatpush.bf16.msra.mxu0 %v9225
        %9261 = vmatpush.bf16.msra.mxu0 %v9224
        %9262 = vmatpush.bf16.msra.mxu0 %v9223
        %9263 = vmatmul.bf16.gmra.mxu0 %v9095
        %v9264 = vpop.f32.mrf.mxu0
        %v9265 = vadd.f32 0.0, %v9264
        %v9266 = vpop.f32.mrf.mxu0
        %v9267 = vadd.f32 0.0, %v9266
        %9268 = vmatmul.bf16.gmra.mxu0 %v9097
        %v9269 = vpop.f32.mrf.mxu0
        %v9270 = vadd.f32 0.0, %v9269
        %v9271 = vpop.f32.mrf.mxu0
        %v9272 = vadd.f32 0.0, %v9271
        %9273 = vmatmul.bf16.gmra.mxu0 %v9099
        %v9274 = vpop.f32.mrf.mxu0
        %v9275 = vadd.f32 0.0, %v9274
        %v9276 = vpop.f32.mrf.mxu0
        %v9277 = vadd.f32 0.0, %v9276
        %9278 = vmatmul.bf16.gmra.mxu0 %v9101
        %v9279 = vpop.f32.mrf.mxu0
        %v9280 = vadd.f32 0.0, %v9279
        %v9281 = vpop.f32.mrf.mxu0
        %v9282 = vadd.f32 0.0, %v9281
        %9283 = vmatmul.bf16.gmra.mxu0 %v9103
        %v9284 = vpop.f32.mrf.mxu0
        %v9285 = vadd.f32 0.0, %v9284
        %v9286 = vpop.f32.mrf.mxu0
        %v9287 = vadd.f32 0.0, %v9286
        %9288 = vmatmul.bf16.gmra.mxu0 %v9105
        %v9289 = vpop.f32.mrf.mxu0
        %v9290 = vadd.f32 0.0, %v9289
        %v9291 = vpop.f32.mrf.mxu0
        %v9292 = vadd.f32 0.0, %v9291
        %9293 = vmatmul.bf16.gmra.mxu0 %v9107
        %v9294 = vpop.f32.mrf.mxu0
        %v9295 = vadd.f32 0.0, %v9294
        %v9296 = vpop.f32.mrf.mxu0
        %v9297 = vadd.f32 0.0, %v9296
        %9298 = vmatmul.bf16.gmra.mxu0 %v9109
        %v9299 = vpop.f32.mrf.mxu0
        %v9300 = vadd.f32 0.0, %v9299
        %v9301 = vpop.f32.mrf.mxu0
        %v9302 = vadd.f32 0.0, %v9301
        %9303 = vmatmul.bf16.gmra.mxu0 %v9111
        %v9304 = vpop.f32.mrf.mxu0
        %v9305 = vadd.f32 0.0, %v9304
        %v9306 = vpop.f32.mrf.mxu0
        %v9307 = vadd.f32 0.0, %v9306
        %9308 = vmatmul.bf16.gmra.mxu0 %v9113
        %v9309 = vpop.f32.mrf.mxu0
        %v9310 = vadd.f32 0.0, %v9309
        %v9311 = vpop.f32.mrf.mxu0
        %v9312 = vadd.f32 0.0, %v9311
        %9313 = vmatmul.bf16.gmra.mxu0 %v9115
        %v9314 = vpop.f32.mrf.mxu0
        %v9315 = vadd.f32 0.0, %v9314
        %v9316 = vpop.f32.mrf.mxu0
        %v9317 = vadd.f32 0.0, %v9316
        %9318 = vmatmul.bf16.gmra.mxu0 %v9117
        %v9319 = vpop.f32.mrf.mxu0
        %v9320 = vadd.f32 0.0, %v9319
        %v9321 = vpop.f32.mrf.mxu0
        %v9322 = vadd.f32 0.0, %v9321
        %9323 = vmatmul.bf16.gmra.mxu0 %v9119
        %v9324 = vpop.f32.mrf.mxu0
        %v9325 = vadd.f32 0.0, %v9324
        %v9326 = vpop.f32.mrf.mxu0
        %v9327 = vadd.f32 0.0, %v9326
        %9328 = vmatmul.bf16.gmra.mxu0 %v9121
        %v9329 = vpop.f32.mrf.mxu0
        %v9330 = vadd.f32 0.0, %v9329
        %v9331 = vpop.f32.mrf.mxu0
        %v9332 = vadd.f32 0.0, %v9331
        %9333 = vmatmul.bf16.gmra.mxu0 %v9123
        %v9334 = vpop.f32.mrf.mxu0
        %v9335 = vadd.f32 0.0, %v9334
        %v9336 = vpop.f32.mrf.mxu0
        %v9337 = vadd.f32 0.0, %v9336
        %9338 = vmatmul.bf16.gmra.mxu0 %v9125
        %v9339 = vpop.f32.mrf.mxu0
        %v9340 = vadd.f32 0.0, %v9339
        %v9341 = vpop.f32.mrf.mxu0
        %v9342 = vadd.f32 0.0, %v9341
        %9343 = vdwg.mxu0
        %9344 = vmatpush.bf16.msra.mxu0 %v9238
        %9345 = vmatpush.bf16.msra.mxu0 %v9237
        %9346 = vmatpush.bf16.msra.mxu0 %v9236
        %9347 = vmatpush.bf16.msra.mxu0 %v9235
        %9348 = vmatpush.bf16.msra.mxu0 %v9234
        %9349 = vmatpush.bf16.msra.mxu0 %v9233
        %9350 = vmatpush.bf16.msra.mxu0 %v9232
        %9351 = vmatpush.bf16.msra.mxu0 %v9231
        %9352 = vmatmul.bf16.gmra.mxu0 %v9096
        %v9353 = vpop.f32.mrf.mxu0
        %v9354 = vadd.f32 %v9265, %v9353
        %v9355 = vpop.f32.mrf.mxu0
        %v9356 = vadd.f32 %v9267, %v9355
        %9357 = vmatmul.bf16.gmra.mxu0 %v9098
        %v9358 = vpop.f32.mrf.mxu0
        %v9359 = vadd.f32 %v9270, %v9358
        %v9360 = vpop.f32.mrf.mxu0
        %v9361 = vadd.f32 %v9272, %v9360
        %9362 = vmatmul.bf16.gmra.mxu0 %v9100
        %v9363 = vpop.f32.mrf.mxu0
        %v9364 = vadd.f32 %v9275, %v9363
        %v9365 = vpop.f32.mrf.mxu0
        %v9366 = vadd.f32 %v9277, %v9365
        %9367 = vmatmul.bf16.gmra.mxu0 %v9102
        %v9368 = vpop.f32.mrf.mxu0
        %v9369 = vadd.f32 %v9280, %v9368
        %v9370 = vpop.f32.mrf.mxu0
        %v9371 = vadd.f32 %v9282, %v9370
        %9372 = vmatmul.bf16.gmra.mxu0 %v9104
        %v9373 = vpop.f32.mrf.mxu0
        %v9374 = vadd.f32 %v9285, %v9373
        %v9375 = vpop.f32.mrf.mxu0
        %v9376 = vadd.f32 %v9287, %v9375
        %9377 = vmatmul.bf16.gmra.mxu0 %v9106
        %v9378 = vpop.f32.mrf.mxu0
        %v9379 = vadd.f32 %v9290, %v9378
        %v9380 = vpop.f32.mrf.mxu0
        %v9381 = vadd.f32 %v9292, %v9380
        %9382 = vmatmul.bf16.gmra.mxu0 %v9108
        %v9383 = vpop.f32.mrf.mxu0
        %v9384 = vadd.f32 %v9295, %v9383
        %v9385 = vpop.f32.mrf.mxu0
        %v9386 = vadd.f32 %v9297, %v9385
        %9387 = vmatmul.bf16.gmra.mxu0 %v9110
        %v9388 = vpop.f32.mrf.mxu0
        %v9389 = vadd.f32 %v9300, %v9388
        %v9390 = vpop.f32.mrf.mxu0
        %v9391 = vadd.f32 %v9302, %v9390
        %9392 = vmatmul.bf16.gmra.mxu0 %v9112
        %v9393 = vpop.f32.mrf.mxu0
        %v9394 = vadd.f32 %v9305, %v9393
        %v9395 = vpop.f32.mrf.mxu0
        %v9396 = vadd.f32 %v9307, %v9395
        %9397 = vmatmul.bf16.gmra.mxu0 %v9114
        %v9398 = vpop.f32.mrf.mxu0
        %v9399 = vadd.f32 %v9310, %v9398
        %v9400 = vpop.f32.mrf.mxu0
        %v9401 = vadd.f32 %v9312, %v9400
        %9402 = vmatmul.bf16.gmra.mxu0 %v9116
        %v9403 = vpop.f32.mrf.mxu0
        %v9404 = vadd.f32 %v9315, %v9403
        %v9405 = vpop.f32.mrf.mxu0
        %v9406 = vadd.f32 %v9317, %v9405
        %9407 = vmatmul.bf16.gmra.mxu0 %v9118
        %v9408 = vpop.f32.mrf.mxu0
        %v9409 = vadd.f32 %v9320, %v9408
        %v9410 = vpop.f32.mrf.mxu0
        %v9411 = vadd.f32 %v9322, %v9410
        %9412 = vmatmul.bf16.gmra.mxu0 %v9120
        %v9413 = vpop.f32.mrf.mxu0
        %v9414 = vadd.f32 %v9325, %v9413
        %v9415 = vpop.f32.mrf.mxu0
        %v9416 = vadd.f32 %v9327, %v9415
        %9417 = vmatmul.bf16.gmra.mxu0 %v9122
        %v9418 = vpop.f32.mrf.mxu0
        %v9419 = vadd.f32 %v9330, %v9418
        %v9420 = vpop.f32.mrf.mxu0
        %v9421 = vadd.f32 %v9332, %v9420
        %9422 = vmatmul.bf16.gmra.mxu0 %v9124
        %v9423 = vpop.f32.mrf.mxu0
        %v9424 = vadd.f32 %v9335, %v9423
        %v9425 = vpop.f32.mrf.mxu0
        %v9426 = vadd.f32 %v9337, %v9425
        %9427 = vmatmul.bf16.gmra.mxu0 %v9126
        %v9428 = vpop.f32.mrf.mxu0
        %v9429 = vadd.f32 %v9340, %v9428
        %v9430 = vpop.f32.mrf.mxu0
        %v9431 = vadd.f32 %v9342, %v9430
        %9432 = vdwg.mxu0
        %v9433 = vadd.f32 %v8719, %v9354
        %v9434 = vadd.f32 %v8720, %v9356
        %v9435 = vadd.f32 %v8721, %v9359
        %v9436 = vadd.f32 %v8722, %v9361
        %v9437 = vadd.f32 %v8723, %v9364
        %v9438 = vadd.f32 %v8724, %v9366
        %v9439 = vadd.f32 %v8725, %v9369
        %v9440 = vadd.f32 %v8726, %v9371
        %v9441 = vadd.f32 %v8727, %v9374
        %v9442 = vadd.f32 %v8728, %v9376
        %v9443 = vadd.f32 %v8729, %v9379
        %v9444 = vadd.f32 %v8730, %v9381
        %v9445 = vadd.f32 %v8731, %v9384
        %v9446 = vadd.f32 %v8732, %v9386
        %v9447 = vadd.f32 %v8733, %v9389
        %v9448 = vadd.f32 %v8734, %v9391
        %v9449 = vadd.f32 %v8735, %v9394
        %v9450 = vadd.f32 %v8736, %v9396
        %v9451 = vadd.f32 %v8737, %v9399
        %v9452 = vadd.f32 %v8738, %v9401
        %v9453 = vadd.f32 %v8739, %v9404
        %v9454 = vadd.f32 %v8740, %v9406
        %v9455 = vadd.f32 %v8741, %v9409
        %v9456 = vadd.f32 %v8742, %v9411
        %v9457 = vadd.f32 %v8743, %v9414
        %v9458 = vadd.f32 %v8744, %v9416
        %v9459 = vadd.f32 %v8745, %v9419
        %v9460 = vadd.f32 %v8746, %v9421
        %v9461 = vadd.f32 %v8747, %v9424
        %v9462 = vadd.f32 %v8748, %v9426
        %v9463 = vadd.f32 %v8749, %v9429
        %v9464 = vadd.f32 %v8750, %v9431
        %v9465 = vld [vmem:[%s769 + $0x38] sm:$0xff]
        %v9466 = vld [vmem:[%s769 + $0x78] sm:$0xff]
        %v9467 = vld [vmem:[%s769 + $0xb8] sm:$0xff]
        %v9468 = vld [vmem:[%s769 + $0xf8] sm:$0xff]
        %v9469 = vld [vmem:[%s769 + $0x138] sm:$0xff]
        %v9470 = vld [vmem:[%s769 + $0x178] sm:$0xff]
        %v9471 = vld [vmem:[%s769 + $0x1b8] sm:$0xff]
        %v9472 = vld [vmem:[%s769 + $0x1f8] sm:$0xff]
        %v9473 = vld [vmem:[%s769 + $0x238] sm:$0xff]
        %v9474 = vld [vmem:[%s769 + $0x278] sm:$0xff]
        %v9475 = vld [vmem:[%s769 + $0x2b8] sm:$0xff]
        %v9476 = vld [vmem:[%s769 + $0x2f8] sm:$0xff]
        %v9477 = vld [vmem:[%s769 + $0x338] sm:$0xff]
        %v9478 = vld [vmem:[%s769 + $0x378] sm:$0xff]
        %v9479 = vld [vmem:[%s769 + $0x3b8] sm:$0xff]
        %v9480 = vld [vmem:[%s769 + $0x3f8] sm:$0xff]
        %v9481 = vld [vmem:[%s773 + $0xe] sm:$0x3]
        %v9483 = vperm.slane %v9481, 0
        %v9484 = vperm.slane %v9481, 1
        %v9503 = vunpack.c.l.b16 %v9465
        %v9504 = vunpack.c.h.b16 %v9465
        %v9505 = vunpack.c.l.b16 %v9466
        %v9506 = vunpack.c.h.b16 %v9466
        %v9507 = vunpack.c.l.b16 %v9467
        %v9508 = vunpack.c.h.b16 %v9467
        %v9509 = vunpack.c.l.b16 %v9468
        %v9510 = vunpack.c.h.b16 %v9468
        %v9511 = vunpack.c.l.b16 %v9469
        %v9512 = vunpack.c.h.b16 %v9469
        %v9513 = vunpack.c.l.b16 %v9470
        %v9514 = vunpack.c.h.b16 %v9470
        %v9515 = vunpack.c.l.b16 %v9471
        %v9516 = vunpack.c.h.b16 %v9471
        %v9517 = vunpack.c.l.b16 %v9472
        %v9518 = vunpack.c.h.b16 %v9472
        %v9519 = vunpack.c.l.b16 %v9473
        %v9520 = vunpack.c.h.b16 %v9473
        %v9521 = vunpack.c.l.b16 %v9474
        %v9522 = vunpack.c.h.b16 %v9474
        %v9523 = vunpack.c.l.b16 %v9475
        %v9524 = vunpack.c.h.b16 %v9475
        %v9525 = vunpack.c.l.b16 %v9476
        %v9526 = vunpack.c.h.b16 %v9476
        %v9527 = vunpack.c.l.b16 %v9477
        %v9528 = vunpack.c.h.b16 %v9477
        %v9529 = vunpack.c.l.b16 %v9478
        %v9530 = vunpack.c.h.b16 %v9478
        %v9531 = vunpack.c.l.b16 %v9479
        %v9532 = vunpack.c.h.b16 %v9479
        %v9533 = vunpack.c.l.b16 %v9480
        %v9534 = vunpack.c.h.b16 %v9480
        %v9535 = vpack.c.b16 %v9505, %v9503
        %v9536 = vpack.c.b16 %v9506, %v9504
        %v9537 = vpack.c.b16 %v9509, %v9507
        %v9538 = vpack.c.b16 %v9510, %v9508
        %v9539 = vpack.c.b16 %v9513, %v9511
        %v9540 = vpack.c.b16 %v9514, %v9512
        %v9541 = vpack.c.b16 %v9517, %v9515
        %v9542 = vpack.c.b16 %v9518, %v9516
        %v9543 = vpack.c.b16 %v9521, %v9519
        %v9544 = vpack.c.b16 %v9522, %v9520
        %v9545 = vpack.c.b16 %v9525, %v9523
        %v9546 = vpack.c.b16 %v9526, %v9524
        %v9547 = vpack.c.b16 %v9529, %v9527
        %v9548 = vpack.c.b16 %v9530, %v9528
        %v9549 = vpack.c.b16 %v9533, %v9531
        %v9550 = vpack.c.b16 %v9534, %v9532
        %9567 = vmatpush.bf16.msra.mxu0 %v9549
        %9568 = vmatpush.bf16.msra.mxu0 %v9547
        %9569 = vmatpush.bf16.msra.mxu0 %v9545
        %9570 = vmatpush.bf16.msra.mxu0 %v9543
        %9571 = vmatpush.bf16.msra.mxu0 %v9541
        %9572 = vmatpush.bf16.msra.mxu0 %v9539
        %9573 = vmatpush.bf16.msra.mxu0 %v9537
        %9574 = vmatpush.bf16.msra.mxu0 %v9535
        %9575 = vmatmul.bf16.gmra.mxu0 %v4515
        %v9576 = vpop.f32.mrf.mxu0
        %v9577 = vadd.f32 %v9483, %v9576
        %v9578 = vpop.f32.mrf.mxu0
        %v9579 = vadd.f32 %v9483, %v9578
        %9580 = vmatmul.bf16.gmra.mxu0 %v4516
        %v9581 = vpop.f32.mrf.mxu0
        %v9582 = vadd.f32 %v9483, %v9581
        %v9583 = vpop.f32.mrf.mxu0
        %v9584 = vadd.f32 %v9483, %v9583
        %9585 = vmatmul.bf16.gmra.mxu0 %v4517
        %v9586 = vpop.f32.mrf.mxu0
        %v9587 = vadd.f32 %v9483, %v9586
        %v9588 = vpop.f32.mrf.mxu0
        %v9589 = vadd.f32 %v9483, %v9588
        %9590 = vmatmul.bf16.gmra.mxu0 %v4518
        %v9591 = vpop.f32.mrf.mxu0
        %v9592 = vadd.f32 %v9483, %v9591
        %v9593 = vpop.f32.mrf.mxu0
        %v9594 = vadd.f32 %v9483, %v9593
        %9595 = vmatmul.bf16.gmra.mxu0 %v4519
        %v9596 = vpop.f32.mrf.mxu0
        %v9597 = vadd.f32 %v9483, %v9596
        %v9598 = vpop.f32.mrf.mxu0
        %v9599 = vadd.f32 %v9483, %v9598
        %9600 = vmatmul.bf16.gmra.mxu0 %v4520
        %v9601 = vpop.f32.mrf.mxu0
        %v9602 = vadd.f32 %v9483, %v9601
        %v9603 = vpop.f32.mrf.mxu0
        %v9604 = vadd.f32 %v9483, %v9603
        %9605 = vmatmul.bf16.gmra.mxu0 %v4521
        %v9606 = vpop.f32.mrf.mxu0
        %v9607 = vadd.f32 %v9483, %v9606
        %v9608 = vpop.f32.mrf.mxu0
        %v9609 = vadd.f32 %v9483, %v9608
        %9610 = vmatmul.bf16.gmra.mxu0 %v4522
        %v9611 = vpop.f32.mrf.mxu0
        %v9612 = vadd.f32 %v9483, %v9611
        %v9613 = vpop.f32.mrf.mxu0
        %v9614 = vadd.f32 %v9483, %v9613
        %9615 = vmatmul.bf16.gmra.mxu0 %v4523
        %v9616 = vpop.f32.mrf.mxu0
        %v9617 = vadd.f32 %v9483, %v9616
        %v9618 = vpop.f32.mrf.mxu0
        %v9619 = vadd.f32 %v9483, %v9618
        %9620 = vmatmul.bf16.gmra.mxu0 %v4524
        %v9621 = vpop.f32.mrf.mxu0
        %v9622 = vadd.f32 %v9483, %v9621
        %v9623 = vpop.f32.mrf.mxu0
        %v9624 = vadd.f32 %v9483, %v9623
        %9625 = vmatmul.bf16.gmra.mxu0 %v4525
        %v9626 = vpop.f32.mrf.mxu0
        %v9627 = vadd.f32 %v9483, %v9626
        %v9628 = vpop.f32.mrf.mxu0
        %v9629 = vadd.f32 %v9483, %v9628
        %9630 = vmatmul.bf16.gmra.mxu0 %v4526
        %v9631 = vpop.f32.mrf.mxu0
        %v9632 = vadd.f32 %v9483, %v9631
        %v9633 = vpop.f32.mrf.mxu0
        %v9634 = vadd.f32 %v9483, %v9633
        %9635 = vmatmul.bf16.gmra.mxu0 %v4527
        %v9636 = vpop.f32.mrf.mxu0
        %v9637 = vadd.f32 %v9483, %v9636
        %v9638 = vpop.f32.mrf.mxu0
        %v9639 = vadd.f32 %v9483, %v9638
        %9640 = vmatmul.bf16.gmra.mxu0 %v4528
        %v9641 = vpop.f32.mrf.mxu0
        %v9642 = vadd.f32 %v9483, %v9641
        %v9643 = vpop.f32.mrf.mxu0
        %v9644 = vadd.f32 %v9483, %v9643
        %9645 = vmatmul.bf16.gmra.mxu0 %v4529
        %v9646 = vpop.f32.mrf.mxu0
        %v9647 = vadd.f32 %v9483, %v9646
        %v9648 = vpop.f32.mrf.mxu0
        %v9649 = vadd.f32 %v9483, %v9648
        %9650 = vmatmul.bf16.gmra.mxu0 %v4530
        %v9651 = vpop.f32.mrf.mxu0
        %v9652 = vadd.f32 %v9483, %v9651
        %v9653 = vpop.f32.mrf.mxu0
        %v9654 = vadd.f32 %v9483, %v9653
        %9655 = vdwg.mxu0
        %9656 = vmatpush.bf16.msra.mxu0 %v9550
        %9657 = vmatpush.bf16.msra.mxu0 %v9548
        %9658 = vmatpush.bf16.msra.mxu0 %v9546
        %9659 = vmatpush.bf16.msra.mxu0 %v9544
        %9660 = vmatpush.bf16.msra.mxu0 %v9542
        %9661 = vmatpush.bf16.msra.mxu0 %v9540
        %9662 = vmatpush.bf16.msra.mxu0 %v9538
        %9663 = vmatpush.bf16.msra.mxu0 %v9536
        %9664 = vmatmul.bf16.gmra.mxu0 %v4515
        %v9665 = vpop.f32.mrf.mxu0
        %v9666 = vadd.f32 %v9484, %v9665
        %v9667 = vpop.f32.mrf.mxu0
        %v9668 = vadd.f32 %v9484, %v9667
        %9669 = vmatmul.bf16.gmra.mxu0 %v4516
        %v9670 = vpop.f32.mrf.mxu0
        %v9671 = vadd.f32 %v9484, %v9670
        %v9672 = vpop.f32.mrf.mxu0
        %v9673 = vadd.f32 %v9484, %v9672
        %9674 = vmatmul.bf16.gmra.mxu0 %v4517
        %v9675 = vpop.f32.mrf.mxu0
        %v9676 = vadd.f32 %v9484, %v9675
        %v9677 = vpop.f32.mrf.mxu0
        %v9678 = vadd.f32 %v9484, %v9677
        %9679 = vmatmul.bf16.gmra.mxu0 %v4518
        %v9680 = vpop.f32.mrf.mxu0
        %v9681 = vadd.f32 %v9484, %v9680
        %v9682 = vpop.f32.mrf.mxu0
        %v9683 = vadd.f32 %v9484, %v9682
        %9684 = vmatmul.bf16.gmra.mxu0 %v4519
        %v9685 = vpop.f32.mrf.mxu0
        %v9686 = vadd.f32 %v9484, %v9685
        %v9687 = vpop.f32.mrf.mxu0
        %v9688 = vadd.f32 %v9484, %v9687
        %9689 = vmatmul.bf16.gmra.mxu0 %v4520
        %v9690 = vpop.f32.mrf.mxu0
        %v9691 = vadd.f32 %v9484, %v9690
        %v9692 = vpop.f32.mrf.mxu0
        %v9693 = vadd.f32 %v9484, %v9692
        %9694 = vmatmul.bf16.gmra.mxu0 %v4521
        %v9695 = vpop.f32.mrf.mxu0
        %v9696 = vadd.f32 %v9484, %v9695
        %v9697 = vpop.f32.mrf.mxu0
        %v9698 = vadd.f32 %v9484, %v9697
        %9699 = vmatmul.bf16.gmra.mxu0 %v4522
        %v9700 = vpop.f32.mrf.mxu0
        %v9701 = vadd.f32 %v9484, %v9700
        %v9702 = vpop.f32.mrf.mxu0
        %v9703 = vadd.f32 %v9484, %v9702
        %9704 = vmatmul.bf16.gmra.mxu0 %v4523
        %v9705 = vpop.f32.mrf.mxu0
        %v9706 = vadd.f32 %v9484, %v9705
        %v9707 = vpop.f32.mrf.mxu0
        %v9708 = vadd.f32 %v9484, %v9707
        %9709 = vmatmul.bf16.gmra.mxu0 %v4524
        %v9710 = vpop.f32.mrf.mxu0
        %v9711 = vadd.f32 %v9484, %v9710
        %v9712 = vpop.f32.mrf.mxu0
        %v9713 = vadd.f32 %v9484, %v9712
        %9714 = vmatmul.bf16.gmra.mxu0 %v4525
        %v9715 = vpop.f32.mrf.mxu0
        %v9716 = vadd.f32 %v9484, %v9715
        %v9717 = vpop.f32.mrf.mxu0
        %v9718 = vadd.f32 %v9484, %v9717
        %9719 = vmatmul.bf16.gmra.mxu0 %v4526
        %v9720 = vpop.f32.mrf.mxu0
        %v9721 = vadd.f32 %v9484, %v9720
        %v9722 = vpop.f32.mrf.mxu0
        %v9723 = vadd.f32 %v9484, %v9722
        %9724 = vmatmul.bf16.gmra.mxu0 %v4527
        %v9725 = vpop.f32.mrf.mxu0
        %v9726 = vadd.f32 %v9484, %v9725
        %v9727 = vpop.f32.mrf.mxu0
        %v9728 = vadd.f32 %v9484, %v9727
        %9729 = vmatmul.bf16.gmra.mxu0 %v4528
        %v9730 = vpop.f32.mrf.mxu0
        %v9731 = vadd.f32 %v9484, %v9730
        %v9732 = vpop.f32.mrf.mxu0
        %v9733 = vadd.f32 %v9484, %v9732
        %9734 = vmatmul.bf16.gmra.mxu0 %v4529
        %v9735 = vpop.f32.mrf.mxu0
        %v9736 = vadd.f32 %v9484, %v9735
        %v9737 = vpop.f32.mrf.mxu0
        %v9738 = vadd.f32 %v9484, %v9737
        %9739 = vmatmul.bf16.gmra.mxu0 %v4530
        %v9740 = vpop.f32.mrf.mxu0
        %v9741 = vadd.f32 %v9484, %v9740
        %v9742 = vpop.f32.mrf.mxu0
        %v9743 = vadd.f32 %v9484, %v9742
        %9744 = vdwg.mxu0
        %v9745 = vmax.f32 %v9577, 0.0
        %v9746 = vmax.f32 %v9666, 0.0
        %v9747 = vmax.f32 %v9579, 0.0
        %v9748 = vmax.f32 %v9668, 0.0
        %v9749 = vmax.f32 %v9582, 0.0
        %v9750 = vmax.f32 %v9671, 0.0
        %v9751 = vmax.f32 %v9584, 0.0
        %v9752 = vmax.f32 %v9673, 0.0
        %v9753 = vmax.f32 %v9587, 0.0
        %v9754 = vmax.f32 %v9676, 0.0
        %v9755 = vmax.f32 %v9589, 0.0
        %v9756 = vmax.f32 %v9678, 0.0
        %v9757 = vmax.f32 %v9592, 0.0
        %v9758 = vmax.f32 %v9681, 0.0
        %v9759 = vmax.f32 %v9594, 0.0
        %v9760 = vmax.f32 %v9683, 0.0
        %v9761 = vmax.f32 %v9597, 0.0
        %v9762 = vmax.f32 %v9686, 0.0
        %v9763 = vmax.f32 %v9599, 0.0
        %v9764 = vmax.f32 %v9688, 0.0
        %v9765 = vmax.f32 %v9602, 0.0
        %v9766 = vmax.f32 %v9691, 0.0
        %v9767 = vmax.f32 %v9604, 0.0
        %v9768 = vmax.f32 %v9693, 0.0
        %v9769 = vmax.f32 %v9607, 0.0
        %v9770 = vmax.f32 %v9696, 0.0
        %v9771 = vmax.f32 %v9609, 0.0
        %v9772 = vmax.f32 %v9698, 0.0
        %v9773 = vmax.f32 %v9612, 0.0
        %v9774 = vmax.f32 %v9701, 0.0
        %v9775 = vmax.f32 %v9614, 0.0
        %v9776 = vmax.f32 %v9703, 0.0
        %v9777 = vmax.f32 %v9617, 0.0
        %v9778 = vmax.f32 %v9706, 0.0
        %v9779 = vmax.f32 %v9619, 0.0
        %v9780 = vmax.f32 %v9708, 0.0
        %v9781 = vmax.f32 %v9622, 0.0
        %v9782 = vmax.f32 %v9711, 0.0
        %v9783 = vmax.f32 %v9624, 0.0
        %v9784 = vmax.f32 %v9713, 0.0
        %v9785 = vmax.f32 %v9627, 0.0
        %v9786 = vmax.f32 %v9716, 0.0
        %v9787 = vmax.f32 %v9629, 0.0
        %v9788 = vmax.f32 %v9718, 0.0
        %v9789 = vmax.f32 %v9632, 0.0
        %v9790 = vmax.f32 %v9721, 0.0
        %v9791 = vmax.f32 %v9634, 0.0
        %v9792 = vmax.f32 %v9723, 0.0
        %v9793 = vmax.f32 %v9637, 0.0
        %v9794 = vmax.f32 %v9726, 0.0
        %v9795 = vmax.f32 %v9639, 0.0
        %v9796 = vmax.f32 %v9728, 0.0
        %v9797 = vmax.f32 %v9642, 0.0
        %v9798 = vmax.f32 %v9731, 0.0
        %v9799 = vmax.f32 %v9644, 0.0
        %v9800 = vmax.f32 %v9733, 0.0
        %v9801 = vmax.f32 %v9647, 0.0
        %v9802 = vmax.f32 %v9736, 0.0
        %v9803 = vmax.f32 %v9649, 0.0
        %v9804 = vmax.f32 %v9738, 0.0
        %v9805 = vmax.f32 %v9652, 0.0
        %v9806 = vmax.f32 %v9741, 0.0
        %v9807 = vmax.f32 %v9654, 0.0
        %v9808 = vmax.f32 %v9743, 0.0
        %v9809 = vpack.c.bf16 %v9747, %v9745
        %v9810 = vpack.c.bf16 %v9748, %v9746
        %v9811 = vpack.c.bf16 %v9751, %v9749
        %v9812 = vpack.c.bf16 %v9752, %v9750
        %v9813 = vpack.c.bf16 %v9755, %v9753
        %v9814 = vpack.c.bf16 %v9756, %v9754
        %v9815 = vpack.c.bf16 %v9759, %v9757
        %v9816 = vpack.c.bf16 %v9760, %v9758
        %v9817 = vpack.c.bf16 %v9763, %v9761
        %v9818 = vpack.c.bf16 %v9764, %v9762
        %v9819 = vpack.c.bf16 %v9767, %v9765
        %v9820 = vpack.c.bf16 %v9768, %v9766
        %v9821 = vpack.c.bf16 %v9771, %v9769
        %v9822 = vpack.c.bf16 %v9772, %v9770
        %v9823 = vpack.c.bf16 %v9775, %v9773
        %v9824 = vpack.c.bf16 %v9776, %v9774
        %v9825 = vpack.c.bf16 %v9779, %v9777
        %v9826 = vpack.c.bf16 %v9780, %v9778
        %v9827 = vpack.c.bf16 %v9783, %v9781
        %v9828 = vpack.c.bf16 %v9784, %v9782
        %v9829 = vpack.c.bf16 %v9787, %v9785
        %v9830 = vpack.c.bf16 %v9788, %v9786
        %v9831 = vpack.c.bf16 %v9791, %v9789
        %v9832 = vpack.c.bf16 %v9792, %v9790
        %v9833 = vpack.c.bf16 %v9795, %v9793
        %v9834 = vpack.c.bf16 %v9796, %v9794
        %v9835 = vpack.c.bf16 %v9799, %v9797
        %v9836 = vpack.c.bf16 %v9800, %v9798
        %v9837 = vpack.c.bf16 %v9803, %v9801
        %v9838 = vpack.c.bf16 %v9804, %v9802
        %v9839 = vpack.c.bf16 %v9807, %v9805
        %v9840 = vpack.c.bf16 %v9808, %v9806
        %v9841 = vld [vmem:[%s778 + $0x380] sm:$0xf]
        %v9842 = vld [vmem:[%s778 + $0x384] sm:$0xf]
        %v9843 = vld [vmem:[%s778 + $0x388] sm:$0xf]
        %v9844 = vld [vmem:[%s778 + $0x38c] sm:$0xf]
        %v9845 = vld [vmem:[%s778 + $0x390] sm:$0xf]
        %v9846 = vld [vmem:[%s778 + $0x394] sm:$0xf]
        %v9847 = vld [vmem:[%s778 + $0x398] sm:$0xf]
        %v9848 = vld [vmem:[%s778 + $0x39c] sm:$0xf]
        %v9849 = vld [vmem:[%s778 + $0x3a0] sm:$0xf]
        %v9850 = vld [vmem:[%s778 + $0x3a4] sm:$0xf]
        %v9851 = vld [vmem:[%s778 + $0x3a8] sm:$0xf]
        %v9852 = vld [vmem:[%s778 + $0x3ac] sm:$0xf]
        %v9853 = vld [vmem:[%s778 + $0x3b0] sm:$0xf]
        %v9854 = vld [vmem:[%s778 + $0x3b4] sm:$0xf]
        %v9855 = vld [vmem:[%s778 + $0x3b8] sm:$0xf]
        %v9856 = vld [vmem:[%s778 + $0x3bc] sm:$0xf]
        %v9857 = vld [vmem:[%s778 + $0x3c0] sm:$0xf]
        %v9858 = vld [vmem:[%s778 + $0x3c4] sm:$0xf]
        %v9859 = vld [vmem:[%s778 + $0x3c8] sm:$0xf]
        %v9860 = vld [vmem:[%s778 + $0x3cc] sm:$0xf]
        %v9861 = vld [vmem:[%s778 + $0x3d0] sm:$0xf]
        %v9862 = vld [vmem:[%s778 + $0x3d4] sm:$0xf]
        %v9863 = vld [vmem:[%s778 + $0x3d8] sm:$0xf]
        %v9864 = vld [vmem:[%s778 + $0x3dc] sm:$0xf]
        %v9865 = vld [vmem:[%s778 + $0x3e0] sm:$0xf]
        %v9866 = vld [vmem:[%s778 + $0x3e4] sm:$0xf]
        %v9867 = vld [vmem:[%s778 + $0x3e8] sm:$0xf]
        %v9868 = vld [vmem:[%s778 + $0x3ec] sm:$0xf]
        %v9869 = vld [vmem:[%s778 + $0x3f0] sm:$0xf]
        %v9870 = vld [vmem:[%s778 + $0x3f4] sm:$0xf]
        %v9871 = vld [vmem:[%s778 + $0x3f8] sm:$0xf]
        %v9872 = vld [vmem:[%s778 + $0x3fc] sm:$0xf]
        %v9905 = vunpack.c.l.b16 %v9841
        %v9906 = vunpack.c.l.b16 %v9842
        %v9907 = vunpack.c.l.b16 %v9843
        %v9908 = vunpack.c.l.b16 %v9844
        %v9909 = vunpack.c.l.b16 %v9845
        %v9910 = vunpack.c.l.b16 %v9846
        %v9911 = vunpack.c.l.b16 %v9847
        %v9912 = vunpack.c.l.b16 %v9848
        %v9913 = vunpack.c.l.b16 %v9849
        %v9914 = vunpack.c.l.b16 %v9850
        %v9915 = vunpack.c.l.b16 %v9851
        %v9916 = vunpack.c.l.b16 %v9852
        %v9917 = vunpack.c.l.b16 %v9853
        %v9918 = vunpack.c.l.b16 %v9854
        %v9919 = vunpack.c.l.b16 %v9855
        %v9920 = vunpack.c.l.b16 %v9856
        %v9921 = vunpack.c.l.b16 %v9857
        %v9922 = vunpack.c.l.b16 %v9858
        %v9923 = vunpack.c.l.b16 %v9859
        %v9924 = vunpack.c.l.b16 %v9860
        %v9925 = vunpack.c.l.b16 %v9861
        %v9926 = vunpack.c.l.b16 %v9862
        %v9927 = vunpack.c.l.b16 %v9863
        %v9928 = vunpack.c.l.b16 %v9864
        %v9929 = vunpack.c.l.b16 %v9865
        %v9930 = vunpack.c.l.b16 %v9866
        %v9931 = vunpack.c.l.b16 %v9867
        %v9932 = vunpack.c.l.b16 %v9868
        %v9933 = vunpack.c.l.b16 %v9869
        %v9934 = vunpack.c.l.b16 %v9870
        %v9935 = vunpack.c.l.b16 %v9871
        %v9936 = vunpack.c.l.b16 %v9872
        %v9937 = vpack.c.b16 %v9906, %v9905
        %v9938 = vpack.c.b16 %v9908, %v9907
        %v9939 = vpack.c.b16 %v9910, %v9909
        %v9940 = vpack.c.b16 %v9912, %v9911
        %v9941 = vpack.c.b16 %v9914, %v9913
        %v9942 = vpack.c.b16 %v9916, %v9915
        %v9943 = vpack.c.b16 %v9918, %v9917
        %v9944 = vpack.c.b16 %v9920, %v9919
        %v9945 = vpack.c.b16 %v9922, %v9921
        %v9946 = vpack.c.b16 %v9924, %v9923
        %v9947 = vpack.c.b16 %v9926, %v9925
        %v9948 = vpack.c.b16 %v9928, %v9927
        %v9949 = vpack.c.b16 %v9930, %v9929
        %v9950 = vpack.c.b16 %v9932, %v9931
        %v9951 = vpack.c.b16 %v9934, %v9933
        %v9952 = vpack.c.b16 %v9936, %v9935
        %9969 = vmatpush.bf16.msra.mxu0 %v9944
        %9970 = vmatpush.bf16.msra.mxu0 %v9943
        %9971 = vmatpush.bf16.msra.mxu0 %v9942
        %9972 = vmatpush.bf16.msra.mxu0 %v9941
        %9973 = vmatpush.bf16.msra.mxu0 %v9940
        %9974 = vmatpush.bf16.msra.mxu0 %v9939
        %9975 = vmatpush.bf16.msra.mxu0 %v9938
        %9976 = vmatpush.bf16.msra.mxu0 %v9937
        %9977 = vmatmul.bf16.gmra.mxu0 %v9809
        %v9978 = vpop.f32.mrf.mxu0
        %v9979 = vadd.f32 0.0, %v9978
        %v9980 = vpop.f32.mrf.mxu0
        %v9981 = vadd.f32 0.0, %v9980
        %9982 = vmatmul.bf16.gmra.mxu0 %v9811
        %v9983 = vpop.f32.mrf.mxu0
        %v9984 = vadd.f32 0.0, %v9983
        %v9985 = vpop.f32.mrf.mxu0
        %v9986 = vadd.f32 0.0, %v9985
        %9987 = vmatmul.bf16.gmra.mxu0 %v9813
        %v9988 = vpop.f32.mrf.mxu0
        %v9989 = vadd.f32 0.0, %v9988
        %v9990 = vpop.f32.mrf.mxu0
        %v9991 = vadd.f32 0.0, %v9990
        %9992 = vmatmul.bf16.gmra.mxu0 %v9815
        %v9993 = vpop.f32.mrf.mxu0
        %v9994 = vadd.f32 0.0, %v9993
        %v9995 = vpop.f32.mrf.mxu0
        %v9996 = vadd.f32 0.0, %v9995
        %9997 = vmatmul.bf16.gmra.mxu0 %v9817
        %v9998 = vpop.f32.mrf.mxu0
        %v9999 = vadd.f32 0.0, %v9998
        %v10000 = vpop.f32.mrf.mxu0
        %v10001 = vadd.f32 0.0, %v10000
        %10002 = vmatmul.bf16.gmra.mxu0 %v9819
        %v10003 = vpop.f32.mrf.mxu0
        %v10004 = vadd.f32 0.0, %v10003
        %v10005 = vpop.f32.mrf.mxu0
        %v10006 = vadd.f32 0.0, %v10005
        %10007 = vmatmul.bf16.gmra.mxu0 %v9821
        %v10008 = vpop.f32.mrf.mxu0
        %v10009 = vadd.f32 0.0, %v10008
        %v10010 = vpop.f32.mrf.mxu0
        %v10011 = vadd.f32 0.0, %v10010
        %10012 = vmatmul.bf16.gmra.mxu0 %v9823
        %v10013 = vpop.f32.mrf.mxu0
        %v10014 = vadd.f32 0.0, %v10013
        %v10015 = vpop.f32.mrf.mxu0
        %v10016 = vadd.f32 0.0, %v10015
        %10017 = vmatmul.bf16.gmra.mxu0 %v9825
        %v10018 = vpop.f32.mrf.mxu0
        %v10019 = vadd.f32 0.0, %v10018
        %v10020 = vpop.f32.mrf.mxu0
        %v10021 = vadd.f32 0.0, %v10020
        %10022 = vmatmul.bf16.gmra.mxu0 %v9827
        %v10023 = vpop.f32.mrf.mxu0
        %v10024 = vadd.f32 0.0, %v10023
        %v10025 = vpop.f32.mrf.mxu0
        %v10026 = vadd.f32 0.0, %v10025
        %10027 = vmatmul.bf16.gmra.mxu0 %v9829
        %v10028 = vpop.f32.mrf.mxu0
        %v10029 = vadd.f32 0.0, %v10028
        %v10030 = vpop.f32.mrf.mxu0
        %v10031 = vadd.f32 0.0, %v10030
        %10032 = vmatmul.bf16.gmra.mxu0 %v9831
        %v10033 = vpop.f32.mrf.mxu0
        %v10034 = vadd.f32 0.0, %v10033
        %v10035 = vpop.f32.mrf.mxu0
        %v10036 = vadd.f32 0.0, %v10035
        %10037 = vmatmul.bf16.gmra.mxu0 %v9833
        %v10038 = vpop.f32.mrf.mxu0
        %v10039 = vadd.f32 0.0, %v10038
        %v10040 = vpop.f32.mrf.mxu0
        %v10041 = vadd.f32 0.0, %v10040
        %10042 = vmatmul.bf16.gmra.mxu0 %v9835
        %v10043 = vpop.f32.mrf.mxu0
        %v10044 = vadd.f32 0.0, %v10043
        %v10045 = vpop.f32.mrf.mxu0
        %v10046 = vadd.f32 0.0, %v10045
        %10047 = vmatmul.bf16.gmra.mxu0 %v9837
        %v10048 = vpop.f32.mrf.mxu0
        %v10049 = vadd.f32 0.0, %v10048
        %v10050 = vpop.f32.mrf.mxu0
        %v10051 = vadd.f32 0.0, %v10050
        %10052 = vmatmul.bf16.gmra.mxu0 %v9839
        %v10053 = vpop.f32.mrf.mxu0
        %v10054 = vadd.f32 0.0, %v10053
        %v10055 = vpop.f32.mrf.mxu0
        %v10056 = vadd.f32 0.0, %v10055
        %10057 = vdwg.mxu0
        %10058 = vmatpush.bf16.msra.mxu0 %v9952
        %10059 = vmatpush.bf16.msra.mxu0 %v9951
        %10060 = vmatpush.bf16.msra.mxu0 %v9950
        %10061 = vmatpush.bf16.msra.mxu0 %v9949
        %10062 = vmatpush.bf16.msra.mxu0 %v9948
        %10063 = vmatpush.bf16.msra.mxu0 %v9947
        %10064 = vmatpush.bf16.msra.mxu0 %v9946
        %10065 = vmatpush.bf16.msra.mxu0 %v9945
        %10066 = vmatmul.bf16.gmra.mxu0 %v9810
        %v10067 = vpop.f32.mrf.mxu0
        %v10068 = vadd.f32 %v9979, %v10067
        %v10069 = vpop.f32.mrf.mxu0
        %v10070 = vadd.f32 %v9981, %v10069
        %10071 = vmatmul.bf16.gmra.mxu0 %v9812
        %v10072 = vpop.f32.mrf.mxu0
        %v10073 = vadd.f32 %v9984, %v10072
        %v10074 = vpop.f32.mrf.mxu0
        %v10075 = vadd.f32 %v9986, %v10074
        %10076 = vmatmul.bf16.gmra.mxu0 %v9814
        %v10077 = vpop.f32.mrf.mxu0
        %v10078 = vadd.f32 %v9989, %v10077
        %v10079 = vpop.f32.mrf.mxu0
        %v10080 = vadd.f32 %v9991, %v10079
        %10081 = vmatmul.bf16.gmra.mxu0 %v9816
        %v10082 = vpop.f32.mrf.mxu0
        %v10083 = vadd.f32 %v9994, %v10082
        %v10084 = vpop.f32.mrf.mxu0
        %v10085 = vadd.f32 %v9996, %v10084
        %10086 = vmatmul.bf16.gmra.mxu0 %v9818
        %v10087 = vpop.f32.mrf.mxu0
        %v10088 = vadd.f32 %v9999, %v10087
        %v10089 = vpop.f32.mrf.mxu0
        %v10090 = vadd.f32 %v10001, %v10089
        %10091 = vmatmul.bf16.gmra.mxu0 %v9820
        %v10092 = vpop.f32.mrf.mxu0
        %v10093 = vadd.f32 %v10004, %v10092
        %v10094 = vpop.f32.mrf.mxu0
        %v10095 = vadd.f32 %v10006, %v10094
        %10096 = vmatmul.bf16.gmra.mxu0 %v9822
        %v10097 = vpop.f32.mrf.mxu0
        %v10098 = vadd.f32 %v10009, %v10097
        %v10099 = vpop.f32.mrf.mxu0
        %v10100 = vadd.f32 %v10011, %v10099
        %10101 = vmatmul.bf16.gmra.mxu0 %v9824
        %v10102 = vpop.f32.mrf.mxu0
        %v10103 = vadd.f32 %v10014, %v10102
        %v10104 = vpop.f32.mrf.mxu0
        %v10105 = vadd.f32 %v10016, %v10104
        %10106 = vmatmul.bf16.gmra.mxu0 %v9826
        %v10107 = vpop.f32.mrf.mxu0
        %v10108 = vadd.f32 %v10019, %v10107
        %v10109 = vpop.f32.mrf.mxu0
        %v10110 = vadd.f32 %v10021, %v10109
        %10111 = vmatmul.bf16.gmra.mxu0 %v9828
        %v10112 = vpop.f32.mrf.mxu0
        %v10113 = vadd.f32 %v10024, %v10112
        %v10114 = vpop.f32.mrf.mxu0
        %v10115 = vadd.f32 %v10026, %v10114
        %10116 = vmatmul.bf16.gmra.mxu0 %v9830
        %v10117 = vpop.f32.mrf.mxu0
        %v10118 = vadd.f32 %v10029, %v10117
        %v10119 = vpop.f32.mrf.mxu0
        %v10120 = vadd.f32 %v10031, %v10119
        %10121 = vmatmul.bf16.gmra.mxu0 %v9832
        %v10122 = vpop.f32.mrf.mxu0
        %v10123 = vadd.f32 %v10034, %v10122
        %v10124 = vpop.f32.mrf.mxu0
        %v10125 = vadd.f32 %v10036, %v10124
        %10126 = vmatmul.bf16.gmra.mxu0 %v9834
        %v10127 = vpop.f32.mrf.mxu0
        %v10128 = vadd.f32 %v10039, %v10127
        %v10129 = vpop.f32.mrf.mxu0
        %v10130 = vadd.f32 %v10041, %v10129
        %10131 = vmatmul.bf16.gmra.mxu0 %v9836
        %v10132 = vpop.f32.mrf.mxu0
        %v10133 = vadd.f32 %v10044, %v10132
        %v10134 = vpop.f32.mrf.mxu0
        %v10135 = vadd.f32 %v10046, %v10134
        %10136 = vmatmul.bf16.gmra.mxu0 %v9838
        %v10137 = vpop.f32.mrf.mxu0
        %v10138 = vadd.f32 %v10049, %v10137
        %v10139 = vpop.f32.mrf.mxu0
        %v10140 = vadd.f32 %v10051, %v10139
        %10141 = vmatmul.bf16.gmra.mxu0 %v9840
        %v10142 = vpop.f32.mrf.mxu0
        %v10143 = vadd.f32 %v10054, %v10142
        %v10144 = vpop.f32.mrf.mxu0
        %v10145 = vadd.f32 %v10056, %v10144
        %10146 = vdwg.mxu0
        %v10147 = vadd.f32 %v9433, %v10068
        %v10148 = vadd.f32 %v9434, %v10070
        %v10149 = vadd.f32 %v9435, %v10073
        %v10150 = vadd.f32 %v9436, %v10075
        %v10151 = vadd.f32 %v9437, %v10078
        %v10152 = vadd.f32 %v9438, %v10080
        %v10153 = vadd.f32 %v9439, %v10083
        %v10154 = vadd.f32 %v9440, %v10085
        %v10155 = vadd.f32 %v9441, %v10088
        %v10156 = vadd.f32 %v9442, %v10090
        %v10157 = vadd.f32 %v9443, %v10093
        %v10158 = vadd.f32 %v9444, %v10095
        %v10159 = vadd.f32 %v9445, %v10098
        %v10160 = vadd.f32 %v9446, %v10100
        %v10161 = vadd.f32 %v9447, %v10103
        %v10162 = vadd.f32 %v9448, %v10105
        %v10163 = vadd.f32 %v9449, %v10108
        %v10164 = vadd.f32 %v9450, %v10110
        %v10165 = vadd.f32 %v9451, %v10113
        %v10166 = vadd.f32 %v9452, %v10115
        %v10167 = vadd.f32 %v9453, %v10118
        %v10168 = vadd.f32 %v9454, %v10120
        %v10169 = vadd.f32 %v9455, %v10123
        %v10170 = vadd.f32 %v9456, %v10125
        %v10171 = vadd.f32 %v9457, %v10128
        %v10172 = vadd.f32 %v9458, %v10130
        %v10173 = vadd.f32 %v9459, %v10133
        %v10174 = vadd.f32 %v9460, %v10135
        %v10175 = vadd.f32 %v9461, %v10138
        %v10176 = vadd.f32 %v9462, %v10140
        %v10177 = vadd.f32 %v9463, %v10143
        %v10178 = vadd.f32 %v9464, %v10145
        %v10179 = vadd.f32 %v4483, %v10147
        %v10180 = vadd.f32 %v4484, %v10148
        %v10181 = vadd.f32 %v4485, %v10149
        %v10182 = vadd.f32 %v4486, %v10150
        %v10183 = vadd.f32 %v4487, %v10151
        %v10184 = vadd.f32 %v4488, %v10152
        %v10185 = vadd.f32 %v4489, %v10153
        %v10186 = vadd.f32 %v4490, %v10154
        %v10187 = vadd.f32 %v4491, %v10155
        %v10188 = vadd.f32 %v4492, %v10156
        %v10189 = vadd.f32 %v4493, %v10157
        %v10190 = vadd.f32 %v4494, %v10158
        %v10191 = vadd.f32 %v4495, %v10159
        %v10192 = vadd.f32 %v4496, %v10160
        %v10193 = vadd.f32 %v4497, %v10161
        %v10194 = vadd.f32 %v4498, %v10162
        %v10195 = vadd.f32 %v4499, %v10163
        %v10196 = vadd.f32 %v4500, %v10164
        %v10197 = vadd.f32 %v4501, %v10165
        %v10198 = vadd.f32 %v4502, %v10166
        %v10199 = vadd.f32 %v4503, %v10167
        %v10200 = vadd.f32 %v4504, %v10168
        %v10201 = vadd.f32 %v4505, %v10169
        %v10202 = vadd.f32 %v4506, %v10170
        %v10203 = vadd.f32 %v4507, %v10171
        %v10204 = vadd.f32 %v4508, %v10172
        %v10205 = vadd.f32 %v4509, %v10173
        %v10206 = vadd.f32 %v4510, %v10174
        %v10207 = vadd.f32 %v4511, %v10175
        %v10208 = vadd.f32 %v4512, %v10176
        %v10209 = vadd.f32 %v4513, %v10177
        %v10210 = vadd.f32 %v4514, %v10178
        %v10211 = vld [vmem:[%s781] sm:$0x1]
        %v10213 = vperm.slane %v10211, 0
        %v10215 = vadd.f32 %v10179, %v10213
        %v10216 = vadd.f32 %v10180, %v10213
        %v10217 = vadd.f32 %v10181, %v10213
        %v10218 = vadd.f32 %v10182, %v10213
        %v10219 = vadd.f32 %v10183, %v10213
        %v10220 = vadd.f32 %v10184, %v10213
        %v10221 = vadd.f32 %v10185, %v10213
        %v10222 = vadd.f32 %v10186, %v10213
        %v10223 = vadd.f32 %v10187, %v10213
        %v10224 = vadd.f32 %v10188, %v10213
        %v10225 = vadd.f32 %v10189, %v10213
        %v10226 = vadd.f32 %v10190, %v10213
        %v10227 = vadd.f32 %v10191, %v10213
        %v10228 = vadd.f32 %v10192, %v10213
        %v10229 = vadd.f32 %v10193, %v10213
        %v10230 = vadd.f32 %v10194, %v10213
        %v10231 = vadd.f32 %v10195, %v10213
        %v10232 = vadd.f32 %v10196, %v10213
        %v10233 = vadd.f32 %v10197, %v10213
        %v10234 = vadd.f32 %v10198, %v10213
        %v10235 = vadd.f32 %v10199, %v10213
        %v10236 = vadd.f32 %v10200, %v10213
        %v10237 = vadd.f32 %v10201, %v10213
        %v10238 = vadd.f32 %v10202, %v10213
        %v10239 = vadd.f32 %v10203, %v10213
        %v10240 = vadd.f32 %v10204, %v10213
        %v10241 = vadd.f32 %v10205, %v10213
        %v10242 = vadd.f32 %v10206, %v10213
        %v10243 = vadd.f32 %v10207, %v10213
        %v10244 = vadd.f32 %v10208, %v10213
        %v10245 = vadd.f32 %v10209, %v10213
        %v10246 = vadd.f32 %v10210, %v10213
        %10247 = vadd.xlane.f32.xlu0 %v10215
        %v10248 = vpop.xlane.xlu0 %10247
        %10249 = vadd.xlane.f32.xlu0 %v10216
        %v10250 = vpop.xlane.xlu0 %10249
        %10251 = vadd.xlane.f32.xlu0 %v10217
        %v10252 = vpop.xlane.xlu0 %10251
        %10253 = vadd.xlane.f32.xlu0 %v10218
        %v10254 = vpop.xlane.xlu0 %10253
        %10255 = vadd.xlane.f32.xlu0 %v10219
        %v10256 = vpop.xlane.xlu0 %10255
        %10257 = vadd.xlane.f32.xlu0 %v10220
        %v10258 = vpop.xlane.xlu0 %10257
        %10259 = vadd.xlane.f32.xlu0 %v10221
        %v10260 = vpop.xlane.xlu0 %10259
        %10261 = vadd.xlane.f32.xlu0 %v10222
        %v10262 = vpop.xlane.xlu0 %10261
        %10263 = vadd.xlane.f32.xlu0 %v10223
        %v10264 = vpop.xlane.xlu0 %10263
        %10265 = vadd.xlane.f32.xlu0 %v10224
        %v10266 = vpop.xlane.xlu0 %10265
        %10267 = vadd.xlane.f32.xlu0 %v10225
        %v10268 = vpop.xlane.xlu0 %10267
        %10269 = vadd.xlane.f32.xlu0 %v10226
        %v10270 = vpop.xlane.xlu0 %10269
        %10271 = vadd.xlane.f32.xlu0 %v10227
        %v10272 = vpop.xlane.xlu0 %10271
        %10273 = vadd.xlane.f32.xlu0 %v10228
        %v10274 = vpop.xlane.xlu0 %10273
        %10275 = vadd.xlane.f32.xlu0 %v10229
        %v10276 = vpop.xlane.xlu0 %10275
        %10277 = vadd.xlane.f32.xlu0 %v10230
        %v10278 = vpop.xlane.xlu0 %10277
        %10279 = vadd.xlane.f32.xlu0 %v10231
        %v10280 = vpop.xlane.xlu0 %10279
        %10281 = vadd.xlane.f32.xlu0 %v10232
        %v10282 = vpop.xlane.xlu0 %10281
        %10283 = vadd.xlane.f32.xlu0 %v10233
        %v10284 = vpop.xlane.xlu0 %10283
        %10285 = vadd.xlane.f32.xlu0 %v10234
        %v10286 = vpop.xlane.xlu0 %10285
        %10287 = vadd.xlane.f32.xlu0 %v10235
        %v10288 = vpop.xlane.xlu0 %10287
        %10289 = vadd.xlane.f32.xlu0 %v10236
        %v10290 = vpop.xlane.xlu0 %10289
        %10291 = vadd.xlane.f32.xlu0 %v10237
        %v10292 = vpop.xlane.xlu0 %10291
        %10293 = vadd.xlane.f32.xlu0 %v10238
        %v10294 = vpop.xlane.xlu0 %10293
        %10295 = vadd.xlane.f32.xlu0 %v10239
        %v10296 = vpop.xlane.xlu0 %10295
        %10297 = vadd.xlane.f32.xlu0 %v10240
        %v10298 = vpop.xlane.xlu0 %10297
        %10299 = vadd.xlane.f32.xlu0 %v10241
        %v10300 = vpop.xlane.xlu0 %10299
        %10301 = vadd.xlane.f32.xlu0 %v10242
        %v10302 = vpop.xlane.xlu0 %10301
        %10303 = vadd.xlane.f32.xlu0 %v10243
        %v10304 = vpop.xlane.xlu0 %10303
        %10305 = vadd.xlane.f32.xlu0 %v10244
        %v10306 = vpop.xlane.xlu0 %10305
        %10307 = vadd.xlane.f32.xlu0 %v10245
        %v10308 = vpop.xlane.xlu0 %10307
        %10309 = vadd.xlane.f32.xlu0 %v10246
        %v10310 = vpop.xlane.xlu0 %10309
        %v10311 = vmul.f32 %v10248, %v3802
        %v10312 = vmul.f32 %v10250, %v3802
        %v10313 = vmul.f32 %v10252, %v3802
        %v10314 = vmul.f32 %v10254, %v3802
        %v10315 = vmul.f32 %v10256, %v3802
        %v10316 = vmul.f32 %v10258, %v3802
        %v10317 = vmul.f32 %v10260, %v3802
        %v10318 = vmul.f32 %v10262, %v3802
        %v10319 = vmul.f32 %v10264, %v3802
        %v10320 = vmul.f32 %v10266, %v3802
        %v10321 = vmul.f32 %v10268, %v3802
        %v10322 = vmul.f32 %v10270, %v3802
        %v10323 = vmul.f32 %v10272, %v3802
        %v10324 = vmul.f32 %v10274, %v3802
        %v10325 = vmul.f32 %v10276, %v3802
        %v10326 = vmul.f32 %v10278, %v3802
        %v10327 = vmul.f32 %v10280, %v3802
        %v10328 = vmul.f32 %v10282, %v3802
        %v10329 = vmul.f32 %v10284, %v3802
        %v10330 = vmul.f32 %v10286, %v3802
        %v10331 = vmul.f32 %v10288, %v3802
        %v10332 = vmul.f32 %v10290, %v3802
        %v10333 = vmul.f32 %v10292, %v3802
        %v10334 = vmul.f32 %v10294, %v3802
        %v10335 = vmul.f32 %v10296, %v3802
        %v10336 = vmul.f32 %v10298, %v3802
        %v10337 = vmul.f32 %v10300, %v3802
        %v10338 = vmul.f32 %v10302, %v3802
        %v10339 = vmul.f32 %v10304, %v3802
        %v10340 = vmul.f32 %v10306, %v3802
        %v10341 = vmul.f32 %v10308, %v3802
        %v10342 = vmul.f32 %v10310, %v3802
        %v10343 = vsub.f32 %v10215, %v10311
        %v10344 = vsub.f32 %v10216, %v10312
        %v10345 = vsub.f32 %v10217, %v10313
        %v10346 = vsub.f32 %v10218, %v10314
        %v10347 = vsub.f32 %v10219, %v10315
        %v10348 = vsub.f32 %v10220, %v10316
        %v10349 = vsub.f32 %v10221, %v10317
        %v10350 = vsub.f32 %v10222, %v10318
        %v10351 = vsub.f32 %v10223, %v10319
        %v10352 = vsub.f32 %v10224, %v10320
        %v10353 = vsub.f32 %v10225, %v10321
        %v10354 = vsub.f32 %v10226, %v10322
        %v10355 = vsub.f32 %v10227, %v10323
        %v10356 = vsub.f32 %v10228, %v10324
        %v10357 = vsub.f32 %v10229, %v10325
        %v10358 = vsub.f32 %v10230, %v10326
        %v10359 = vsub.f32 %v10231, %v10327
        %v10360 = vsub.f32 %v10232, %v10328
        %v10361 = vsub.f32 %v10233, %v10329
        %v10362 = vsub.f32 %v10234, %v10330
        %v10363 = vsub.f32 %v10235, %v10331
        %v10364 = vsub.f32 %v10236, %v10332
        %v10365 = vsub.f32 %v10237, %v10333
        %v10366 = vsub.f32 %v10238, %v10334
        %v10367 = vsub.f32 %v10239, %v10335
        %v10368 = vsub.f32 %v10240, %v10336
        %v10369 = vsub.f32 %v10241, %v10337
        %v10370 = vsub.f32 %v10242, %v10338
        %v10371 = vsub.f32 %v10243, %v10339
        %v10372 = vsub.f32 %v10244, %v10340
        %v10373 = vsub.f32 %v10245, %v10341
        %v10374 = vsub.f32 %v10246, %v10342
        %v10375 = vmul.f32 %v10343, %v10343
        %v10376 = vmul.f32 %v10344, %v10344
        %v10377 = vmul.f32 %v10345, %v10345
        %v10378 = vmul.f32 %v10346, %v10346
        %v10379 = vmul.f32 %v10347, %v10347
        %v10380 = vmul.f32 %v10348, %v10348
        %v10381 = vmul.f32 %v10349, %v10349
        %v10382 = vmul.f32 %v10350, %v10350
        %v10383 = vmul.f32 %v10351, %v10351
        %v10384 = vmul.f32 %v10352, %v10352
        %v10385 = vmul.f32 %v10353, %v10353
        %v10386 = vmul.f32 %v10354, %v10354
        %v10387 = vmul.f32 %v10355, %v10355
        %v10388 = vmul.f32 %v10356, %v10356
        %v10389 = vmul.f32 %v10357, %v10357
        %v10390 = vmul.f32 %v10358, %v10358
        %v10391 = vmul.f32 %v10359, %v10359
        %v10392 = vmul.f32 %v10360, %v10360
        %v10393 = vmul.f32 %v10361, %v10361
        %v10394 = vmul.f32 %v10362, %v10362
        %v10395 = vmul.f32 %v10363, %v10363
        %v10396 = vmul.f32 %v10364, %v10364
        %v10397 = vmul.f32 %v10365, %v10365
        %v10398 = vmul.f32 %v10366, %v10366
        %v10399 = vmul.f32 %v10367, %v10367
        %v10400 = vmul.f32 %v10368, %v10368
        %v10401 = vmul.f32 %v10369, %v10369
        %v10402 = vmul.f32 %v10370, %v10370
        %v10403 = vmul.f32 %v10371, %v10371
        %v10404 = vmul.f32 %v10372, %v10372
        %v10405 = vmul.f32 %v10373, %v10373
        %v10406 = vmul.f32 %v10374, %v10374
        %10407 = vadd.xlane.f32.xlu0 %v10375
        %v10408 = vpop.xlane.xlu0 %10407
        %10409 = vadd.xlane.f32.xlu0 %v10376
        %v10410 = vpop.xlane.xlu0 %10409
        %10411 = vadd.xlane.f32.xlu0 %v10377
        %v10412 = vpop.xlane.xlu0 %10411
        %10413 = vadd.xlane.f32.xlu0 %v10378
        %v10414 = vpop.xlane.xlu0 %10413
        %10415 = vadd.xlane.f32.xlu0 %v10379
        %v10416 = vpop.xlane.xlu0 %10415
        %10417 = vadd.xlane.f32.xlu0 %v10380
        %v10418 = vpop.xlane.xlu0 %10417
        %10419 = vadd.xlane.f32.xlu0 %v10381
        %v10420 = vpop.xlane.xlu0 %10419
        %10421 = vadd.xlane.f32.xlu0 %v10382
        %v10422 = vpop.xlane.xlu0 %10421
        %10423 = vadd.xlane.f32.xlu0 %v10383
        %v10424 = vpop.xlane.xlu0 %10423
        %10425 = vadd.xlane.f32.xlu0 %v10384
        %v10426 = vpop.xlane.xlu0 %10425
        %10427 = vadd.xlane.f32.xlu0 %v10385
        %v10428 = vpop.xlane.xlu0 %10427
        %10429 = vadd.xlane.f32.xlu0 %v10386
        %v10430 = vpop.xlane.xlu0 %10429
        %10431 = vadd.xlane.f32.xlu0 %v10387
        %v10432 = vpop.xlane.xlu0 %10431
        %10433 = vadd.xlane.f32.xlu0 %v10388
        %v10434 = vpop.xlane.xlu0 %10433
        %10435 = vadd.xlane.f32.xlu0 %v10389
        %v10436 = vpop.xlane.xlu0 %10435
        %10437 = vadd.xlane.f32.xlu0 %v10390
        %v10438 = vpop.xlane.xlu0 %10437
        %10439 = vadd.xlane.f32.xlu0 %v10391
        %v10440 = vpop.xlane.xlu0 %10439
        %10441 = vadd.xlane.f32.xlu0 %v10392
        %v10442 = vpop.xlane.xlu0 %10441
        %10443 = vadd.xlane.f32.xlu0 %v10393
        %v10444 = vpop.xlane.xlu0 %10443
        %10445 = vadd.xlane.f32.xlu0 %v10394
        %v10446 = vpop.xlane.xlu0 %10445
        %10447 = vadd.xlane.f32.xlu0 %v10395
        %v10448 = vpop.xlane.xlu0 %10447
        %10449 = vadd.xlane.f32.xlu0 %v10396
        %v10450 = vpop.xlane.xlu0 %10449
        %10451 = vadd.xlane.f32.xlu0 %v10397
        %v10452 = vpop.xlane.xlu0 %10451
        %10453 = vadd.xlane.f32.xlu0 %v10398
        %v10454 = vpop.xlane.xlu0 %10453
        %10455 = vadd.xlane.f32.xlu0 %v10399
        %v10456 = vpop.xlane.xlu0 %10455
        %10457 = vadd.xlane.f32.xlu0 %v10400
        %v10458 = vpop.xlane.xlu0 %10457
        %10459 = vadd.xlane.f32.xlu0 %v10401
        %v10460 = vpop.xlane.xlu0 %10459
        %10461 = vadd.xlane.f32.xlu0 %v10402
        %v10462 = vpop.xlane.xlu0 %10461
        %10463 = vadd.xlane.f32.xlu0 %v10403
        %v10464 = vpop.xlane.xlu0 %10463
        %10465 = vadd.xlane.f32.xlu0 %v10404
        %v10466 = vpop.xlane.xlu0 %10465
        %10467 = vadd.xlane.f32.xlu0 %v10405
        %v10468 = vpop.xlane.xlu0 %10467
        %10469 = vadd.xlane.f32.xlu0 %v10406
        %v10470 = vpop.xlane.xlu0 %10469
        %v10471 = vmul.f32 %v10408, %v3802
        %v10472 = vmul.f32 %v10410, %v3802
        %v10473 = vmul.f32 %v10412, %v3802
        %v10474 = vmul.f32 %v10414, %v3802
        %v10475 = vmul.f32 %v10416, %v3802
        %v10476 = vmul.f32 %v10418, %v3802
        %v10477 = vmul.f32 %v10420, %v3802
        %v10478 = vmul.f32 %v10422, %v3802
        %v10479 = vmul.f32 %v10424, %v3802
        %v10480 = vmul.f32 %v10426, %v3802
        %v10481 = vmul.f32 %v10428, %v3802
        %v10482 = vmul.f32 %v10430, %v3802
        %v10483 = vmul.f32 %v10432, %v3802
        %v10484 = vmul.f32 %v10434, %v3802
        %v10485 = vmul.f32 %v10436, %v3802
        %v10486 = vmul.f32 %v10438, %v3802
        %v10487 = vmul.f32 %v10440, %v3802
        %v10488 = vmul.f32 %v10442, %v3802
        %v10489 = vmul.f32 %v10444, %v3802
        %v10490 = vmul.f32 %v10446, %v3802
        %v10491 = vmul.f32 %v10448, %v3802
        %v10492 = vmul.f32 %v10450, %v3802
        %v10493 = vmul.f32 %v10452, %v3802
        %v10494 = vmul.f32 %v10454, %v3802
        %v10495 = vmul.f32 %v10456, %v3802
        %v10496 = vmul.f32 %v10458, %v3802
        %v10497 = vmul.f32 %v10460, %v3802
        %v10498 = vmul.f32 %v10462, %v3802
        %v10499 = vmul.f32 %v10464, %v3802
        %v10500 = vmul.f32 %v10466, %v3802
        %v10501 = vmul.f32 %v10468, %v3802
        %v10502 = vmul.f32 %v10470, %v3802
        %v10503 = vadd.f32 %v10471, 1e-05
        %v10504 = vadd.f32 %v10472, 1e-05
        %v10505 = vadd.f32 %v10473, 1e-05
        %v10506 = vadd.f32 %v10474, 1e-05
        %v10507 = vadd.f32 %v10475, 1e-05
        %v10508 = vadd.f32 %v10476, 1e-05
        %v10509 = vadd.f32 %v10477, 1e-05
        %v10510 = vadd.f32 %v10478, 1e-05
        %v10511 = vadd.f32 %v10479, 1e-05
        %v10512 = vadd.f32 %v10480, 1e-05
        %v10513 = vadd.f32 %v10481, 1e-05
        %v10514 = vadd.f32 %v10482, 1e-05
        %v10515 = vadd.f32 %v10483, 1e-05
        %v10516 = vadd.f32 %v10484, 1e-05
        %v10517 = vadd.f32 %v10485, 1e-05
        %v10518 = vadd.f32 %v10486, 1e-05
        %v10519 = vadd.f32 %v10487, 1e-05
        %v10520 = vadd.f32 %v10488, 1e-05
        %v10521 = vadd.f32 %v10489, 1e-05
        %v10522 = vadd.f32 %v10490, 1e-05
        %v10523 = vadd.f32 %v10491, 1e-05
        %v10524 = vadd.f32 %v10492, 1e-05
        %v10525 = vadd.f32 %v10493, 1e-05
        %v10526 = vadd.f32 %v10494, 1e-05
        %v10527 = vadd.f32 %v10495, 1e-05
        %v10528 = vadd.f32 %v10496, 1e-05
        %v10529 = vadd.f32 %v10497, 1e-05
        %v10530 = vadd.f32 %v10498, 1e-05
        %v10531 = vadd.f32 %v10499, 1e-05
        %v10532 = vadd.f32 %v10500, 1e-05
        %v10533 = vadd.f32 %v10501, 1e-05
        %v10534 = vadd.f32 %v10502, 1e-05
        %v10535 = vrsqrt.pop %v10503
        %v10536 = vmul.f32 %v10535, %v10503
        %v10537 = vmul.f32 %v10536, %v10535
        %v10538 = vmul.f32 0.5, %v10537
        %v10539 = vsub.f32 1.5, %v10538
        %v10540 = vmul.f32 %v10535, %v10539
        %vm10541 = vweird.f32 %v10503
        %vm10542 = vweird.f32 %v10535
        %vm10543 = vmor %vm10541, %vm10542
        %v10544 = vsel %vm10543, %v10535, %v10540
        %v10545 = vrsqrt.pop %v10504
        %v10546 = vmul.f32 %v10545, %v10504
        %v10547 = vmul.f32 %v10546, %v10545
        %v10548 = vmul.f32 0.5, %v10547
        %v10549 = vsub.f32 1.5, %v10548
        %v10550 = vmul.f32 %v10545, %v10549
        %vm10551 = vweird.f32 %v10504
        %vm10552 = vweird.f32 %v10545
        %vm10553 = vmor %vm10551, %vm10552
        %v10554 = vsel %vm10553, %v10545, %v10550
        %v10555 = vrsqrt.pop %v10505
        %v10556 = vmul.f32 %v10555, %v10505
        %v10557 = vmul.f32 %v10556, %v10555
        %v10558 = vmul.f32 0.5, %v10557
        %v10559 = vsub.f32 1.5, %v10558
        %v10560 = vmul.f32 %v10555, %v10559
        %vm10561 = vweird.f32 %v10505
        %vm10562 = vweird.f32 %v10555
        %vm10563 = vmor %vm10561, %vm10562
        %v10564 = vsel %vm10563, %v10555, %v10560
        %v10565 = vrsqrt.pop %v10506
        %v10566 = vmul.f32 %v10565, %v10506
        %v10567 = vmul.f32 %v10566, %v10565
        %v10568 = vmul.f32 0.5, %v10567
        %v10569 = vsub.f32 1.5, %v10568
        %v10570 = vmul.f32 %v10565, %v10569
        %vm10571 = vweird.f32 %v10506
        %vm10572 = vweird.f32 %v10565
        %vm10573 = vmor %vm10571, %vm10572
        %v10574 = vsel %vm10573, %v10565, %v10570
        %v10575 = vrsqrt.pop %v10507
        %v10576 = vmul.f32 %v10575, %v10507
        %v10577 = vmul.f32 %v10576, %v10575
        %v10578 = vmul.f32 0.5, %v10577
        %v10579 = vsub.f32 1.5, %v10578
        %v10580 = vmul.f32 %v10575, %v10579
        %vm10581 = vweird.f32 %v10507
        %vm10582 = vweird.f32 %v10575
        %vm10583 = vmor %vm10581, %vm10582
        %v10584 = vsel %vm10583, %v10575, %v10580
        %v10585 = vrsqrt.pop %v10508
        %v10586 = vmul.f32 %v10585, %v10508
        %v10587 = vmul.f32 %v10586, %v10585
        %v10588 = vmul.f32 0.5, %v10587
        %v10589 = vsub.f32 1.5, %v10588
        %v10590 = vmul.f32 %v10585, %v10589
        %vm10591 = vweird.f32 %v10508
        %vm10592 = vweird.f32 %v10585
        %vm10593 = vmor %vm10591, %vm10592
        %v10594 = vsel %vm10593, %v10585, %v10590
        %v10595 = vrsqrt.pop %v10509
        %v10596 = vmul.f32 %v10595, %v10509
        %v10597 = vmul.f32 %v10596, %v10595
        %v10598 = vmul.f32 0.5, %v10597
        %v10599 = vsub.f32 1.5, %v10598
        %v10600 = vmul.f32 %v10595, %v10599
        %vm10601 = vweird.f32 %v10509
        %vm10602 = vweird.f32 %v10595
        %vm10603 = vmor %vm10601, %vm10602
        %v10604 = vsel %vm10603, %v10595, %v10600
        %v10605 = vrsqrt.pop %v10510
        %v10606 = vmul.f32 %v10605, %v10510
        %v10607 = vmul.f32 %v10606, %v10605
        %v10608 = vmul.f32 0.5, %v10607
        %v10609 = vsub.f32 1.5, %v10608
        %v10610 = vmul.f32 %v10605, %v10609
        %vm10611 = vweird.f32 %v10510
        %vm10612 = vweird.f32 %v10605
        %vm10613 = vmor %vm10611, %vm10612
        %v10614 = vsel %vm10613, %v10605, %v10610
        %v10615 = vrsqrt.pop %v10511
        %v10616 = vmul.f32 %v10615, %v10511
        %v10617 = vmul.f32 %v10616, %v10615
        %v10618 = vmul.f32 0.5, %v10617
        %v10619 = vsub.f32 1.5, %v10618
        %v10620 = vmul.f32 %v10615, %v10619
        %vm10621 = vweird.f32 %v10511
        %vm10622 = vweird.f32 %v10615
        %vm10623 = vmor %vm10621, %vm10622
        %v10624 = vsel %vm10623, %v10615, %v10620
        %v10625 = vrsqrt.pop %v10512
        %v10626 = vmul.f32 %v10625, %v10512
        %v10627 = vmul.f32 %v10626, %v10625
        %v10628 = vmul.f32 0.5, %v10627
        %v10629 = vsub.f32 1.5, %v10628
        %v10630 = vmul.f32 %v10625, %v10629
        %vm10631 = vweird.f32 %v10512
        %vm10632 = vweird.f32 %v10625
        %vm10633 = vmor %vm10631, %vm10632
        %v10634 = vsel %vm10633, %v10625, %v10630
        %v10635 = vrsqrt.pop %v10513
        %v10636 = vmul.f32 %v10635, %v10513
        %v10637 = vmul.f32 %v10636, %v10635
        %v10638 = vmul.f32 0.5, %v10637
        %v10639 = vsub.f32 1.5, %v10638
        %v10640 = vmul.f32 %v10635, %v10639
        %vm10641 = vweird.f32 %v10513
        %vm10642 = vweird.f32 %v10635
        %vm10643 = vmor %vm10641, %vm10642
        %v10644 = vsel %vm10643, %v10635, %v10640
        %v10645 = vrsqrt.pop %v10514
        %v10646 = vmul.f32 %v10645, %v10514
        %v10647 = vmul.f32 %v10646, %v10645
        %v10648 = vmul.f32 0.5, %v10647
        %v10649 = vsub.f32 1.5, %v10648
        %v10650 = vmul.f32 %v10645, %v10649
        %vm10651 = vweird.f32 %v10514
        %vm10652 = vweird.f32 %v10645
        %vm10653 = vmor %vm10651, %vm10652
        %v10654 = vsel %vm10653, %v10645, %v10650
        %v10655 = vrsqrt.pop %v10515
        %v10656 = vmul.f32 %v10655, %v10515
        %v10657 = vmul.f32 %v10656, %v10655
        %v10658 = vmul.f32 0.5, %v10657
        %v10659 = vsub.f32 1.5, %v10658
        %v10660 = vmul.f32 %v10655, %v10659
        %vm10661 = vweird.f32 %v10515
        %vm10662 = vweird.f32 %v10655
        %vm10663 = vmor %vm10661, %vm10662
        %v10664 = vsel %vm10663, %v10655, %v10660
        %v10665 = vrsqrt.pop %v10516
        %v10666 = vmul.f32 %v10665, %v10516
        %v10667 = vmul.f32 %v10666, %v10665
        %v10668 = vmul.f32 0.5, %v10667
        %v10669 = vsub.f32 1.5, %v10668
        %v10670 = vmul.f32 %v10665, %v10669
        %vm10671 = vweird.f32 %v10516
        %vm10672 = vweird.f32 %v10665
        %vm10673 = vmor %vm10671, %vm10672
        %v10674 = vsel %vm10673, %v10665, %v10670
        %v10675 = vrsqrt.pop %v10517
        %v10676 = vmul.f32 %v10675, %v10517
        %v10677 = vmul.f32 %v10676, %v10675
        %v10678 = vmul.f32 0.5, %v10677
        %v10679 = vsub.f32 1.5, %v10678
        %v10680 = vmul.f32 %v10675, %v10679
        %vm10681 = vweird.f32 %v10517
        %vm10682 = vweird.f32 %v10675
        %vm10683 = vmor %vm10681, %vm10682
        %v10684 = vsel %vm10683, %v10675, %v10680
        %v10685 = vrsqrt.pop %v10518
        %v10686 = vmul.f32 %v10685, %v10518
        %v10687 = vmul.f32 %v10686, %v10685
        %v10688 = vmul.f32 0.5, %v10687
        %v10689 = vsub.f32 1.5, %v10688
        %v10690 = vmul.f32 %v10685, %v10689
        %vm10691 = vweird.f32 %v10518
        %vm10692 = vweird.f32 %v10685
        %vm10693 = vmor %vm10691, %vm10692
        %v10694 = vsel %vm10693, %v10685, %v10690
        %v10695 = vrsqrt.pop %v10519
        %v10696 = vmul.f32 %v10695, %v10519
        %v10697 = vmul.f32 %v10696, %v10695
        %v10698 = vmul.f32 0.5, %v10697
        %v10699 = vsub.f32 1.5, %v10698
        %v10700 = vmul.f32 %v10695, %v10699
        %vm10701 = vweird.f32 %v10519
        %vm10702 = vweird.f32 %v10695
        %vm10703 = vmor %vm10701, %vm10702
        %v10704 = vsel %vm10703, %v10695, %v10700
        %v10705 = vrsqrt.pop %v10520
        %v10706 = vmul.f32 %v10705, %v10520
        %v10707 = vmul.f32 %v10706, %v10705
        %v10708 = vmul.f32 0.5, %v10707
        %v10709 = vsub.f32 1.5, %v10708
        %v10710 = vmul.f32 %v10705, %v10709
        %vm10711 = vweird.f32 %v10520
        %vm10712 = vweird.f32 %v10705
        %vm10713 = vmor %vm10711, %vm10712
        %v10714 = vsel %vm10713, %v10705, %v10710
        %v10715 = vrsqrt.pop %v10521
        %v10716 = vmul.f32 %v10715, %v10521
        %v10717 = vmul.f32 %v10716, %v10715
        %v10718 = vmul.f32 0.5, %v10717
        %v10719 = vsub.f32 1.5, %v10718
        %v10720 = vmul.f32 %v10715, %v10719
        %vm10721 = vweird.f32 %v10521
        %vm10722 = vweird.f32 %v10715
        %vm10723 = vmor %vm10721, %vm10722
        %v10724 = vsel %vm10723, %v10715, %v10720
        %v10725 = vrsqrt.pop %v10522
        %v10726 = vmul.f32 %v10725, %v10522
        %v10727 = vmul.f32 %v10726, %v10725
        %v10728 = vmul.f32 0.5, %v10727
        %v10729 = vsub.f32 1.5, %v10728
        %v10730 = vmul.f32 %v10725, %v10729
        %vm10731 = vweird.f32 %v10522
        %vm10732 = vweird.f32 %v10725
        %vm10733 = vmor %vm10731, %vm10732
        %v10734 = vsel %vm10733, %v10725, %v10730
        %v10735 = vrsqrt.pop %v10523
        %v10736 = vmul.f32 %v10735, %v10523
        %v10737 = vmul.f32 %v10736, %v10735
        %v10738 = vmul.f32 0.5, %v10737
        %v10739 = vsub.f32 1.5, %v10738
        %v10740 = vmul.f32 %v10735, %v10739
        %vm10741 = vweird.f32 %v10523
        %vm10742 = vweird.f32 %v10735
        %vm10743 = vmor %vm10741, %vm10742
        %v10744 = vsel %vm10743, %v10735, %v10740
        %v10745 = vrsqrt.pop %v10524
        %v10746 = vmul.f32 %v10745, %v10524
        %v10747 = vmul.f32 %v10746, %v10745
        %v10748 = vmul.f32 0.5, %v10747
        %v10749 = vsub.f32 1.5, %v10748
        %v10750 = vmul.f32 %v10745, %v10749
        %vm10751 = vweird.f32 %v10524
        %vm10752 = vweird.f32 %v10745
        %vm10753 = vmor %vm10751, %vm10752
        %v10754 = vsel %vm10753, %v10745, %v10750
        %v10755 = vrsqrt.pop %v10525
        %v10756 = vmul.f32 %v10755, %v10525
        %v10757 = vmul.f32 %v10756, %v10755
        %v10758 = vmul.f32 0.5, %v10757
        %v10759 = vsub.f32 1.5, %v10758
        %v10760 = vmul.f32 %v10755, %v10759
        %vm10761 = vweird.f32 %v10525
        %vm10762 = vweird.f32 %v10755
        %vm10763 = vmor %vm10761, %vm10762
        %v10764 = vsel %vm10763, %v10755, %v10760
        %v10765 = vrsqrt.pop %v10526
        %v10766 = vmul.f32 %v10765, %v10526
        %v10767 = vmul.f32 %v10766, %v10765
        %v10768 = vmul.f32 0.5, %v10767
        %v10769 = vsub.f32 1.5, %v10768
        %v10770 = vmul.f32 %v10765, %v10769
        %vm10771 = vweird.f32 %v10526
        %vm10772 = vweird.f32 %v10765
        %vm10773 = vmor %vm10771, %vm10772
        %v10774 = vsel %vm10773, %v10765, %v10770
        %v10775 = vrsqrt.pop %v10527
        %v10776 = vmul.f32 %v10775, %v10527
        %v10777 = vmul.f32 %v10776, %v10775
        %v10778 = vmul.f32 0.5, %v10777
        %v10779 = vsub.f32 1.5, %v10778
        %v10780 = vmul.f32 %v10775, %v10779
        %vm10781 = vweird.f32 %v10527
        %vm10782 = vweird.f32 %v10775
        %vm10783 = vmor %vm10781, %vm10782
        %v10784 = vsel %vm10783, %v10775, %v10780
        %v10785 = vrsqrt.pop %v10528
        %v10786 = vmul.f32 %v10785, %v10528
        %v10787 = vmul.f32 %v10786, %v10785
        %v10788 = vmul.f32 0.5, %v10787
        %v10789 = vsub.f32 1.5, %v10788
        %v10790 = vmul.f32 %v10785, %v10789
        %vm10791 = vweird.f32 %v10528
        %vm10792 = vweird.f32 %v10785
        %vm10793 = vmor %vm10791, %vm10792
        %v10794 = vsel %vm10793, %v10785, %v10790
        %v10795 = vrsqrt.pop %v10529
        %v10796 = vmul.f32 %v10795, %v10529
        %v10797 = vmul.f32 %v10796, %v10795
        %v10798 = vmul.f32 0.5, %v10797
        %v10799 = vsub.f32 1.5, %v10798
        %v10800 = vmul.f32 %v10795, %v10799
        %vm10801 = vweird.f32 %v10529
        %vm10802 = vweird.f32 %v10795
        %vm10803 = vmor %vm10801, %vm10802
        %v10804 = vsel %vm10803, %v10795, %v10800
        %v10805 = vrsqrt.pop %v10530
        %v10806 = vmul.f32 %v10805, %v10530
        %v10807 = vmul.f32 %v10806, %v10805
        %v10808 = vmul.f32 0.5, %v10807
        %v10809 = vsub.f32 1.5, %v10808
        %v10810 = vmul.f32 %v10805, %v10809
        %vm10811 = vweird.f32 %v10530
        %vm10812 = vweird.f32 %v10805
        %vm10813 = vmor %vm10811, %vm10812
        %v10814 = vsel %vm10813, %v10805, %v10810
        %v10815 = vrsqrt.pop %v10531
        %v10816 = vmul.f32 %v10815, %v10531
        %v10817 = vmul.f32 %v10816, %v10815
        %v10818 = vmul.f32 0.5, %v10817
        %v10819 = vsub.f32 1.5, %v10818
        %v10820 = vmul.f32 %v10815, %v10819
        %vm10821 = vweird.f32 %v10531
        %vm10822 = vweird.f32 %v10815
        %vm10823 = vmor %vm10821, %vm10822
        %v10824 = vsel %vm10823, %v10815, %v10820
        %v10825 = vrsqrt.pop %v10532
        %v10826 = vmul.f32 %v10825, %v10532
        %v10827 = vmul.f32 %v10826, %v10825
        %v10828 = vmul.f32 0.5, %v10827
        %v10829 = vsub.f32 1.5, %v10828
        %v10830 = vmul.f32 %v10825, %v10829
        %vm10831 = vweird.f32 %v10532
        %vm10832 = vweird.f32 %v10825
        %vm10833 = vmor %vm10831, %vm10832
        %v10834 = vsel %vm10833, %v10825, %v10830
        %v10835 = vrsqrt.pop %v10533
        %v10836 = vmul.f32 %v10835, %v10533
        %v10837 = vmul.f32 %v10836, %v10835
        %v10838 = vmul.f32 0.5, %v10837
        %v10839 = vsub.f32 1.5, %v10838
        %v10840 = vmul.f32 %v10835, %v10839
        %vm10841 = vweird.f32 %v10533
        %vm10842 = vweird.f32 %v10835
        %vm10843 = vmor %vm10841, %vm10842
        %v10844 = vsel %vm10843, %v10835, %v10840
        %v10845 = vrsqrt.pop %v10534
        %v10846 = vmul.f32 %v10845, %v10534
        %v10847 = vmul.f32 %v10846, %v10845
        %v10848 = vmul.f32 0.5, %v10847
        %v10849 = vsub.f32 1.5, %v10848
        %v10850 = vmul.f32 %v10845, %v10849
        %vm10851 = vweird.f32 %v10534
        %vm10852 = vweird.f32 %v10845
        %vm10853 = vmor %vm10851, %vm10852
        %v10854 = vsel %vm10853, %v10845, %v10850
        %v10855 = vmul.f32 %v10343, %v10544
        %v10856 = vmul.f32 %v10344, %v10554
        %v10857 = vmul.f32 %v10345, %v10564
        %v10858 = vmul.f32 %v10346, %v10574
        %v10859 = vmul.f32 %v10347, %v10584
        %v10860 = vmul.f32 %v10348, %v10594
        %v10861 = vmul.f32 %v10349, %v10604
        %v10862 = vmul.f32 %v10350, %v10614
        %v10863 = vmul.f32 %v10351, %v10624
        %v10864 = vmul.f32 %v10352, %v10634
        %v10865 = vmul.f32 %v10353, %v10644
        %v10866 = vmul.f32 %v10354, %v10654
        %v10867 = vmul.f32 %v10355, %v10664
        %v10868 = vmul.f32 %v10356, %v10674
        %v10869 = vmul.f32 %v10357, %v10684
        %v10870 = vmul.f32 %v10358, %v10694
        %v10871 = vmul.f32 %v10359, %v10704
        %v10872 = vmul.f32 %v10360, %v10714
        %v10873 = vmul.f32 %v10361, %v10724
        %v10874 = vmul.f32 %v10362, %v10734
        %v10875 = vmul.f32 %v10363, %v10744
        %v10876 = vmul.f32 %v10364, %v10754
        %v10877 = vmul.f32 %v10365, %v10764
        %v10878 = vmul.f32 %v10366, %v10774
        %v10879 = vmul.f32 %v10367, %v10784
        %v10880 = vmul.f32 %v10368, %v10794
        %v10881 = vmul.f32 %v10369, %v10804
        %v10882 = vmul.f32 %v10370, %v10814
        %v10883 = vmul.f32 %v10371, %v10824
        %v10884 = vmul.f32 %v10372, %v10834
        %v10885 = vmul.f32 %v10373, %v10844
        %v10886 = vmul.f32 %v10374, %v10854
        %v10887 = vld [vmem:[%s790] sm:$0x1]
        %v10889 = vperm.slane %v10887, 0
        %v10891 = vmul.f32 %v10855, %v10889
        %v10892 = vmul.f32 %v10856, %v10889
        %v10893 = vmul.f32 %v10857, %v10889
        %v10894 = vmul.f32 %v10858, %v10889
        %v10895 = vmul.f32 %v10859, %v10889
        %v10896 = vmul.f32 %v10860, %v10889
        %v10897 = vmul.f32 %v10861, %v10889
        %v10898 = vmul.f32 %v10862, %v10889
        %v10899 = vmul.f32 %v10863, %v10889
        %v10900 = vmul.f32 %v10864, %v10889
        %v10901 = vmul.f32 %v10865, %v10889
        %v10902 = vmul.f32 %v10866, %v10889
        %v10903 = vmul.f32 %v10867, %v10889
        %v10904 = vmul.f32 %v10868, %v10889
        %v10905 = vmul.f32 %v10869, %v10889
        %v10906 = vmul.f32 %v10870, %v10889
        %v10907 = vmul.f32 %v10871, %v10889
        %v10908 = vmul.f32 %v10872, %v10889
        %v10909 = vmul.f32 %v10873, %v10889
        %v10910 = vmul.f32 %v10874, %v10889
        %v10911 = vmul.f32 %v10875, %v10889
        %v10912 = vmul.f32 %v10876, %v10889
        %v10913 = vmul.f32 %v10877, %v10889
        %v10914 = vmul.f32 %v10878, %v10889
        %v10915 = vmul.f32 %v10879, %v10889
        %v10916 = vmul.f32 %v10880, %v10889
        %v10917 = vmul.f32 %v10881, %v10889
        %v10918 = vmul.f32 %v10882, %v10889
        %v10919 = vmul.f32 %v10883, %v10889
        %v10920 = vmul.f32 %v10884, %v10889
        %v10921 = vmul.f32 %v10885, %v10889
        %v10922 = vmul.f32 %v10886, %v10889
        %v10923 = vld [vmem:[%s793] sm:$0x1]
        %v10925 = vperm.slane %v10923, 0
        %v10927 = vadd.f32 %v10891, %v10925
        %v10928 = vadd.f32 %v10892, %v10925
        %v10929 = vadd.f32 %v10893, %v10925
        %v10930 = vadd.f32 %v10894, %v10925
        %v10931 = vadd.f32 %v10895, %v10925
        %v10932 = vadd.f32 %v10896, %v10925
        %v10933 = vadd.f32 %v10897, %v10925
        %v10934 = vadd.f32 %v10898, %v10925
        %v10935 = vadd.f32 %v10899, %v10925
        %v10936 = vadd.f32 %v10900, %v10925
        %v10937 = vadd.f32 %v10901, %v10925
        %v10938 = vadd.f32 %v10902, %v10925
        %v10939 = vadd.f32 %v10903, %v10925
        %v10940 = vadd.f32 %v10904, %v10925
        %v10941 = vadd.f32 %v10905, %v10925
        %v10942 = vadd.f32 %v10906, %v10925
        %v10943 = vadd.f32 %v10907, %v10925
        %v10944 = vadd.f32 %v10908, %v10925
        %v10945 = vadd.f32 %v10909, %v10925
        %v10946 = vadd.f32 %v10910, %v10925
        %v10947 = vadd.f32 %v10911, %v10925
        %v10948 = vadd.f32 %v10912, %v10925
        %v10949 = vadd.f32 %v10913, %v10925
        %v10950 = vadd.f32 %v10914, %v10925
        %v10951 = vadd.f32 %v10915, %v10925
        %v10952 = vadd.f32 %v10916, %v10925
        %v10953 = vadd.f32 %v10917, %v10925
        %v10954 = vadd.f32 %v10918, %v10925
        %v10955 = vadd.f32 %v10919, %v10925
        %v10956 = vadd.f32 %v10920, %v10925
        %v10957 = vadd.f32 %v10921, %v10925
        %v10958 = vadd.f32 %v10922, %v10925
        %10959 = vst [vmem:[#allocation2] sm:$0xff] %v10927
        %10960 = vst [vmem:[#allocation2 + $0x8] sm:$0xff] %v10928
        %10961 = vst [vmem:[#allocation2 + $0x10] sm:$0xff] %v10929
        %10962 = vst [vmem:[#allocation2 + $0x18] sm:$0xff] %v10930
        %10963 = vst [vmem:[#allocation2 + $0x20] sm:$0xff] %v10931
        %10964 = vst [vmem:[#allocation2 + $0x28] sm:$0xff] %v10932
        %10965 = vst [vmem:[#allocation2 + $0x30] sm:$0xff] %v10933
        %10966 = vst [vmem:[#allocation2 + $0x38] sm:$0xff] %v10934
        %10967 = vst [vmem:[#allocation2 + $0x40] sm:$0xff] %v10935
        %10968 = vst [vmem:[#allocation2 + $0x48] sm:$0xff] %v10936
        %10969 = vst [vmem:[#allocation2 + $0x50] sm:$0xff] %v10937
        %10970 = vst [vmem:[#allocation2 + $0x58] sm:$0xff] %v10938
        %10971 = vst [vmem:[#allocation2 + $0x60] sm:$0xff] %v10939
        %10972 = vst [vmem:[#allocation2 + $0x68] sm:$0xff] %v10940
        %10973 = vst [vmem:[#allocation2 + $0x70] sm:$0xff] %v10941
        %10974 = vst [vmem:[#allocation2 + $0x78] sm:$0xff] %v10942
        %10975 = vst [vmem:[#allocation2 + $0x80] sm:$0xff] %v10943
        %10976 = vst [vmem:[#allocation2 + $0x88] sm:$0xff] %v10944
        %10977 = vst [vmem:[#allocation2 + $0x90] sm:$0xff] %v10945
        %10978 = vst [vmem:[#allocation2 + $0x98] sm:$0xff] %v10946
        %10979 = vst [vmem:[#allocation2 + $0xa0] sm:$0xff] %v10947
        %10980 = vst [vmem:[#allocation2 + $0xa8] sm:$0xff] %v10948
        %10981 = vst [vmem:[#allocation2 + $0xb0] sm:$0xff] %v10949
        %10982 = vst [vmem:[#allocation2 + $0xb8] sm:$0xff] %v10950
        %10983 = vst [vmem:[#allocation2 + $0xc0] sm:$0xff] %v10951
        %10984 = vst [vmem:[#allocation2 + $0xc8] sm:$0xff] %v10952
        %10985 = vst [vmem:[#allocation2 + $0xd0] sm:$0xff] %v10953
        %10986 = vst [vmem:[#allocation2 + $0xd8] sm:$0xff] %v10954
        %10987 = vst [vmem:[#allocation2 + $0xe0] sm:$0xff] %v10955
        %10988 = vst [vmem:[#allocation2 + $0xe8] sm:$0xff] %v10956
        %10989 = vst [vmem:[#allocation2 + $0xf0] sm:$0xff] %v10957
        %10990 = vst [vmem:[#allocation2 + $0xf8] sm:$0xff] %v10958
        %p10991 = scmp.eq.s32.totalorder %s32, 1
        // Predicated region
        $region105: #{forward.1} parent=99 // pred_check
          %p10992 = pneg %p10991
        $region106: #{forward.1} parent=99 // pred_check_branch
          %10994 = sbr.rel (%p10992) target = $region108
        $region107: #{forward.1} parent=99 // pred_region
          %v10995 = vld [vmem:[#allocation2] sm:$0xff]
          %v10996 = vld [vmem:[#allocation2 + $0x8] sm:$0xff]
          %v10997 = vld [vmem:[#allocation2 + $0x10] sm:$0xff]
          %v10998 = vld [vmem:[#allocation2 + $0x18] sm:$0xff]
          %v10999 = vld [vmem:[#allocation2 + $0x20] sm:$0xff]
          %v11000 = vld [vmem:[#allocation2 + $0x28] sm:$0xff]
          %v11001 = vld [vmem:[#allocation2 + $0x30] sm:$0xff]
          %v11002 = vld [vmem:[#allocation2 + $0x38] sm:$0xff]
          %v11003 = vld [vmem:[#allocation2 + $0x40] sm:$0xff]
          %v11004 = vld [vmem:[#allocation2 + $0x48] sm:$0xff]
          %v11005 = vld [vmem:[#allocation2 + $0x50] sm:$0xff]
          %v11006 = vld [vmem:[#allocation2 + $0x58] sm:$0xff]
          %v11007 = vld [vmem:[#allocation2 + $0x60] sm:$0xff]
          %v11008 = vld [vmem:[#allocation2 + $0x68] sm:$0xff]
          %v11009 = vld [vmem:[#allocation2 + $0x70] sm:$0xff]
          %v11010 = vld [vmem:[#allocation2 + $0x78] sm:$0xff]
          %v11011 = vld [vmem:[#allocation2 + $0x80] sm:$0xff]
          %v11012 = vld [vmem:[#allocation2 + $0x88] sm:$0xff]
          %v11013 = vld [vmem:[#allocation2 + $0x90] sm:$0xff]
          %v11014 = vld [vmem:[#allocation2 + $0x98] sm:$0xff]
          %v11015 = vld [vmem:[#allocation2 + $0xa0] sm:$0xff]
          %v11016 = vld [vmem:[#allocation2 + $0xa8] sm:$0xff]
          %v11017 = vld [vmem:[#allocation2 + $0xb0] sm:$0xff]
          %v11018 = vld [vmem:[#allocation2 + $0xb8] sm:$0xff]
          %v11019 = vld [vmem:[#allocation2 + $0xc0] sm:$0xff]
          %v11020 = vld [vmem:[#allocation2 + $0xc8] sm:$0xff]
          %v11021 = vld [vmem:[#allocation2 + $0xd0] sm:$0xff]
          %v11022 = vld [vmem:[#allocation2 + $0xd8] sm:$0xff]
          %v11023 = vld [vmem:[#allocation2 + $0xe0] sm:$0xff]
          %v11024 = vld [vmem:[#allocation2 + $0xe8] sm:$0xff]
          %v11025 = vld [vmem:[#allocation2 + $0xf0] sm:$0xff]
          %v11026 = vld [vmem:[#allocation2 + $0xf8] sm:$0xff]
          %v11027 = vadd.f32 %v10995, %v10996
          %v11028 = vadd.f32 %v11027, %v10997
          %v11029 = vadd.f32 %v11028, %v10998
          %v11030 = vadd.f32 %v11029, %v10999
          %v11031 = vadd.f32 %v11030, %v11000
          %v11032 = vadd.f32 %v11031, %v11001
          %v11033 = vadd.f32 %v11032, %v11002
          %v11034 = vadd.f32 %v11033, %v11003
          %v11035 = vadd.f32 %v11034, %v11004
          %v11036 = vadd.f32 %v11035, %v11005
          %v11037 = vadd.f32 %v11036, %v11006
          %v11038 = vadd.f32 %v11037, %v11007
          %v11039 = vadd.f32 %v11038, %v11008
          %v11040 = vadd.f32 %v11039, %v11009
          %v11041 = vadd.f32 %v11040, %v11010
          %v11042 = vrot.slane %v11041, 4
          %v11043 = vadd.f32 %v11041, %v11042
          %v11044 = vrot.slane %v11043, 2
          %v11045 = vadd.f32 %v11043, %v11044
          %v11046 = vrot.slane %v11045, 1
          %v11047 = vadd.f32 %v11045, %v11046
          %v11048 = vmul.f32 %v11047, 0.0078125
          %v11049 = vadd.f32 %v11011, %v11012
          %v11050 = vadd.f32 %v11049, %v11013
          %v11051 = vadd.f32 %v11050, %v11014
          %v11052 = vadd.f32 %v11051, %v11015
          %v11053 = vadd.f32 %v11052, %v11016
          %v11054 = vadd.f32 %v11053, %v11017
          %v11055 = vadd.f32 %v11054, %v11018
          %v11056 = vadd.f32 %v11055, %v11019
          %v11057 = vadd.f32 %v11056, %v11020
          %v11058 = vadd.f32 %v11057, %v11021
          %v11059 = vadd.f32 %v11058, %v11022
          %v11060 = vadd.f32 %v11059, %v11023
          %v11061 = vadd.f32 %v11060, %v11024
          %v11062 = vadd.f32 %v11061, %v11025
          %v11063 = vadd.f32 %v11062, %v11026
          %v11064 = vrot.slane %v11063, 4
          %v11065 = vadd.f32 %v11063, %v11064
          %v11066 = vrot.slane %v11065, 2
          %v11067 = vadd.f32 %v11065, %v11066
          %v11068 = vrot.slane %v11067, 1
          %v11069 = vadd.f32 %v11067, %v11068
          %v11070 = vmul.f32 %v11069, 0.0078125
          %vm11071 = vcmask 1040384
          %v11072 = vsel %vm11071, %v11048, %v11070
          %v11073 = vld [vmem:[%s6] sm:$0xff]
          %v11074 = vld [vmem:[%s6 + $0x8] sm:$0xff]
          %v11075 = vld [vmem:[%s6 + $0x10] sm:$0xff]
          %v11076 = vld [vmem:[%s6 + $0x18] sm:$0xff]
          %v11077 = vld [vmem:[%s6 + $0x20] sm:$0xff]
          %v11078 = vld [vmem:[%s6 + $0x28] sm:$0xff]
          %v11079 = vld [vmem:[%s6 + $0x30] sm:$0xff]
          %v11080 = vld [vmem:[%s6 + $0x38] sm:$0xff]
          %v11081 = vld [vmem:[%s6 + $0x40] sm:$0xff]
          %v11082 = vld [vmem:[%s6 + $0x48] sm:$0xff]
          %v11083 = vld [vmem:[%s6 + $0x50] sm:$0xff]
          %v11084 = vld [vmem:[%s6 + $0x58] sm:$0xff]
          %v11085 = vld [vmem:[%s6 + $0x60] sm:$0xff]
          %v11086 = vld [vmem:[%s6 + $0x68] sm:$0xff]
          %v11087 = vld [vmem:[%s6 + $0x70] sm:$0xff]
          %v11088 = vld [vmem:[%s6 + $0x78] sm:$0xff]
          %v11089 = vld [vmem:[%s7] sm:$0x1]
          %v11091 = vperm.slane %v11089, 0
          %11093 = vmatpush.msra.mxu0 %v11088
          %11094 = vmatpush.msra.mxu0 %v11087
          %11095 = vmatpush.msra.mxu0 %v11086
          %11096 = vmatpush.msra.mxu0 %v11085
          %11097 = vmatpush.msra.mxu0 %v11084
          %11098 = vmatpush.msra.mxu0 %v11083
          %11099 = vmatpush.msra.mxu0 %v11082
          %11100 = vmatpush.msra.mxu0 %v11081
          %11101 = vmatpush.msra.mxu0 %v11080
          %11102 = vmatpush.msra.mxu0 %v11079
          %11103 = vmatpush.msra.mxu0 %v11078
          %11104 = vmatpush.msra.mxu0 %v11077
          %11105 = vmatpush.msra.mxu0 %v11076
          %11106 = vmatpush.msra.mxu0 %v11075
          %11107 = vmatpush.msra.mxu0 %v11074
          %11108 = vmatpush.msra.mxu0 %v11073
          %11109 = vmatmul.f32.gmra.mxu0 %v11072
          %v11110 = vpop.f32.mrf.mxu0
          %v11111 = vadd.f32 %v11091, %v11110
          %11112 = vdwg.mxu0
          %11113 = vst [vmem:[#allocation4] sm:$0x3] %v11111
        $region108: #{forward.1} parent=99 // pred_fallthru
          _
        // Predicated region
        $region109: #{forward.1} parent=99 // pred_check
          %p11114 = pneg %p525
        $region110: #{forward.1} parent=99 // pred_check_branch
          %11116 = sbr.rel (%p11114) target = $region112
        $region111: #{forward.1} parent=99 // pred_region
          %11118 = vsyncadd [#allocation5], 0
          %s11120 = sshll.u32 [#allocation4], 4
          %s11121 = int_to_ptr.vmem [resolvable:$true] %s11120
          %s11122 = sshll.u32 %s20, 4
          %s11123 = int_to_ptr.hbm [resolvable:$true] %s11122
          %11125 = dma.vmem_to_hbm [thread:$0]  %s11121, 32, %s11123, [#allocation5]
        $region112: #{forward.1} parent=99 // pred_fallthru
          _
        // Predicated region
        $region113: #{forward.1} parent=99 // pred_check
          %p11126 = pneg %p525
        $region114: #{forward.1} parent=99 // pred_check_branch
          %11128 = sbr.rel (%p11126) target = $region116
        $region115: #{forward.1} parent=99 // pred_region
          %11130 = dma.done [#allocation5], 32
        $region116: #{forward.1} parent=99 // pred_fallthru
          _
      $region100: #{forward.1} parent=5 // pred_fallthru
        _
      %p11131 = scmp.le.s32.totalorder 2, %s27
      // Predicated region
      $region117: #{forward.1} parent=5 // pred_check
        %p11132 = pneg %p11131
      $region118: #{forward.1} parent=5 // pred_check_branch
        %11134 = sbr.rel (%p11132) target = $region120
      $region119: #{forward.1} parent=5 // pred_region
        %s11135 = ssub.s32 %s27, 2
      $region120: #{forward.1} parent=5 // pred_fallthru
        _
    $region6: #{forward.1} parent=1 // loop_footer
      %s31 = sadd.s32 1, %s27
    $region7: #{forward.1} parent=1 // loop_footer_branch
      %26 = sbr.rel target = $region3
    $region8: #{forward.1} parent=1 // loop_exit
      _
    %11136 = vsyncpa [#allocation5], 1
    %s11137 = scalar_lea.sflag [#allocation5], 1
    %11138 = vsyncpa %s11137, 1

</llo_original>
